<compile_context>
chip_gen: v5e
topology: v5e:2x2
jax: 0.10.0
libtpu: 0.0.40
codegen_flags: <defaults>
</compile_context>

<pallas_src>
import functools
import math

import jax
import jax.numpy as jnp
from jax.experimental import pallas as pl
from jax.experimental.pallas import tpu as pltpu


# ----------------------------------------------------------------------------
# Fused Pallas kernel: 2-layer bidirectional LSTM + Linear head
# ----------------------------------------------------------------------------
def _fused_bilstm_kernel(
    x_ref,                                   # (T*B, Din) bf16, time-major flat
    wih0_ref, b0_ref,                        # (Din, 8H) bf16, (1, 8H) f32
    whh0f_ref, whh0b_ref,                    # (H, 4H) bf16 each
    wih1_hbm, b1_ref,                        # (2H, 8H) bf16 in HBM, (1, 8H) f32
    whh1f_hbm, whh1b_hbm,                    # (H, 4H) bf16 each, in HBM
    wout_hbm, bout_ref,                      # (2H, OUT_PAD) bf16 HBM, (1, OUT_PAD) f32
    y_ref,                                   # (T*B, OUT_PAD) f32 output
    seq0_ref, seq1_ref,                      # (T*B, 2H) f32 layer output sequences
    gx_ref,                                  # (T*B, 8H) f32 hoisted gate projections
    wih1_vmem, whh1f_vmem, whh1b_vmem,       # bf16 VMEM landing buffers
    wout_vmem,                               # bf16 VMEM landing buffer
    dma_sem,                                 # DMA semaphores (4,)
    *, T, B, H,
):
    f32 = jnp.float32
    bf16 = jnp.bfloat16

    # Prefetch layer-1 + head weights from HBM; hidden behind layer-0 compute.
    cp_wih1 = pltpu.make_async_copy(wih1_hbm, wih1_vmem, dma_sem.at[0])
    cp_whh1f = pltpu.make_async_copy(whh1f_hbm, whh1f_vmem, dma_sem.at[1])
    cp_whh1b = pltpu.make_async_copy(whh1b_hbm, whh1b_vmem, dma_sem.at[2])
    cp_wout = pltpu.make_async_copy(wout_hbm, wout_vmem, dma_sem.at[3])
    cp_wih1.start()
    cp_whh1f.start()
    cp_whh1b.start()
    cp_wout.start()

    def run_layer(x_bf16, wih_ref, b_ref, whhf_ref, whhb_ref, out_ref):
        # (1) Hoisted input projection + bias: ONE batched GEMM covering both
        #     directions (N = 8H), completely off the serial recurrence path.
        gx_ref[...] = (
            jnp.dot(x_bf16, wih_ref[...], preferred_element_type=f32)
            + b_ref[...]
        )

        hf = jnp.zeros((B, H), f32)
        hb = jnp.zeros((B, H), f32)
        c_pack = jnp.zeros((2 * B, H), f32)

        # (2) Fully-unrolled time loop (static T).  Only h_{t-1} @ W_hh (bf16
        #     operands, f32 acc) and the gate nonlinearities remain on the
        #     dependent chain; fwd/bwd chains are independent and pipeline
        #     through the MXU.
        for s in range(T):
            rf = s * B              # forward direction processes time s
            rb = (T - 1 - s) * B    # backward direction processes time T-1-s
            # W_hh is re-read from its Ref every iteration (no 64-vreg value
            # kept live across the unrolled region -> no spill churn).
            gf = (
                jnp.dot(hf.astype(bf16), whhf_ref[...],
                        preferred_element_type=f32)
                + gx_ref[rf:rf + B, 0:4 * H]
            )
            gb = (
                jnp.dot(hb.astype(bf16), whhb_ref[...],
                        preferred_element_type=f32)
                + gx_ref[rb:rb + B, 4 * H:8 * H]
            )
            # (3) Stacked cell math: both directions share one pass of
            #     sigmoid/tanh/VPU work on a (2B, 4H) tensor.
            g = jnp.concatenate([gf, gb], axis=0)
            i = jax.nn.sigmoid(g[:, 0 * H:1 * H])
            f = jax.nn.sigmoid(g[:, 1 * H:2 * H])
            gg = jnp.tanh(g[:, 2 * H:3 * H])
            o = jax.nn.sigmoid(g[:, 3 * H:4 * H])
            c_pack = f * c_pack + i * gg
            h_pack = o * jnp.tanh(c_pack)
            hf = h_pack[:B, :]
            hb = h_pack[B:, :]
            # (4) Write straight into the two 128-lane column halves of the
            #     (T*B, 2H) sequence buffer — no post-hoc concatenate.
            out_ref[rf:rf + B, 0:H] = hf
            out_ref[rb:rb + B, H:2 * H] = hb

    # Layer 0: inputdim -> 2H (both directions fused).
    run_layer(x_ref[...], wih0_ref, b0_ref, whh0f_ref, whh0b_ref, seq0_ref)

    # TODO(synk): inter-layer dropout (p=0.1) is train-only in PyTorch;
    # eval-mode (identity) semantics are implemented here.

    # Layer 1: 2H -> 2H.  Wait on the prefetched weights (DMA overlapped with
    # layer-0 compute above).
    cp_wih1.wait()
    cp_whh1f.wait()
    cp_whh1b.wait()
    run_layer(seq0_ref[...].astype(bf16), wih1_vmem, b1_ref,
              whh1f_vmem, whh1b_vmem, seq1_ref)

    # Fused output Linear head; N padded to 128 lanes -> unmasked stores.
    cp_wout.wait()
    y_ref[...] = (
        jnp.dot(seq1_ref[...].astype(bf16), wout_vmem[...],
                preferred_element_type=f32)
        + bout_ref[...]
    ).astype(y_ref.dtype)


# ----------------------------------------------------------------------------
# Wrapper
# ----------------------------------------------------------------------------
def _pad_cols(a, n):
    pad = n - a.shape[-1]
    return a if pad == 0 else jnp.pad(a, ((0, 0), (0, pad)))


@jax.jit
def lstm_model_forward(x_btd, params):
    """Equivalent of LSTM.forward (eval mode): 2-layer bidirectional LSTM
    (hidden=H) + Linear head, fused into a single Pallas kernel.

    x_btd: (B, T, inputdim) batch-first, like PyTorch.  Returns (B, T, out).
    """
    B, T, Din = x_btd.shape
    layers = params["lstm_layers"]
    assert len(layers) == 2, "fused kernel is specialized to num_layers=2"
    H = layers[0]["fwd"][1].shape[0]
    out_size = params["w_out_t"].shape[-1]
    out_pad = ((out_size + 127) // 128) * 128

    f32 = jnp.float32
    bf16 = jnp.bfloat16

    # time-major, flattened so every GEMM sees a dense 2-D (T*B, feat) LHS.
    x2d = jnp.transpose(x_btd, (1, 0, 2)).reshape(T * B, Din).astype(bf16)

    def pack_layer(layer):
        wih_f, whh_f, b_f = layer["fwd"]
        wih_b, whh_b, b_b = layer["bwd"]
        wih = jnp.concatenate([wih_f, wih_b], axis=1).astype(bf16)   # (din, 8H)
        b = jnp.concatenate([b_f, b_b], axis=1).astype(f32)          # (1, 8H)
        return wih, b, whh_f.astype(bf16), whh_b.astype(bf16)

    wih0, b0, whh0f, whh0b = pack_layer(layers[0])
    wih1, b1, whh1f, whh1b = pack_layer(layers[1])

    wout_p = _pad_cols(params["w_out_t"].astype(f32), out_pad).astype(bf16)
    bout_p = _pad_cols(params["b_out"].astype(f32), out_pad)

    kernel = functools.partial(_fused_bilstm_kernel, T=T, B=B, H=H)

    vmem = pl.BlockSpec(memory_space=pltpu.MemorySpace.VMEM)
    hbm = pl.BlockSpec(memory_space=pl.ANY)

    y2d = pl.pallas_call(
        kernel,
        out_shape=jax.ShapeDtypeStruct((T * B, out_pad), f32),
        in_specs=[
            vmem,                # x
            vmem, vmem,          # wih0 (packed), b0 (packed)
            vmem, vmem,          # whh0f, whh0b
            hbm, vmem,           # wih1 (packed, HBM), b1 (packed)
            hbm, hbm,            # whh1f, whh1b (HBM)
            hbm, vmem,           # wout (HBM), bout
        ],
        out_specs=vmem,
        scratch_shapes=[
            pltpu.VMEM((T * B, 2 * H), f32),        # layer-0 output sequence
            pltpu.VMEM((T * B, 2 * H), f32),        # layer-1 output sequence
            pltpu.VMEM((T * B, 8 * H), f32),        # hoisted gate projections
            pltpu.VMEM((2 * H, 8 * H), bf16),       # wih1 landing buffer
            pltpu.VMEM((H, 4 * H), bf16),           # whh1f landing buffer
            pltpu.VMEM((H, 4 * H), bf16),           # whh1b landing buffer
            pltpu.VMEM((2 * H, out_pad), bf16),     # wout landing buffer
            pltpu.SemaphoreType.DMA((4,)),          # manual-DMA completion sems
        ],
    )(x2d, wih0, b0, whh0f, whh0b, wih1, b1, whh1f, whh1b, wout_p, bout_p)

    y = y2d[:, :out_size].reshape(T, B, out_size).transpose(1, 0, 2)  # (B,T,out)
    return y


# ----------------------------------------------------------------------------
# Deterministic parameter init (mirrors init_rnn: xavier weights, zero biases)
# ----------------------------------------------------------------------------
def _xavier_uniform(key, shape):
    # shape = (fan_out, fan_in) like a PyTorch weight; returned transposed.
    fan_out, fan_in = shape
    bound = math.sqrt(6.0 / (fan_in + fan_out))
    w = jax.random.uniform(key, shape, jnp.float32, -bound, bound)
    return w.T  # (fan_in, fan_out) so kernels do x @ W


def make_params(key, inputdim, hidden, num_layers, output_size):
    params = {"lstm_layers": []}
    for layer in range(num_layers):
        din = inputdim if layer == 0 else 2 * hidden
        layer_p = {}
        for dname in ("fwd", "bwd"):
            key, k1, k2 = jax.random.split(key, 3)
            w_ih_t = _xavier_uniform(k1, (4 * hidden, din))      # (din, 4H)
            w_hh_t = _xavier_uniform(k2, (4 * hidden, hidden))   # (H, 4H)
            # init_rnn zeroes both b_ih and b_hh; keep them pre-summed.
            bias = jnp.zeros((1, 4 * hidden), jnp.float32)
            layer_p[dname] = (w_ih_t, w_hh_t, bias)
        params["lstm_layers"].append(layer_p)

    # Output Linear(2H -> output_size), PyTorch-default-style uniform init.
    key, k1, k2 = jax.random.split(key, 3)
    fan_in = 2 * hidden
    bound = 1.0 / math.sqrt(fan_in)
    params["w_out_t"] = jax.random.uniform(
        k1, (fan_in, output_size), jnp.float32, -bound, bound)
    params["b_out"] = jax.random.uniform(
        k2, (1, output_size), jnp.float32, -bound, bound)
    return params


# ----------------------------------------------------------------------------
# Pure-JAX reference (mixed-precision: bf16 MXU operands, f32 accumulation,
# matching the kernel's numerics)
# ----------------------------------------------------------------------------
def _mdot(a, b):
    return jnp.dot(a.astype(jnp.bfloat16), b.astype(jnp.bfloat16),
                   preferred_element_type=jnp.float32)


def _ref_lstm_onedir(x_tbd, w_ih_t, w_hh_t, b, reverse):
    T, B, _ = x_tbd.shape
    H = w_hh_t.shape[0]
    xs = x_tbd[::-1] if reverse else x_tbd

    def step(carry, x_t):
        h, c = carry
        g = _mdot(x_t, w_ih_t) + _mdot(h, w_hh_t) + b
        i = jax.nn.sigmoid(g[:, :H])
        f = jax.nn.sigmoid(g[:, H:2 * H])
        gg = jnp.tanh(g[:, 2 * H:3 * H])
        o = jax.nn.sigmoid(g[:, 3 * H:])
        c = f * c + i * gg
        h = o * jnp.tanh(c)
        return (h, c), h

    init = (jnp.zeros((B, H), jnp.float32), jnp.zeros((B, H), jnp.float32))
    _, hs = jax.lax.scan(step, init, xs)
    return hs[::-1] if reverse else hs


def _ref_forward(x_btd, params):
    x = jnp.transpose(x_btd, (1, 0, 2)).astype(jnp.float32)
    out = x
    for layer in params["lstm_layers"]:
        hf = _ref_lstm_onedir(out, *layer["fwd"], reverse=False)
        hb = _ref_lstm_onedir(out, *layer["bwd"], reverse=True)
        out = jnp.concatenate([hf, hb], axis=-1)
    y = _mdot(out, params["w_out_t"]) + params["b_out"]
    return jnp.transpose(y, (1, 0, 2))


# ----------------------------------------------------------------------------
if __name__ == "__main__":
    B, T = 2, 8
    INPUTDIM = 16
    HIDDEN = 128          # nn.LSTM default in the module (hidden_size=128)
    NUM_LAYERS = 2
    OUTPUT_SIZE = 8

    key = jax.random.PRNGKey(0)
    key, kx = jax.random.split(key)
    x = jax.random.normal(kx, (B, T, INPUTDIM), jnp.float32)

    params = make_params(key, INPUTDIM, HIDDEN, NUM_LAYERS, OUTPUT_SIZE)

    y = jax.block_until_ready(lstm_model_forward(x, params))
    y_ref = jax.block_until_ready(_ref_forward(x, params))

    assert y.shape == (B, T, OUTPUT_SIZE)
    max_err = float(jnp.max(jnp.abs(y - y_ref)))
    assert jnp.allclose(y, y_ref, atol=5e-3, rtol=5e-3), max_err

    print("KERNEL_OK")
</pallas_src>

<mosaic_0001>
module attributes {stable_mosaic.version = 11 : i64} {
  func.func @_fused_bilstm_kernel(%arg0: memref<16x16xbf16, #tpu.memory_space<vmem>>, %arg1: memref<16x1024xbf16, #tpu.memory_space<vmem>>, %arg2: memref<1x1024xf32, #tpu.memory_space<vmem>>, %arg3: memref<128x512xbf16, #tpu.memory_space<vmem>>, %arg4: memref<128x512xbf16, #tpu.memory_space<vmem>>, %arg5: memref<256x1024xbf16, #tpu.memory_space<any>>, %arg6: memref<1x1024xf32, #tpu.memory_space<vmem>>, %arg7: memref<128x512xbf16, #tpu.memory_space<any>>, %arg8: memref<128x512xbf16, #tpu.memory_space<any>>, %arg9: memref<256x128xbf16, #tpu.memory_space<any>>, %arg10: memref<1x128xf32, #tpu.memory_space<vmem>>, %arg11: memref<16x128xf32, #tpu.memory_space<vmem>>, %arg12: memref<16x256xf32, #tpu.memory_space<vmem>>, %arg13: memref<16x256xf32, #tpu.memory_space<vmem>>, %arg14: memref<16x1024xf32, #tpu.memory_space<vmem>>, %arg15: memref<256x1024xbf16, #tpu.memory_space<vmem>>, %arg16: memref<128x512xbf16, #tpu.memory_space<vmem>>, %arg17: memref<128x512xbf16, #tpu.memory_space<vmem>>, %arg18: memref<256x128xbf16, #tpu.memory_space<vmem>>, %arg19: memref<4x!tpu.dma_semaphore, #tpu.memory_space<semaphore_mem>>) attributes {dimension_semantics = [], scalar_prefetch = 0 : i64, scratch_operands = 8 : i64, tpu.core_type = #tpu.core_type<tc>} {
    %c0_i32 = arith.constant 0 : i32
    %0 = tpu.memref_slice %arg19[%c0_i32] : memref<4x!tpu.dma_semaphore, #tpu.memory_space<semaphore_mem>> -> memref<1x!tpu.dma_semaphore, #tpu.memory_space<semaphore_mem>>
    %1 = tpu.memref_squeeze %0 : memref<1x!tpu.dma_semaphore, #tpu.memory_space<semaphore_mem>> -> memref<!tpu.dma_semaphore, #tpu.memory_space<semaphore_mem>>
    tpu.enqueue_dma source(%arg5 : memref<256x1024xbf16, #tpu.memory_space<any>>) target(%arg15 : memref<256x1024xbf16, #tpu.memory_space<vmem>>) target_semaphore(%1 : memref<!tpu.dma_semaphore, #tpu.memory_space<semaphore_mem>>)
    %c1_i32 = arith.constant 1 : i32
    %2 = tpu.memref_slice %arg19[%c1_i32] : memref<4x!tpu.dma_semaphore, #tpu.memory_space<semaphore_mem>> -> memref<1x!tpu.dma_semaphore, #tpu.memory_space<semaphore_mem>>
    %3 = tpu.memref_squeeze %2 : memref<1x!tpu.dma_semaphore, #tpu.memory_space<semaphore_mem>> -> memref<!tpu.dma_semaphore, #tpu.memory_space<semaphore_mem>>
    tpu.enqueue_dma source(%arg7 : memref<128x512xbf16, #tpu.memory_space<any>>) target(%arg16 : memref<128x512xbf16, #tpu.memory_space<vmem>>) target_semaphore(%3 : memref<!tpu.dma_semaphore, #tpu.memory_space<semaphore_mem>>)
    %c2_i32 = arith.constant 2 : i32
    %4 = tpu.memref_slice %arg19[%c2_i32] : memref<4x!tpu.dma_semaphore, #tpu.memory_space<semaphore_mem>> -> memref<1x!tpu.dma_semaphore, #tpu.memory_space<semaphore_mem>>
    %5 = tpu.memref_squeeze %4 : memref<1x!tpu.dma_semaphore, #tpu.memory_space<semaphore_mem>> -> memref<!tpu.dma_semaphore, #tpu.memory_space<semaphore_mem>>
    tpu.enqueue_dma source(%arg8 : memref<128x512xbf16, #tpu.memory_space<any>>) target(%arg17 : memref<128x512xbf16, #tpu.memory_space<vmem>>) target_semaphore(%5 : memref<!tpu.dma_semaphore, #tpu.memory_space<semaphore_mem>>)
    %c3_i32 = arith.constant 3 : i32
    %6 = tpu.memref_slice %arg19[%c3_i32] : memref<4x!tpu.dma_semaphore, #tpu.memory_space<semaphore_mem>> -> memref<1x!tpu.dma_semaphore, #tpu.memory_space<semaphore_mem>>
    %7 = tpu.memref_squeeze %6 : memref<1x!tpu.dma_semaphore, #tpu.memory_space<semaphore_mem>> -> memref<!tpu.dma_semaphore, #tpu.memory_space<semaphore_mem>>
    tpu.enqueue_dma source(%arg9 : memref<256x128xbf16, #tpu.memory_space<any>>) target(%arg18 : memref<256x128xbf16, #tpu.memory_space<vmem>>) target_semaphore(%7 : memref<!tpu.dma_semaphore, #tpu.memory_space<semaphore_mem>>)
    %c0 = arith.constant 0 : index
    %c0_0 = arith.constant 0 : index
    %8 = vector.load %arg0[%c0, %c0_0] : memref<16x16xbf16, #tpu.memory_space<vmem>>, vector<16x16xbf16>
    %c0_1 = arith.constant 0 : index
    %c0_2 = arith.constant 0 : index
    %9 = vector.load %arg1[%c0_1, %c0_2] : memref<16x1024xbf16, #tpu.memory_space<vmem>>, vector<16x1024xbf16>
    %cst = arith.constant dense<0.000000e+00> : vector<16x1024xf32>
    %10 = tpu.matmul %8, %9, %cst {dimension_numbers = #tpu.dot_dimension_numbers<[1], [0], [0], [1], [0, 0, 1, 1], [], []>} : vector<16x16xbf16>, vector<16x1024xbf16>, vector<16x1024xf32> -> vector<16x1024xf32>
    %c0_3 = arith.constant 0 : index
    %c0_4 = arith.constant 0 : index
    %11 = vector.load %arg2[%c0_3, %c0_4] : memref<1x1024xf32, #tpu.memory_space<vmem>>, vector<1x1024xf32>
    %12 = vector.broadcast %11 : vector<1x1024xf32> to vector<16x1024xf32>
    %13 = arith.addf %10, %12 : vector<16x1024xf32>
    %c0_5 = arith.constant 0 : index
    %c0_6 = arith.constant 0 : index
    %14 = vector.load %arg14[%c0_5, %c0_6] : memref<16x1024xf32, #tpu.memory_space<vmem>>, vector<16x1024xf32>
    tpu.vector_store %arg14[%c0_5, %c0_6], %13 {strides = array<i32>} : memref<16x1024xf32, #tpu.memory_space<vmem>>, vector<16x1024xf32>,
    %cst_7 = arith.constant 0.000000e+00 : f32
    %15 = vector.broadcast %cst_7 : f32 to vector<2x128xf32>
    %cst_8 = arith.constant 0.000000e+00 : f32
    %16 = vector.broadcast %cst_8 : f32 to vector<2x128xf32>
    %cst_9 = arith.constant 0.000000e+00 : f32
    %17 = vector.broadcast %cst_9 : f32 to vector<4x128xf32>
    %18 = arith.truncf %15 : vector<2x128xf32> to vector<2x128xbf16>
    %c0_10 = arith.constant 0 : index
    %c0_11 = arith.constant 0 : index
    %19 = vector.load %arg3[%c0_10, %c0_11] : memref<128x512xbf16, #tpu.memory_space<vmem>>, vector<128x512xbf16>
    %cst_12 = arith.constant dense<0.000000e+00> : vector<2x512xf32>
    %20 = tpu.matmul %18, %19, %cst_12 {dimension_numbers = #tpu.dot_dimension_numbers<[1], [0], [0], [1], [0, 0, 1, 1], [], []>} : vector<2x128xbf16>, vector<128x512xbf16>, vector<2x512xf32> -> vector<2x512xf32>
    %c0_13 = arith.constant 0 : index
    %c0_14 = arith.constant 0 : index
    %21 = vector.load %arg14[%c0_13, %c0_14] : memref<16x1024xf32, #tpu.memory_space<vmem>>, vector<2x512xf32>
    %22 = arith.addf %20, %21 : vector<2x512xf32>
    %23 = arith.truncf %16 : vector<2x128xf32> to vector<2x128xbf16>
    %c0_15 = arith.constant 0 : index
    %c0_16 = arith.constant 0 : index
    %24 = vector.load %arg4[%c0_15, %c0_16] : memref<128x512xbf16, #tpu.memory_space<vmem>>, vector<128x512xbf16>
    %cst_17 = arith.constant dense<0.000000e+00> : vector<2x512xf32>
    %25 = tpu.matmul %23, %24, %cst_17 {dimension_numbers = #tpu.dot_dimension_numbers<[1], [0], [0], [1], [0, 0, 1, 1], [], []>} : vector<2x128xbf16>, vector<128x512xbf16>, vector<2x512xf32> -> vector<2x512xf32>
    %c14 = arith.constant 14 : index
    %c512 = arith.constant 512 : index
    %26 = vector.load %arg14[%c14, %c512] : memref<16x1024xf32, #tpu.memory_space<vmem>>, vector<2x512xf32>
    %27 = arith.addf %25, %26 : vector<2x512xf32>
    %28 = tpu.concatenate %22, %27 in 0 : vector<2x512xf32>, vector<2x512xf32> -> vector<4x512xf32>
    %29 = vector.extract_strided_slice %28 {offsets = [0, 0], sizes = [4, 128], strides = [1, 1]} : vector<4x512xf32> to vector<4x128xf32>
    %30 = arith.negf %29 : vector<4x128xf32>
    %31 = math.exp %30 : vector<4x128xf32>
    %cst_18 = arith.constant 1.000000e+00 : f32
    %32 = vector.broadcast %cst_18 : f32 to vector<4x128xf32>
    %33 = arith.addf %32, %31 : vector<4x128xf32>
    %34 = arith.divf %32, %33 : vector<4x128xf32>
    %35 = vector.extract_strided_slice %28 {offsets = [0, 128], sizes = [4, 128], strides = [1, 1]} : vector<4x512xf32> to vector<4x128xf32>
    %36 = arith.negf %35 : vector<4x128xf32>
    %37 = math.exp %36 : vector<4x128xf32>
    %cst_19 = arith.constant 1.000000e+00 : f32
    %38 = vector.broadcast %cst_19 : f32 to vector<4x128xf32>
    %39 = arith.addf %38, %37 : vector<4x128xf32>
    %40 = arith.divf %38, %39 : vector<4x128xf32>
    %41 = vector.extract_strided_slice %28 {offsets = [0, 256], sizes = [4, 128], strides = [1, 1]} : vector<4x512xf32> to vector<4x128xf32>
    %42 = math.tanh %41 : vector<4x128xf32>
    %43 = vector.extract_strided_slice %28 {offsets = [0, 384], sizes = [4, 128], strides = [1, 1]} : vector<4x512xf32> to vector<4x128xf32>
    %44 = arith.negf %43 : vector<4x128xf32>
    %45 = math.exp %44 : vector<4x128xf32>
    %cst_20 = arith.constant 1.000000e+00 : f32
    %46 = vector.broadcast %cst_20 : f32 to vector<4x128xf32>
    %47 = arith.addf %46, %45 : vector<4x128xf32>
    %48 = arith.divf %46, %47 : vector<4x128xf32>
    %49 = arith.mulf %40, %17 : vector<4x128xf32>
    %50 = arith.mulf %34, %42 : vector<4x128xf32>
    %51 = arith.addf %49, %50 : vector<4x128xf32>
    %52 = math.tanh %51 : vector<4x128xf32>
    %53 = arith.mulf %48, %52 : vector<4x128xf32>
    %54 = vector.extract_strided_slice %53 {offsets = [0, 0], sizes = [2, 128], strides = [1, 1]} : vector<4x128xf32> to vector<2x128xf32>
    %55 = vector.extract_strided_slice %53 {offsets = [2, 0], sizes = [2, 128], strides = [1, 1]} : vector<4x128xf32> to vector<2x128xf32>
    %c0_21 = arith.constant 0 : index
    %c0_22 = arith.constant 0 : index
    %56 = vector.load %arg12[%c0_21, %c0_22] : memref<16x256xf32, #tpu.memory_space<vmem>>, vector<2x128xf32>
    tpu.vector_store %arg12[%c0_21, %c0_22], %54 {strides = array<i32>} : memref<16x256xf32, #tpu.memory_space<vmem>>, vector<2x128xf32>,
    %c14_23 = arith.constant 14 : index
    %c128 = arith.constant 128 : index
    %57 = vector.load %arg12[%c14_23, %c128] : memref<16x256xf32, #tpu.memory_space<vmem>>, vector<2x128xf32>
    tpu.vector_store %arg12[%c14_23, %c128], %55 {strides = array<i32>} : memref<16x256xf32, #tpu.memory_space<vmem>>, vector<2x128xf32>,
    %58 = arith.truncf %54 : vector<2x128xf32> to vector<2x128xbf16>
    %c0_24 = arith.constant 0 : index
    %c0_25 = arith.constant 0 : index
    %59 = vector.load %arg3[%c0_24, %c0_25] : memref<128x512xbf16, #tpu.memory_space<vmem>>, vector<128x512xbf16>
    %cst_26 = arith.constant dense<0.000000e+00> : vector<2x512xf32>
    %60 = tpu.matmul %58, %59, %cst_26 {dimension_numbers = #tpu.dot_dimension_numbers<[1], [0], [0], [1], [0, 0, 1, 1], [], []>} : vector<2x128xbf16>, vector<128x512xbf16>, vector<2x512xf32> -> vector<2x512xf32>
    %c2 = arith.constant 2 : index
    %c0_27 = arith.constant 0 : index
    %61 = vector.load %arg14[%c2, %c0_27] : memref<16x1024xf32, #tpu.memory_space<vmem>>, vector<2x512xf32>
    %62 = arith.addf %60, %61 : vector<2x512xf32>
    %63 = arith.truncf %55 : vector<2x128xf32> to vector<2x128xbf16>
    %c0_28 = arith.constant 0 : index
    %c0_29 = arith.constant 0 : index
    %64 = vector.load %arg4[%c0_28, %c0_29] : memref<128x512xbf16, #tpu.memory_space<vmem>>, vector<128x512xbf16>
    %cst_30 = arith.constant dense<0.000000e+00> : vector<2x512xf32>
    %65 = tpu.matmul %63, %64, %cst_30 {dimension_numbers = #tpu.dot_dimension_numbers<[1], [0], [0], [1], [0, 0, 1, 1], [], []>} : vector<2x128xbf16>, vector<128x512xbf16>, vector<2x512xf32> -> vector<2x512xf32>
    %c12 = arith.constant 12 : index
    %c512_31 = arith.constant 512 : index
    %66 = vector.load %arg14[%c12, %c512_31] : memref<16x1024xf32, #tpu.memory_space<vmem>>, vector<2x512xf32>
    %67 = arith.addf %65, %66 : vector<2x512xf32>
    %68 = tpu.concatenate %62, %67 in 0 : vector<2x512xf32>, vector<2x512xf32> -> vector<4x512xf32>
    %69 = vector.extract_strided_slice %68 {offsets = [0, 0], sizes = [4, 128], strides = [1, 1]} : vector<4x512xf32> to vector<4x128xf32>
    %70 = arith.negf %69 : vector<4x128xf32>
    %71 = math.exp %70 : vector<4x128xf32>
    %cst_32 = arith.constant 1.000000e+00 : f32
    %72 = vector.broadcast %cst_32 : f32 to vector<4x128xf32>
    %73 = arith.addf %72, %71 : vector<4x128xf32>
    %74 = arith.divf %72, %73 : vector<4x128xf32>
    %75 = vector.extract_strided_slice %68 {offsets = [0, 128], sizes = [4, 128], strides = [1, 1]} : vector<4x512xf32> to vector<4x128xf32>
    %76 = arith.negf %75 : vector<4x128xf32>
    %77 = math.exp %76 : vector<4x128xf32>
    %cst_33 = arith.constant 1.000000e+00 : f32
    %78 = vector.broadcast %cst_33 : f32 to vector<4x128xf32>
    %79 = arith.addf %78, %77 : vector<4x128xf32>
    %80 = arith.divf %78, %79 : vector<4x128xf32>
    %81 = vector.extract_strided_slice %68 {offsets = [0, 256], sizes = [4, 128], strides = [1, 1]} : vector<4x512xf32> to vector<4x128xf32>
    %82 = math.tanh %81 : vector<4x128xf32>
    %83 = vector.extract_strided_slice %68 {offsets = [0, 384], sizes = [4, 128], strides = [1, 1]} : vector<4x512xf32> to vector<4x128xf32>
    %84 = arith.negf %83 : vector<4x128xf32>
    %85 = math.exp %84 : vector<4x128xf32>
    %cst_34 = arith.constant 1.000000e+00 : f32
    %86 = vector.broadcast %cst_34 : f32 to vector<4x128xf32>
    %87 = arith.addf %86, %85 : vector<4x128xf32>
    %88 = arith.divf %86, %87 : vector<4x128xf32>
    %89 = arith.mulf %80, %51 : vector<4x128xf32>
    %90 = arith.mulf %74, %82 : vector<4x128xf32>
    %91 = arith.addf %89, %90 : vector<4x128xf32>
    %92 = math.tanh %91 : vector<4x128xf32>
    %93 = arith.mulf %88, %92 : vector<4x128xf32>
    %94 = vector.extract_strided_slice %93 {offsets = [0, 0], sizes = [2, 128], strides = [1, 1]} : vector<4x128xf32> to vector<2x128xf32>
    %95 = vector.extract_strided_slice %93 {offsets = [2, 0], sizes = [2, 128], strides = [1, 1]} : vector<4x128xf32> to vector<2x128xf32>
    %c2_35 = arith.constant 2 : index
    %c0_36 = arith.constant 0 : index
    %96 = vector.load %arg12[%c2_35, %c0_36] : memref<16x256xf32, #tpu.memory_space<vmem>>, vector<2x128xf32>
    tpu.vector_store %arg12[%c2_35, %c0_36], %94 {strides = array<i32>} : memref<16x256xf32, #tpu.memory_space<vmem>>, vector<2x128xf32>,
    %c12_37 = arith.constant 12 : index
    %c128_38 = arith.constant 128 : index
    %97 = vector.load %arg12[%c12_37, %c128_38] : memref<16x256xf32, #tpu.memory_space<vmem>>, vector<2x128xf32>
    tpu.vector_store %arg12[%c12_37, %c128_38], %95 {strides = array<i32>} : memref<16x256xf32, #tpu.memory_space<vmem>>, vector<2x128xf32>,
    %98 = arith.truncf %94 : vector<2x128xf32> to vector<2x128xbf16>
    %c0_39 = arith.constant 0 : index
    %c0_40 = arith.constant 0 : index
    %99 = vector.load %arg3[%c0_39, %c0_40] : memref<128x512xbf16, #tpu.memory_space<vmem>>, vector<128x512xbf16>
    %cst_41 = arith.constant dense<0.000000e+00> : vector<2x512xf32>
    %100 = tpu.matmul %98, %99, %cst_41 {dimension_numbers = #tpu.dot_dimension_numbers<[1], [0], [0], [1], [0, 0, 1, 1], [], []>} : vector<2x128xbf16>, vector<128x512xbf16>, vector<2x512xf32> -> vector<2x512xf32>
    %c4 = arith.constant 4 : index
    %c0_42 = arith.constant 0 : index
    %101 = vector.load %arg14[%c4, %c0_42] : memref<16x1024xf32, #tpu.memory_space<vmem>>, vector<2x512xf32>
    %102 = arith.addf %100, %101 : vector<2x512xf32>
    %103 = arith.truncf %95 : vector<2x128xf32> to vector<2x128xbf16>
    %c0_43 = arith.constant 0 : index
    %c0_44 = arith.constant 0 : index
    %104 = vector.load %arg4[%c0_43, %c0_44] : memref<128x512xbf16, #tpu.memory_space<vmem>>, vector<128x512xbf16>
    %cst_45 = arith.constant dense<0.000000e+00> : vector<2x512xf32>
    %105 = tpu.matmul %103, %104, %cst_45 {dimension_numbers = #tpu.dot_dimension_numbers<[1], [0], [0], [1], [0, 0, 1, 1], [], []>} : vector<2x128xbf16>, vector<128x512xbf16>, vector<2x512xf32> -> vector<2x512xf32>
    %c10 = arith.constant 10 : index
    %c512_46 = arith.constant 512 : index
    %106 = vector.load %arg14[%c10, %c512_46] : memref<16x1024xf32, #tpu.memory_space<vmem>>, vector<2x512xf32>
    %107 = arith.addf %105, %106 : vector<2x512xf32>
    %108 = tpu.concatenate %102, %107 in 0 : vector<2x512xf32>, vector<2x512xf32> -> vector<4x512xf32>
    %109 = vector.extract_strided_slice %108 {offsets = [0, 0], sizes = [4, 128], strides = [1, 1]} : vector<4x512xf32> to vector<4x128xf32>
    %110 = arith.negf %109 : vector<4x128xf32>
    %111 = math.exp %110 : vector<4x128xf32>
    %cst_47 = arith.constant 1.000000e+00 : f32
    %112 = vector.broadcast %cst_47 : f32 to vector<4x128xf32>
    %113 = arith.addf %112, %111 : vector<4x128xf32>
    %114 = arith.divf %112, %113 : vector<4x128xf32>
    %115 = vector.extract_strided_slice %108 {offsets = [0, 128], sizes = [4, 128], strides = [1, 1]} : vector<4x512xf32> to vector<4x128xf32>
    %116 = arith.negf %115 : vector<4x128xf32>
    %117 = math.exp %116 : vector<4x128xf32>
    %cst_48 = arith.constant 1.000000e+00 : f32
    %118 = vector.broadcast %cst_48 : f32 to vector<4x128xf32>
    %119 = arith.addf %118, %117 : vector<4x128xf32>
    %120 = arith.divf %118, %119 : vector<4x128xf32>
    %121 = vector.extract_strided_slice %108 {offsets = [0, 256], sizes = [4, 128], strides = [1, 1]} : vector<4x512xf32> to vector<4x128xf32>
    %122 = math.tanh %121 : vector<4x128xf32>
    %123 = vector.extract_strided_slice %108 {offsets = [0, 384], sizes = [4, 128], strides = [1, 1]} : vector<4x512xf32> to vector<4x128xf32>
    %124 = arith.negf %123 : vector<4x128xf32>
    %125 = math.exp %124 : vector<4x128xf32>
    %cst_49 = arith.constant 1.000000e+00 : f32
    %126 = vector.broadcast %cst_49 : f32 to vector<4x128xf32>
    %127 = arith.addf %126, %125 : vector<4x128xf32>
    %128 = arith.divf %126, %127 : vector<4x128xf32>
    %129 = arith.mulf %120, %91 : vector<4x128xf32>
    %130 = arith.mulf %114, %122 : vector<4x128xf32>
    %131 = arith.addf %129, %130 : vector<4x128xf32>
    %132 = math.tanh %131 : vector<4x128xf32>
    %133 = arith.mulf %128, %132 : vector<4x128xf32>
    %134 = vector.extract_strided_slice %133 {offsets = [0, 0], sizes = [2, 128], strides = [1, 1]} : vector<4x128xf32> to vector<2x128xf32>
    %135 = vector.extract_strided_slice %133 {offsets = [2, 0], sizes = [2, 128], strides = [1, 1]} : vector<4x128xf32> to vector<2x128xf32>
    %c4_50 = arith.constant 4 : index
    %c0_51 = arith.constant 0 : index
    %136 = vector.load %arg12[%c4_50, %c0_51] : memref<16x256xf32, #tpu.memory_space<vmem>>, vector<2x128xf32>
    tpu.vector_store %arg12[%c4_50, %c0_51], %134 {strides = array<i32>} : memref<16x256xf32, #tpu.memory_space<vmem>>, vector<2x128xf32>,
    %c10_52 = arith.constant 10 : index
    %c128_53 = arith.constant 128 : index
    %137 = vector.load %arg12[%c10_52, %c128_53] : memref<16x256xf32, #tpu.memory_space<vmem>>, vector<2x128xf32>
    tpu.vector_store %arg12[%c10_52, %c128_53], %135 {strides = array<i32>} : memref<16x256xf32, #tpu.memory_space<vmem>>, vector<2x128xf32>,
    %138 = arith.truncf %134 : vector<2x128xf32> to vector<2x128xbf16>
    %c0_54 = arith.constant 0 : index
    %c0_55 = arith.constant 0 : index
    %139 = vector.load %arg3[%c0_54, %c0_55] : memref<128x512xbf16, #tpu.memory_space<vmem>>, vector<128x512xbf16>
    %cst_56 = arith.constant dense<0.000000e+00> : vector<2x512xf32>
    %140 = tpu.matmul %138, %139, %cst_56 {dimension_numbers = #tpu.dot_dimension_numbers<[1], [0], [0], [1], [0, 0, 1, 1], [], []>} : vector<2x128xbf16>, vector<128x512xbf16>, vector<2x512xf32> -> vector<2x512xf32>
    %c6 = arith.constant 6 : index
    %c0_57 = arith.constant 0 : index
    %141 = vector.load %arg14[%c6, %c0_57] : memref<16x1024xf32, #tpu.memory_space<vmem>>, vector<2x512xf32>
    %142 = arith.addf %140, %141 : vector<2x512xf32>
    %143 = arith.truncf %135 : vector<2x128xf32> to vector<2x128xbf16>
    %c0_58 = arith.constant 0 : index
    %c0_59 = arith.constant 0 : index
    %144 = vector.load %arg4[%c0_58, %c0_59] : memref<128x512xbf16, #tpu.memory_space<vmem>>, vector<128x512xbf16>
    %cst_60 = arith.constant dense<0.000000e+00> : vector<2x512xf32>
    %145 = tpu.matmul %143, %144, %cst_60 {dimension_numbers = #tpu.dot_dimension_numbers<[1], [0], [0], [1], [0, 0, 1, 1], [], []>} : vector<2x128xbf16>, vector<128x512xbf16>, vector<2x512xf32> -> vector<2x512xf32>
    %c8 = arith.constant 8 : index
    %c512_61 = arith.constant 512 : index
    %146 = vector.load %arg14[%c8, %c512_61] : memref<16x1024xf32, #tpu.memory_space<vmem>>, vector<2x512xf32>
    %147 = arith.addf %145, %146 : vector<2x512xf32>
    %148 = tpu.concatenate %142, %147 in 0 : vector<2x512xf32>, vector<2x512xf32> -> vector<4x512xf32>
    %149 = vector.extract_strided_slice %148 {offsets = [0, 0], sizes = [4, 128], strides = [1, 1]} : vector<4x512xf32> to vector<4x128xf32>
    %150 = arith.negf %149 : vector<4x128xf32>
    %151 = math.exp %150 : vector<4x128xf32>
    %cst_62 = arith.constant 1.000000e+00 : f32
    %152 = vector.broadcast %cst_62 : f32 to vector<4x128xf32>
    %153 = arith.addf %152, %151 : vector<4x128xf32>
    %154 = arith.divf %152, %153 : vector<4x128xf32>
    %155 = vector.extract_strided_slice %148 {offsets = [0, 128], sizes = [4, 128], strides = [1, 1]} : vector<4x512xf32> to vector<4x128xf32>
    %156 = arith.negf %155 : vector<4x128xf32>
    %157 = math.exp %156 : vector<4x128xf32>
    %cst_63 = arith.constant 1.000000e+00 : f32
    %158 = vector.broadcast %cst_63 : f32 to vector<4x128xf32>
    %159 = arith.addf %158, %157 : vector<4x128xf32>
    %160 = arith.divf %158, %159 : vector<4x128xf32>
    %161 = vector.extract_strided_slice %148 {offsets = [0, 256], sizes = [4, 128], strides = [1, 1]} : vector<4x512xf32> to vector<4x128xf32>
    %162 = math.tanh %161 : vector<4x128xf32>
    %163 = vector.extract_strided_slice %148 {offsets = [0, 384], sizes = [4, 128], strides = [1, 1]} : vector<4x512xf32> to vector<4x128xf32>
    %164 = arith.negf %163 : vector<4x128xf32>
    %165 = math.exp %164 : vector<4x128xf32>
    %cst_64 = arith.constant 1.000000e+00 : f32
    %166 = vector.broadcast %cst_64 : f32 to vector<4x128xf32>
    %167 = arith.addf %166, %165 : vector<4x128xf32>
    %168 = arith.divf %166, %167 : vector<4x128xf32>
    %169 = arith.mulf %160, %131 : vector<4x128xf32>
    %170 = arith.mulf %154, %162 : vector<4x128xf32>
    %171 = arith.addf %169, %170 : vector<4x128xf32>
    %172 = math.tanh %171 : vector<4x128xf32>
    %173 = arith.mulf %168, %172 : vector<4x128xf32>
    %174 = vector.extract_strided_slice %173 {offsets = [0, 0], sizes = [2, 128], strides = [1, 1]} : vector<4x128xf32> to vector<2x128xf32>
    %175 = vector.extract_strided_slice %173 {offsets = [2, 0], sizes = [2, 128], strides = [1, 1]} : vector<4x128xf32> to vector<2x128xf32>
    %c6_65 = arith.constant 6 : index
    %c0_66 = arith.constant 0 : index
    %176 = vector.load %arg12[%c6_65, %c0_66] : memref<16x256xf32, #tpu.memory_space<vmem>>, vector<2x128xf32>
    tpu.vector_store %arg12[%c6_65, %c0_66], %174 {strides = array<i32>} : memref<16x256xf32, #tpu.memory_space<vmem>>, vector<2x128xf32>,
    %c8_67 = arith.constant 8 : index
    %c128_68 = arith.constant 128 : index
    %177 = vector.load %arg12[%c8_67, %c128_68] : memref<16x256xf32, #tpu.memory_space<vmem>>, vector<2x128xf32>
    tpu.vector_store %arg12[%c8_67, %c128_68], %175 {strides = array<i32>} : memref<16x256xf32, #tpu.memory_space<vmem>>, vector<2x128xf32>,
    %178 = arith.truncf %174 : vector<2x128xf32> to vector<2x128xbf16>
    %c0_69 = arith.constant 0 : index
    %c0_70 = arith.constant 0 : index
    %179 = vector.load %arg3[%c0_69, %c0_70] : memref<128x512xbf16, #tpu.memory_space<vmem>>, vector<128x512xbf16>
    %cst_71 = arith.constant dense<0.000000e+00> : vector<2x512xf32>
    %180 = tpu.matmul %178, %179, %cst_71 {dimension_numbers = #tpu.dot_dimension_numbers<[1], [0], [0], [1], [0, 0, 1, 1], [], []>} : vector<2x128xbf16>, vector<128x512xbf16>, vector<2x512xf32> -> vector<2x512xf32>
    %c8_72 = arith.constant 8 : index
    %c0_73 = arith.constant 0 : index
    %181 = vector.load %arg14[%c8_72, %c0_73] : memref<16x1024xf32, #tpu.memory_space<vmem>>, vector<2x512xf32>
    %182 = arith.addf %180, %181 : vector<2x512xf32>
    %183 = arith.truncf %175 : vector<2x128xf32> to vector<2x128xbf16>
    %c0_74 = arith.constant 0 : index
    %c0_75 = arith.constant 0 : index
    %184 = vector.load %arg4[%c0_74, %c0_75] : memref<128x512xbf16, #tpu.memory_space<vmem>>, vector<128x512xbf16>
    %cst_76 = arith.constant dense<0.000000e+00> : vector<2x512xf32>
    %185 = tpu.matmul %183, %184, %cst_76 {dimension_numbers = #tpu.dot_dimension_numbers<[1], [0], [0], [1], [0, 0, 1, 1], [], []>} : vector<2x128xbf16>, vector<128x512xbf16>, vector<2x512xf32> -> vector<2x512xf32>
    %c6_77 = arith.constant 6 : index
    %c512_78 = arith.constant 512 : index
    %186 = vector.load %arg14[%c6_77, %c512_78] : memref<16x1024xf32, #tpu.memory_space<vmem>>, vector<2x512xf32>
    %187 = arith.addf %185, %186 : vector<2x512xf32>
    %188 = tpu.concatenate %182, %187 in 0 : vector<2x512xf32>, vector<2x512xf32> -> vector<4x512xf32>
    %189 = vector.extract_strided_slice %188 {offsets = [0, 0], sizes = [4, 128], strides = [1, 1]} : vector<4x512xf32> to vector<4x128xf32>
    %190 = arith.negf %189 : vector<4x128xf32>
    %191 = math.exp %190 : vector<4x128xf32>
    %cst_79 = arith.constant 1.000000e+00 : f32
    %192 = vector.broadcast %cst_79 : f32 to vector<4x128xf32>
    %193 = arith.addf %192, %191 : vector<4x128xf32>
    %194 = arith.divf %192, %193 : vector<4x128xf32>
    %195 = vector.extract_strided_slice %188 {offsets = [0, 128], sizes = [4, 128], strides = [1, 1]} : vector<4x512xf32> to vector<4x128xf32>
    %196 = arith.negf %195 : vector<4x128xf32>
    %197 = math.exp %196 : vector<4x128xf32>
    %cst_80 = arith.constant 1.000000e+00 : f32
    %198 = vector.broadcast %cst_80 : f32 to vector<4x128xf32>
    %199 = arith.addf %198, %197 : vector<4x128xf32>
    %200 = arith.divf %198, %199 : vector<4x128xf32>
    %201 = vector.extract_strided_slice %188 {offsets = [0, 256], sizes = [4, 128], strides = [1, 1]} : vector<4x512xf32> to vector<4x128xf32>
    %202 = math.tanh %201 : vector<4x128xf32>
    %203 = vector.extract_strided_slice %188 {offsets = [0, 384], sizes = [4, 128], strides = [1, 1]} : vector<4x512xf32> to vector<4x128xf32>
    %204 = arith.negf %203 : vector<4x128xf32>
    %205 = math.exp %204 : vector<4x128xf32>
    %cst_81 = arith.constant 1.000000e+00 : f32
    %206 = vector.broadcast %cst_81 : f32 to vector<4x128xf32>
    %207 = arith.addf %206, %205 : vector<4x128xf32>
    %208 = arith.divf %206, %207 : vector<4x128xf32>
    %209 = arith.mulf %200, %171 : vector<4x128xf32>
    %210 = arith.mulf %194, %202 : vector<4x128xf32>
    %211 = arith.addf %209, %210 : vector<4x128xf32>
    %212 = math.tanh %211 : vector<4x128xf32>
    %213 = arith.mulf %208, %212 : vector<4x128xf32>
    %214 = vector.extract_strided_slice %213 {offsets = [0, 0], sizes = [2, 128], strides = [1, 1]} : vector<4x128xf32> to vector<2x128xf32>
    %215 = vector.extract_strided_slice %213 {offsets = [2, 0], sizes = [2, 128], strides = [1, 1]} : vector<4x128xf32> to vector<2x128xf32>
    %c8_82 = arith.constant 8 : index
    %c0_83 = arith.constant 0 : index
    %216 = vector.load %arg12[%c8_82, %c0_83] : memref<16x256xf32, #tpu.memory_space<vmem>>, vector<2x128xf32>
    tpu.vector_store %arg12[%c8_82, %c0_83], %214 {strides = array<i32>} : memref<16x256xf32, #tpu.memory_space<vmem>>, vector<2x128xf32>,
    %c6_84 = arith.constant 6 : index
    %c128_85 = arith.constant 128 : index
    %217 = vector.load %arg12[%c6_84, %c128_85] : memref<16x256xf32, #tpu.memory_space<vmem>>, vector<2x128xf32>
    tpu.vector_store %arg12[%c6_84, %c128_85], %215 {strides = array<i32>} : memref<16x256xf32, #tpu.memory_space<vmem>>, vector<2x128xf32>,
    %218 = arith.truncf %214 : vector<2x128xf32> to vector<2x128xbf16>
    %c0_86 = arith.constant 0 : index
    %c0_87 = arith.constant 0 : index
    %219 = vector.load %arg3[%c0_86, %c0_87] : memref<128x512xbf16, #tpu.memory_space<vmem>>, vector<128x512xbf16>
    %cst_88 = arith.constant dense<0.000000e+00> : vector<2x512xf32>
    %220 = tpu.matmul %218, %219, %cst_88 {dimension_numbers = #tpu.dot_dimension_numbers<[1], [0], [0], [1], [0, 0, 1, 1], [], []>} : vector<2x128xbf16>, vector<128x512xbf16>, vector<2x512xf32> -> vector<2x512xf32>
    %c10_89 = arith.constant 10 : index
    %c0_90 = arith.constant 0 : index
    %221 = vector.load %arg14[%c10_89, %c0_90] : memref<16x1024xf32, #tpu.memory_space<vmem>>, vector<2x512xf32>
    %222 = arith.addf %220, %221 : vector<2x512xf32>
    %223 = arith.truncf %215 : vector<2x128xf32> to vector<2x128xbf16>
    %c0_91 = arith.constant 0 : index
    %c0_92 = arith.constant 0 : index
    %224 = vector.load %arg4[%c0_91, %c0_92] : memref<128x512xbf16, #tpu.memory_space<vmem>>, vector<128x512xbf16>
    %cst_93 = arith.constant dense<0.000000e+00> : vector<2x512xf32>
    %225 = tpu.matmul %223, %224, %cst_93 {dimension_numbers = #tpu.dot_dimension_numbers<[1], [0], [0], [1], [0, 0, 1, 1], [], []>} : vector<2x128xbf16>, vector<128x512xbf16>, vector<2x512xf32> -> vector<2x512xf32>
    %c4_94 = arith.constant 4 : index
    %c512_95 = arith.constant 512 : index
    %226 = vector.load %arg14[%c4_94, %c512_95] : memref<16x1024xf32, #tpu.memory_space<vmem>>, vector<2x512xf32>
    %227 = arith.addf %225, %226 : vector<2x512xf32>
    %228 = tpu.concatenate %222, %227 in 0 : vector<2x512xf32>, vector<2x512xf32> -> vector<4x512xf32>
    %229 = vector.extract_strided_slice %228 {offsets = [0, 0], sizes = [4, 128], strides = [1, 1]} : vector<4x512xf32> to vector<4x128xf32>
    %230 = arith.negf %229 : vector<4x128xf32>
    %231 = math.exp %230 : vector<4x128xf32>
    %cst_96 = arith.constant 1.000000e+00 : f32
    %232 = vector.broadcast %cst_96 : f32 to vector<4x128xf32>
    %233 = arith.addf %232, %231 : vector<4x128xf32>
    %234 = arith.divf %232, %233 : vector<4x128xf32>
    %235 = vector.extract_strided_slice %228 {offsets = [0, 128], sizes = [4, 128], strides = [1, 1]} : vector<4x512xf32> to vector<4x128xf32>
    %236 = arith.negf %235 : vector<4x128xf32>
    %237 = math.exp %236 : vector<4x128xf32>
    %cst_97 = arith.constant 1.000000e+00 : f32
    %238 = vector.broadcast %cst_97 : f32 to vector<4x128xf32>
    %239 = arith.addf %238, %237 : vector<4x128xf32>
    %240 = arith.divf %238, %239 : vector<4x128xf32>
    %241 = vector.extract_strided_slice %228 {offsets = [0, 256], sizes = [4, 128], strides = [1, 1]} : vector<4x512xf32> to vector<4x128xf32>
    %242 = math.tanh %241 : vector<4x128xf32>
    %243 = vector.extract_strided_slice %228 {offsets = [0, 384], sizes = [4, 128], strides = [1, 1]} : vector<4x512xf32> to vector<4x128xf32>
    %244 = arith.negf %243 : vector<4x128xf32>
    %245 = math.exp %244 : vector<4x128xf32>
    %cst_98 = arith.constant 1.000000e+00 : f32
    %246 = vector.broadcast %cst_98 : f32 to vector<4x128xf32>
    %247 = arith.addf %246, %245 : vector<4x128xf32>
    %248 = arith.divf %246, %247 : vector<4x128xf32>
    %249 = arith.mulf %240, %211 : vector<4x128xf32>
    %250 = arith.mulf %234, %242 : vector<4x128xf32>
    %251 = arith.addf %249, %250 : vector<4x128xf32>
    %252 = math.tanh %251 : vector<4x128xf32>
    %253 = arith.mulf %248, %252 : vector<4x128xf32>
    %254 = vector.extract_strided_slice %253 {offsets = [0, 0], sizes = [2, 128], strides = [1, 1]} : vector<4x128xf32> to vector<2x128xf32>
    %255 = vector.extract_strided_slice %253 {offsets = [2, 0], sizes = [2, 128], strides = [1, 1]} : vector<4x128xf32> to vector<2x128xf32>
    %c10_99 = arith.constant 10 : index
    %c0_100 = arith.constant 0 : index
    %256 = vector.load %arg12[%c10_99, %c0_100] : memref<16x256xf32, #tpu.memory_space<vmem>>, vector<2x128xf32>
    tpu.vector_store %arg12[%c10_99, %c0_100], %254 {strides = array<i32>} : memref<16x256xf32, #tpu.memory_space<vmem>>, vector<2x128xf32>,
    %c4_101 = arith.constant 4 : index
    %c128_102 = arith.constant 128 : index
    %257 = vector.load %arg12[%c4_101, %c128_102] : memref<16x256xf32, #tpu.memory_space<vmem>>, vector<2x128xf32>
    tpu.vector_store %arg12[%c4_101, %c128_102], %255 {strides = array<i32>} : memref<16x256xf32, #tpu.memory_space<vmem>>, vector<2x128xf32>,
    %258 = arith.truncf %254 : vector<2x128xf32> to vector<2x128xbf16>
    %c0_103 = arith.constant 0 : index
    %c0_104 = arith.constant 0 : index
    %259 = vector.load %arg3[%c0_103, %c0_104] : memref<128x512xbf16, #tpu.memory_space<vmem>>, vector<128x512xbf16>
    %cst_105 = arith.constant dense<0.000000e+00> : vector<2x512xf32>
    %260 = tpu.matmul %258, %259, %cst_105 {dimension_numbers = #tpu.dot_dimension_numbers<[1], [0], [0], [1], [0, 0, 1, 1], [], []>} : vector<2x128xbf16>, vector<128x512xbf16>, vector<2x512xf32> -> vector<2x512xf32>
    %c12_106 = arith.constant 12 : index
    %c0_107 = arith.constant 0 : index
    %261 = vector.load %arg14[%c12_106, %c0_107] : memref<16x1024xf32, #tpu.memory_space<vmem>>, vector<2x512xf32>
    %262 = arith.addf %260, %261 : vector<2x512xf32>
    %263 = arith.truncf %255 : vector<2x128xf32> to vector<2x128xbf16>
    %c0_108 = arith.constant 0 : index
    %c0_109 = arith.constant 0 : index
    %264 = vector.load %arg4[%c0_108, %c0_109] : memref<128x512xbf16, #tpu.memory_space<vmem>>, vector<128x512xbf16>
    %cst_110 = arith.constant dense<0.000000e+00> : vector<2x512xf32>
    %265 = tpu.matmul %263, %264, %cst_110 {dimension_numbers = #tpu.dot_dimension_numbers<[1], [0], [0], [1], [0, 0, 1, 1], [], []>} : vector<2x128xbf16>, vector<128x512xbf16>, vector<2x512xf32> -> vector<2x512xf32>
    %c2_111 = arith.constant 2 : index
    %c512_112 = arith.constant 512 : index
    %266 = vector.load %arg14[%c2_111, %c512_112] : memref<16x1024xf32, #tpu.memory_space<vmem>>, vector<2x512xf32>
    %267 = arith.addf %265, %266 : vector<2x512xf32>
    %268 = tpu.concatenate %262, %267 in 0 : vector<2x512xf32>, vector<2x512xf32> -> vector<4x512xf32>
    %269 = vector.extract_strided_slice %268 {offsets = [0, 0], sizes = [4, 128], strides = [1, 1]} : vector<4x512xf32> to vector<4x128xf32>
    %270 = arith.negf %269 : vector<4x128xf32>
    %271 = math.exp %270 : vector<4x128xf32>
    %cst_113 = arith.constant 1.000000e+00 : f32
    %272 = vector.broadcast %cst_113 : f32 to vector<4x128xf32>
    %273 = arith.addf %272, %271 : vector<4x128xf32>
    %274 = arith.divf %272, %273 : vector<4x128xf32>
    %275 = vector.extract_strided_slice %268 {offsets = [0, 128], sizes = [4, 128], strides = [1, 1]} : vector<4x512xf32> to vector<4x128xf32>
    %276 = arith.negf %275 : vector<4x128xf32>
    %277 = math.exp %276 : vector<4x128xf32>
    %cst_114 = arith.constant 1.000000e+00 : f32
    %278 = vector.broadcast %cst_114 : f32 to vector<4x128xf32>
    %279 = arith.addf %278, %277 : vector<4x128xf32>
    %280 = arith.divf %278, %279 : vector<4x128xf32>
    %281 = vector.extract_strided_slice %268 {offsets = [0, 256], sizes = [4, 128], strides = [1, 1]} : vector<4x512xf32> to vector<4x128xf32>
    %282 = math.tanh %281 : vector<4x128xf32>
    %283 = vector.extract_strided_slice %268 {offsets = [0, 384], sizes = [4, 128], strides = [1, 1]} : vector<4x512xf32> to vector<4x128xf32>
    %284 = arith.negf %283 : vector<4x128xf32>
    %285 = math.exp %284 : vector<4x128xf32>
    %cst_115 = arith.constant 1.000000e+00 : f32
    %286 = vector.broadcast %cst_115 : f32 to vector<4x128xf32>
    %287 = arith.addf %286, %285 : vector<4x128xf32>
    %288 = arith.divf %286, %287 : vector<4x128xf32>
    %289 = arith.mulf %280, %251 : vector<4x128xf32>
    %290 = arith.mulf %274, %282 : vector<4x128xf32>
    %291 = arith.addf %289, %290 : vector<4x128xf32>
    %292 = math.tanh %291 : vector<4x128xf32>
    %293 = arith.mulf %288, %292 : vector<4x128xf32>
    %294 = vector.extract_strided_slice %293 {offsets = [0, 0], sizes = [2, 128], strides = [1, 1]} : vector<4x128xf32> to vector<2x128xf32>
    %295 = vector.extract_strided_slice %293 {offsets = [2, 0], sizes = [2, 128], strides = [1, 1]} : vector<4x128xf32> to vector<2x128xf32>
    %c12_116 = arith.constant 12 : index
    %c0_117 = arith.constant 0 : index
    %296 = vector.load %arg12[%c12_116, %c0_117] : memref<16x256xf32, #tpu.memory_space<vmem>>, vector<2x128xf32>
    tpu.vector_store %arg12[%c12_116, %c0_117], %294 {strides = array<i32>} : memref<16x256xf32, #tpu.memory_space<vmem>>, vector<2x128xf32>,
    %c2_118 = arith.constant 2 : index
    %c128_119 = arith.constant 128 : index
    %297 = vector.load %arg12[%c2_118, %c128_119] : memref<16x256xf32, #tpu.memory_space<vmem>>, vector<2x128xf32>
    tpu.vector_store %arg12[%c2_118, %c128_119], %295 {strides = array<i32>} : memref<16x256xf32, #tpu.memory_space<vmem>>, vector<2x128xf32>,
    %298 = arith.truncf %294 : vector<2x128xf32> to vector<2x128xbf16>
    %c0_120 = arith.constant 0 : index
    %c0_121 = arith.constant 0 : index
    %299 = vector.load %arg3[%c0_120, %c0_121] : memref<128x512xbf16, #tpu.memory_space<vmem>>, vector<128x512xbf16>
    %cst_122 = arith.constant dense<0.000000e+00> : vector<2x512xf32>
    %300 = tpu.matmul %298, %299, %cst_122 {dimension_numbers = #tpu.dot_dimension_numbers<[1], [0], [0], [1], [0, 0, 1, 1], [], []>} : vector<2x128xbf16>, vector<128x512xbf16>, vector<2x512xf32> -> vector<2x512xf32>
    %c14_123 = arith.constant 14 : index
    %c0_124 = arith.constant 0 : index
    %301 = vector.load %arg14[%c14_123, %c0_124] : memref<16x1024xf32, #tpu.memory_space<vmem>>, vector<2x512xf32>
    %302 = arith.addf %300, %301 : vector<2x512xf32>
    %303 = arith.truncf %295 : vector<2x128xf32> to vector<2x128xbf16>
    %c0_125 = arith.constant 0 : index
    %c0_126 = arith.constant 0 : index
    %304 = vector.load %arg4[%c0_125, %c0_126] : memref<128x512xbf16, #tpu.memory_space<vmem>>, vector<128x512xbf16>
    %cst_127 = arith.constant dense<0.000000e+00> : vector<2x512xf32>
    %305 = tpu.matmul %303, %304, %cst_127 {dimension_numbers = #tpu.dot_dimension_numbers<[1], [0], [0], [1], [0, 0, 1, 1], [], []>} : vector<2x128xbf16>, vector<128x512xbf16>, vector<2x512xf32> -> vector<2x512xf32>
    %c0_128 = arith.constant 0 : index
    %c512_129 = arith.constant 512 : index
    %306 = vector.load %arg14[%c0_128, %c512_129] : memref<16x1024xf32, #tpu.memory_space<vmem>>, vector<2x512xf32>
    %307 = arith.addf %305, %306 : vector<2x512xf32>
    %308 = tpu.concatenate %302, %307 in 0 : vector<2x512xf32>, vector<2x512xf32> -> vector<4x512xf32>
    %309 = vector.extract_strided_slice %308 {offsets = [0, 0], sizes = [4, 128], strides = [1, 1]} : vector<4x512xf32> to vector<4x128xf32>
    %310 = arith.negf %309 : vector<4x128xf32>
    %311 = math.exp %310 : vector<4x128xf32>
    %cst_130 = arith.constant 1.000000e+00 : f32
    %312 = vector.broadcast %cst_130 : f32 to vector<4x128xf32>
    %313 = arith.addf %312, %311 : vector<4x128xf32>
    %314 = arith.divf %312, %313 : vector<4x128xf32>
    %315 = vector.extract_strided_slice %308 {offsets = [0, 128], sizes = [4, 128], strides = [1, 1]} : vector<4x512xf32> to vector<4x128xf32>
    %316 = arith.negf %315 : vector<4x128xf32>
    %317 = math.exp %316 : vector<4x128xf32>
    %cst_131 = arith.constant 1.000000e+00 : f32
    %318 = vector.broadcast %cst_131 : f32 to vector<4x128xf32>
    %319 = arith.addf %318, %317 : vector<4x128xf32>
    %320 = arith.divf %318, %319 : vector<4x128xf32>
    %321 = vector.extract_strided_slice %308 {offsets = [0, 256], sizes = [4, 128], strides = [1, 1]} : vector<4x512xf32> to vector<4x128xf32>
    %322 = math.tanh %321 : vector<4x128xf32>
    %323 = vector.extract_strided_slice %308 {offsets = [0, 384], sizes = [4, 128], strides = [1, 1]} : vector<4x512xf32> to vector<4x128xf32>
    %324 = arith.negf %323 : vector<4x128xf32>
    %325 = math.exp %324 : vector<4x128xf32>
    %cst_132 = arith.constant 1.000000e+00 : f32
    %326 = vector.broadcast %cst_132 : f32 to vector<4x128xf32>
    %327 = arith.addf %326, %325 : vector<4x128xf32>
    %328 = arith.divf %326, %327 : vector<4x128xf32>
    %329 = arith.mulf %320, %291 : vector<4x128xf32>
    %330 = arith.mulf %314, %322 : vector<4x128xf32>
    %331 = arith.addf %329, %330 : vector<4x128xf32>
    %332 = math.tanh %331 : vector<4x128xf32>
    %333 = arith.mulf %328, %332 : vector<4x128xf32>
    %334 = vector.extract_strided_slice %333 {offsets = [0, 0], sizes = [2, 128], strides = [1, 1]} : vector<4x128xf32> to vector<2x128xf32>
    %335 = vector.extract_strided_slice %333 {offsets = [2, 0], sizes = [2, 128], strides = [1, 1]} : vector<4x128xf32> to vector<2x128xf32>
    %c14_133 = arith.constant 14 : index
    %c0_134 = arith.constant 0 : index
    %336 = vector.load %arg12[%c14_133, %c0_134] : memref<16x256xf32, #tpu.memory_space<vmem>>, vector<2x128xf32>
    tpu.vector_store %arg12[%c14_133, %c0_134], %334 {strides = array<i32>} : memref<16x256xf32, #tpu.memory_space<vmem>>, vector<2x128xf32>,
    %c0_135 = arith.constant 0 : index
    %c128_136 = arith.constant 128 : index
    %337 = vector.load %arg12[%c0_135, %c128_136] : memref<16x256xf32, #tpu.memory_space<vmem>>, vector<2x128xf32>
    tpu.vector_store %arg12[%c0_135, %c128_136], %335 {strides = array<i32>} : memref<16x256xf32, #tpu.memory_space<vmem>>, vector<2x128xf32>,
    %c0_i32_137 = arith.constant 0 : i32
    %338 = tpu.memref_slice %arg19[%c0_i32_137] : memref<4x!tpu.dma_semaphore, #tpu.memory_space<semaphore_mem>> -> memref<1x!tpu.dma_semaphore, #tpu.memory_space<semaphore_mem>>
    %339 = tpu.memref_squeeze %338 : memref<1x!tpu.dma_semaphore, #tpu.memory_space<semaphore_mem>> -> memref<!tpu.dma_semaphore, #tpu.memory_space<semaphore_mem>>
    tpu.wait_dma2 semaphore(%339 : memref<!tpu.dma_semaphore, #tpu.memory_space<semaphore_mem>>) src(%arg5 : memref<256x1024xbf16, #tpu.memory_space<any>>) dst(%arg15 : memref<256x1024xbf16, #tpu.memory_space<vmem>>)
    %c1_i32_138 = arith.constant 1 : i32
    %340 = tpu.memref_slice %arg19[%c1_i32_138] : memref<4x!tpu.dma_semaphore, #tpu.memory_space<semaphore_mem>> -> memref<1x!tpu.dma_semaphore, #tpu.memory_space<semaphore_mem>>
    %341 = tpu.memref_squeeze %340 : memref<1x!tpu.dma_semaphore, #tpu.memory_space<semaphore_mem>> -> memref<!tpu.dma_semaphore, #tpu.memory_space<semaphore_mem>>
    tpu.wait_dma2 semaphore(%341 : memref<!tpu.dma_semaphore, #tpu.memory_space<semaphore_mem>>) src(%arg7 : memref<128x512xbf16, #tpu.memory_space<any>>) dst(%arg16 : memref<128x512xbf16, #tpu.memory_space<vmem>>)
    %c2_i32_139 = arith.constant 2 : i32
    %342 = tpu.memref_slice %arg19[%c2_i32_139] : memref<4x!tpu.dma_semaphore, #tpu.memory_space<semaphore_mem>> -> memref<1x!tpu.dma_semaphore, #tpu.memory_space<semaphore_mem>>
    %343 = tpu.memref_squeeze %342 : memref<1x!tpu.dma_semaphore, #tpu.memory_space<semaphore_mem>> -> memref<!tpu.dma_semaphore, #tpu.memory_space<semaphore_mem>>
    tpu.wait_dma2 semaphore(%343 : memref<!tpu.dma_semaphore, #tpu.memory_space<semaphore_mem>>) src(%arg8 : memref<128x512xbf16, #tpu.memory_space<any>>) dst(%arg17 : memref<128x512xbf16, #tpu.memory_space<vmem>>)
    %c0_140 = arith.constant 0 : index
    %c0_141 = arith.constant 0 : index
    %344 = vector.load %arg12[%c0_140, %c0_141] : memref<16x256xf32, #tpu.memory_space<vmem>>, vector<16x256xf32>
    %345 = arith.truncf %344 : vector<16x256xf32> to vector<16x256xbf16>
    %c0_142 = arith.constant 0 : index
    %c0_143 = arith.constant 0 : index
    %346 = vector.load %arg15[%c0_142, %c0_143] : memref<256x1024xbf16, #tpu.memory_space<vmem>>, vector<256x1024xbf16>
    %cst_144 = arith.constant dense<0.000000e+00> : vector<16x1024xf32>
    %347 = tpu.matmul %345, %346, %cst_144 {dimension_numbers = #tpu.dot_dimension_numbers<[1], [0], [0], [1], [0, 0, 1, 1], [], []>} : vector<16x256xbf16>, vector<256x1024xbf16>, vector<16x1024xf32> -> vector<16x1024xf32>
    %c0_145 = arith.constant 0 : index
    %c0_146 = arith.constant 0 : index
    %348 = vector.load %arg6[%c0_145, %c0_146] : memref<1x1024xf32, #tpu.memory_space<vmem>>, vector<1x1024xf32>
    %349 = vector.broadcast %348 : vector<1x1024xf32> to vector<16x1024xf32>
    %350 = arith.addf %347, %349 : vector<16x1024xf32>
    %c0_147 = arith.constant 0 : index
    %c0_148 = arith.constant 0 : index
    %351 = vector.load %arg14[%c0_147, %c0_148] : memref<16x1024xf32, #tpu.memory_space<vmem>>, vector<16x1024xf32>
    tpu.vector_store %arg14[%c0_147, %c0_148], %350 {strides = array<i32>} : memref<16x1024xf32, #tpu.memory_space<vmem>>, vector<16x1024xf32>,
    %cst_149 = arith.constant 0.000000e+00 : f32
    %352 = vector.broadcast %cst_149 : f32 to vector<2x128xf32>
    %cst_150 = arith.constant 0.000000e+00 : f32
    %353 = vector.broadcast %cst_150 : f32 to vector<2x128xf32>
    %cst_151 = arith.constant 0.000000e+00 : f32
    %354 = vector.broadcast %cst_151 : f32 to vector<4x128xf32>
    %355 = arith.truncf %352 : vector<2x128xf32> to vector<2x128xbf16>
    %c0_152 = arith.constant 0 : index
    %c0_153 = arith.constant 0 : index
    %356 = vector.load %arg16[%c0_152, %c0_153] : memref<128x512xbf16, #tpu.memory_space<vmem>>, vector<128x512xbf16>
    %cst_154 = arith.constant dense<0.000000e+00> : vector<2x512xf32>
    %357 = tpu.matmul %355, %356, %cst_154 {dimension_numbers = #tpu.dot_dimension_numbers<[1], [0], [0], [1], [0, 0, 1, 1], [], []>} : vector<2x128xbf16>, vector<128x512xbf16>, vector<2x512xf32> -> vector<2x512xf32>
    %c0_155 = arith.constant 0 : index
    %c0_156 = arith.constant 0 : index
    %358 = vector.load %arg14[%c0_155, %c0_156] : memref<16x1024xf32, #tpu.memory_space<vmem>>, vector<2x512xf32>
    %359 = arith.addf %357, %358 : vector<2x512xf32>
    %360 = arith.truncf %353 : vector<2x128xf32> to vector<2x128xbf16>
    %c0_157 = arith.constant 0 : index
    %c0_158 = arith.constant 0 : index
    %361 = vector.load %arg17[%c0_157, %c0_158] : memref<128x512xbf16, #tpu.memory_space<vmem>>, vector<128x512xbf16>
    %cst_159 = arith.constant dense<0.000000e+00> : vector<2x512xf32>
    %362 = tpu.matmul %360, %361, %cst_159 {dimension_numbers = #tpu.dot_dimension_numbers<[1], [0], [0], [1], [0, 0, 1, 1], [], []>} : vector<2x128xbf16>, vector<128x512xbf16>, vector<2x512xf32> -> vector<2x512xf32>
    %c14_160 = arith.constant 14 : index
    %c512_161 = arith.constant 512 : index
    %363 = vector.load %arg14[%c14_160, %c512_161] : memref<16x1024xf32, #tpu.memory_space<vmem>>, vector<2x512xf32>
    %364 = arith.addf %362, %363 : vector<2x512xf32>
    %365 = tpu.concatenate %359, %364 in 0 : vector<2x512xf32>, vector<2x512xf32> -> vector<4x512xf32>
    %366 = vector.extract_strided_slice %365 {offsets = [0, 0], sizes = [4, 128], strides = [1, 1]} : vector<4x512xf32> to vector<4x128xf32>
    %367 = arith.negf %366 : vector<4x128xf32>
    %368 = math.exp %367 : vector<4x128xf32>
    %cst_162 = arith.constant 1.000000e+00 : f32
    %369 = vector.broadcast %cst_162 : f32 to vector<4x128xf32>
    %370 = arith.addf %369, %368 : vector<4x128xf32>
    %371 = arith.divf %369, %370 : vector<4x128xf32>
    %372 = vector.extract_strided_slice %365 {offsets = [0, 128], sizes = [4, 128], strides = [1, 1]} : vector<4x512xf32> to vector<4x128xf32>
    %373 = arith.negf %372 : vector<4x128xf32>
    %374 = math.exp %373 : vector<4x128xf32>
    %cst_163 = arith.constant 1.000000e+00 : f32
    %375 = vector.broadcast %cst_163 : f32 to vector<4x128xf32>
    %376 = arith.addf %375, %374 : vector<4x128xf32>
    %377 = arith.divf %375, %376 : vector<4x128xf32>
    %378 = vector.extract_strided_slice %365 {offsets = [0, 256], sizes = [4, 128], strides = [1, 1]} : vector<4x512xf32> to vector<4x128xf32>
    %379 = math.tanh %378 : vector<4x128xf32>
    %380 = vector.extract_strided_slice %365 {offsets = [0, 384], sizes = [4, 128], strides = [1, 1]} : vector<4x512xf32> to vector<4x128xf32>
    %381 = arith.negf %380 : vector<4x128xf32>
    %382 = math.exp %381 : vector<4x128xf32>
    %cst_164 = arith.constant 1.000000e+00 : f32
    %383 = vector.broadcast %cst_164 : f32 to vector<4x128xf32>
    %384 = arith.addf %383, %382 : vector<4x128xf32>
    %385 = arith.divf %383, %384 : vector<4x128xf32>
    %386 = arith.mulf %377, %354 : vector<4x128xf32>
    %387 = arith.mulf %371, %379 : vector<4x128xf32>
    %388 = arith.addf %386, %387 : vector<4x128xf32>
    %389 = math.tanh %388 : vector<4x128xf32>
    %390 = arith.mulf %385, %389 : vector<4x128xf32>
    %391 = vector.extract_strided_slice %390 {offsets = [0, 0], sizes = [2, 128], strides = [1, 1]} : vector<4x128xf32> to vector<2x128xf32>
    %392 = vector.extract_strided_slice %390 {offsets = [2, 0], sizes = [2, 128], strides = [1, 1]} : vector<4x128xf32> to vector<2x128xf32>
    %c0_165 = arith.constant 0 : index
    %c0_166 = arith.constant 0 : index
    %393 = vector.load %arg13[%c0_165, %c0_166] : memref<16x256xf32, #tpu.memory_space<vmem>>, vector<2x128xf32>
    tpu.vector_store %arg13[%c0_165, %c0_166], %391 {strides = array<i32>} : memref<16x256xf32, #tpu.memory_space<vmem>>, vector<2x128xf32>,
    %c14_167 = arith.constant 14 : index
    %c128_168 = arith.constant 128 : index
    %394 = vector.load %arg13[%c14_167, %c128_168] : memref<16x256xf32, #tpu.memory_space<vmem>>, vector<2x128xf32>
    tpu.vector_store %arg13[%c14_167, %c128_168], %392 {strides = array<i32>} : memref<16x256xf32, #tpu.memory_space<vmem>>, vector<2x128xf32>,
    %395 = arith.truncf %391 : vector<2x128xf32> to vector<2x128xbf16>
    %c0_169 = arith.constant 0 : index
    %c0_170 = arith.constant 0 : index
    %396 = vector.load %arg16[%c0_169, %c0_170] : memref<128x512xbf16, #tpu.memory_space<vmem>>, vector<128x512xbf16>
    %cst_171 = arith.constant dense<0.000000e+00> : vector<2x512xf32>
    %397 = tpu.matmul %395, %396, %cst_171 {dimension_numbers = #tpu.dot_dimension_numbers<[1], [0], [0], [1], [0, 0, 1, 1], [], []>} : vector<2x128xbf16>, vector<128x512xbf16>, vector<2x512xf32> -> vector<2x512xf32>
    %c2_172 = arith.constant 2 : index
    %c0_173 = arith.constant 0 : index
    %398 = vector.load %arg14[%c2_172, %c0_173] : memref<16x1024xf32, #tpu.memory_space<vmem>>, vector<2x512xf32>
    %399 = arith.addf %397, %398 : vector<2x512xf32>
    %400 = arith.truncf %392 : vector<2x128xf32> to vector<2x128xbf16>
    %c0_174 = arith.constant 0 : index
    %c0_175 = arith.constant 0 : index
    %401 = vector.load %arg17[%c0_174, %c0_175] : memref<128x512xbf16, #tpu.memory_space<vmem>>, vector<128x512xbf16>
    %cst_176 = arith.constant dense<0.000000e+00> : vector<2x512xf32>
    %402 = tpu.matmul %400, %401, %cst_176 {dimension_numbers = #tpu.dot_dimension_numbers<[1], [0], [0], [1], [0, 0, 1, 1], [], []>} : vector<2x128xbf16>, vector<128x512xbf16>, vector<2x512xf32> -> vector<2x512xf32>
    %c12_177 = arith.constant 12 : index
    %c512_178 = arith.constant 512 : index
    %403 = vector.load %arg14[%c12_177, %c512_178] : memref<16x1024xf32, #tpu.memory_space<vmem>>, vector<2x512xf32>
    %404 = arith.addf %402, %403 : vector<2x512xf32>
    %405 = tpu.concatenate %399, %404 in 0 : vector<2x512xf32>, vector<2x512xf32> -> vector<4x512xf32>
    %406 = vector.extract_strided_slice %405 {offsets = [0, 0], sizes = [4, 128], strides = [1, 1]} : vector<4x512xf32> to vector<4x128xf32>
    %407 = arith.negf %406 : vector<4x128xf32>
    %408 = math.exp %407 : vector<4x128xf32>
    %cst_179 = arith.constant 1.000000e+00 : f32
    %409 = vector.broadcast %cst_179 : f32 to vector<4x128xf32>
    %410 = arith.addf %409, %408 : vector<4x128xf32>
    %411 = arith.divf %409, %410 : vector<4x128xf32>
    %412 = vector.extract_strided_slice %405 {offsets = [0, 128], sizes = [4, 128], strides = [1, 1]} : vector<4x512xf32> to vector<4x128xf32>
    %413 = arith.negf %412 : vector<4x128xf32>
    %414 = math.exp %413 : vector<4x128xf32>
    %cst_180 = arith.constant 1.000000e+00 : f32
    %415 = vector.broadcast %cst_180 : f32 to vector<4x128xf32>
    %416 = arith.addf %415, %414 : vector<4x128xf32>
    %417 = arith.divf %415, %416 : vector<4x128xf32>
    %418 = vector.extract_strided_slice %405 {offsets = [0, 256], sizes = [4, 128], strides = [1, 1]} : vector<4x512xf32> to vector<4x128xf32>
    %419 = math.tanh %418 : vector<4x128xf32>
    %420 = vector.extract_strided_slice %405 {offsets = [0, 384], sizes = [4, 128], strides = [1, 1]} : vector<4x512xf32> to vector<4x128xf32>
    %421 = arith.negf %420 : vector<4x128xf32>
    %422 = math.exp %421 : vector<4x128xf32>
    %cst_181 = arith.constant 1.000000e+00 : f32
    %423 = vector.broadcast %cst_181 : f32 to vector<4x128xf32>
    %424 = arith.addf %423, %422 : vector<4x128xf32>
    %425 = arith.divf %423, %424 : vector<4x128xf32>
    %426 = arith.mulf %417, %388 : vector<4x128xf32>
    %427 = arith.mulf %411, %419 : vector<4x128xf32>
    %428 = arith.addf %426, %427 : vector<4x128xf32>
    %429 = math.tanh %428 : vector<4x128xf32>
    %430 = arith.mulf %425, %429 : vector<4x128xf32>
    %431 = vector.extract_strided_slice %430 {offsets = [0, 0], sizes = [2, 128], strides = [1, 1]} : vector<4x128xf32> to vector<2x128xf32>
    %432 = vector.extract_strided_slice %430 {offsets = [2, 0], sizes = [2, 128], strides = [1, 1]} : vector<4x128xf32> to vector<2x128xf32>
    %c2_182 = arith.constant 2 : index
    %c0_183 = arith.constant 0 : index
    %433 = vector.load %arg13[%c2_182, %c0_183] : memref<16x256xf32, #tpu.memory_space<vmem>>, vector<2x128xf32>
    tpu.vector_store %arg13[%c2_182, %c0_183], %431 {strides = array<i32>} : memref<16x256xf32, #tpu.memory_space<vmem>>, vector<2x128xf32>,
    %c12_184 = arith.constant 12 : index
    %c128_185 = arith.constant 128 : index
    %434 = vector.load %arg13[%c12_184, %c128_185] : memref<16x256xf32, #tpu.memory_space<vmem>>, vector<2x128xf32>
    tpu.vector_store %arg13[%c12_184, %c128_185], %432 {strides = array<i32>} : memref<16x256xf32, #tpu.memory_space<vmem>>, vector<2x128xf32>,
    %435 = arith.truncf %431 : vector<2x128xf32> to vector<2x128xbf16>
    %c0_186 = arith.constant 0 : index
    %c0_187 = arith.constant 0 : index
    %436 = vector.load %arg16[%c0_186, %c0_187] : memref<128x512xbf16, #tpu.memory_space<vmem>>, vector<128x512xbf16>
    %cst_188 = arith.constant dense<0.000000e+00> : vector<2x512xf32>
    %437 = tpu.matmul %435, %436, %cst_188 {dimension_numbers = #tpu.dot_dimension_numbers<[1], [0], [0], [1], [0, 0, 1, 1], [], []>} : vector<2x128xbf16>, vector<128x512xbf16>, vector<2x512xf32> -> vector<2x512xf32>
    %c4_189 = arith.constant 4 : index
    %c0_190 = arith.constant 0 : index
    %438 = vector.load %arg14[%c4_189, %c0_190] : memref<16x1024xf32, #tpu.memory_space<vmem>>, vector<2x512xf32>
    %439 = arith.addf %437, %438 : vector<2x512xf32>
    %440 = arith.truncf %432 : vector<2x128xf32> to vector<2x128xbf16>
    %c0_191 = arith.constant 0 : index
    %c0_192 = arith.constant 0 : index
    %441 = vector.load %arg17[%c0_191, %c0_192] : memref<128x512xbf16, #tpu.memory_space<vmem>>, vector<128x512xbf16>
    %cst_193 = arith.constant dense<0.000000e+00> : vector<2x512xf32>
    %442 = tpu.matmul %440, %441, %cst_193 {dimension_numbers = #tpu.dot_dimension_numbers<[1], [0], [0], [1], [0, 0, 1, 1], [], []>} : vector<2x128xbf16>, vector<128x512xbf16>, vector<2x512xf32> -> vector<2x512xf32>
    %c10_194 = arith.constant 10 : index
    %c512_195 = arith.constant 512 : index
    %443 = vector.load %arg14[%c10_194, %c512_195] : memref<16x1024xf32, #tpu.memory_space<vmem>>, vector<2x512xf32>
    %444 = arith.addf %442, %443 : vector<2x512xf32>
    %445 = tpu.concatenate %439, %444 in 0 : vector<2x512xf32>, vector<2x512xf32> -> vector<4x512xf32>
    %446 = vector.extract_strided_slice %445 {offsets = [0, 0], sizes = [4, 128], strides = [1, 1]} : vector<4x512xf32> to vector<4x128xf32>
    %447 = arith.negf %446 : vector<4x128xf32>
    %448 = math.exp %447 : vector<4x128xf32>
    %cst_196 = arith.constant 1.000000e+00 : f32
    %449 = vector.broadcast %cst_196 : f32 to vector<4x128xf32>
    %450 = arith.addf %449, %448 : vector<4x128xf32>
    %451 = arith.divf %449, %450 : vector<4x128xf32>
    %452 = vector.extract_strided_slice %445 {offsets = [0, 128], sizes = [4, 128], strides = [1, 1]} : vector<4x512xf32> to vector<4x128xf32>
    %453 = arith.negf %452 : vector<4x128xf32>
    %454 = math.exp %453 : vector<4x128xf32>
    %cst_197 = arith.constant 1.000000e+00 : f32
    %455 = vector.broadcast %cst_197 : f32 to vector<4x128xf32>
    %456 = arith.addf %455, %454 : vector<4x128xf32>
    %457 = arith.divf %455, %456 : vector<4x128xf32>
    %458 = vector.extract_strided_slice %445 {offsets = [0, 256], sizes = [4, 128], strides = [1, 1]} : vector<4x512xf32> to vector<4x128xf32>
    %459 = math.tanh %458 : vector<4x128xf32>
    %460 = vector.extract_strided_slice %445 {offsets = [0, 384], sizes = [4, 128], strides = [1, 1]} : vector<4x512xf32> to vector<4x128xf32>
    %461 = arith.negf %460 : vector<4x128xf32>
    %462 = math.exp %461 : vector<4x128xf32>
    %cst_198 = arith.constant 1.000000e+00 : f32
    %463 = vector.broadcast %cst_198 : f32 to vector<4x128xf32>
    %464 = arith.addf %463, %462 : vector<4x128xf32>
    %465 = arith.divf %463, %464 : vector<4x128xf32>
    %466 = arith.mulf %457, %428 : vector<4x128xf32>
    %467 = arith.mulf %451, %459 : vector<4x128xf32>
    %468 = arith.addf %466, %467 : vector<4x128xf32>
    %469 = math.tanh %468 : vector<4x128xf32>
    %470 = arith.mulf %465, %469 : vector<4x128xf32>
    %471 = vector.extract_strided_slice %470 {offsets = [0, 0], sizes = [2, 128], strides = [1, 1]} : vector<4x128xf32> to vector<2x128xf32>
    %472 = vector.extract_strided_slice %470 {offsets = [2, 0], sizes = [2, 128], strides = [1, 1]} : vector<4x128xf32> to vector<2x128xf32>
    %c4_199 = arith.constant 4 : index
    %c0_200 = arith.constant 0 : index
    %473 = vector.load %arg13[%c4_199, %c0_200] : memref<16x256xf32, #tpu.memory_space<vmem>>, vector<2x128xf32>
    tpu.vector_store %arg13[%c4_199, %c0_200], %471 {strides = array<i32>} : memref<16x256xf32, #tpu.memory_space<vmem>>, vector<2x128xf32>,
    %c10_201 = arith.constant 10 : index
    %c128_202 = arith.constant 128 : index
    %474 = vector.load %arg13[%c10_201, %c128_202] : memref<16x256xf32, #tpu.memory_space<vmem>>, vector<2x128xf32>
    tpu.vector_store %arg13[%c10_201, %c128_202], %472 {strides = array<i32>} : memref<16x256xf32, #tpu.memory_space<vmem>>, vector<2x128xf32>,
    %475 = arith.truncf %471 : vector<2x128xf32> to vector<2x128xbf16>
    %c0_203 = arith.constant 0 : index
    %c0_204 = arith.constant 0 : index
    %476 = vector.load %arg16[%c0_203, %c0_204] : memref<128x512xbf16, #tpu.memory_space<vmem>>, vector<128x512xbf16>
    %cst_205 = arith.constant dense<0.000000e+00> : vector<2x512xf32>
    %477 = tpu.matmul %475, %476, %cst_205 {dimension_numbers = #tpu.dot_dimension_numbers<[1], [0], [0], [1], [0, 0, 1, 1], [], []>} : vector<2x128xbf16>, vector<128x512xbf16>, vector<2x512xf32> -> vector<2x512xf32>
    %c6_206 = arith.constant 6 : index
    %c0_207 = arith.constant 0 : index
    %478 = vector.load %arg14[%c6_206, %c0_207] : memref<16x1024xf32, #tpu.memory_space<vmem>>, vector<2x512xf32>
    %479 = arith.addf %477, %478 : vector<2x512xf32>
    %480 = arith.truncf %472 : vector<2x128xf32> to vector<2x128xbf16>
    %c0_208 = arith.constant 0 : index
    %c0_209 = arith.constant 0 : index
    %481 = vector.load %arg17[%c0_208, %c0_209] : memref<128x512xbf16, #tpu.memory_space<vmem>>, vector<128x512xbf16>
    %cst_210 = arith.constant dense<0.000000e+00> : vector<2x512xf32>
    %482 = tpu.matmul %480, %481, %cst_210 {dimension_numbers = #tpu.dot_dimension_numbers<[1], [0], [0], [1], [0, 0, 1, 1], [], []>} : vector<2x128xbf16>, vector<128x512xbf16>, vector<2x512xf32> -> vector<2x512xf32>
    %c8_211 = arith.constant 8 : index
    %c512_212 = arith.constant 512 : index
    %483 = vector.load %arg14[%c8_211, %c512_212] : memref<16x1024xf32, #tpu.memory_space<vmem>>, vector<2x512xf32>
    %484 = arith.addf %482, %483 : vector<2x512xf32>
    %485 = tpu.concatenate %479, %484 in 0 : vector<2x512xf32>, vector<2x512xf32> -> vector<4x512xf32>
    %486 = vector.extract_strided_slice %485 {offsets = [0, 0], sizes = [4, 128], strides = [1, 1]} : vector<4x512xf32> to vector<4x128xf32>
    %487 = arith.negf %486 : vector<4x128xf32>
    %488 = math.exp %487 : vector<4x128xf32>
    %cst_213 = arith.constant 1.000000e+00 : f32
    %489 = vector.broadcast %cst_213 : f32 to vector<4x128xf32>
    %490 = arith.addf %489, %488 : vector<4x128xf32>
    %491 = arith.divf %489, %490 : vector<4x128xf32>
    %492 = vector.extract_strided_slice %485 {offsets = [0, 128], sizes = [4, 128], strides = [1, 1]} : vector<4x512xf32> to vector<4x128xf32>
    %493 = arith.negf %492 : vector<4x128xf32>
    %494 = math.exp %493 : vector<4x128xf32>
    %cst_214 = arith.constant 1.000000e+00 : f32
    %495 = vector.broadcast %cst_214 : f32 to vector<4x128xf32>
    %496 = arith.addf %495, %494 : vector<4x128xf32>
    %497 = arith.divf %495, %496 : vector<4x128xf32>
    %498 = vector.extract_strided_slice %485 {offsets = [0, 256], sizes = [4, 128], strides = [1, 1]} : vector<4x512xf32> to vector<4x128xf32>
    %499 = math.tanh %498 : vector<4x128xf32>
    %500 = vector.extract_strided_slice %485 {offsets = [0, 384], sizes = [4, 128], strides = [1, 1]} : vector<4x512xf32> to vector<4x128xf32>
    %501 = arith.negf %500 : vector<4x128xf32>
    %502 = math.exp %501 : vector<4x128xf32>
    %cst_215 = arith.constant 1.000000e+00 : f32
    %503 = vector.broadcast %cst_215 : f32 to vector<4x128xf32>
    %504 = arith.addf %503, %502 : vector<4x128xf32>
    %505 = arith.divf %503, %504 : vector<4x128xf32>
    %506 = arith.mulf %497, %468 : vector<4x128xf32>
    %507 = arith.mulf %491, %499 : vector<4x128xf32>
    %508 = arith.addf %506, %507 : vector<4x128xf32>
    %509 = math.tanh %508 : vector<4x128xf32>
    %510 = arith.mulf %505, %509 : vector<4x128xf32>
    %511 = vector.extract_strided_slice %510 {offsets = [0, 0], sizes = [2, 128], strides = [1, 1]} : vector<4x128xf32> to vector<2x128xf32>
    %512 = vector.extract_strided_slice %510 {offsets = [2, 0], sizes = [2, 128], strides = [1, 1]} : vector<4x128xf32> to vector<2x128xf32>
    %c6_216 = arith.constant 6 : index
    %c0_217 = arith.constant 0 : index
    %513 = vector.load %arg13[%c6_216, %c0_217] : memref<16x256xf32, #tpu.memory_space<vmem>>, vector<2x128xf32>
    tpu.vector_store %arg13[%c6_216, %c0_217], %511 {strides = array<i32>} : memref<16x256xf32, #tpu.memory_space<vmem>>, vector<2x128xf32>,
    %c8_218 = arith.constant 8 : index
    %c128_219 = arith.constant 128 : index
    %514 = vector.load %arg13[%c8_218, %c128_219] : memref<16x256xf32, #tpu.memory_space<vmem>>, vector<2x128xf32>
    tpu.vector_store %arg13[%c8_218, %c128_219], %512 {strides = array<i32>} : memref<16x256xf32, #tpu.memory_space<vmem>>, vector<2x128xf32>,
    %515 = arith.truncf %511 : vector<2x128xf32> to vector<2x128xbf16>
    %c0_220 = arith.constant 0 : index
    %c0_221 = arith.constant 0 : index
    %516 = vector.load %arg16[%c0_220, %c0_221] : memref<128x512xbf16, #tpu.memory_space<vmem>>, vector<128x512xbf16>
    %cst_222 = arith.constant dense<0.000000e+00> : vector<2x512xf32>
    %517 = tpu.matmul %515, %516, %cst_222 {dimension_numbers = #tpu.dot_dimension_numbers<[1], [0], [0], [1], [0, 0, 1, 1], [], []>} : vector<2x128xbf16>, vector<128x512xbf16>, vector<2x512xf32> -> vector<2x512xf32>
    %c8_223 = arith.constant 8 : index
    %c0_224 = arith.constant 0 : index
    %518 = vector.load %arg14[%c8_223, %c0_224] : memref<16x1024xf32, #tpu.memory_space<vmem>>, vector<2x512xf32>
    %519 = arith.addf %517, %518 : vector<2x512xf32>
    %520 = arith.truncf %512 : vector<2x128xf32> to vector<2x128xbf16>
    %c0_225 = arith.constant 0 : index
    %c0_226 = arith.constant 0 : index
    %521 = vector.load %arg17[%c0_225, %c0_226] : memref<128x512xbf16, #tpu.memory_space<vmem>>, vector<128x512xbf16>
    %cst_227 = arith.constant dense<0.000000e+00> : vector<2x512xf32>
    %522 = tpu.matmul %520, %521, %cst_227 {dimension_numbers = #tpu.dot_dimension_numbers<[1], [0], [0], [1], [0, 0, 1, 1], [], []>} : vector<2x128xbf16>, vector<128x512xbf16>, vector<2x512xf32> -> vector<2x512xf32>
    %c6_228 = arith.constant 6 : index
    %c512_229 = arith.constant 512 : index
    %523 = vector.load %arg14[%c6_228, %c512_229] : memref<16x1024xf32, #tpu.memory_space<vmem>>, vector<2x512xf32>
    %524 = arith.addf %522, %523 : vector<2x512xf32>
    %525 = tpu.concatenate %519, %524 in 0 : vector<2x512xf32>, vector<2x512xf32> -> vector<4x512xf32>
    %526 = vector.extract_strided_slice %525 {offsets = [0, 0], sizes = [4, 128], strides = [1, 1]} : vector<4x512xf32> to vector<4x128xf32>
    %527 = arith.negf %526 : vector<4x128xf32>
    %528 = math.exp %527 : vector<4x128xf32>
    %cst_230 = arith.constant 1.000000e+00 : f32
    %529 = vector.broadcast %cst_230 : f32 to vector<4x128xf32>
    %530 = arith.addf %529, %528 : vector<4x128xf32>
    %531 = arith.divf %529, %530 : vector<4x128xf32>
    %532 = vector.extract_strided_slice %525 {offsets = [0, 128], sizes = [4, 128], strides = [1, 1]} : vector<4x512xf32> to vector<4x128xf32>
    %533 = arith.negf %532 : vector<4x128xf32>
    %534 = math.exp %533 : vector<4x128xf32>
    %cst_231 = arith.constant 1.000000e+00 : f32
    %535 = vector.broadcast %cst_231 : f32 to vector<4x128xf32>
    %536 = arith.addf %535, %534 : vector<4x128xf32>
    %537 = arith.divf %535, %536 : vector<4x128xf32>
    %538 = vector.extract_strided_slice %525 {offsets = [0, 256], sizes = [4, 128], strides = [1, 1]} : vector<4x512xf32> to vector<4x128xf32>
    %539 = math.tanh %538 : vector<4x128xf32>
    %540 = vector.extract_strided_slice %525 {offsets = [0, 384], sizes = [4, 128], strides = [1, 1]} : vector<4x512xf32> to vector<4x128xf32>
    %541 = arith.negf %540 : vector<4x128xf32>
    %542 = math.exp %541 : vector<4x128xf32>
    %cst_232 = arith.constant 1.000000e+00 : f32
    %543 = vector.broadcast %cst_232 : f32 to vector<4x128xf32>
    %544 = arith.addf %543, %542 : vector<4x128xf32>
    %545 = arith.divf %543, %544 : vector<4x128xf32>
    %546 = arith.mulf %537, %508 : vector<4x128xf32>
    %547 = arith.mulf %531, %539 : vector<4x128xf32>
    %548 = arith.addf %546, %547 : vector<4x128xf32>
    %549 = math.tanh %548 : vector<4x128xf32>
    %550 = arith.mulf %545, %549 : vector<4x128xf32>
    %551 = vector.extract_strided_slice %550 {offsets = [0, 0], sizes = [2, 128], strides = [1, 1]} : vector<4x128xf32> to vector<2x128xf32>
    %552 = vector.extract_strided_slice %550 {offsets = [2, 0], sizes = [2, 128], strides = [1, 1]} : vector<4x128xf32> to vector<2x128xf32>
    %c8_233 = arith.constant 8 : index
    %c0_234 = arith.constant 0 : index
    %553 = vector.load %arg13[%c8_233, %c0_234] : memref<16x256xf32, #tpu.memory_space<vmem>>, vector<2x128xf32>
    tpu.vector_store %arg13[%c8_233, %c0_234], %551 {strides = array<i32>} : memref<16x256xf32, #tpu.memory_space<vmem>>, vector<2x128xf32>,
    %c6_235 = arith.constant 6 : index
    %c128_236 = arith.constant 128 : index
    %554 = vector.load %arg13[%c6_235, %c128_236] : memref<16x256xf32, #tpu.memory_space<vmem>>, vector<2x128xf32>
    tpu.vector_store %arg13[%c6_235, %c128_236], %552 {strides = array<i32>} : memref<16x256xf32, #tpu.memory_space<vmem>>, vector<2x128xf32>,
    %555 = arith.truncf %551 : vector<2x128xf32> to vector<2x128xbf16>
    %c0_237 = arith.constant 0 : index
    %c0_238 = arith.constant 0 : index
    %556 = vector.load %arg16[%c0_237, %c0_238] : memref<128x512xbf16, #tpu.memory_space<vmem>>, vector<128x512xbf16>
    %cst_239 = arith.constant dense<0.000000e+00> : vector<2x512xf32>
    %557 = tpu.matmul %555, %556, %cst_239 {dimension_numbers = #tpu.dot_dimension_numbers<[1], [0], [0], [1], [0, 0, 1, 1], [], []>} : vector<2x128xbf16>, vector<128x512xbf16>, vector<2x512xf32> -> vector<2x512xf32>
    %c10_240 = arith.constant 10 : index
    %c0_241 = arith.constant 0 : index
    %558 = vector.load %arg14[%c10_240, %c0_241] : memref<16x1024xf32, #tpu.memory_space<vmem>>, vector<2x512xf32>
    %559 = arith.addf %557, %558 : vector<2x512xf32>
    %560 = arith.truncf %552 : vector<2x128xf32> to vector<2x128xbf16>
    %c0_242 = arith.constant 0 : index
    %c0_243 = arith.constant 0 : index
    %561 = vector.load %arg17[%c0_242, %c0_243] : memref<128x512xbf16, #tpu.memory_space<vmem>>, vector<128x512xbf16>
    %cst_244 = arith.constant dense<0.000000e+00> : vector<2x512xf32>
    %562 = tpu.matmul %560, %561, %cst_244 {dimension_numbers = #tpu.dot_dimension_numbers<[1], [0], [0], [1], [0, 0, 1, 1], [], []>} : vector<2x128xbf16>, vector<128x512xbf16>, vector<2x512xf32> -> vector<2x512xf32>
    %c4_245 = arith.constant 4 : index
    %c512_246 = arith.constant 512 : index
    %563 = vector.load %arg14[%c4_245, %c512_246] : memref<16x1024xf32, #tpu.memory_space<vmem>>, vector<2x512xf32>
    %564 = arith.addf %562, %563 : vector<2x512xf32>
    %565 = tpu.concatenate %559, %564 in 0 : vector<2x512xf32>, vector<2x512xf32> -> vector<4x512xf32>
    %566 = vector.extract_strided_slice %565 {offsets = [0, 0], sizes = [4, 128], strides = [1, 1]} : vector<4x512xf32> to vector<4x128xf32>
    %567 = arith.negf %566 : vector<4x128xf32>
    %568 = math.exp %567 : vector<4x128xf32>
    %cst_247 = arith.constant 1.000000e+00 : f32
    %569 = vector.broadcast %cst_247 : f32 to vector<4x128xf32>
    %570 = arith.addf %569, %568 : vector<4x128xf32>
    %571 = arith.divf %569, %570 : vector<4x128xf32>
    %572 = vector.extract_strided_slice %565 {offsets = [0, 128], sizes = [4, 128], strides = [1, 1]} : vector<4x512xf32> to vector<4x128xf32>
    %573 = arith.negf %572 : vector<4x128xf32>
    %574 = math.exp %573 : vector<4x128xf32>
    %cst_248 = arith.constant 1.000000e+00 : f32
    %575 = vector.broadcast %cst_248 : f32 to vector<4x128xf32>
    %576 = arith.addf %575, %574 : vector<4x128xf32>
    %577 = arith.divf %575, %576 : vector<4x128xf32>
    %578 = vector.extract_strided_slice %565 {offsets = [0, 256], sizes = [4, 128], strides = [1, 1]} : vector<4x512xf32> to vector<4x128xf32>
    %579 = math.tanh %578 : vector<4x128xf32>
    %580 = vector.extract_strided_slice %565 {offsets = [0, 384], sizes = [4, 128], strides = [1, 1]} : vector<4x512xf32> to vector<4x128xf32>
    %581 = arith.negf %580 : vector<4x128xf32>
    %582 = math.exp %581 : vector<4x128xf32>
    %cst_249 = arith.constant 1.000000e+00 : f32
    %583 = vector.broadcast %cst_249 : f32 to vector<4x128xf32>
    %584 = arith.addf %583, %582 : vector<4x128xf32>
    %585 = arith.divf %583, %584 : vector<4x128xf32>
    %586 = arith.mulf %577, %548 : vector<4x128xf32>
    %587 = arith.mulf %571, %579 : vector<4x128xf32>
    %588 = arith.addf %586, %587 : vector<4x128xf32>
    %589 = math.tanh %588 : vector<4x128xf32>
    %590 = arith.mulf %585, %589 : vector<4x128xf32>
    %591 = vector.extract_strided_slice %590 {offsets = [0, 0], sizes = [2, 128], strides = [1, 1]} : vector<4x128xf32> to vector<2x128xf32>
    %592 = vector.extract_strided_slice %590 {offsets = [2, 0], sizes = [2, 128], strides = [1, 1]} : vector<4x128xf32> to vector<2x128xf32>
    %c10_250 = arith.constant 10 : index
    %c0_251 = arith.constant 0 : index
    %593 = vector.load %arg13[%c10_250, %c0_251] : memref<16x256xf32, #tpu.memory_space<vmem>>, vector<2x128xf32>
    tpu.vector_store %arg13[%c10_250, %c0_251], %591 {strides = array<i32>} : memref<16x256xf32, #tpu.memory_space<vmem>>, vector<2x128xf32>,
    %c4_252 = arith.constant 4 : index
    %c128_253 = arith.constant 128 : index
    %594 = vector.load %arg13[%c4_252, %c128_253] : memref<16x256xf32, #tpu.memory_space<vmem>>, vector<2x128xf32>
    tpu.vector_store %arg13[%c4_252, %c128_253], %592 {strides = array<i32>} : memref<16x256xf32, #tpu.memory_space<vmem>>, vector<2x128xf32>,
    %595 = arith.truncf %591 : vector<2x128xf32> to vector<2x128xbf16>
    %c0_254 = arith.constant 0 : index
    %c0_255 = arith.constant 0 : index
    %596 = vector.load %arg16[%c0_254, %c0_255] : memref<128x512xbf16, #tpu.memory_space<vmem>>, vector<128x512xbf16>
    %cst_256 = arith.constant dense<0.000000e+00> : vector<2x512xf32>
    %597 = tpu.matmul %595, %596, %cst_256 {dimension_numbers = #tpu.dot_dimension_numbers<[1], [0], [0], [1], [0, 0, 1, 1], [], []>} : vector<2x128xbf16>, vector<128x512xbf16>, vector<2x512xf32> -> vector<2x512xf32>
    %c12_257 = arith.constant 12 : index
    %c0_258 = arith.constant 0 : index
    %598 = vector.load %arg14[%c12_257, %c0_258] : memref<16x1024xf32, #tpu.memory_space<vmem>>, vector<2x512xf32>
    %599 = arith.addf %597, %598 : vector<2x512xf32>
    %600 = arith.truncf %592 : vector<2x128xf32> to vector<2x128xbf16>
    %c0_259 = arith.constant 0 : index
    %c0_260 = arith.constant 0 : index
    %601 = vector.load %arg17[%c0_259, %c0_260] : memref<128x512xbf16, #tpu.memory_space<vmem>>, vector<128x512xbf16>
    %cst_261 = arith.constant dense<0.000000e+00> : vector<2x512xf32>
    %602 = tpu.matmul %600, %601, %cst_261 {dimension_numbers = #tpu.dot_dimension_numbers<[1], [0], [0], [1], [0, 0, 1, 1], [], []>} : vector<2x128xbf16>, vector<128x512xbf16>, vector<2x512xf32> -> vector<2x512xf32>
    %c2_262 = arith.constant 2 : index
    %c512_263 = arith.constant 512 : index
    %603 = vector.load %arg14[%c2_262, %c512_263] : memref<16x1024xf32, #tpu.memory_space<vmem>>, vector<2x512xf32>
    %604 = arith.addf %602, %603 : vector<2x512xf32>
    %605 = tpu.concatenate %599, %604 in 0 : vector<2x512xf32>, vector<2x512xf32> -> vector<4x512xf32>
    %606 = vector.extract_strided_slice %605 {offsets = [0, 0], sizes = [4, 128], strides = [1, 1]} : vector<4x512xf32> to vector<4x128xf32>
    %607 = arith.negf %606 : vector<4x128xf32>
    %608 = math.exp %607 : vector<4x128xf32>
    %cst_264 = arith.constant 1.000000e+00 : f32
    %609 = vector.broadcast %cst_264 : f32 to vector<4x128xf32>
    %610 = arith.addf %609, %608 : vector<4x128xf32>
    %611 = arith.divf %609, %610 : vector<4x128xf32>
    %612 = vector.extract_strided_slice %605 {offsets = [0, 128], sizes = [4, 128], strides = [1, 1]} : vector<4x512xf32> to vector<4x128xf32>
    %613 = arith.negf %612 : vector<4x128xf32>
    %614 = math.exp %613 : vector<4x128xf32>
    %cst_265 = arith.constant 1.000000e+00 : f32
    %615 = vector.broadcast %cst_265 : f32 to vector<4x128xf32>
    %616 = arith.addf %615, %614 : vector<4x128xf32>
    %617 = arith.divf %615, %616 : vector<4x128xf32>
    %618 = vector.extract_strided_slice %605 {offsets = [0, 256], sizes = [4, 128], strides = [1, 1]} : vector<4x512xf32> to vector<4x128xf32>
    %619 = math.tanh %618 : vector<4x128xf32>
    %620 = vector.extract_strided_slice %605 {offsets = [0, 384], sizes = [4, 128], strides = [1, 1]} : vector<4x512xf32> to vector<4x128xf32>
    %621 = arith.negf %620 : vector<4x128xf32>
    %622 = math.exp %621 : vector<4x128xf32>
    %cst_266 = arith.constant 1.000000e+00 : f32
    %623 = vector.broadcast %cst_266 : f32 to vector<4x128xf32>
    %624 = arith.addf %623, %622 : vector<4x128xf32>
    %625 = arith.divf %623, %624 : vector<4x128xf32>
    %626 = arith.mulf %617, %588 : vector<4x128xf32>
    %627 = arith.mulf %611, %619 : vector<4x128xf32>
    %628 = arith.addf %626, %627 : vector<4x128xf32>
    %629 = math.tanh %628 : vector<4x128xf32>
    %630 = arith.mulf %625, %629 : vector<4x128xf32>
    %631 = vector.extract_strided_slice %630 {offsets = [0, 0], sizes = [2, 128], strides = [1, 1]} : vector<4x128xf32> to vector<2x128xf32>
    %632 = vector.extract_strided_slice %630 {offsets = [2, 0], sizes = [2, 128], strides = [1, 1]} : vector<4x128xf32> to vector<2x128xf32>
    %c12_267 = arith.constant 12 : index
    %c0_268 = arith.constant 0 : index
    %633 = vector.load %arg13[%c12_267, %c0_268] : memref<16x256xf32, #tpu.memory_space<vmem>>, vector<2x128xf32>
    tpu.vector_store %arg13[%c12_267, %c0_268], %631 {strides = array<i32>} : memref<16x256xf32, #tpu.memory_space<vmem>>, vector<2x128xf32>,
    %c2_269 = arith.constant 2 : index
    %c128_270 = arith.constant 128 : index
    %634 = vector.load %arg13[%c2_269, %c128_270] : memref<16x256xf32, #tpu.memory_space<vmem>>, vector<2x128xf32>
    tpu.vector_store %arg13[%c2_269, %c128_270], %632 {strides = array<i32>} : memref<16x256xf32, #tpu.memory_space<vmem>>, vector<2x128xf32>,
    %635 = arith.truncf %631 : vector<2x128xf32> to vector<2x128xbf16>
    %c0_271 = arith.constant 0 : index
    %c0_272 = arith.constant 0 : index
    %636 = vector.load %arg16[%c0_271, %c0_272] : memref<128x512xbf16, #tpu.memory_space<vmem>>, vector<128x512xbf16>
    %cst_273 = arith.constant dense<0.000000e+00> : vector<2x512xf32>
    %637 = tpu.matmul %635, %636, %cst_273 {dimension_numbers = #tpu.dot_dimension_numbers<[1], [0], [0], [1], [0, 0, 1, 1], [], []>} : vector<2x128xbf16>, vector<128x512xbf16>, vector<2x512xf32> -> vector<2x512xf32>
    %c14_274 = arith.constant 14 : index
    %c0_275 = arith.constant 0 : index
    %638 = vector.load %arg14[%c14_274, %c0_275] : memref<16x1024xf32, #tpu.memory_space<vmem>>, vector<2x512xf32>
    %639 = arith.addf %637, %638 : vector<2x512xf32>
    %640 = arith.truncf %632 : vector<2x128xf32> to vector<2x128xbf16>
    %c0_276 = arith.constant 0 : index
    %c0_277 = arith.constant 0 : index
    %641 = vector.load %arg17[%c0_276, %c0_277] : memref<128x512xbf16, #tpu.memory_space<vmem>>, vector<128x512xbf16>
    %cst_278 = arith.constant dense<0.000000e+00> : vector<2x512xf32>
    %642 = tpu.matmul %640, %641, %cst_278 {dimension_numbers = #tpu.dot_dimension_numbers<[1], [0], [0], [1], [0, 0, 1, 1], [], []>} : vector<2x128xbf16>, vector<128x512xbf16>, vector<2x512xf32> -> vector<2x512xf32>
    %c0_279 = arith.constant 0 : index
    %c512_280 = arith.constant 512 : index
    %643 = vector.load %arg14[%c0_279, %c512_280] : memref<16x1024xf32, #tpu.memory_space<vmem>>, vector<2x512xf32>
    %644 = arith.addf %642, %643 : vector<2x512xf32>
    %645 = tpu.concatenate %639, %644 in 0 : vector<2x512xf32>, vector<2x512xf32> -> vector<4x512xf32>
    %646 = vector.extract_strided_slice %645 {offsets = [0, 0], sizes = [4, 128], strides = [1, 1]} : vector<4x512xf32> to vector<4x128xf32>
    %647 = arith.negf %646 : vector<4x128xf32>
    %648 = math.exp %647 : vector<4x128xf32>
    %cst_281 = arith.constant 1.000000e+00 : f32
    %649 = vector.broadcast %cst_281 : f32 to vector<4x128xf32>
    %650 = arith.addf %649, %648 : vector<4x128xf32>
    %651 = arith.divf %649, %650 : vector<4x128xf32>
    %652 = vector.extract_strided_slice %645 {offsets = [0, 128], sizes = [4, 128], strides = [1, 1]} : vector<4x512xf32> to vector<4x128xf32>
    %653 = arith.negf %652 : vector<4x128xf32>
    %654 = math.exp %653 : vector<4x128xf32>
    %cst_282 = arith.constant 1.000000e+00 : f32
    %655 = vector.broadcast %cst_282 : f32 to vector<4x128xf32>
    %656 = arith.addf %655, %654 : vector<4x128xf32>
    %657 = arith.divf %655, %656 : vector<4x128xf32>
    %658 = vector.extract_strided_slice %645 {offsets = [0, 256], sizes = [4, 128], strides = [1, 1]} : vector<4x512xf32> to vector<4x128xf32>
    %659 = math.tanh %658 : vector<4x128xf32>
    %660 = vector.extract_strided_slice %645 {offsets = [0, 384], sizes = [4, 128], strides = [1, 1]} : vector<4x512xf32> to vector<4x128xf32>
    %661 = arith.negf %660 : vector<4x128xf32>
    %662 = math.exp %661 : vector<4x128xf32>
    %cst_283 = arith.constant 1.000000e+00 : f32
    %663 = vector.broadcast %cst_283 : f32 to vector<4x128xf32>
    %664 = arith.addf %663, %662 : vector<4x128xf32>
    %665 = arith.divf %663, %664 : vector<4x128xf32>
    %666 = arith.mulf %657, %628 : vector<4x128xf32>
    %667 = arith.mulf %651, %659 : vector<4x128xf32>
    %668 = arith.addf %666, %667 : vector<4x128xf32>
    %669 = math.tanh %668 : vector<4x128xf32>
    %670 = arith.mulf %665, %669 : vector<4x128xf32>
    %671 = vector.extract_strided_slice %670 {offsets = [0, 0], sizes = [2, 128], strides = [1, 1]} : vector<4x128xf32> to vector<2x128xf32>
    %672 = vector.extract_strided_slice %670 {offsets = [2, 0], sizes = [2, 128], strides = [1, 1]} : vector<4x128xf32> to vector<2x128xf32>
    %c14_284 = arith.constant 14 : index
    %c0_285 = arith.constant 0 : index
    %673 = vector.load %arg13[%c14_284, %c0_285] : memref<16x256xf32, #tpu.memory_space<vmem>>, vector<2x128xf32>
    tpu.vector_store %arg13[%c14_284, %c0_285], %671 {strides = array<i32>} : memref<16x256xf32, #tpu.memory_space<vmem>>, vector<2x128xf32>,
    %c0_286 = arith.constant 0 : index
    %c128_287 = arith.constant 128 : index
    %674 = vector.load %arg13[%c0_286, %c128_287] : memref<16x256xf32, #tpu.memory_space<vmem>>, vector<2x128xf32>
    tpu.vector_store %arg13[%c0_286, %c128_287], %672 {strides = array<i32>} : memref<16x256xf32, #tpu.memory_space<vmem>>, vector<2x128xf32>,
    %c3_i32_288 = arith.constant 3 : i32
    %675 = tpu.memref_slice %arg19[%c3_i32_288] : memref<4x!tpu.dma_semaphore, #tpu.memory_space<semaphore_mem>> -> memref<1x!tpu.dma_semaphore, #tpu.memory_space<semaphore_mem>>
    %676 = tpu.memref_squeeze %675 : memref<1x!tpu.dma_semaphore, #tpu.memory_space<semaphore_mem>> -> memref<!tpu.dma_semaphore, #tpu.memory_space<semaphore_mem>>
    tpu.wait_dma2 semaphore(%676 : memref<!tpu.dma_semaphore, #tpu.memory_space<semaphore_mem>>) src(%arg9 : memref<256x128xbf16, #tpu.memory_space<any>>) dst(%arg18 : memref<256x128xbf16, #tpu.memory_space<vmem>>)
    %c0_289 = arith.constant 0 : index
    %c0_290 = arith.constant 0 : index
    %677 = vector.load %arg13[%c0_289, %c0_290] : memref<16x256xf32, #tpu.memory_space<vmem>>, vector<16x256xf32>
    %678 = arith.truncf %677 : vector<16x256xf32> to vector<16x256xbf16>
    %c0_291 = arith.constant 0 : index
    %c0_292 = arith.constant 0 : index
    %679 = vector.load %arg18[%c0_291, %c0_292] : memref<256x128xbf16, #tpu.memory_space<vmem>>, vector<256x128xbf16>
    %cst_293 = arith.constant dense<0.000000e+00> : vector<16x128xf32>
    %680 = tpu.matmul %678, %679, %cst_293 {dimension_numbers = #tpu.dot_dimension_numbers<[1], [0], [0], [1], [0, 0, 1, 1], [], []>} : vector<16x256xbf16>, vector<256x128xbf16>, vector<16x128xf32> -> vector<16x128xf32>
    %c0_294 = arith.constant 0 : index
    %c0_295 = arith.constant 0 : index
    %681 = vector.load %arg10[%c0_294, %c0_295] : memref<1x128xf32, #tpu.memory_space<vmem>>, vector<1x128xf32>
    %682 = vector.broadcast %681 : vector<1x128xf32> to vector<16x128xf32>
    %683 = arith.addf %680, %682 : vector<16x128xf32>
    %c0_296 = arith.constant 0 : index
    %c0_297 = arith.constant 0 : index
    %684 = vector.load %arg11[%c0_296, %c0_297] : memref<16x128xf32, #tpu.memory_space<vmem>>, vector<16x128xf32>
    tpu.vector_store %arg11[%c0_296, %c0_297], %683 {strides = array<i32>} : memref<16x128xf32, #tpu.memory_space<vmem>>, vector<16x128xf32>,
    return
  }
}

</mosaic_0001>

<llo_original>
// kernel: lstm_model_forward.1
$region0: #{lstm_model_forward.1}
  #allocation0 [shape = 'u32[]', space=smem, size = 0x4, offset = 0x4, fixed_abs, tag = 'smem constant byte address 0x4 - core index']
  #allocation1 [shape = 'u32[72,128]{1,0:T(1,128)}', space=vmem, size = 0x9000, scoped, tag = 'internal scratch']
  #allocation2 [shape = 'f32[16,256]{1,0:T(8,128)}', space=vmem, size = 0x4000, scoped, tag = 'scratch operand']
  #allocation3 [shape = 'f32[16,256]{1,0:T(8,128)}', space=vmem, size = 0x4000, scoped, tag = 'scratch operand']
  #allocation4 [shape = 'f32[16,1024]{1,0:T(8,128)}', space=vmem, size = 0x10000, scoped, tag = 'scratch operand']
  #allocation5 [shape = 'bf16[256,1024]{1,0:T(8,128)(2,1)}', space=vmem, size = 0x80000, scoped, tag = 'scratch operand']
  #allocation6 [shape = 'bf16[128,512]{1,0:T(8,128)(2,1)}', space=vmem, size = 0x20000, scoped, tag = 'scratch operand']
  #allocation7 [shape = 'bf16[128,512]{1,0:T(8,128)(2,1)}', space=vmem, size = 0x20000, scoped, tag = 'scratch operand']
  #allocation8 [shape = 'bf16[256,128]{1,0:T(8,128)(2,1)}', space=vmem, size = 0x10000, scoped, tag = 'scratch operand']
  #allocation9 [shape = 's32[4]{0}', space=sflag, size = 0x10, scoped, tag = 'scratch operand']
  #allocation10 [shape = 's32[]', space=sflag, size = 0x4, offset = 0, fixed_abs, tag = 'sflag constant byte address 0x0 - dummy sync flag']
  #allocation11 [shape = 's32[]', space=sflag, size = 0x4, offset = 0, fixed_abs, tag = 'sflag constant byte address 0x0 - dummy sync flag']
  #allocation12 [shape = 's32[]', space=sflag, size = 0x4, offset = 0, fixed_abs, tag = 'sflag constant byte address 0x0 - dummy sync flag']
  #allocation13 [shape = 's32[]', space=sflag, size = 0x4, offset = 0, fixed_abs, tag = 'sflag constant byte address 0x0 - dummy sync flag']
  %s0 = inlined_call_operand.vmem [shape: bf16[16,16], index: 0, kind: input, shape index: {}]
  %s1 = inlined_call_operand.vmem [shape: bf16[16,1024], index: 1, kind: input, shape index: {}]
  %s2 = inlined_call_operand.vmem [shape: f32[1,1024], index: 2, kind: input, shape index: {}]
  %s3 = inlined_call_operand.vmem [shape: bf16[128,512], index: 3, kind: input, shape index: {}]
  %s4 = inlined_call_operand.vmem [shape: bf16[128,512], index: 4, kind: input, shape index: {}]
  %s5 = inlined_call_operand.vmem [shape: bf16[256,1024], index: 5, kind: input, shape index: {}]
  %s6 = inlined_call_operand.vmem [shape: f32[1,1024], index: 6, kind: input, shape index: {}]
  %s7 = inlined_call_operand.vmem [shape: bf16[128,512], index: 7, kind: input, shape index: {}]
  %s8 = inlined_call_operand.vmem [shape: bf16[128,512], index: 8, kind: input, shape index: {}]
  %s9 = inlined_call_operand.vmem [shape: bf16[256,128], index: 9, kind: input, shape index: {}]
  %s10 = inlined_call_operand.vmem [shape: f32[1,128], index: 10, kind: input, shape index: {}]
  %s11 = inlined_call_operand.vmem [shape: f32[16,128], index: 11, kind: output, shape index: {}]
  %s12 = sld [smem:[#allocation0]]
  $region114: #{lstm_model_forward.1} parent=0
    _
  %s14 = ssub.s32 1, %s12
  %s15 = scalar_select 0, %s14, %s12
  // Predicated region
  $region2: #{lstm_model_forward.1} parent=0 // pred_check
    _
  $region3: #{lstm_model_forward.1} parent=0 // pred_check_branch
    %17 = sbr.rel (0) target = $region5
  $region4: #{lstm_model_forward.1} parent=0 // pred_region
    _
  $region5: #{lstm_model_forward.1} parent=0 // pred_fallthru
    _
  // Predicated region
  $region6: #{lstm_model_forward.1} parent=0 // pred_check
    _
  $region7: #{lstm_model_forward.1} parent=0 // pred_check_branch
    %19 = sbr.rel (0) target = $region9
  $region8: #{lstm_model_forward.1} parent=0 // pred_region
    _
  $region9: #{lstm_model_forward.1} parent=0 // pred_fallthru
    _
  // Predicated region
  $region10: #{lstm_model_forward.1} parent=0 // pred_check
    _
  $region11: #{lstm_model_forward.1} parent=0 // pred_check_branch
    %21 = sbr.rel (0) target = $region13
  $region12: #{lstm_model_forward.1} parent=0 // pred_region
    _
  $region13: #{lstm_model_forward.1} parent=0 // pred_fallthru
    _
  // Predicated region
  $region14: #{lstm_model_forward.1} parent=0 // pred_check
    _
  $region15: #{lstm_model_forward.1} parent=0 // pred_check_branch
    %23 = sbr.rel (0) target = $region17
  $region16: #{lstm_model_forward.1} parent=0 // pred_region
    _
  $region17: #{lstm_model_forward.1} parent=0 // pred_fallthru
    _
  // Predicated region
  $region18: #{lstm_model_forward.1} parent=0 // pred_check
    _
  $region19: #{lstm_model_forward.1} parent=0 // pred_check_branch
    %25 = sbr.rel (0) target = $region21
  $region20: #{lstm_model_forward.1} parent=0 // pred_region
    _
  $region21: #{lstm_model_forward.1} parent=0 // pred_fallthru
    _
  // Predicated region
  $region22: #{lstm_model_forward.1} parent=0 // pred_check
    _
  $region23: #{lstm_model_forward.1} parent=0 // pred_check_branch
    %27 = sbr.rel (0) target = $region25
  $region24: #{lstm_model_forward.1} parent=0 // pred_region
    _
  $region25: #{lstm_model_forward.1} parent=0 // pred_fallthru
    _
  // Predicated region
  $region26: #{lstm_model_forward.1} parent=0 // pred_check
    _
  $region27: #{lstm_model_forward.1} parent=0 // pred_check_branch
    %29 = sbr.rel (0) target = $region29
  $region28: #{lstm_model_forward.1} parent=0 // pred_region
    _
  $region29: #{lstm_model_forward.1} parent=0 // pred_fallthru
    _
  // Predicated region
  $region30: #{lstm_model_forward.1} parent=0 // pred_check
    _
  $region31: #{lstm_model_forward.1} parent=0 // pred_check_branch
    %32 = sbr.rel (0) target = $region33
  $region32: #{lstm_model_forward.1} parent=0 // pred_region
    loop: start=0, step=1, limit=1
    $region34: #{lstm_model_forward.1} parent=32 // loop_pre_header
      _
    $region35: #{lstm_model_forward.1} parent=32 // loop_header
      %s34 = sphi 0, %s38
      %p35 = scmp.ge.s32.totalorder %s34, 1
      %s39 = sphi %s5, %s5
      %s40 = sphi [#allocation5], [#allocation5]
    $region36: #{lstm_model_forward.1} parent=32 // loop_header_branch
      %37 = sbr.rel (%p35) target = $region40
    $region37: #{lstm_model_forward.1} parent=32 // loop_body
      %v41 = vld [vmem:[%s39] sm:$0xff]
      %42 = vst [vmem:[%s40] sm:$0xff] %v41
      %v43 = vld [vmem:[%s39 + $0x8] sm:$0xff]
      %44 = vst [vmem:[%s40 + $0x8] sm:$0xff] %v43
      %v45 = vld [vmem:[%s39 + $0x10] sm:$0xff]
      %46 = vst [vmem:[%s40 + $0x10] sm:$0xff] %v45
      %v47 = vld [vmem:[%s39 + $0x18] sm:$0xff]
      %48 = vst [vmem:[%s40 + $0x18] sm:$0xff] %v47
      %v49 = vld [vmem:[%s39 + $0x20] sm:$0xff]
      %50 = vst [vmem:[%s40 + $0x20] sm:$0xff] %v49
      %v51 = vld [vmem:[%s39 + $0x28] sm:$0xff]
      %52 = vst [vmem:[%s40 + $0x28] sm:$0xff] %v51
      %v53 = vld [vmem:[%s39 + $0x30] sm:$0xff]
      %54 = vst [vmem:[%s40 + $0x30] sm:$0xff] %v53
      %v55 = vld [vmem:[%s39 + $0x38] sm:$0xff]
      %56 = vst [vmem:[%s40 + $0x38] sm:$0xff] %v55
      %v57 = vld [vmem:[%s39 + $0x40] sm:$0xff]
      %58 = vst [vmem:[%s40 + $0x40] sm:$0xff] %v57
      %v59 = vld [vmem:[%s39 + $0x48] sm:$0xff]
      %60 = vst [vmem:[%s40 + $0x48] sm:$0xff] %v59
      %v61 = vld [vmem:[%s39 + $0x50] sm:$0xff]
      %62 = vst [vmem:[%s40 + $0x50] sm:$0xff] %v61
      %v63 = vld [vmem:[%s39 + $0x58] sm:$0xff]
      %64 = vst [vmem:[%s40 + $0x58] sm:$0xff] %v63
      %v65 = vld [vmem:[%s39 + $0x60] sm:$0xff]
      %66 = vst [vmem:[%s40 + $0x60] sm:$0xff] %v65
      %v67 = vld [vmem:[%s39 + $0x68] sm:$0xff]
      %68 = vst [vmem:[%s40 + $0x68] sm:$0xff] %v67
      %v69 = vld [vmem:[%s39 + $0x70] sm:$0xff]
      %70 = vst [vmem:[%s40 + $0x70] sm:$0xff] %v69
      %v71 = vld [vmem:[%s39 + $0x78] sm:$0xff]
      %72 = vst [vmem:[%s40 + $0x78] sm:$0xff] %v71
      %v73 = vld [vmem:[%s39 + $0x80] sm:$0xff]
      %74 = vst [vmem:[%s40 + $0x80] sm:$0xff] %v73
      %v75 = vld [vmem:[%s39 + $0x88] sm:$0xff]
      %76 = vst [vmem:[%s40 + $0x88] sm:$0xff] %v75
      %v77 = vld [vmem:[%s39 + $0x90] sm:$0xff]
      %78 = vst [vmem:[%s40 + $0x90] sm:$0xff] %v77
      %v79 = vld [vmem:[%s39 + $0x98] sm:$0xff]
      %80 = vst [vmem:[%s40 + $0x98] sm:$0xff] %v79
      %v81 = vld [vmem:[%s39 + $0xa0] sm:$0xff]
      %82 = vst [vmem:[%s40 + $0xa0] sm:$0xff] %v81
      %v83 = vld [vmem:[%s39 + $0xa8] sm:$0xff]
      %84 = vst [vmem:[%s40 + $0xa8] sm:$0xff] %v83
      %v85 = vld [vmem:[%s39 + $0xb0] sm:$0xff]
      %86 = vst [vmem:[%s40 + $0xb0] sm:$0xff] %v85
      %v87 = vld [vmem:[%s39 + $0xb8] sm:$0xff]
      %88 = vst [vmem:[%s40 + $0xb8] sm:$0xff] %v87
      %v89 = vld [vmem:[%s39 + $0xc0] sm:$0xff]
      %90 = vst [vmem:[%s40 + $0xc0] sm:$0xff] %v89
      %v91 = vld [vmem:[%s39 + $0xc8] sm:$0xff]
      %92 = vst [vmem:[%s40 + $0xc8] sm:$0xff] %v91
      %v93 = vld [vmem:[%s39 + $0xd0] sm:$0xff]
      %94 = vst [vmem:[%s40 + $0xd0] sm:$0xff] %v93
      %v95 = vld [vmem:[%s39 + $0xd8] sm:$0xff]
      %96 = vst [vmem:[%s40 + $0xd8] sm:$0xff] %v95
      %v97 = vld [vmem:[%s39 + $0xe0] sm:$0xff]
      %98 = vst [vmem:[%s40 + $0xe0] sm:$0xff] %v97
      %v99 = vld [vmem:[%s39 + $0xe8] sm:$0xff]
      %100 = vst [vmem:[%s40 + $0xe8] sm:$0xff] %v99
      %v101 = vld [vmem:[%s39 + $0xf0] sm:$0xff]
      %102 = vst [vmem:[%s40 + $0xf0] sm:$0xff] %v101
      %v103 = vld [vmem:[%s39 + $0xf8] sm:$0xff]
      %104 = vst [vmem:[%s40 + $0xf8] sm:$0xff] %v103
      %v105 = vld [vmem:[%s39 + $0x100] sm:$0xff]
      %106 = vst [vmem:[%s40 + $0x100] sm:$0xff] %v105
      %v107 = vld [vmem:[%s39 + $0x108] sm:$0xff]
      %108 = vst [vmem:[%s40 + $0x108] sm:$0xff] %v107
      %v109 = vld [vmem:[%s39 + $0x110] sm:$0xff]
      %110 = vst [vmem:[%s40 + $0x110] sm:$0xff] %v109
      %v111 = vld [vmem:[%s39 + $0x118] sm:$0xff]
      %112 = vst [vmem:[%s40 + $0x118] sm:$0xff] %v111
      %v113 = vld [vmem:[%s39 + $0x120] sm:$0xff]
      %114 = vst [vmem:[%s40 + $0x120] sm:$0xff] %v113
      %v115 = vld [vmem:[%s39 + $0x128] sm:$0xff]
      %116 = vst [vmem:[%s40 + $0x128] sm:$0xff] %v115
      %v117 = vld [vmem:[%s39 + $0x130] sm:$0xff]
      %118 = vst [vmem:[%s40 + $0x130] sm:$0xff] %v117
      %v119 = vld [vmem:[%s39 + $0x138] sm:$0xff]
      %120 = vst [vmem:[%s40 + $0x138] sm:$0xff] %v119
      %v121 = vld [vmem:[%s39 + $0x140] sm:$0xff]
      %122 = vst [vmem:[%s40 + $0x140] sm:$0xff] %v121
      %v123 = vld [vmem:[%s39 + $0x148] sm:$0xff]
      %124 = vst [vmem:[%s40 + $0x148] sm:$0xff] %v123
      %v125 = vld [vmem:[%s39 + $0x150] sm:$0xff]
      %126 = vst [vmem:[%s40 + $0x150] sm:$0xff] %v125
      %v127 = vld [vmem:[%s39 + $0x158] sm:$0xff]
      %128 = vst [vmem:[%s40 + $0x158] sm:$0xff] %v127
      %v129 = vld [vmem:[%s39 + $0x160] sm:$0xff]
      %130 = vst [vmem:[%s40 + $0x160] sm:$0xff] %v129
      %v131 = vld [vmem:[%s39 + $0x168] sm:$0xff]
      %132 = vst [vmem:[%s40 + $0x168] sm:$0xff] %v131
      %v133 = vld [vmem:[%s39 + $0x170] sm:$0xff]
      %134 = vst [vmem:[%s40 + $0x170] sm:$0xff] %v133
      %v135 = vld [vmem:[%s39 + $0x178] sm:$0xff]
      %136 = vst [vmem:[%s40 + $0x178] sm:$0xff] %v135
      %v137 = vld [vmem:[%s39 + $0x180] sm:$0xff]
      %138 = vst [vmem:[%s40 + $0x180] sm:$0xff] %v137
      %v139 = vld [vmem:[%s39 + $0x188] sm:$0xff]
      %140 = vst [vmem:[%s40 + $0x188] sm:$0xff] %v139
      %v141 = vld [vmem:[%s39 + $0x190] sm:$0xff]
      %142 = vst [vmem:[%s40 + $0x190] sm:$0xff] %v141
      %v143 = vld [vmem:[%s39 + $0x198] sm:$0xff]
      %144 = vst [vmem:[%s40 + $0x198] sm:$0xff] %v143
      %v145 = vld [vmem:[%s39 + $0x1a0] sm:$0xff]
      %146 = vst [vmem:[%s40 + $0x1a0] sm:$0xff] %v145
      %v147 = vld [vmem:[%s39 + $0x1a8] sm:$0xff]
      %148 = vst [vmem:[%s40 + $0x1a8] sm:$0xff] %v147
      %v149 = vld [vmem:[%s39 + $0x1b0] sm:$0xff]
      %150 = vst [vmem:[%s40 + $0x1b0] sm:$0xff] %v149
      %v151 = vld [vmem:[%s39 + $0x1b8] sm:$0xff]
      %152 = vst [vmem:[%s40 + $0x1b8] sm:$0xff] %v151
      %v153 = vld [vmem:[%s39 + $0x1c0] sm:$0xff]
      %154 = vst [vmem:[%s40 + $0x1c0] sm:$0xff] %v153
      %v155 = vld [vmem:[%s39 + $0x1c8] sm:$0xff]
      %156 = vst [vmem:[%s40 + $0x1c8] sm:$0xff] %v155
      %v157 = vld [vmem:[%s39 + $0x1d0] sm:$0xff]
      %158 = vst [vmem:[%s40 + $0x1d0] sm:$0xff] %v157
      %v159 = vld [vmem:[%s39 + $0x1d8] sm:$0xff]
      %160 = vst [vmem:[%s40 + $0x1d8] sm:$0xff] %v159
      %v161 = vld [vmem:[%s39 + $0x1e0] sm:$0xff]
      %162 = vst [vmem:[%s40 + $0x1e0] sm:$0xff] %v161
      %v163 = vld [vmem:[%s39 + $0x1e8] sm:$0xff]
      %164 = vst [vmem:[%s40 + $0x1e8] sm:$0xff] %v163
      %v165 = vld [vmem:[%s39 + $0x1f0] sm:$0xff]
      %166 = vst [vmem:[%s40 + $0x1f0] sm:$0xff] %v165
      %v167 = vld [vmem:[%s39 + $0x1f8] sm:$0xff]
      %168 = vst [vmem:[%s40 + $0x1f8] sm:$0xff] %v167
      %v169 = vld [vmem:[%s39 + $0x200] sm:$0xff]
      %170 = vst [vmem:[%s40 + $0x200] sm:$0xff] %v169
      %v171 = vld [vmem:[%s39 + $0x208] sm:$0xff]
      %172 = vst [vmem:[%s40 + $0x208] sm:$0xff] %v171
      %v173 = vld [vmem:[%s39 + $0x210] sm:$0xff]
      %174 = vst [vmem:[%s40 + $0x210] sm:$0xff] %v173
      %v175 = vld [vmem:[%s39 + $0x218] sm:$0xff]
      %176 = vst [vmem:[%s40 + $0x218] sm:$0xff] %v175
      %v177 = vld [vmem:[%s39 + $0x220] sm:$0xff]
      %178 = vst [vmem:[%s40 + $0x220] sm:$0xff] %v177
      %v179 = vld [vmem:[%s39 + $0x228] sm:$0xff]
      %180 = vst [vmem:[%s40 + $0x228] sm:$0xff] %v179
      %v181 = vld [vmem:[%s39 + $0x230] sm:$0xff]
      %182 = vst [vmem:[%s40 + $0x230] sm:$0xff] %v181
      %v183 = vld [vmem:[%s39 + $0x238] sm:$0xff]
      %184 = vst [vmem:[%s40 + $0x238] sm:$0xff] %v183
      %v185 = vld [vmem:[%s39 + $0x240] sm:$0xff]
      %186 = vst [vmem:[%s40 + $0x240] sm:$0xff] %v185
      %v187 = vld [vmem:[%s39 + $0x248] sm:$0xff]
      %188 = vst [vmem:[%s40 + $0x248] sm:$0xff] %v187
      %v189 = vld [vmem:[%s39 + $0x250] sm:$0xff]
      %190 = vst [vmem:[%s40 + $0x250] sm:$0xff] %v189
      %v191 = vld [vmem:[%s39 + $0x258] sm:$0xff]
      %192 = vst [vmem:[%s40 + $0x258] sm:$0xff] %v191
      %v193 = vld [vmem:[%s39 + $0x260] sm:$0xff]
      %194 = vst [vmem:[%s40 + $0x260] sm:$0xff] %v193
      %v195 = vld [vmem:[%s39 + $0x268] sm:$0xff]
      %196 = vst [vmem:[%s40 + $0x268] sm:$0xff] %v195
      %v197 = vld [vmem:[%s39 + $0x270] sm:$0xff]
      %198 = vst [vmem:[%s40 + $0x270] sm:$0xff] %v197
      %v199 = vld [vmem:[%s39 + $0x278] sm:$0xff]
      %200 = vst [vmem:[%s40 + $0x278] sm:$0xff] %v199
      %v201 = vld [vmem:[%s39 + $0x280] sm:$0xff]
      %202 = vst [vmem:[%s40 + $0x280] sm:$0xff] %v201
      %v203 = vld [vmem:[%s39 + $0x288] sm:$0xff]
      %204 = vst [vmem:[%s40 + $0x288] sm:$0xff] %v203
      %v205 = vld [vmem:[%s39 + $0x290] sm:$0xff]
      %206 = vst [vmem:[%s40 + $0x290] sm:$0xff] %v205
      %v207 = vld [vmem:[%s39 + $0x298] sm:$0xff]
      %208 = vst [vmem:[%s40 + $0x298] sm:$0xff] %v207
      %v209 = vld [vmem:[%s39 + $0x2a0] sm:$0xff]
      %210 = vst [vmem:[%s40 + $0x2a0] sm:$0xff] %v209
      %v211 = vld [vmem:[%s39 + $0x2a8] sm:$0xff]
      %212 = vst [vmem:[%s40 + $0x2a8] sm:$0xff] %v211
      %v213 = vld [vmem:[%s39 + $0x2b0] sm:$0xff]
      %214 = vst [vmem:[%s40 + $0x2b0] sm:$0xff] %v213
      %v215 = vld [vmem:[%s39 + $0x2b8] sm:$0xff]
      %216 = vst [vmem:[%s40 + $0x2b8] sm:$0xff] %v215
      %v217 = vld [vmem:[%s39 + $0x2c0] sm:$0xff]
      %218 = vst [vmem:[%s40 + $0x2c0] sm:$0xff] %v217
      %v219 = vld [vmem:[%s39 + $0x2c8] sm:$0xff]
      %220 = vst [vmem:[%s40 + $0x2c8] sm:$0xff] %v219
      %v221 = vld [vmem:[%s39 + $0x2d0] sm:$0xff]
      %222 = vst [vmem:[%s40 + $0x2d0] sm:$0xff] %v221
      %v223 = vld [vmem:[%s39 + $0x2d8] sm:$0xff]
      %224 = vst [vmem:[%s40 + $0x2d8] sm:$0xff] %v223
      %v225 = vld [vmem:[%s39 + $0x2e0] sm:$0xff]
      %226 = vst [vmem:[%s40 + $0x2e0] sm:$0xff] %v225
      %v227 = vld [vmem:[%s39 + $0x2e8] sm:$0xff]
      %228 = vst [vmem:[%s40 + $0x2e8] sm:$0xff] %v227
      %v229 = vld [vmem:[%s39 + $0x2f0] sm:$0xff]
      %230 = vst [vmem:[%s40 + $0x2f0] sm:$0xff] %v229
      %v231 = vld [vmem:[%s39 + $0x2f8] sm:$0xff]
      %232 = vst [vmem:[%s40 + $0x2f8] sm:$0xff] %v231
      %v233 = vld [vmem:[%s39 + $0x300] sm:$0xff]
      %234 = vst [vmem:[%s40 + $0x300] sm:$0xff] %v233
      %v235 = vld [vmem:[%s39 + $0x308] sm:$0xff]
      %236 = vst [vmem:[%s40 + $0x308] sm:$0xff] %v235
      %v237 = vld [vmem:[%s39 + $0x310] sm:$0xff]
      %238 = vst [vmem:[%s40 + $0x310] sm:$0xff] %v237
      %v239 = vld [vmem:[%s39 + $0x318] sm:$0xff]
      %240 = vst [vmem:[%s40 + $0x318] sm:$0xff] %v239
      %v241 = vld [vmem:[%s39 + $0x320] sm:$0xff]
      %242 = vst [vmem:[%s40 + $0x320] sm:$0xff] %v241
      %v243 = vld [vmem:[%s39 + $0x328] sm:$0xff]
      %244 = vst [vmem:[%s40 + $0x328] sm:$0xff] %v243
      %v245 = vld [vmem:[%s39 + $0x330] sm:$0xff]
      %246 = vst [vmem:[%s40 + $0x330] sm:$0xff] %v245
      %v247 = vld [vmem:[%s39 + $0x338] sm:$0xff]
      %248 = vst [vmem:[%s40 + $0x338] sm:$0xff] %v247
      %v249 = vld [vmem:[%s39 + $0x340] sm:$0xff]
      %250 = vst [vmem:[%s40 + $0x340] sm:$0xff] %v249
      %v251 = vld [vmem:[%s39 + $0x348] sm:$0xff]
      %252 = vst [vmem:[%s40 + $0x348] sm:$0xff] %v251
      %v253 = vld [vmem:[%s39 + $0x350] sm:$0xff]
      %254 = vst [vmem:[%s40 + $0x350] sm:$0xff] %v253
      %v255 = vld [vmem:[%s39 + $0x358] sm:$0xff]
      %256 = vst [vmem:[%s40 + $0x358] sm:$0xff] %v255
      %v257 = vld [vmem:[%s39 + $0x360] sm:$0xff]
      %258 = vst [vmem:[%s40 + $0x360] sm:$0xff] %v257
      %v259 = vld [vmem:[%s39 + $0x368] sm:$0xff]
      %260 = vst [vmem:[%s40 + $0x368] sm:$0xff] %v259
      %v261 = vld [vmem:[%s39 + $0x370] sm:$0xff]
      %262 = vst [vmem:[%s40 + $0x370] sm:$0xff] %v261
      %v263 = vld [vmem:[%s39 + $0x378] sm:$0xff]
      %264 = vst [vmem:[%s40 + $0x378] sm:$0xff] %v263
      %v265 = vld [vmem:[%s39 + $0x380] sm:$0xff]
      %266 = vst [vmem:[%s40 + $0x380] sm:$0xff] %v265
      %v267 = vld [vmem:[%s39 + $0x388] sm:$0xff]
      %268 = vst [vmem:[%s40 + $0x388] sm:$0xff] %v267
      %v269 = vld [vmem:[%s39 + $0x390] sm:$0xff]
      %270 = vst [vmem:[%s40 + $0x390] sm:$0xff] %v269
      %v271 = vld [vmem:[%s39 + $0x398] sm:$0xff]
      %272 = vst [vmem:[%s40 + $0x398] sm:$0xff] %v271
      %v273 = vld [vmem:[%s39 + $0x3a0] sm:$0xff]
      %274 = vst [vmem:[%s40 + $0x3a0] sm:$0xff] %v273
      %v275 = vld [vmem:[%s39 + $0x3a8] sm:$0xff]
      %276 = vst [vmem:[%s40 + $0x3a8] sm:$0xff] %v275
      %v277 = vld [vmem:[%s39 + $0x3b0] sm:$0xff]
      %278 = vst [vmem:[%s40 + $0x3b0] sm:$0xff] %v277
      %v279 = vld [vmem:[%s39 + $0x3b8] sm:$0xff]
      %280 = vst [vmem:[%s40 + $0x3b8] sm:$0xff] %v279
      %v281 = vld [vmem:[%s39 + $0x3c0] sm:$0xff]
      %282 = vst [vmem:[%s40 + $0x3c0] sm:$0xff] %v281
      %v283 = vld [vmem:[%s39 + $0x3c8] sm:$0xff]
      %284 = vst [vmem:[%s40 + $0x3c8] sm:$0xff] %v283
      %v285 = vld [vmem:[%s39 + $0x3d0] sm:$0xff]
      %286 = vst [vmem:[%s40 + $0x3d0] sm:$0xff] %v285
      %v287 = vld [vmem:[%s39 + $0x3d8] sm:$0xff]
      %288 = vst [vmem:[%s40 + $0x3d8] sm:$0xff] %v287
      %v289 = vld [vmem:[%s39 + $0x3e0] sm:$0xff]
      %290 = vst [vmem:[%s40 + $0x3e0] sm:$0xff] %v289
      %v291 = vld [vmem:[%s39 + $0x3e8] sm:$0xff]
      %292 = vst [vmem:[%s40 + $0x3e8] sm:$0xff] %v291
      %v293 = vld [vmem:[%s39 + $0x3f0] sm:$0xff]
      %294 = vst [vmem:[%s40 + $0x3f0] sm:$0xff] %v293
      %v295 = vld [vmem:[%s39 + $0x3f8] sm:$0xff]
      %296 = vst [vmem:[%s40 + $0x3f8] sm:$0xff] %v295
    $region38: #{lstm_model_forward.1} parent=32 // loop_footer
      %s38 = sadd.s32 1, %s34
    $region39: #{lstm_model_forward.1} parent=32 // loop_footer_branch
      %33 = sbr.rel target = $region35
    $region40: #{lstm_model_forward.1} parent=32 // loop_exit
      _
  $region33: #{lstm_model_forward.1} parent=0 // pred_fallthru
    _
  // Predicated region
  $region41: #{lstm_model_forward.1} parent=0 // pred_check
    _
  $region42: #{lstm_model_forward.1} parent=0 // pred_check_branch
    %298 = sbr.rel target = $region44
  $region43: #{lstm_model_forward.1} parent=0 // pred_region
    _
  $region44: #{lstm_model_forward.1} parent=0 // pred_fallthru
    _
  // Predicated region
  $region45: #{lstm_model_forward.1} parent=0 // pred_check
    _
  $region46: #{lstm_model_forward.1} parent=0 // pred_check_branch
    %301 = sbr.rel (0) target = $region48
  $region47: #{lstm_model_forward.1} parent=0 // pred_region
    %302 = vsyncadd [#allocation9], 16384
  $region48: #{lstm_model_forward.1} parent=0 // pred_fallthru
    _
  %s303 = scalar_lea.sflag [#allocation9], 1
  // Predicated region
  $region49: #{lstm_model_forward.1} parent=0 // pred_check
    _
  $region50: #{lstm_model_forward.1} parent=0 // pred_check_branch
    %305 = sbr.rel (0) target = $region52
  $region51: #{lstm_model_forward.1} parent=0 // pred_region
    loop: start=0, step=1, limit=1
    $region53: #{lstm_model_forward.1} parent=51 // loop_pre_header
      _
    $region54: #{lstm_model_forward.1} parent=51 // loop_header
      %s307 = sphi 0, %s311
      %p308 = scmp.ge.s32.totalorder %s307, 1
      %s312 = sphi %s7, %s7
      %s313 = sphi [#allocation6], [#allocation6]
    $region55: #{lstm_model_forward.1} parent=51 // loop_header_branch
      %310 = sbr.rel (%p308) target = $region59
    $region56: #{lstm_model_forward.1} parent=51 // loop_body
      %v314 = vld [vmem:[%s312] sm:$0xff]
      %315 = vst [vmem:[%s313] sm:$0xff] %v314
      %v316 = vld [vmem:[%s312 + $0x8] sm:$0xff]
      %317 = vst [vmem:[%s313 + $0x8] sm:$0xff] %v316
      %v318 = vld [vmem:[%s312 + $0x10] sm:$0xff]
      %319 = vst [vmem:[%s313 + $0x10] sm:$0xff] %v318
      %v320 = vld [vmem:[%s312 + $0x18] sm:$0xff]
      %321 = vst [vmem:[%s313 + $0x18] sm:$0xff] %v320
      %v322 = vld [vmem:[%s312 + $0x20] sm:$0xff]
      %323 = vst [vmem:[%s313 + $0x20] sm:$0xff] %v322
      %v324 = vld [vmem:[%s312 + $0x28] sm:$0xff]
      %325 = vst [vmem:[%s313 + $0x28] sm:$0xff] %v324
      %v326 = vld [vmem:[%s312 + $0x30] sm:$0xff]
      %327 = vst [vmem:[%s313 + $0x30] sm:$0xff] %v326
      %v328 = vld [vmem:[%s312 + $0x38] sm:$0xff]
      %329 = vst [vmem:[%s313 + $0x38] sm:$0xff] %v328
      %v330 = vld [vmem:[%s312 + $0x40] sm:$0xff]
      %331 = vst [vmem:[%s313 + $0x40] sm:$0xff] %v330
      %v332 = vld [vmem:[%s312 + $0x48] sm:$0xff]
      %333 = vst [vmem:[%s313 + $0x48] sm:$0xff] %v332
      %v334 = vld [vmem:[%s312 + $0x50] sm:$0xff]
      %335 = vst [vmem:[%s313 + $0x50] sm:$0xff] %v334
      %v336 = vld [vmem:[%s312 + $0x58] sm:$0xff]
      %337 = vst [vmem:[%s313 + $0x58] sm:$0xff] %v336
      %v338 = vld [vmem:[%s312 + $0x60] sm:$0xff]
      %339 = vst [vmem:[%s313 + $0x60] sm:$0xff] %v338
      %v340 = vld [vmem:[%s312 + $0x68] sm:$0xff]
      %341 = vst [vmem:[%s313 + $0x68] sm:$0xff] %v340
      %v342 = vld [vmem:[%s312 + $0x70] sm:$0xff]
      %343 = vst [vmem:[%s313 + $0x70] sm:$0xff] %v342
      %v344 = vld [vmem:[%s312 + $0x78] sm:$0xff]
      %345 = vst [vmem:[%s313 + $0x78] sm:$0xff] %v344
      %v346 = vld [vmem:[%s312 + $0x80] sm:$0xff]
      %347 = vst [vmem:[%s313 + $0x80] sm:$0xff] %v346
      %v348 = vld [vmem:[%s312 + $0x88] sm:$0xff]
      %349 = vst [vmem:[%s313 + $0x88] sm:$0xff] %v348
      %v350 = vld [vmem:[%s312 + $0x90] sm:$0xff]
      %351 = vst [vmem:[%s313 + $0x90] sm:$0xff] %v350
      %v352 = vld [vmem:[%s312 + $0x98] sm:$0xff]
      %353 = vst [vmem:[%s313 + $0x98] sm:$0xff] %v352
      %v354 = vld [vmem:[%s312 + $0xa0] sm:$0xff]
      %355 = vst [vmem:[%s313 + $0xa0] sm:$0xff] %v354
      %v356 = vld [vmem:[%s312 + $0xa8] sm:$0xff]
      %357 = vst [vmem:[%s313 + $0xa8] sm:$0xff] %v356
      %v358 = vld [vmem:[%s312 + $0xb0] sm:$0xff]
      %359 = vst [vmem:[%s313 + $0xb0] sm:$0xff] %v358
      %v360 = vld [vmem:[%s312 + $0xb8] sm:$0xff]
      %361 = vst [vmem:[%s313 + $0xb8] sm:$0xff] %v360
      %v362 = vld [vmem:[%s312 + $0xc0] sm:$0xff]
      %363 = vst [vmem:[%s313 + $0xc0] sm:$0xff] %v362
      %v364 = vld [vmem:[%s312 + $0xc8] sm:$0xff]
      %365 = vst [vmem:[%s313 + $0xc8] sm:$0xff] %v364
      %v366 = vld [vmem:[%s312 + $0xd0] sm:$0xff]
      %367 = vst [vmem:[%s313 + $0xd0] sm:$0xff] %v366
      %v368 = vld [vmem:[%s312 + $0xd8] sm:$0xff]
      %369 = vst [vmem:[%s313 + $0xd8] sm:$0xff] %v368
      %v370 = vld [vmem:[%s312 + $0xe0] sm:$0xff]
      %371 = vst [vmem:[%s313 + $0xe0] sm:$0xff] %v370
      %v372 = vld [vmem:[%s312 + $0xe8] sm:$0xff]
      %373 = vst [vmem:[%s313 + $0xe8] sm:$0xff] %v372
      %v374 = vld [vmem:[%s312 + $0xf0] sm:$0xff]
      %375 = vst [vmem:[%s313 + $0xf0] sm:$0xff] %v374
      %v376 = vld [vmem:[%s312 + $0xf8] sm:$0xff]
      %377 = vst [vmem:[%s313 + $0xf8] sm:$0xff] %v376
    $region57: #{lstm_model_forward.1} parent=51 // loop_footer
      %s311 = sadd.s32 1, %s307
    $region58: #{lstm_model_forward.1} parent=51 // loop_footer_branch
      %306 = sbr.rel target = $region54
    $region59: #{lstm_model_forward.1} parent=51 // loop_exit
      _
  $region52: #{lstm_model_forward.1} parent=0 // pred_fallthru
    _
  // Predicated region
  $region60: #{lstm_model_forward.1} parent=0 // pred_check
    _
  $region61: #{lstm_model_forward.1} parent=0 // pred_check_branch
    %379 = sbr.rel target = $region63
  $region62: #{lstm_model_forward.1} parent=0 // pred_region
    _
  $region63: #{lstm_model_forward.1} parent=0 // pred_fallthru
    _
  // Predicated region
  $region64: #{lstm_model_forward.1} parent=0 // pred_check
    _
  $region65: #{lstm_model_forward.1} parent=0 // pred_check_branch
    %382 = sbr.rel (0) target = $region67
  $region66: #{lstm_model_forward.1} parent=0 // pred_region
    %383 = vsyncadd %s303, 4096
  $region67: #{lstm_model_forward.1} parent=0 // pred_fallthru
    _
  %s384 = scalar_lea.sflag [#allocation9], 2
  // Predicated region
  $region68: #{lstm_model_forward.1} parent=0 // pred_check
    _
  $region69: #{lstm_model_forward.1} parent=0 // pred_check_branch
    %386 = sbr.rel (0) target = $region71
  $region70: #{lstm_model_forward.1} parent=0 // pred_region
    loop: start=0, step=1, limit=1
    $region72: #{lstm_model_forward.1} parent=70 // loop_pre_header
      _
    $region73: #{lstm_model_forward.1} parent=70 // loop_header
      %s388 = sphi 0, %s392
      %p389 = scmp.ge.s32.totalorder %s388, 1
      %s393 = sphi %s8, %s8
      %s394 = sphi [#allocation7], [#allocation7]
    $region74: #{lstm_model_forward.1} parent=70 // loop_header_branch
      %391 = sbr.rel (%p389) target = $region78
    $region75: #{lstm_model_forward.1} parent=70 // loop_body
      %v395 = vld [vmem:[%s393] sm:$0xff]
      %396 = vst [vmem:[%s394] sm:$0xff] %v395
      %v397 = vld [vmem:[%s393 + $0x8] sm:$0xff]
      %398 = vst [vmem:[%s394 + $0x8] sm:$0xff] %v397
      %v399 = vld [vmem:[%s393 + $0x10] sm:$0xff]
      %400 = vst [vmem:[%s394 + $0x10] sm:$0xff] %v399
      %v401 = vld [vmem:[%s393 + $0x18] sm:$0xff]
      %402 = vst [vmem:[%s394 + $0x18] sm:$0xff] %v401
      %v403 = vld [vmem:[%s393 + $0x20] sm:$0xff]
      %404 = vst [vmem:[%s394 + $0x20] sm:$0xff] %v403
      %v405 = vld [vmem:[%s393 + $0x28] sm:$0xff]
      %406 = vst [vmem:[%s394 + $0x28] sm:$0xff] %v405
      %v407 = vld [vmem:[%s393 + $0x30] sm:$0xff]
      %408 = vst [vmem:[%s394 + $0x30] sm:$0xff] %v407
      %v409 = vld [vmem:[%s393 + $0x38] sm:$0xff]
      %410 = vst [vmem:[%s394 + $0x38] sm:$0xff] %v409
      %v411 = vld [vmem:[%s393 + $0x40] sm:$0xff]
      %412 = vst [vmem:[%s394 + $0x40] sm:$0xff] %v411
      %v413 = vld [vmem:[%s393 + $0x48] sm:$0xff]
      %414 = vst [vmem:[%s394 + $0x48] sm:$0xff] %v413
      %v415 = vld [vmem:[%s393 + $0x50] sm:$0xff]
      %416 = vst [vmem:[%s394 + $0x50] sm:$0xff] %v415
      %v417 = vld [vmem:[%s393 + $0x58] sm:$0xff]
      %418 = vst [vmem:[%s394 + $0x58] sm:$0xff] %v417
      %v419 = vld [vmem:[%s393 + $0x60] sm:$0xff]
      %420 = vst [vmem:[%s394 + $0x60] sm:$0xff] %v419
      %v421 = vld [vmem:[%s393 + $0x68] sm:$0xff]
      %422 = vst [vmem:[%s394 + $0x68] sm:$0xff] %v421
      %v423 = vld [vmem:[%s393 + $0x70] sm:$0xff]
      %424 = vst [vmem:[%s394 + $0x70] sm:$0xff] %v423
      %v425 = vld [vmem:[%s393 + $0x78] sm:$0xff]
      %426 = vst [vmem:[%s394 + $0x78] sm:$0xff] %v425
      %v427 = vld [vmem:[%s393 + $0x80] sm:$0xff]
      %428 = vst [vmem:[%s394 + $0x80] sm:$0xff] %v427
      %v429 = vld [vmem:[%s393 + $0x88] sm:$0xff]
      %430 = vst [vmem:[%s394 + $0x88] sm:$0xff] %v429
      %v431 = vld [vmem:[%s393 + $0x90] sm:$0xff]
      %432 = vst [vmem:[%s394 + $0x90] sm:$0xff] %v431
      %v433 = vld [vmem:[%s393 + $0x98] sm:$0xff]
      %434 = vst [vmem:[%s394 + $0x98] sm:$0xff] %v433
      %v435 = vld [vmem:[%s393 + $0xa0] sm:$0xff]
      %436 = vst [vmem:[%s394 + $0xa0] sm:$0xff] %v435
      %v437 = vld [vmem:[%s393 + $0xa8] sm:$0xff]
      %438 = vst [vmem:[%s394 + $0xa8] sm:$0xff] %v437
      %v439 = vld [vmem:[%s393 + $0xb0] sm:$0xff]
      %440 = vst [vmem:[%s394 + $0xb0] sm:$0xff] %v439
      %v441 = vld [vmem:[%s393 + $0xb8] sm:$0xff]
      %442 = vst [vmem:[%s394 + $0xb8] sm:$0xff] %v441
      %v443 = vld [vmem:[%s393 + $0xc0] sm:$0xff]
      %444 = vst [vmem:[%s394 + $0xc0] sm:$0xff] %v443
      %v445 = vld [vmem:[%s393 + $0xc8] sm:$0xff]
      %446 = vst [vmem:[%s394 + $0xc8] sm:$0xff] %v445
      %v447 = vld [vmem:[%s393 + $0xd0] sm:$0xff]
      %448 = vst [vmem:[%s394 + $0xd0] sm:$0xff] %v447
      %v449 = vld [vmem:[%s393 + $0xd8] sm:$0xff]
      %450 = vst [vmem:[%s394 + $0xd8] sm:$0xff] %v449
      %v451 = vld [vmem:[%s393 + $0xe0] sm:$0xff]
      %452 = vst [vmem:[%s394 + $0xe0] sm:$0xff] %v451
      %v453 = vld [vmem:[%s393 + $0xe8] sm:$0xff]
      %454 = vst [vmem:[%s394 + $0xe8] sm:$0xff] %v453
      %v455 = vld [vmem:[%s393 + $0xf0] sm:$0xff]
      %456 = vst [vmem:[%s394 + $0xf0] sm:$0xff] %v455
      %v457 = vld [vmem:[%s393 + $0xf8] sm:$0xff]
      %458 = vst [vmem:[%s394 + $0xf8] sm:$0xff] %v457
    $region76: #{lstm_model_forward.1} parent=70 // loop_footer
      %s392 = sadd.s32 1, %s388
    $region77: #{lstm_model_forward.1} parent=70 // loop_footer_branch
      %387 = sbr.rel target = $region73
    $region78: #{lstm_model_forward.1} parent=70 // loop_exit
      _
  $region71: #{lstm_model_forward.1} parent=0 // pred_fallthru
    _
  // Predicated region
  $region79: #{lstm_model_forward.1} parent=0 // pred_check
    _
  $region80: #{lstm_model_forward.1} parent=0 // pred_check_branch
    %460 = sbr.rel target = $region82
  $region81: #{lstm_model_forward.1} parent=0 // pred_region
    _
  $region82: #{lstm_model_forward.1} parent=0 // pred_fallthru
    _
  // Predicated region
  $region83: #{lstm_model_forward.1} parent=0 // pred_check
    _
  $region84: #{lstm_model_forward.1} parent=0 // pred_check_branch
    %463 = sbr.rel (0) target = $region86
  $region85: #{lstm_model_forward.1} parent=0 // pred_region
    %464 = vsyncadd %s384, 4096
  $region86: #{lstm_model_forward.1} parent=0 // pred_fallthru
    _
  %s465 = scalar_lea.sflag [#allocation9], 3
  // Predicated region
  $region87: #{lstm_model_forward.1} parent=0 // pred_check
    _
  $region88: #{lstm_model_forward.1} parent=0 // pred_check_branch
    %467 = sbr.rel (0) target = $region90
  $region89: #{lstm_model_forward.1} parent=0 // pred_region
    loop: start=0, step=1, limit=1
    $region91: #{lstm_model_forward.1} parent=89 // loop_pre_header
      _
    $region92: #{lstm_model_forward.1} parent=89 // loop_header
      %s469 = sphi 0, %s473
      %p470 = scmp.ge.s32.totalorder %s469, 1
      %s474 = sphi %s9, %s9
      %s475 = sphi [#allocation8], [#allocation8]
    $region93: #{lstm_model_forward.1} parent=89 // loop_header_branch
      %472 = sbr.rel (%p470) target = $region97
    $region94: #{lstm_model_forward.1} parent=89 // loop_body
      %v476 = vld [vmem:[%s474] sm:$0xff]
      %477 = vst [vmem:[%s475] sm:$0xff] %v476
      %v478 = vld [vmem:[%s474 + $0x8] sm:$0xff]
      %479 = vst [vmem:[%s475 + $0x8] sm:$0xff] %v478
      %v480 = vld [vmem:[%s474 + $0x10] sm:$0xff]
      %481 = vst [vmem:[%s475 + $0x10] sm:$0xff] %v480
      %v482 = vld [vmem:[%s474 + $0x18] sm:$0xff]
      %483 = vst [vmem:[%s475 + $0x18] sm:$0xff] %v482
      %v484 = vld [vmem:[%s474 + $0x20] sm:$0xff]
      %485 = vst [vmem:[%s475 + $0x20] sm:$0xff] %v484
      %v486 = vld [vmem:[%s474 + $0x28] sm:$0xff]
      %487 = vst [vmem:[%s475 + $0x28] sm:$0xff] %v486
      %v488 = vld [vmem:[%s474 + $0x30] sm:$0xff]
      %489 = vst [vmem:[%s475 + $0x30] sm:$0xff] %v488
      %v490 = vld [vmem:[%s474 + $0x38] sm:$0xff]
      %491 = vst [vmem:[%s475 + $0x38] sm:$0xff] %v490
      %v492 = vld [vmem:[%s474 + $0x40] sm:$0xff]
      %493 = vst [vmem:[%s475 + $0x40] sm:$0xff] %v492
      %v494 = vld [vmem:[%s474 + $0x48] sm:$0xff]
      %495 = vst [vmem:[%s475 + $0x48] sm:$0xff] %v494
      %v496 = vld [vmem:[%s474 + $0x50] sm:$0xff]
      %497 = vst [vmem:[%s475 + $0x50] sm:$0xff] %v496
      %v498 = vld [vmem:[%s474 + $0x58] sm:$0xff]
      %499 = vst [vmem:[%s475 + $0x58] sm:$0xff] %v498
      %v500 = vld [vmem:[%s474 + $0x60] sm:$0xff]
      %501 = vst [vmem:[%s475 + $0x60] sm:$0xff] %v500
      %v502 = vld [vmem:[%s474 + $0x68] sm:$0xff]
      %503 = vst [vmem:[%s475 + $0x68] sm:$0xff] %v502
      %v504 = vld [vmem:[%s474 + $0x70] sm:$0xff]
      %505 = vst [vmem:[%s475 + $0x70] sm:$0xff] %v504
      %v506 = vld [vmem:[%s474 + $0x78] sm:$0xff]
      %507 = vst [vmem:[%s475 + $0x78] sm:$0xff] %v506
    $region95: #{lstm_model_forward.1} parent=89 // loop_footer
      %s473 = sadd.s32 1, %s469
    $region96: #{lstm_model_forward.1} parent=89 // loop_footer_branch
      %468 = sbr.rel target = $region92
    $region97: #{lstm_model_forward.1} parent=89 // loop_exit
      _
  $region90: #{lstm_model_forward.1} parent=0 // pred_fallthru
    _
  // Predicated region
  $region98: #{lstm_model_forward.1} parent=0 // pred_check
    _
  $region99: #{lstm_model_forward.1} parent=0 // pred_check_branch
    %509 = sbr.rel target = $region101
  $region100: #{lstm_model_forward.1} parent=0 // pred_region
    _
  $region101: #{lstm_model_forward.1} parent=0 // pred_fallthru
    _
  // Predicated region
  $region102: #{lstm_model_forward.1} parent=0 // pred_check
    _
  $region103: #{lstm_model_forward.1} parent=0 // pred_check_branch
    %512 = sbr.rel (0) target = $region105
  $region104: #{lstm_model_forward.1} parent=0 // pred_region
    %513 = vsyncadd %s465, 2048
  $region105: #{lstm_model_forward.1} parent=0 // pred_fallthru
    _
  %v514 = vld [vmem:[%s0] sm:$0xf]
  %v515 = vld [vmem:[%s0 + $0x4] sm:$0xf]
  %v516 = vld [vmem:[%s1] sm:$0xff]
  %v517 = vld [vmem:[%s1 + $0x8] sm:$0xff]
  %v518 = vld [vmem:[%s1 + $0x10] sm:$0xff]
  %v519 = vld [vmem:[%s1 + $0x18] sm:$0xff]
  %v520 = vld [vmem:[%s1 + $0x20] sm:$0xff]
  %v521 = vld [vmem:[%s1 + $0x28] sm:$0xff]
  %v522 = vld [vmem:[%s1 + $0x30] sm:$0xff]
  %v523 = vld [vmem:[%s1 + $0x38] sm:$0xff]
  %v524 = vld [vmem:[%s2] sm:$0xff]
  %v526 = vperm.slane %v524, 0
  %v527 = vperm.slane %v524, 1
  %v528 = vperm.slane %v524, 2
  %v529 = vperm.slane %v524, 3
  %v530 = vperm.slane %v524, 4
  %v531 = vperm.slane %v524, 5
  %v532 = vperm.slane %v524, 6
  %v533 = vperm.slane %v524, 7
  %v544 = vunpack.c.l.b16 %v514
  %v545 = vunpack.c.l.b16 %v515
  %v546 = vpack.c.b16 %v545, %v544
  %v555 = vunpack.c.l.b16 %v516
  %v556 = vunpack.c.h.b16 %v516
  %v557 = vunpack.c.l.b16 %v517
  %v558 = vunpack.c.h.b16 %v517
  %v559 = vunpack.c.l.b16 %v518
  %v560 = vunpack.c.h.b16 %v518
  %v561 = vunpack.c.l.b16 %v519
  %v562 = vunpack.c.h.b16 %v519
  %v563 = vunpack.c.l.b16 %v520
  %v564 = vunpack.c.h.b16 %v520
  %v565 = vunpack.c.l.b16 %v521
  %v566 = vunpack.c.h.b16 %v521
  %v567 = vunpack.c.l.b16 %v522
  %v568 = vunpack.c.h.b16 %v522
  %v569 = vunpack.c.l.b16 %v523
  %v570 = vunpack.c.h.b16 %v523
  %v571 = vpack.c.b16 %v563, %v555
  %v572 = vpack.c.b16 %v564, %v556
  %v573 = vpack.c.b16 %v565, %v557
  %v574 = vpack.c.b16 %v566, %v558
  %v575 = vpack.c.b16 %v567, %v559
  %v576 = vpack.c.b16 %v568, %v560
  %v577 = vpack.c.b16 %v569, %v561
  %v578 = vpack.c.b16 %v570, %v562
  %vm587 = vcmask 130048
  %v589 = vsel %vm587, %v546, 0
  %591 = vmatpush.bf16.msra.mxu0 0
  %592 = vmatpush.bf16.msra.mxu0 0
  %593 = vmatpush.bf16.msra.mxu0 0
  %594 = vmatpush.bf16.msra.mxu0 0
  %595 = vmatpush.bf16.msra.mxu0 0
  %596 = vmatpush.bf16.msra.mxu0 0
  %597 = vmatpush.bf16.msra.mxu0 0
  %598 = vmatpush.bf16.msra.mxu0 %v571
  %599 = vmatmul.bf16.gmra.mxu0 %v589
  %v600 = vpop.f32.mrf.mxu0
  %v601 = vadd.f32 %v526, %v600
  %v602 = vpop.f32.mrf.mxu0
  %v603 = vadd.f32 %v526, %v602
  %604 = vdwg.mxu0
  %605 = vmatpush.bf16.msra.mxu0 0
  %606 = vmatpush.bf16.msra.mxu0 0
  %607 = vmatpush.bf16.msra.mxu0 0
  %608 = vmatpush.bf16.msra.mxu0 0
  %609 = vmatpush.bf16.msra.mxu0 0
  %610 = vmatpush.bf16.msra.mxu0 0
  %611 = vmatpush.bf16.msra.mxu0 0
  %612 = vmatpush.bf16.msra.mxu0 %v572
  %613 = vmatmul.bf16.gmra.mxu0 %v589
  %v614 = vpop.f32.mrf.mxu0
  %v615 = vadd.f32 %v527, %v614
  %v616 = vpop.f32.mrf.mxu0
  %v617 = vadd.f32 %v527, %v616
  %618 = vdwg.mxu0
  %619 = vmatpush.bf16.msra.mxu0 0
  %620 = vmatpush.bf16.msra.mxu0 0
  %621 = vmatpush.bf16.msra.mxu0 0
  %622 = vmatpush.bf16.msra.mxu0 0
  %623 = vmatpush.bf16.msra.mxu0 0
  %624 = vmatpush.bf16.msra.mxu0 0
  %625 = vmatpush.bf16.msra.mxu0 0
  %626 = vmatpush.bf16.msra.mxu0 %v573
  %627 = vmatmul.bf16.gmra.mxu0 %v589
  %v628 = vpop.f32.mrf.mxu0
  %v629 = vadd.f32 %v528, %v628
  %v630 = vpop.f32.mrf.mxu0
  %v631 = vadd.f32 %v528, %v630
  %632 = vdwg.mxu0
  %633 = vmatpush.bf16.msra.mxu0 0
  %634 = vmatpush.bf16.msra.mxu0 0
  %635 = vmatpush.bf16.msra.mxu0 0
  %636 = vmatpush.bf16.msra.mxu0 0
  %637 = vmatpush.bf16.msra.mxu0 0
  %638 = vmatpush.bf16.msra.mxu0 0
  %639 = vmatpush.bf16.msra.mxu0 0
  %640 = vmatpush.bf16.msra.mxu0 %v574
  %641 = vmatmul.bf16.gmra.mxu0 %v589
  %v642 = vpop.f32.mrf.mxu0
  %v643 = vadd.f32 %v529, %v642
  %v644 = vpop.f32.mrf.mxu0
  %v645 = vadd.f32 %v529, %v644
  %646 = vdwg.mxu0
  %647 = vmatpush.bf16.msra.mxu0 0
  %648 = vmatpush.bf16.msra.mxu0 0
  %649 = vmatpush.bf16.msra.mxu0 0
  %650 = vmatpush.bf16.msra.mxu0 0
  %651 = vmatpush.bf16.msra.mxu0 0
  %652 = vmatpush.bf16.msra.mxu0 0
  %653 = vmatpush.bf16.msra.mxu0 0
  %654 = vmatpush.bf16.msra.mxu0 %v575
  %655 = vmatmul.bf16.gmra.mxu0 %v589
  %v656 = vpop.f32.mrf.mxu0
  %v657 = vadd.f32 %v530, %v656
  %v658 = vpop.f32.mrf.mxu0
  %v659 = vadd.f32 %v530, %v658
  %660 = vdwg.mxu0
  %661 = vmatpush.bf16.msra.mxu0 0
  %662 = vmatpush.bf16.msra.mxu0 0
  %663 = vmatpush.bf16.msra.mxu0 0
  %664 = vmatpush.bf16.msra.mxu0 0
  %665 = vmatpush.bf16.msra.mxu0 0
  %666 = vmatpush.bf16.msra.mxu0 0
  %667 = vmatpush.bf16.msra.mxu0 0
  %668 = vmatpush.bf16.msra.mxu0 %v576
  %669 = vmatmul.bf16.gmra.mxu0 %v589
  %v670 = vpop.f32.mrf.mxu0
  %v671 = vadd.f32 %v531, %v670
  %v672 = vpop.f32.mrf.mxu0
  %v673 = vadd.f32 %v531, %v672
  %674 = vdwg.mxu0
  %675 = vmatpush.bf16.msra.mxu0 0
  %676 = vmatpush.bf16.msra.mxu0 0
  %677 = vmatpush.bf16.msra.mxu0 0
  %678 = vmatpush.bf16.msra.mxu0 0
  %679 = vmatpush.bf16.msra.mxu0 0
  %680 = vmatpush.bf16.msra.mxu0 0
  %681 = vmatpush.bf16.msra.mxu0 0
  %682 = vmatpush.bf16.msra.mxu0 %v577
  %683 = vmatmul.bf16.gmra.mxu0 %v589
  %v684 = vpop.f32.mrf.mxu0
  %v685 = vadd.f32 %v532, %v684
  %v686 = vpop.f32.mrf.mxu0
  %v687 = vadd.f32 %v532, %v686
  %688 = vdwg.mxu0
  %689 = vmatpush.bf16.msra.mxu0 0
  %690 = vmatpush.bf16.msra.mxu0 0
  %691 = vmatpush.bf16.msra.mxu0 0
  %692 = vmatpush.bf16.msra.mxu0 0
  %693 = vmatpush.bf16.msra.mxu0 0
  %694 = vmatpush.bf16.msra.mxu0 0
  %695 = vmatpush.bf16.msra.mxu0 0
  %696 = vmatpush.bf16.msra.mxu0 %v578
  %697 = vmatmul.bf16.gmra.mxu0 %v589
  %v698 = vpop.f32.mrf.mxu0
  %v699 = vadd.f32 %v533, %v698
  %v700 = vpop.f32.mrf.mxu0
  %v701 = vadd.f32 %v533, %v700
  %702 = vdwg.mxu0
  %703 = vst [vmem:[#allocation4] sm:$0xff] %v601
  %704 = vst [vmem:[#allocation4 + $0x8] sm:$0xff] %v615
  %705 = vst [vmem:[#allocation4 + $0x10] sm:$0xff] %v629
  %706 = vst [vmem:[#allocation4 + $0x18] sm:$0xff] %v643
  %707 = vst [vmem:[#allocation4 + $0x20] sm:$0xff] %v657
  %708 = vst [vmem:[#allocation4 + $0x28] sm:$0xff] %v671
  %709 = vst [vmem:[#allocation4 + $0x30] sm:$0xff] %v685
  %710 = vst [vmem:[#allocation4 + $0x38] sm:$0xff] %v699
  %711 = vst [vmem:[#allocation4 + $0x40] sm:$0xff] %v603
  %712 = vst [vmem:[#allocation4 + $0x48] sm:$0xff] %v617
  %713 = vst [vmem:[#allocation4 + $0x50] sm:$0xff] %v631
  %714 = vst [vmem:[#allocation4 + $0x58] sm:$0xff] %v645
  %715 = vst [vmem:[#allocation4 + $0x60] sm:$0xff] %v659
  %716 = vst [vmem:[#allocation4 + $0x68] sm:$0xff] %v673
  %717 = vst [vmem:[#allocation4 + $0x70] sm:$0xff] %v687
  %718 = vst [vmem:[#allocation4 + $0x78] sm:$0xff] %v701
  %v719 = vld [vmem:[%s3] sm:$0xff]
  %v720 = vld [vmem:[%s3 + $0x8] sm:$0xff]
  %v721 = vld [vmem:[%s3 + $0x10] sm:$0xff]
  %v722 = vld [vmem:[%s3 + $0x18] sm:$0xff]
  %v723 = vld [vmem:[%s3 + $0x20] sm:$0xff]
  %v724 = vld [vmem:[%s3 + $0x28] sm:$0xff]
  %v725 = vld [vmem:[%s3 + $0x30] sm:$0xff]
  %v726 = vld [vmem:[%s3 + $0x38] sm:$0xff]
  %v727 = vld [vmem:[%s3 + $0x40] sm:$0xff]
  %v728 = vld [vmem:[%s3 + $0x48] sm:$0xff]
  %v729 = vld [vmem:[%s3 + $0x50] sm:$0xff]
  %v730 = vld [vmem:[%s3 + $0x58] sm:$0xff]
  %v731 = vld [vmem:[%s3 + $0x60] sm:$0xff]
  %v732 = vld [vmem:[%s3 + $0x68] sm:$0xff]
  %v733 = vld [vmem:[%s3 + $0x70] sm:$0xff]
  %v734 = vld [vmem:[%s3 + $0x78] sm:$0xff]
  %v735 = vld [vmem:[%s3 + $0x80] sm:$0xff]
  %v736 = vld [vmem:[%s3 + $0x88] sm:$0xff]
  %v737 = vld [vmem:[%s3 + $0x90] sm:$0xff]
  %v738 = vld [vmem:[%s3 + $0x98] sm:$0xff]
  %v739 = vld [vmem:[%s3 + $0xa0] sm:$0xff]
  %v740 = vld [vmem:[%s3 + $0xa8] sm:$0xff]
  %v741 = vld [vmem:[%s3 + $0xb0] sm:$0xff]
  %v742 = vld [vmem:[%s3 + $0xb8] sm:$0xff]
  %v743 = vld [vmem:[%s3 + $0xc0] sm:$0xff]
  %v744 = vld [vmem:[%s3 + $0xc8] sm:$0xff]
  %v745 = vld [vmem:[%s3 + $0xd0] sm:$0xff]
  %v746 = vld [vmem:[%s3 + $0xd8] sm:$0xff]
  %v747 = vld [vmem:[%s3 + $0xe0] sm:$0xff]
  %v748 = vld [vmem:[%s3 + $0xe8] sm:$0xff]
  %v749 = vld [vmem:[%s3 + $0xf0] sm:$0xff]
  %v750 = vld [vmem:[%s3 + $0xf8] sm:$0xff]
  %v751 = vld [vmem:[#allocation4] sm:$0x3]
  %v752 = vld [vmem:[#allocation4 + $0x8] sm:$0x3]
  %v753 = vld [vmem:[#allocation4 + $0x10] sm:$0x3]
  %v754 = vld [vmem:[#allocation4 + $0x18] sm:$0x3]
  %v787 = vunpack.c.l.b16 %v719
  %v788 = vunpack.c.h.b16 %v719
  %v789 = vunpack.c.l.b16 %v720
  %v790 = vunpack.c.h.b16 %v720
  %v791 = vunpack.c.l.b16 %v721
  %v792 = vunpack.c.h.b16 %v721
  %v793 = vunpack.c.l.b16 %v722
  %v794 = vunpack.c.h.b16 %v722
  %v795 = vunpack.c.l.b16 %v723
  %v796 = vunpack.c.h.b16 %v723
  %v797 = vunpack.c.l.b16 %v724
  %v798 = vunpack.c.h.b16 %v724
  %v799 = vunpack.c.l.b16 %v725
  %v800 = vunpack.c.h.b16 %v725
  %v801 = vunpack.c.l.b16 %v726
  %v802 = vunpack.c.h.b16 %v726
  %v803 = vunpack.c.l.b16 %v727
  %v804 = vunpack.c.h.b16 %v727
  %v805 = vunpack.c.l.b16 %v728
  %v806 = vunpack.c.h.b16 %v728
  %v807 = vunpack.c.l.b16 %v729
  %v808 = vunpack.c.h.b16 %v729
  %v809 = vunpack.c.l.b16 %v730
  %v810 = vunpack.c.h.b16 %v730
  %v811 = vunpack.c.l.b16 %v731
  %v812 = vunpack.c.h.b16 %v731
  %v813 = vunpack.c.l.b16 %v732
  %v814 = vunpack.c.h.b16 %v732
  %v815 = vunpack.c.l.b16 %v733
  %v816 = vunpack.c.h.b16 %v733
  %v817 = vunpack.c.l.b16 %v734
  %v818 = vunpack.c.h.b16 %v734
  %v819 = vunpack.c.l.b16 %v735
  %v820 = vunpack.c.h.b16 %v735
  %v821 = vunpack.c.l.b16 %v736
  %v822 = vunpack.c.h.b16 %v736
  %v823 = vunpack.c.l.b16 %v737
  %v824 = vunpack.c.h.b16 %v737
  %v825 = vunpack.c.l.b16 %v738
  %v826 = vunpack.c.h.b16 %v738
  %v827 = vunpack.c.l.b16 %v739
  %v828 = vunpack.c.h.b16 %v739
  %v829 = vunpack.c.l.b16 %v740
  %v830 = vunpack.c.h.b16 %v740
  %v831 = vunpack.c.l.b16 %v741
  %v832 = vunpack.c.h.b16 %v741
  %v833 = vunpack.c.l.b16 %v742
  %v834 = vunpack.c.h.b16 %v742
  %v835 = vunpack.c.l.b16 %v743
  %v836 = vunpack.c.h.b16 %v743
  %v837 = vunpack.c.l.b16 %v744
  %v838 = vunpack.c.h.b16 %v744
  %v839 = vunpack.c.l.b16 %v745
  %v840 = vunpack.c.h.b16 %v745
  %v841 = vunpack.c.l.b16 %v746
  %v842 = vunpack.c.h.b16 %v746
  %v843 = vunpack.c.l.b16 %v747
  %v844 = vunpack.c.h.b16 %v747
  %v845 = vunpack.c.l.b16 %v748
  %v846 = vunpack.c.h.b16 %v748
  %v847 = vunpack.c.l.b16 %v749
  %v848 = vunpack.c.h.b16 %v749
  %v849 = vunpack.c.l.b16 %v750
  %v850 = vunpack.c.h.b16 %v750
  %v851 = vpack.c.b16 %v791, %v787
  %v852 = vpack.c.b16 %v792, %v788
  %v853 = vpack.c.b16 %v793, %v789
  %v854 = vpack.c.b16 %v794, %v790
  %v855 = vpack.c.b16 %v799, %v795
  %v856 = vpack.c.b16 %v800, %v796
  %v857 = vpack.c.b16 %v801, %v797
  %v858 = vpack.c.b16 %v802, %v798
  %v859 = vpack.c.b16 %v807, %v803
  %v860 = vpack.c.b16 %v808, %v804
  %v861 = vpack.c.b16 %v809, %v805
  %v862 = vpack.c.b16 %v810, %v806
  %v863 = vpack.c.b16 %v815, %v811
  %v864 = vpack.c.b16 %v816, %v812
  %v865 = vpack.c.b16 %v817, %v813
  %v866 = vpack.c.b16 %v818, %v814
  %v867 = vpack.c.b16 %v823, %v819
  %v868 = vpack.c.b16 %v824, %v820
  %v869 = vpack.c.b16 %v825, %v821
  %v870 = vpack.c.b16 %v826, %v822
  %v871 = vpack.c.b16 %v831, %v827
  %v872 = vpack.c.b16 %v832, %v828
  %v873 = vpack.c.b16 %v833, %v829
  %v874 = vpack.c.b16 %v834, %v830
  %v875 = vpack.c.b16 %v839, %v835
  %v876 = vpack.c.b16 %v840, %v836
  %v877 = vpack.c.b16 %v841, %v837
  %v878 = vpack.c.b16 %v842, %v838
  %v879 = vpack.c.b16 %v847, %v843
  %v880 = vpack.c.b16 %v848, %v844
  %v881 = vpack.c.b16 %v849, %v845
  %v882 = vpack.c.b16 %v850, %v846
  %915 = vmatpush.bf16.msra.mxu0 %v879
  %916 = vmatpush.bf16.msra.mxu0 %v875
  %917 = vmatpush.bf16.msra.mxu0 %v871
  %918 = vmatpush.bf16.msra.mxu0 %v867
  %919 = vmatpush.bf16.msra.mxu0 %v863
  %920 = vmatpush.bf16.msra.mxu0 %v859
  %921 = vmatpush.bf16.msra.mxu0 %v855
  %922 = vmatpush.bf16.msra.mxu0 %v851
  %923 = vmatmul.bf16.gmra.mxu0 0
  %v924 = vpop.f32.mrf.mxu0
  %v925 = vadd.f32 %v751, %v924
  %v926 = vpop.f32.mrf.mxu0
  %927 = vdwg.mxu0
  %928 = vmatpush.bf16.msra.mxu0 %v880
  %929 = vmatpush.bf16.msra.mxu0 %v876
  %930 = vmatpush.bf16.msra.mxu0 %v872
  %931 = vmatpush.bf16.msra.mxu0 %v868
  %932 = vmatpush.bf16.msra.mxu0 %v864
  %933 = vmatpush.bf16.msra.mxu0 %v860
  %934 = vmatpush.bf16.msra.mxu0 %v856
  %935 = vmatpush.bf16.msra.mxu0 %v852
  %936 = vmatmul.bf16.gmra.mxu0 0
  %v937 = vpop.f32.mrf.mxu0
  %v938 = vadd.f32 %v752, %v937
  %v939 = vpop.f32.mrf.mxu0
  %940 = vdwg.mxu0
  %941 = vmatpush.bf16.msra.mxu0 %v881
  %942 = vmatpush.bf16.msra.mxu0 %v877
  %943 = vmatpush.bf16.msra.mxu0 %v873
  %944 = vmatpush.bf16.msra.mxu0 %v869
  %945 = vmatpush.bf16.msra.mxu0 %v865
  %946 = vmatpush.bf16.msra.mxu0 %v861
  %947 = vmatpush.bf16.msra.mxu0 %v857
  %948 = vmatpush.bf16.msra.mxu0 %v853
  %949 = vmatmul.bf16.gmra.mxu0 0
  %v950 = vpop.f32.mrf.mxu0
  %v951 = vadd.f32 %v753, %v950
  %v952 = vpop.f32.mrf.mxu0
  %953 = vdwg.mxu0
  %954 = vmatpush.bf16.msra.mxu0 %v882
  %955 = vmatpush.bf16.msra.mxu0 %v878
  %956 = vmatpush.bf16.msra.mxu0 %v874
  %957 = vmatpush.bf16.msra.mxu0 %v870
  %958 = vmatpush.bf16.msra.mxu0 %v866
  %959 = vmatpush.bf16.msra.mxu0 %v862
  %960 = vmatpush.bf16.msra.mxu0 %v858
  %961 = vmatpush.bf16.msra.mxu0 %v854
  %962 = vmatmul.bf16.gmra.mxu0 0
  %v963 = vpop.f32.mrf.mxu0
  %v964 = vadd.f32 %v754, %v963
  %v965 = vpop.f32.mrf.mxu0
  %966 = vdwg.mxu0
  %v967 = vld [vmem:[%s4] sm:$0xff]
  %v968 = vld [vmem:[%s4 + $0x8] sm:$0xff]
  %v969 = vld [vmem:[%s4 + $0x10] sm:$0xff]
  %v970 = vld [vmem:[%s4 + $0x18] sm:$0xff]
  %v971 = vld [vmem:[%s4 + $0x20] sm:$0xff]
  %v972 = vld [vmem:[%s4 + $0x28] sm:$0xff]
  %v973 = vld [vmem:[%s4 + $0x30] sm:$0xff]
  %v974 = vld [vmem:[%s4 + $0x38] sm:$0xff]
  %v975 = vld [vmem:[%s4 + $0x40] sm:$0xff]
  %v976 = vld [vmem:[%s4 + $0x48] sm:$0xff]
  %v977 = vld [vmem:[%s4 + $0x50] sm:$0xff]
  %v978 = vld [vmem:[%s4 + $0x58] sm:$0xff]
  %v979 = vld [vmem:[%s4 + $0x60] sm:$0xff]
  %v980 = vld [vmem:[%s4 + $0x68] sm:$0xff]
  %v981 = vld [vmem:[%s4 + $0x70] sm:$0xff]
  %v982 = vld [vmem:[%s4 + $0x78] sm:$0xff]
  %v983 = vld [vmem:[%s4 + $0x80] sm:$0xff]
  %v984 = vld [vmem:[%s4 + $0x88] sm:$0xff]
  %v985 = vld [vmem:[%s4 + $0x90] sm:$0xff]
  %v986 = vld [vmem:[%s4 + $0x98] sm:$0xff]
  %v987 = vld [vmem:[%s4 + $0xa0] sm:$0xff]
  %v988 = vld [vmem:[%s4 + $0xa8] sm:$0xff]
  %v989 = vld [vmem:[%s4 + $0xb0] sm:$0xff]
  %v990 = vld [vmem:[%s4 + $0xb8] sm:$0xff]
  %v991 = vld [vmem:[%s4 + $0xc0] sm:$0xff]
  %v992 = vld [vmem:[%s4 + $0xc8] sm:$0xff]
  %v993 = vld [vmem:[%s4 + $0xd0] sm:$0xff]
  %v994 = vld [vmem:[%s4 + $0xd8] sm:$0xff]
  %v995 = vld [vmem:[%s4 + $0xe0] sm:$0xff]
  %v996 = vld [vmem:[%s4 + $0xe8] sm:$0xff]
  %v997 = vld [vmem:[%s4 + $0xf0] sm:$0xff]
  %v998 = vld [vmem:[%s4 + $0xf8] sm:$0xff]
  %v999 = vld [vmem:[#allocation4 + $0x60] sm:$0xc0]
  %v1000 = vld [vmem:[#allocation4 + $0x68] sm:$0xc0]
  %v1001 = vld [vmem:[#allocation4 + $0x70] sm:$0xc0]
  %v1002 = vld [vmem:[#allocation4 + $0x78] sm:$0xc0]
  %v1035 = vunpack.c.l.b16 %v967
  %v1036 = vunpack.c.h.b16 %v967
  %v1037 = vunpack.c.l.b16 %v968
  %v1038 = vunpack.c.h.b16 %v968
  %v1039 = vunpack.c.l.b16 %v969
  %v1040 = vunpack.c.h.b16 %v969
  %v1041 = vunpack.c.l.b16 %v970
  %v1042 = vunpack.c.h.b16 %v970
  %v1043 = vunpack.c.l.b16 %v971
  %v1044 = vunpack.c.h.b16 %v971
  %v1045 = vunpack.c.l.b16 %v972
  %v1046 = vunpack.c.h.b16 %v972
  %v1047 = vunpack.c.l.b16 %v973
  %v1048 = vunpack.c.h.b16 %v973
  %v1049 = vunpack.c.l.b16 %v974
  %v1050 = vunpack.c.h.b16 %v974
  %v1051 = vunpack.c.l.b16 %v975
  %v1052 = vunpack.c.h.b16 %v975
  %v1053 = vunpack.c.l.b16 %v976
  %v1054 = vunpack.c.h.b16 %v976
  %v1055 = vunpack.c.l.b16 %v977
  %v1056 = vunpack.c.h.b16 %v977
  %v1057 = vunpack.c.l.b16 %v978
  %v1058 = vunpack.c.h.b16 %v978
  %v1059 = vunpack.c.l.b16 %v979
  %v1060 = vunpack.c.h.b16 %v979
  %v1061 = vunpack.c.l.b16 %v980
  %v1062 = vunpack.c.h.b16 %v980
  %v1063 = vunpack.c.l.b16 %v981
  %v1064 = vunpack.c.h.b16 %v981
  %v1065 = vunpack.c.l.b16 %v982
  %v1066 = vunpack.c.h.b16 %v982
  %v1067 = vunpack.c.l.b16 %v983
  %v1068 = vunpack.c.h.b16 %v983
  %v1069 = vunpack.c.l.b16 %v984
  %v1070 = vunpack.c.h.b16 %v984
  %v1071 = vunpack.c.l.b16 %v985
  %v1072 = vunpack.c.h.b16 %v985
  %v1073 = vunpack.c.l.b16 %v986
  %v1074 = vunpack.c.h.b16 %v986
  %v1075 = vunpack.c.l.b16 %v987
  %v1076 = vunpack.c.h.b16 %v987
  %v1077 = vunpack.c.l.b16 %v988
  %v1078 = vunpack.c.h.b16 %v988
  %v1079 = vunpack.c.l.b16 %v989
  %v1080 = vunpack.c.h.b16 %v989
  %v1081 = vunpack.c.l.b16 %v990
  %v1082 = vunpack.c.h.b16 %v990
  %v1083 = vunpack.c.l.b16 %v991
  %v1084 = vunpack.c.h.b16 %v991
  %v1085 = vunpack.c.l.b16 %v992
  %v1086 = vunpack.c.h.b16 %v992
  %v1087 = vunpack.c.l.b16 %v993
  %v1088 = vunpack.c.h.b16 %v993
  %v1089 = vunpack.c.l.b16 %v994
  %v1090 = vunpack.c.h.b16 %v994
  %v1091 = vunpack.c.l.b16 %v995
  %v1092 = vunpack.c.h.b16 %v995
  %v1093 = vunpack.c.l.b16 %v996
  %v1094 = vunpack.c.h.b16 %v996
  %v1095 = vunpack.c.l.b16 %v997
  %v1096 = vunpack.c.h.b16 %v997
  %v1097 = vunpack.c.l.b16 %v998
  %v1098 = vunpack.c.h.b16 %v998
  %v1099 = vpack.c.b16 %v1039, %v1035
  %v1100 = vpack.c.b16 %v1040, %v1036
  %v1101 = vpack.c.b16 %v1041, %v1037
  %v1102 = vpack.c.b16 %v1042, %v1038
  %v1103 = vpack.c.b16 %v1047, %v1043
  %v1104 = vpack.c.b16 %v1048, %v1044
  %v1105 = vpack.c.b16 %v1049, %v1045
  %v1106 = vpack.c.b16 %v1050, %v1046
  %v1107 = vpack.c.b16 %v1055, %v1051
  %v1108 = vpack.c.b16 %v1056, %v1052
  %v1109 = vpack.c.b16 %v1057, %v1053
  %v1110 = vpack.c.b16 %v1058, %v1054
  %v1111 = vpack.c.b16 %v1063, %v1059
  %v1112 = vpack.c.b16 %v1064, %v1060
  %v1113 = vpack.c.b16 %v1065, %v1061
  %v1114 = vpack.c.b16 %v1066, %v1062
  %v1115 = vpack.c.b16 %v1071, %v1067
  %v1116 = vpack.c.b16 %v1072, %v1068
  %v1117 = vpack.c.b16 %v1073, %v1069
  %v1118 = vpack.c.b16 %v1074, %v1070
  %v1119 = vpack.c.b16 %v1079, %v1075
  %v1120 = vpack.c.b16 %v1080, %v1076
  %v1121 = vpack.c.b16 %v1081, %v1077
  %v1122 = vpack.c.b16 %v1082, %v1078
  %v1123 = vpack.c.b16 %v1087, %v1083
  %v1124 = vpack.c.b16 %v1088, %v1084
  %v1125 = vpack.c.b16 %v1089, %v1085
  %v1126 = vpack.c.b16 %v1090, %v1086
  %v1127 = vpack.c.b16 %v1095, %v1091
  %v1128 = vpack.c.b16 %v1096, %v1092
  %v1129 = vpack.c.b16 %v1097, %v1093
  %v1130 = vpack.c.b16 %v1098, %v1094
  %v1167 = vrot.slane %v999, 6
  %v1168 = vrot.slane %v1000, 6
  %v1169 = vrot.slane %v1001, 6
  %v1170 = vrot.slane %v1002, 6
  %1175 = vmatpush.bf16.msra.mxu0 %v1127
  %1176 = vmatpush.bf16.msra.mxu0 %v1123
  %1177 = vmatpush.bf16.msra.mxu0 %v1119
  %1178 = vmatpush.bf16.msra.mxu0 %v1115
  %1179 = vmatpush.bf16.msra.mxu0 %v1111
  %1180 = vmatpush.bf16.msra.mxu0 %v1107
  %1181 = vmatpush.bf16.msra.mxu0 %v1103
  %1182 = vmatpush.bf16.msra.mxu0 %v1099
  %1183 = vmatmul.bf16.gmra.mxu0 0
  %v1184 = vpop.f32.mrf.mxu0
  %v1185 = vadd.f32 %v1167, %v1184
  %v1186 = vpop.f32.mrf.mxu0
  %1187 = vdwg.mxu0
  %1188 = vmatpush.bf16.msra.mxu0 %v1128
  %1189 = vmatpush.bf16.msra.mxu0 %v1124
  %1190 = vmatpush.bf16.msra.mxu0 %v1120
  %1191 = vmatpush.bf16.msra.mxu0 %v1116
  %1192 = vmatpush.bf16.msra.mxu0 %v1112
  %1193 = vmatpush.bf16.msra.mxu0 %v1108
  %1194 = vmatpush.bf16.msra.mxu0 %v1104
  %1195 = vmatpush.bf16.msra.mxu0 %v1100
  %1196 = vmatmul.bf16.gmra.mxu0 0
  %v1197 = vpop.f32.mrf.mxu0
  %v1198 = vadd.f32 %v1168, %v1197
  %v1199 = vpop.f32.mrf.mxu0
  %1200 = vdwg.mxu0
  %1201 = vmatpush.bf16.msra.mxu0 %v1129
  %1202 = vmatpush.bf16.msra.mxu0 %v1125
  %1203 = vmatpush.bf16.msra.mxu0 %v1121
  %1204 = vmatpush.bf16.msra.mxu0 %v1117
  %1205 = vmatpush.bf16.msra.mxu0 %v1113
  %1206 = vmatpush.bf16.msra.mxu0 %v1109
  %1207 = vmatpush.bf16.msra.mxu0 %v1105
  %1208 = vmatpush.bf16.msra.mxu0 %v1101
  %1209 = vmatmul.bf16.gmra.mxu0 0
  %v1210 = vpop.f32.mrf.mxu0
  %v1211 = vadd.f32 %v1169, %v1210
  %v1212 = vpop.f32.mrf.mxu0
  %1213 = vdwg.mxu0
  %1214 = vmatpush.bf16.msra.mxu0 %v1130
  %1215 = vmatpush.bf16.msra.mxu0 %v1126
  %1216 = vmatpush.bf16.msra.mxu0 %v1122
  %1217 = vmatpush.bf16.msra.mxu0 %v1118
  %1218 = vmatpush.bf16.msra.mxu0 %v1114
  %1219 = vmatpush.bf16.msra.mxu0 %v1110
  %1220 = vmatpush.bf16.msra.mxu0 %v1106
  %1221 = vmatpush.bf16.msra.mxu0 %v1102
  %1222 = vmatmul.bf16.gmra.mxu0 0
  %v1223 = vpop.f32.mrf.mxu0
  %v1224 = vadd.f32 %v1170, %v1223
  %v1225 = vpop.f32.mrf.mxu0
  %1226 = vdwg.mxu0
  %v1231 = vrot.slane %v1185, 6
  %v1232 = vrot.slane %v1198, 6
  %v1233 = vrot.slane %v1211, 6
  %v1234 = vrot.slane %v1224, 6
  %vm1239 = vcmask 1041408
  %v1240 = vsel %vm1239, %v925, %v1231
  %v1241 = vsel %vm1239, %v938, %v1232
  %v1242 = vsel %vm1239, %v951, %v1233
  %v1243 = vsel %vm1239, %v964, %v1234
  %v1244 = vxor.u32 %v1240, 2147483648
  %v1245 = vmul.f32 %v1244, 1.442695
  %v1246 = vpow.pop %v1245
  %v1247 = vadd.f32 %v1246, 1.0
  %v1248 = vrcp.pop %v1247
  %v1249 = vmul.f32 %v1247, %v1248
  %v1250 = vsub.f32 1.0, %v1249
  %v1251 = vmul.f32 %v1248, %v1250
  %v1252 = vadd.f32 %v1248, %v1251
  %vm1253 = vweird.f32 %v1247
  %vm1254 = vweird.f32 %v1248
  %vm1255 = vmor %vm1253, %vm1254
  %v1256 = vsel %vm1255, %v1248, %v1252
  %v1257 = vand.u32 2147483647, %v1247
  %vm1258 = vcmp.eq.f32.partialorder %v1257, 8.507059e+37
  %v1259 = vand.u32 %v1247, 2147483648
  %v1260 = vor.u32 1.1754944e-38, %v1259
  %v1261 = vsel %vm1258, %v1260, %v1256
  %v1262 = vmul.f32 1.0, %v1261
  %v1263 = vxor.u32 %v1241, 2147483648
  %v1264 = vmul.f32 %v1263, 1.442695
  %v1265 = vpow.pop %v1264
  %v1266 = vadd.f32 %v1265, 1.0
  %v1267 = vrcp.pop %v1266
  %v1268 = vmul.f32 %v1266, %v1267
  %v1269 = vsub.f32 1.0, %v1268
  %v1270 = vmul.f32 %v1267, %v1269
  %v1271 = vadd.f32 %v1267, %v1270
  %vm1272 = vweird.f32 %v1266
  %vm1273 = vweird.f32 %v1267
  %vm1274 = vmor %vm1272, %vm1273
  %v1275 = vsel %vm1274, %v1267, %v1271
  %v1276 = vand.u32 2147483647, %v1266
  %vm1277 = vcmp.eq.f32.partialorder %v1276, 8.507059e+37
  %v1278 = vand.u32 %v1266, 2147483648
  %v1279 = vor.u32 1.1754944e-38, %v1278
  %v1280 = vsel %vm1277, %v1279, %v1275
  %v1281 = vmul.f32 1.0, %v1280
  %v1282 = vtanh.pop %v1242
  %v1283 = vxor.u32 %v1243, 2147483648
  %v1284 = vmul.f32 %v1283, 1.442695
  %v1285 = vpow.pop %v1284
  %v1286 = vadd.f32 %v1285, 1.0
  %v1287 = vrcp.pop %v1286
  %v1288 = vmul.f32 %v1286, %v1287
  %v1289 = vsub.f32 1.0, %v1288
  %v1290 = vmul.f32 %v1287, %v1289
  %v1291 = vadd.f32 %v1287, %v1290
  %vm1292 = vweird.f32 %v1286
  %vm1293 = vweird.f32 %v1287
  %vm1294 = vmor %vm1292, %vm1293
  %v1295 = vsel %vm1294, %v1287, %v1291
  %v1296 = vand.u32 2147483647, %v1286
  %vm1297 = vcmp.eq.f32.partialorder %v1296, 8.507059e+37
  %v1298 = vand.u32 %v1286, 2147483648
  %v1299 = vor.u32 1.1754944e-38, %v1298
  %v1300 = vsel %vm1297, %v1299, %v1295
  %v1301 = vmul.f32 1.0, %v1300
  %v1302 = vmul.f32 %v1281, 0.0
  %v1303 = vmul.f32 %v1262, %v1282
  %v1304 = vadd.f32 %v1302, %v1303
  %v1305 = vtanh.pop %v1304
  %v1306 = vmul.f32 %v1301, %v1305
  %1307 = vst [vmem:[#allocation2] sm:$0x3] %v1306
  %v1309 = vrot.slane %v1306, 4
  %1311 = vst [vmem:[#allocation2 + $0x18] sm:$0xc0] %v1309
  %v1312 = vpack.c.bf16 %v1306, %v1306
  %v1313 = vld [vmem:[%s3] sm:$0xff]
  %v1314 = vld [vmem:[%s3 + $0x8] sm:$0xff]
  %v1315 = vld [vmem:[%s3 + $0x10] sm:$0xff]
  %v1316 = vld [vmem:[%s3 + $0x18] sm:$0xff]
  %v1317 = vld [vmem:[%s3 + $0x20] sm:$0xff]
  %v1318 = vld [vmem:[%s3 + $0x28] sm:$0xff]
  %v1319 = vld [vmem:[%s3 + $0x30] sm:$0xff]
  %v1320 = vld [vmem:[%s3 + $0x38] sm:$0xff]
  %v1321 = vld [vmem:[%s3 + $0x40] sm:$0xff]
  %v1322 = vld [vmem:[%s3 + $0x48] sm:$0xff]
  %v1323 = vld [vmem:[%s3 + $0x50] sm:$0xff]
  %v1324 = vld [vmem:[%s3 + $0x58] sm:$0xff]
  %v1325 = vld [vmem:[%s3 + $0x60] sm:$0xff]
  %v1326 = vld [vmem:[%s3 + $0x68] sm:$0xff]
  %v1327 = vld [vmem:[%s3 + $0x70] sm:$0xff]
  %v1328 = vld [vmem:[%s3 + $0x78] sm:$0xff]
  %v1329 = vld [vmem:[%s3 + $0x80] sm:$0xff]
  %v1330 = vld [vmem:[%s3 + $0x88] sm:$0xff]
  %v1331 = vld [vmem:[%s3 + $0x90] sm:$0xff]
  %v1332 = vld [vmem:[%s3 + $0x98] sm:$0xff]
  %v1333 = vld [vmem:[%s3 + $0xa0] sm:$0xff]
  %v1334 = vld [vmem:[%s3 + $0xa8] sm:$0xff]
  %v1335 = vld [vmem:[%s3 + $0xb0] sm:$0xff]
  %v1336 = vld [vmem:[%s3 + $0xb8] sm:$0xff]
  %v1337 = vld [vmem:[%s3 + $0xc0] sm:$0xff]
  %v1338 = vld [vmem:[%s3 + $0xc8] sm:$0xff]
  %v1339 = vld [vmem:[%s3 + $0xd0] sm:$0xff]
  %v1340 = vld [vmem:[%s3 + $0xd8] sm:$0xff]
  %v1341 = vld [vmem:[%s3 + $0xe0] sm:$0xff]
  %v1342 = vld [vmem:[%s3 + $0xe8] sm:$0xff]
  %v1343 = vld [vmem:[%s3 + $0xf0] sm:$0xff]
  %v1344 = vld [vmem:[%s3 + $0xf8] sm:$0xff]
  %v1345 = vld [vmem:[#allocation4] sm:$0xc]
  %v1346 = vld [vmem:[#allocation4 + $0x8] sm:$0xc]
  %v1347 = vld [vmem:[#allocation4 + $0x10] sm:$0xc]
  %v1348 = vld [vmem:[#allocation4 + $0x18] sm:$0xc]
  %v1381 = vunpack.c.l.b16 %v1313
  %v1382 = vunpack.c.h.b16 %v1313
  %v1383 = vunpack.c.l.b16 %v1314
  %v1384 = vunpack.c.h.b16 %v1314
  %v1385 = vunpack.c.l.b16 %v1315
  %v1386 = vunpack.c.h.b16 %v1315
  %v1387 = vunpack.c.l.b16 %v1316
  %v1388 = vunpack.c.h.b16 %v1316
  %v1389 = vunpack.c.l.b16 %v1317
  %v1390 = vunpack.c.h.b16 %v1317
  %v1391 = vunpack.c.l.b16 %v1318
  %v1392 = vunpack.c.h.b16 %v1318
  %v1393 = vunpack.c.l.b16 %v1319
  %v1394 = vunpack.c.h.b16 %v1319
  %v1395 = vunpack.c.l.b16 %v1320
  %v1396 = vunpack.c.h.b16 %v1320
  %v1397 = vunpack.c.l.b16 %v1321
  %v1398 = vunpack.c.h.b16 %v1321
  %v1399 = vunpack.c.l.b16 %v1322
  %v1400 = vunpack.c.h.b16 %v1322
  %v1401 = vunpack.c.l.b16 %v1323
  %v1402 = vunpack.c.h.b16 %v1323
  %v1403 = vunpack.c.l.b16 %v1324
  %v1404 = vunpack.c.h.b16 %v1324
  %v1405 = vunpack.c.l.b16 %v1325
  %v1406 = vunpack.c.h.b16 %v1325
  %v1407 = vunpack.c.l.b16 %v1326
  %v1408 = vunpack.c.h.b16 %v1326
  %v1409 = vunpack.c.l.b16 %v1327
  %v1410 = vunpack.c.h.b16 %v1327
  %v1411 = vunpack.c.l.b16 %v1328
  %v1412 = vunpack.c.h.b16 %v1328
  %v1413 = vunpack.c.l.b16 %v1329
  %v1414 = vunpack.c.h.b16 %v1329
  %v1415 = vunpack.c.l.b16 %v1330
  %v1416 = vunpack.c.h.b16 %v1330
  %v1417 = vunpack.c.l.b16 %v1331
  %v1418 = vunpack.c.h.b16 %v1331
  %v1419 = vunpack.c.l.b16 %v1332
  %v1420 = vunpack.c.h.b16 %v1332
  %v1421 = vunpack.c.l.b16 %v1333
  %v1422 = vunpack.c.h.b16 %v1333
  %v1423 = vunpack.c.l.b16 %v1334
  %v1424 = vunpack.c.h.b16 %v1334
  %v1425 = vunpack.c.l.b16 %v1335
  %v1426 = vunpack.c.h.b16 %v1335
  %v1427 = vunpack.c.l.b16 %v1336
  %v1428 = vunpack.c.h.b16 %v1336
  %v1429 = vunpack.c.l.b16 %v1337
  %v1430 = vunpack.c.h.b16 %v1337
  %v1431 = vunpack.c.l.b16 %v1338
  %v1432 = vunpack.c.h.b16 %v1338
  %v1433 = vunpack.c.l.b16 %v1339
  %v1434 = vunpack.c.h.b16 %v1339
  %v1435 = vunpack.c.l.b16 %v1340
  %v1436 = vunpack.c.h.b16 %v1340
  %v1437 = vunpack.c.l.b16 %v1341
  %v1438 = vunpack.c.h.b16 %v1341
  %v1439 = vunpack.c.l.b16 %v1342
  %v1440 = vunpack.c.h.b16 %v1342
  %v1441 = vunpack.c.l.b16 %v1343
  %v1442 = vunpack.c.h.b16 %v1343
  %v1443 = vunpack.c.l.b16 %v1344
  %v1444 = vunpack.c.h.b16 %v1344
  %v1445 = vpack.c.b16 %v1385, %v1381
  %v1446 = vpack.c.b16 %v1386, %v1382
  %v1447 = vpack.c.b16 %v1387, %v1383
  %v1448 = vpack.c.b16 %v1388, %v1384
  %v1449 = vpack.c.b16 %v1393, %v1389
  %v1450 = vpack.c.b16 %v1394, %v1390
  %v1451 = vpack.c.b16 %v1395, %v1391
  %v1452 = vpack.c.b16 %v1396, %v1392
  %v1453 = vpack.c.b16 %v1401, %v1397
  %v1454 = vpack.c.b16 %v1402, %v1398
  %v1455 = vpack.c.b16 %v1403, %v1399
  %v1456 = vpack.c.b16 %v1404, %v1400
  %v1457 = vpack.c.b16 %v1409, %v1405
  %v1458 = vpack.c.b16 %v1410, %v1406
  %v1459 = vpack.c.b16 %v1411, %v1407
  %v1460 = vpack.c.b16 %v1412, %v1408
  %v1461 = vpack.c.b16 %v1417, %v1413
  %v1462 = vpack.c.b16 %v1418, %v1414
  %v1463 = vpack.c.b16 %v1419, %v1415
  %v1464 = vpack.c.b16 %v1420, %v1416
  %v1465 = vpack.c.b16 %v1425, %v1421
  %v1466 = vpack.c.b16 %v1426, %v1422
  %v1467 = vpack.c.b16 %v1427, %v1423
  %v1468 = vpack.c.b16 %v1428, %v1424
  %v1469 = vpack.c.b16 %v1433, %v1429
  %v1470 = vpack.c.b16 %v1434, %v1430
  %v1471 = vpack.c.b16 %v1435, %v1431
  %v1472 = vpack.c.b16 %v1436, %v1432
  %v1473 = vpack.c.b16 %v1441, %v1437
  %v1474 = vpack.c.b16 %v1442, %v1438
  %v1475 = vpack.c.b16 %v1443, %v1439
  %v1476 = vpack.c.b16 %v1444, %v1440
  %v1513 = vrot.slane %v1345, 2
  %v1514 = vrot.slane %v1346, 2
  %v1515 = vrot.slane %v1347, 2
  %v1516 = vrot.slane %v1348, 2
  %1521 = vmatpush.bf16.msra.mxu0 %v1473
  %1522 = vmatpush.bf16.msra.mxu0 %v1469
  %1523 = vmatpush.bf16.msra.mxu0 %v1465
  %1524 = vmatpush.bf16.msra.mxu0 %v1461
  %1525 = vmatpush.bf16.msra.mxu0 %v1457
  %1526 = vmatpush.bf16.msra.mxu0 %v1453
  %1527 = vmatpush.bf16.msra.mxu0 %v1449
  %1528 = vmatpush.bf16.msra.mxu0 %v1445
  %1529 = vmatmul.bf16.gmra.mxu0 %v1312
  %v1530 = vpop.f32.mrf.mxu0
  %v1531 = vadd.f32 %v1513, %v1530
  %v1532 = vpop.f32.mrf.mxu0
  %1533 = vdwg.mxu0
  %1534 = vmatpush.bf16.msra.mxu0 %v1474
  %1535 = vmatpush.bf16.msra.mxu0 %v1470
  %1536 = vmatpush.bf16.msra.mxu0 %v1466
  %1537 = vmatpush.bf16.msra.mxu0 %v1462
  %1538 = vmatpush.bf16.msra.mxu0 %v1458
  %1539 = vmatpush.bf16.msra.mxu0 %v1454
  %1540 = vmatpush.bf16.msra.mxu0 %v1450
  %1541 = vmatpush.bf16.msra.mxu0 %v1446
  %1542 = vmatmul.bf16.gmra.mxu0 %v1312
  %v1543 = vpop.f32.mrf.mxu0
  %v1544 = vadd.f32 %v1514, %v1543
  %v1545 = vpop.f32.mrf.mxu0
  %1546 = vdwg.mxu0
  %1547 = vmatpush.bf16.msra.mxu0 %v1475
  %1548 = vmatpush.bf16.msra.mxu0 %v1471
  %1549 = vmatpush.bf16.msra.mxu0 %v1467
  %1550 = vmatpush.bf16.msra.mxu0 %v1463
  %1551 = vmatpush.bf16.msra.mxu0 %v1459
  %1552 = vmatpush.bf16.msra.mxu0 %v1455
  %1553 = vmatpush.bf16.msra.mxu0 %v1451
  %1554 = vmatpush.bf16.msra.mxu0 %v1447
  %1555 = vmatmul.bf16.gmra.mxu0 %v1312
  %v1556 = vpop.f32.mrf.mxu0
  %v1557 = vadd.f32 %v1515, %v1556
  %v1558 = vpop.f32.mrf.mxu0
  %1559 = vdwg.mxu0
  %1560 = vmatpush.bf16.msra.mxu0 %v1476
  %1561 = vmatpush.bf16.msra.mxu0 %v1472
  %1562 = vmatpush.bf16.msra.mxu0 %v1468
  %1563 = vmatpush.bf16.msra.mxu0 %v1464
  %1564 = vmatpush.bf16.msra.mxu0 %v1460
  %1565 = vmatpush.bf16.msra.mxu0 %v1456
  %1566 = vmatpush.bf16.msra.mxu0 %v1452
  %1567 = vmatpush.bf16.msra.mxu0 %v1448
  %1568 = vmatmul.bf16.gmra.mxu0 %v1312
  %v1569 = vpop.f32.mrf.mxu0
  %v1570 = vadd.f32 %v1516, %v1569
  %v1571 = vpop.f32.mrf.mxu0
  %1572 = vdwg.mxu0
  %v1573 = vld [vmem:[%s4] sm:$0xff]
  %v1574 = vld [vmem:[%s4 + $0x8] sm:$0xff]
  %v1575 = vld [vmem:[%s4 + $0x10] sm:$0xff]
  %v1576 = vld [vmem:[%s4 + $0x18] sm:$0xff]
  %v1577 = vld [vmem:[%s4 + $0x20] sm:$0xff]
  %v1578 = vld [vmem:[%s4 + $0x28] sm:$0xff]
  %v1579 = vld [vmem:[%s4 + $0x30] sm:$0xff]
  %v1580 = vld [vmem:[%s4 + $0x38] sm:$0xff]
  %v1581 = vld [vmem:[%s4 + $0x40] sm:$0xff]
  %v1582 = vld [vmem:[%s4 + $0x48] sm:$0xff]
  %v1583 = vld [vmem:[%s4 + $0x50] sm:$0xff]
  %v1584 = vld [vmem:[%s4 + $0x58] sm:$0xff]
  %v1585 = vld [vmem:[%s4 + $0x60] sm:$0xff]
  %v1586 = vld [vmem:[%s4 + $0x68] sm:$0xff]
  %v1587 = vld [vmem:[%s4 + $0x70] sm:$0xff]
  %v1588 = vld [vmem:[%s4 + $0x78] sm:$0xff]
  %v1589 = vld [vmem:[%s4 + $0x80] sm:$0xff]
  %v1590 = vld [vmem:[%s4 + $0x88] sm:$0xff]
  %v1591 = vld [vmem:[%s4 + $0x90] sm:$0xff]
  %v1592 = vld [vmem:[%s4 + $0x98] sm:$0xff]
  %v1593 = vld [vmem:[%s4 + $0xa0] sm:$0xff]
  %v1594 = vld [vmem:[%s4 + $0xa8] sm:$0xff]
  %v1595 = vld [vmem:[%s4 + $0xb0] sm:$0xff]
  %v1596 = vld [vmem:[%s4 + $0xb8] sm:$0xff]
  %v1597 = vld [vmem:[%s4 + $0xc0] sm:$0xff]
  %v1598 = vld [vmem:[%s4 + $0xc8] sm:$0xff]
  %v1599 = vld [vmem:[%s4 + $0xd0] sm:$0xff]
  %v1600 = vld [vmem:[%s4 + $0xd8] sm:$0xff]
  %v1601 = vld [vmem:[%s4 + $0xe0] sm:$0xff]
  %v1602 = vld [vmem:[%s4 + $0xe8] sm:$0xff]
  %v1603 = vld [vmem:[%s4 + $0xf0] sm:$0xff]
  %v1604 = vld [vmem:[%s4 + $0xf8] sm:$0xff]
  %v1605 = vld [vmem:[#allocation4 + $0x60] sm:$0x30]
  %v1606 = vld [vmem:[#allocation4 + $0x68] sm:$0x30]
  %v1607 = vld [vmem:[#allocation4 + $0x70] sm:$0x30]
  %v1608 = vld [vmem:[#allocation4 + $0x78] sm:$0x30]
  %v1610 = vrot.slane %v1312, 1
  %v1644 = vunpack.c.l.b16 %v1573
  %v1645 = vunpack.c.h.b16 %v1573
  %v1646 = vunpack.c.l.b16 %v1574
  %v1647 = vunpack.c.h.b16 %v1574
  %v1648 = vunpack.c.l.b16 %v1575
  %v1649 = vunpack.c.h.b16 %v1575
  %v1650 = vunpack.c.l.b16 %v1576
  %v1651 = vunpack.c.h.b16 %v1576
  %v1652 = vunpack.c.l.b16 %v1577
  %v1653 = vunpack.c.h.b16 %v1577
  %v1654 = vunpack.c.l.b16 %v1578
  %v1655 = vunpack.c.h.b16 %v1578
  %v1656 = vunpack.c.l.b16 %v1579
  %v1657 = vunpack.c.h.b16 %v1579
  %v1658 = vunpack.c.l.b16 %v1580
  %v1659 = vunpack.c.h.b16 %v1580
  %v1660 = vunpack.c.l.b16 %v1581
  %v1661 = vunpack.c.h.b16 %v1581
  %v1662 = vunpack.c.l.b16 %v1582
  %v1663 = vunpack.c.h.b16 %v1582
  %v1664 = vunpack.c.l.b16 %v1583
  %v1665 = vunpack.c.h.b16 %v1583
  %v1666 = vunpack.c.l.b16 %v1584
  %v1667 = vunpack.c.h.b16 %v1584
  %v1668 = vunpack.c.l.b16 %v1585
  %v1669 = vunpack.c.h.b16 %v1585
  %v1670 = vunpack.c.l.b16 %v1586
  %v1671 = vunpack.c.h.b16 %v1586
  %v1672 = vunpack.c.l.b16 %v1587
  %v1673 = vunpack.c.h.b16 %v1587
  %v1674 = vunpack.c.l.b16 %v1588
  %v1675 = vunpack.c.h.b16 %v1588
  %v1676 = vunpack.c.l.b16 %v1589
  %v1677 = vunpack.c.h.b16 %v1589
  %v1678 = vunpack.c.l.b16 %v1590
  %v1679 = vunpack.c.h.b16 %v1590
  %v1680 = vunpack.c.l.b16 %v1591
  %v1681 = vunpack.c.h.b16 %v1591
  %v1682 = vunpack.c.l.b16 %v1592
  %v1683 = vunpack.c.h.b16 %v1592
  %v1684 = vunpack.c.l.b16 %v1593
  %v1685 = vunpack.c.h.b16 %v1593
  %v1686 = vunpack.c.l.b16 %v1594
  %v1687 = vunpack.c.h.b16 %v1594
  %v1688 = vunpack.c.l.b16 %v1595
  %v1689 = vunpack.c.h.b16 %v1595
  %v1690 = vunpack.c.l.b16 %v1596
  %v1691 = vunpack.c.h.b16 %v1596
  %v1692 = vunpack.c.l.b16 %v1597
  %v1693 = vunpack.c.h.b16 %v1597
  %v1694 = vunpack.c.l.b16 %v1598
  %v1695 = vunpack.c.h.b16 %v1598
  %v1696 = vunpack.c.l.b16 %v1599
  %v1697 = vunpack.c.h.b16 %v1599
  %v1698 = vunpack.c.l.b16 %v1600
  %v1699 = vunpack.c.h.b16 %v1600
  %v1700 = vunpack.c.l.b16 %v1601
  %v1701 = vunpack.c.h.b16 %v1601
  %v1702 = vunpack.c.l.b16 %v1602
  %v1703 = vunpack.c.h.b16 %v1602
  %v1704 = vunpack.c.l.b16 %v1603
  %v1705 = vunpack.c.h.b16 %v1603
  %v1706 = vunpack.c.l.b16 %v1604
  %v1707 = vunpack.c.h.b16 %v1604
  %v1708 = vpack.c.b16 %v1648, %v1644
  %v1709 = vpack.c.b16 %v1649, %v1645
  %v1710 = vpack.c.b16 %v1650, %v1646
  %v1711 = vpack.c.b16 %v1651, %v1647
  %v1712 = vpack.c.b16 %v1656, %v1652
  %v1713 = vpack.c.b16 %v1657, %v1653
  %v1714 = vpack.c.b16 %v1658, %v1654
  %v1715 = vpack.c.b16 %v1659, %v1655
  %v1716 = vpack.c.b16 %v1664, %v1660
  %v1717 = vpack.c.b16 %v1665, %v1661
  %v1718 = vpack.c.b16 %v1666, %v1662
  %v1719 = vpack.c.b16 %v1667, %v1663
  %v1720 = vpack.c.b16 %v1672, %v1668
  %v1721 = vpack.c.b16 %v1673, %v1669
  %v1722 = vpack.c.b16 %v1674, %v1670
  %v1723 = vpack.c.b16 %v1675, %v1671
  %v1724 = vpack.c.b16 %v1680, %v1676
  %v1725 = vpack.c.b16 %v1681, %v1677
  %v1726 = vpack.c.b16 %v1682, %v1678
  %v1727 = vpack.c.b16 %v1683, %v1679
  %v1728 = vpack.c.b16 %v1688, %v1684
  %v1729 = vpack.c.b16 %v1689, %v1685
  %v1730 = vpack.c.b16 %v1690, %v1686
  %v1731 = vpack.c.b16 %v1691, %v1687
  %v1732 = vpack.c.b16 %v1696, %v1692
  %v1733 = vpack.c.b16 %v1697, %v1693
  %v1734 = vpack.c.b16 %v1698, %v1694
  %v1735 = vpack.c.b16 %v1699, %v1695
  %v1736 = vpack.c.b16 %v1704, %v1700
  %v1737 = vpack.c.b16 %v1705, %v1701
  %v1738 = vpack.c.b16 %v1706, %v1702
  %v1739 = vpack.c.b16 %v1707, %v1703
  %v1776 = vrot.slane %v1605, 4
  %v1777 = vrot.slane %v1606, 4
  %v1778 = vrot.slane %v1607, 4
  %v1779 = vrot.slane %v1608, 4
  %1784 = vmatpush.bf16.msra.mxu0 %v1736
  %1785 = vmatpush.bf16.msra.mxu0 %v1732
  %1786 = vmatpush.bf16.msra.mxu0 %v1728
  %1787 = vmatpush.bf16.msra.mxu0 %v1724
  %1788 = vmatpush.bf16.msra.mxu0 %v1720
  %1789 = vmatpush.bf16.msra.mxu0 %v1716
  %1790 = vmatpush.bf16.msra.mxu0 %v1712
  %1791 = vmatpush.bf16.msra.mxu0 %v1708
  %1792 = vmatmul.bf16.gmra.mxu0 %v1610
  %v1793 = vpop.f32.mrf.mxu0
  %v1794 = vadd.f32 %v1776, %v1793
  %v1795 = vpop.f32.mrf.mxu0
  %1796 = vdwg.mxu0
  %1797 = vmatpush.bf16.msra.mxu0 %v1737
  %1798 = vmatpush.bf16.msra.mxu0 %v1733
  %1799 = vmatpush.bf16.msra.mxu0 %v1729
  %1800 = vmatpush.bf16.msra.mxu0 %v1725
  %1801 = vmatpush.bf16.msra.mxu0 %v1721
  %1802 = vmatpush.bf16.msra.mxu0 %v1717
  %1803 = vmatpush.bf16.msra.mxu0 %v1713
  %1804 = vmatpush.bf16.msra.mxu0 %v1709
  %1805 = vmatmul.bf16.gmra.mxu0 %v1610
  %v1806 = vpop.f32.mrf.mxu0
  %v1807 = vadd.f32 %v1777, %v1806
  %v1808 = vpop.f32.mrf.mxu0
  %1809 = vdwg.mxu0
  %1810 = vmatpush.bf16.msra.mxu0 %v1738
  %1811 = vmatpush.bf16.msra.mxu0 %v1734
  %1812 = vmatpush.bf16.msra.mxu0 %v1730
  %1813 = vmatpush.bf16.msra.mxu0 %v1726
  %1814 = vmatpush.bf16.msra.mxu0 %v1722
  %1815 = vmatpush.bf16.msra.mxu0 %v1718
  %1816 = vmatpush.bf16.msra.mxu0 %v1714
  %1817 = vmatpush.bf16.msra.mxu0 %v1710
  %1818 = vmatmul.bf16.gmra.mxu0 %v1610
  %v1819 = vpop.f32.mrf.mxu0
  %v1820 = vadd.f32 %v1778, %v1819
  %v1821 = vpop.f32.mrf.mxu0
  %1822 = vdwg.mxu0
  %1823 = vmatpush.bf16.msra.mxu0 %v1739
  %1824 = vmatpush.bf16.msra.mxu0 %v1735
  %1825 = vmatpush.bf16.msra.mxu0 %v1731
  %1826 = vmatpush.bf16.msra.mxu0 %v1727
  %1827 = vmatpush.bf16.msra.mxu0 %v1723
  %1828 = vmatpush.bf16.msra.mxu0 %v1719
  %1829 = vmatpush.bf16.msra.mxu0 %v1715
  %1830 = vmatpush.bf16.msra.mxu0 %v1711
  %1831 = vmatmul.bf16.gmra.mxu0 %v1610
  %v1832 = vpop.f32.mrf.mxu0
  %v1833 = vadd.f32 %v1779, %v1832
  %v1834 = vpop.f32.mrf.mxu0
  %1835 = vdwg.mxu0
  %v1840 = vrot.slane %v1794, 6
  %v1841 = vrot.slane %v1807, 6
  %v1842 = vrot.slane %v1820, 6
  %v1843 = vrot.slane %v1833, 6
  %v1848 = vsel %vm1239, %v1531, %v1840
  %v1849 = vsel %vm1239, %v1544, %v1841
  %v1850 = vsel %vm1239, %v1557, %v1842
  %v1851 = vsel %vm1239, %v1570, %v1843
  %v1852 = vxor.u32 %v1848, 2147483648
  %v1853 = vmul.f32 %v1852, 1.442695
  %v1854 = vpow.pop %v1853
  %v1855 = vadd.f32 %v1854, 1.0
  %v1856 = vrcp.pop %v1855
  %v1857 = vmul.f32 %v1855, %v1856
  %v1858 = vsub.f32 1.0, %v1857
  %v1859 = vmul.f32 %v1856, %v1858
  %v1860 = vadd.f32 %v1856, %v1859
  %vm1861 = vweird.f32 %v1855
  %vm1862 = vweird.f32 %v1856
  %vm1863 = vmor %vm1861, %vm1862
  %v1864 = vsel %vm1863, %v1856, %v1860
  %v1865 = vand.u32 2147483647, %v1855
  %vm1866 = vcmp.eq.f32.partialorder %v1865, 8.507059e+37
  %v1867 = vand.u32 %v1855, 2147483648
  %v1868 = vor.u32 1.1754944e-38, %v1867
  %v1869 = vsel %vm1866, %v1868, %v1864
  %v1870 = vmul.f32 1.0, %v1869
  %v1871 = vxor.u32 %v1849, 2147483648
  %v1872 = vmul.f32 %v1871, 1.442695
  %v1873 = vpow.pop %v1872
  %v1874 = vadd.f32 %v1873, 1.0
  %v1875 = vrcp.pop %v1874
  %v1876 = vmul.f32 %v1874, %v1875
  %v1877 = vsub.f32 1.0, %v1876
  %v1878 = vmul.f32 %v1875, %v1877
  %v1879 = vadd.f32 %v1875, %v1878
  %vm1880 = vweird.f32 %v1874
  %vm1881 = vweird.f32 %v1875
  %vm1882 = vmor %vm1880, %vm1881
  %v1883 = vsel %vm1882, %v1875, %v1879
  %v1884 = vand.u32 2147483647, %v1874
  %vm1885 = vcmp.eq.f32.partialorder %v1884, 8.507059e+37
  %v1886 = vand.u32 %v1874, 2147483648
  %v1887 = vor.u32 1.1754944e-38, %v1886
  %v1888 = vsel %vm1885, %v1887, %v1883
  %v1889 = vmul.f32 1.0, %v1888
  %v1890 = vtanh.pop %v1850
  %v1891 = vxor.u32 %v1851, 2147483648
  %v1892 = vmul.f32 %v1891, 1.442695
  %v1893 = vpow.pop %v1892
  %v1894 = vadd.f32 %v1893, 1.0
  %v1895 = vrcp.pop %v1894
  %v1896 = vmul.f32 %v1894, %v1895
  %v1897 = vsub.f32 1.0, %v1896
  %v1898 = vmul.f32 %v1895, %v1897
  %v1899 = vadd.f32 %v1895, %v1898
  %vm1900 = vweird.f32 %v1894
  %vm1901 = vweird.f32 %v1895
  %vm1902 = vmor %vm1900, %vm1901
  %v1903 = vsel %vm1902, %v1895, %v1899
  %v1904 = vand.u32 2147483647, %v1894
  %vm1905 = vcmp.eq.f32.partialorder %v1904, 8.507059e+37
  %v1906 = vand.u32 %v1894, 2147483648
  %v1907 = vor.u32 1.1754944e-38, %v1906
  %v1908 = vsel %vm1905, %v1907, %v1903
  %v1909 = vmul.f32 1.0, %v1908
  %v1910 = vmul.f32 %v1889, %v1304
  %v1911 = vmul.f32 %v1870, %v1890
  %v1912 = vadd.f32 %v1910, %v1911
  %v1913 = vtanh.pop %v1912
  %v1914 = vmul.f32 %v1909, %v1913
  %v1916 = vrot.slane %v1914, 6
  %1918 = vst [vmem:[#allocation2] sm:$0xc] %v1916
  %1919 = vst [vmem:[#allocation2 + $0x18] sm:$0x30] %v1916
  %v1920 = vpack.c.bf16 %v1914, %v1914
  %v1921 = vld [vmem:[%s3] sm:$0xff]
  %v1922 = vld [vmem:[%s3 + $0x8] sm:$0xff]
  %v1923 = vld [vmem:[%s3 + $0x10] sm:$0xff]
  %v1924 = vld [vmem:[%s3 + $0x18] sm:$0xff]
  %v1925 = vld [vmem:[%s3 + $0x20] sm:$0xff]
  %v1926 = vld [vmem:[%s3 + $0x28] sm:$0xff]
  %v1927 = vld [vmem:[%s3 + $0x30] sm:$0xff]
  %v1928 = vld [vmem:[%s3 + $0x38] sm:$0xff]
  %v1929 = vld [vmem:[%s3 + $0x40] sm:$0xff]
  %v1930 = vld [vmem:[%s3 + $0x48] sm:$0xff]
  %v1931 = vld [vmem:[%s3 + $0x50] sm:$0xff]
  %v1932 = vld [vmem:[%s3 + $0x58] sm:$0xff]
  %v1933 = vld [vmem:[%s3 + $0x60] sm:$0xff]
  %v1934 = vld [vmem:[%s3 + $0x68] sm:$0xff]
  %v1935 = vld [vmem:[%s3 + $0x70] sm:$0xff]
  %v1936 = vld [vmem:[%s3 + $0x78] sm:$0xff]
  %v1937 = vld [vmem:[%s3 + $0x80] sm:$0xff]
  %v1938 = vld [vmem:[%s3 + $0x88] sm:$0xff]
  %v1939 = vld [vmem:[%s3 + $0x90] sm:$0xff]
  %v1940 = vld [vmem:[%s3 + $0x98] sm:$0xff]
  %v1941 = vld [vmem:[%s3 + $0xa0] sm:$0xff]
  %v1942 = vld [vmem:[%s3 + $0xa8] sm:$0xff]
  %v1943 = vld [vmem:[%s3 + $0xb0] sm:$0xff]
  %v1944 = vld [vmem:[%s3 + $0xb8] sm:$0xff]
  %v1945 = vld [vmem:[%s3 + $0xc0] sm:$0xff]
  %v1946 = vld [vmem:[%s3 + $0xc8] sm:$0xff]
  %v1947 = vld [vmem:[%s3 + $0xd0] sm:$0xff]
  %v1948 = vld [vmem:[%s3 + $0xd8] sm:$0xff]
  %v1949 = vld [vmem:[%s3 + $0xe0] sm:$0xff]
  %v1950 = vld [vmem:[%s3 + $0xe8] sm:$0xff]
  %v1951 = vld [vmem:[%s3 + $0xf0] sm:$0xff]
  %v1952 = vld [vmem:[%s3 + $0xf8] sm:$0xff]
  %v1953 = vld [vmem:[#allocation4] sm:$0x30]
  %v1954 = vld [vmem:[#allocation4 + $0x8] sm:$0x30]
  %v1955 = vld [vmem:[#allocation4 + $0x10] sm:$0x30]
  %v1956 = vld [vmem:[#allocation4 + $0x18] sm:$0x30]
  %v1989 = vunpack.c.l.b16 %v1921
  %v1990 = vunpack.c.h.b16 %v1921
  %v1991 = vunpack.c.l.b16 %v1922
  %v1992 = vunpack.c.h.b16 %v1922
  %v1993 = vunpack.c.l.b16 %v1923
  %v1994 = vunpack.c.h.b16 %v1923
  %v1995 = vunpack.c.l.b16 %v1924
  %v1996 = vunpack.c.h.b16 %v1924
  %v1997 = vunpack.c.l.b16 %v1925
  %v1998 = vunpack.c.h.b16 %v1925
  %v1999 = vunpack.c.l.b16 %v1926
  %v2000 = vunpack.c.h.b16 %v1926
  %v2001 = vunpack.c.l.b16 %v1927
  %v2002 = vunpack.c.h.b16 %v1927
  %v2003 = vunpack.c.l.b16 %v1928
  %v2004 = vunpack.c.h.b16 %v1928
  %v2005 = vunpack.c.l.b16 %v1929
  %v2006 = vunpack.c.h.b16 %v1929
  %v2007 = vunpack.c.l.b16 %v1930
  %v2008 = vunpack.c.h.b16 %v1930
  %v2009 = vunpack.c.l.b16 %v1931
  %v2010 = vunpack.c.h.b16 %v1931
  %v2011 = vunpack.c.l.b16 %v1932
  %v2012 = vunpack.c.h.b16 %v1932
  %v2013 = vunpack.c.l.b16 %v1933
  %v2014 = vunpack.c.h.b16 %v1933
  %v2015 = vunpack.c.l.b16 %v1934
  %v2016 = vunpack.c.h.b16 %v1934
  %v2017 = vunpack.c.l.b16 %v1935
  %v2018 = vunpack.c.h.b16 %v1935
  %v2019 = vunpack.c.l.b16 %v1936
  %v2020 = vunpack.c.h.b16 %v1936
  %v2021 = vunpack.c.l.b16 %v1937
  %v2022 = vunpack.c.h.b16 %v1937
  %v2023 = vunpack.c.l.b16 %v1938
  %v2024 = vunpack.c.h.b16 %v1938
  %v2025 = vunpack.c.l.b16 %v1939
  %v2026 = vunpack.c.h.b16 %v1939
  %v2027 = vunpack.c.l.b16 %v1940
  %v2028 = vunpack.c.h.b16 %v1940
  %v2029 = vunpack.c.l.b16 %v1941
  %v2030 = vunpack.c.h.b16 %v1941
  %v2031 = vunpack.c.l.b16 %v1942
  %v2032 = vunpack.c.h.b16 %v1942
  %v2033 = vunpack.c.l.b16 %v1943
  %v2034 = vunpack.c.h.b16 %v1943
  %v2035 = vunpack.c.l.b16 %v1944
  %v2036 = vunpack.c.h.b16 %v1944
  %v2037 = vunpack.c.l.b16 %v1945
  %v2038 = vunpack.c.h.b16 %v1945
  %v2039 = vunpack.c.l.b16 %v1946
  %v2040 = vunpack.c.h.b16 %v1946
  %v2041 = vunpack.c.l.b16 %v1947
  %v2042 = vunpack.c.h.b16 %v1947
  %v2043 = vunpack.c.l.b16 %v1948
  %v2044 = vunpack.c.h.b16 %v1948
  %v2045 = vunpack.c.l.b16 %v1949
  %v2046 = vunpack.c.h.b16 %v1949
  %v2047 = vunpack.c.l.b16 %v1950
  %v2048 = vunpack.c.h.b16 %v1950
  %v2049 = vunpack.c.l.b16 %v1951
  %v2050 = vunpack.c.h.b16 %v1951
  %v2051 = vunpack.c.l.b16 %v1952
  %v2052 = vunpack.c.h.b16 %v1952
  %v2053 = vpack.c.b16 %v1993, %v1989
  %v2054 = vpack.c.b16 %v1994, %v1990
  %v2055 = vpack.c.b16 %v1995, %v1991
  %v2056 = vpack.c.b16 %v1996, %v1992
  %v2057 = vpack.c.b16 %v2001, %v1997
  %v2058 = vpack.c.b16 %v2002, %v1998
  %v2059 = vpack.c.b16 %v2003, %v1999
  %v2060 = vpack.c.b16 %v2004, %v2000
  %v2061 = vpack.c.b16 %v2009, %v2005
  %v2062 = vpack.c.b16 %v2010, %v2006
  %v2063 = vpack.c.b16 %v2011, %v2007
  %v2064 = vpack.c.b16 %v2012, %v2008
  %v2065 = vpack.c.b16 %v2017, %v2013
  %v2066 = vpack.c.b16 %v2018, %v2014
  %v2067 = vpack.c.b16 %v2019, %v2015
  %v2068 = vpack.c.b16 %v2020, %v2016
  %v2069 = vpack.c.b16 %v2025, %v2021
  %v2070 = vpack.c.b16 %v2026, %v2022
  %v2071 = vpack.c.b16 %v2027, %v2023
  %v2072 = vpack.c.b16 %v2028, %v2024
  %v2073 = vpack.c.b16 %v2033, %v2029
  %v2074 = vpack.c.b16 %v2034, %v2030
  %v2075 = vpack.c.b16 %v2035, %v2031
  %v2076 = vpack.c.b16 %v2036, %v2032
  %v2077 = vpack.c.b16 %v2041, %v2037
  %v2078 = vpack.c.b16 %v2042, %v2038
  %v2079 = vpack.c.b16 %v2043, %v2039
  %v2080 = vpack.c.b16 %v2044, %v2040
  %v2081 = vpack.c.b16 %v2049, %v2045
  %v2082 = vpack.c.b16 %v2050, %v2046
  %v2083 = vpack.c.b16 %v2051, %v2047
  %v2084 = vpack.c.b16 %v2052, %v2048
  %v2121 = vrot.slane %v1953, 4
  %v2122 = vrot.slane %v1954, 4
  %v2123 = vrot.slane %v1955, 4
  %v2124 = vrot.slane %v1956, 4
  %2129 = vmatpush.bf16.msra.mxu0 %v2081
  %2130 = vmatpush.bf16.msra.mxu0 %v2077
  %2131 = vmatpush.bf16.msra.mxu0 %v2073
  %2132 = vmatpush.bf16.msra.mxu0 %v2069
  %2133 = vmatpush.bf16.msra.mxu0 %v2065
  %2134 = vmatpush.bf16.msra.mxu0 %v2061
  %2135 = vmatpush.bf16.msra.mxu0 %v2057
  %2136 = vmatpush.bf16.msra.mxu0 %v2053
  %2137 = vmatmul.bf16.gmra.mxu0 %v1920
  %v2138 = vpop.f32.mrf.mxu0
  %v2139 = vadd.f32 %v2121, %v2138
  %v2140 = vpop.f32.mrf.mxu0
  %2141 = vdwg.mxu0
  %2142 = vmatpush.bf16.msra.mxu0 %v2082
  %2143 = vmatpush.bf16.msra.mxu0 %v2078
  %2144 = vmatpush.bf16.msra.mxu0 %v2074
  %2145 = vmatpush.bf16.msra.mxu0 %v2070
  %2146 = vmatpush.bf16.msra.mxu0 %v2066
  %2147 = vmatpush.bf16.msra.mxu0 %v2062
  %2148 = vmatpush.bf16.msra.mxu0 %v2058
  %2149 = vmatpush.bf16.msra.mxu0 %v2054
  %2150 = vmatmul.bf16.gmra.mxu0 %v1920
  %v2151 = vpop.f32.mrf.mxu0
  %v2152 = vadd.f32 %v2122, %v2151
  %v2153 = vpop.f32.mrf.mxu0
  %2154 = vdwg.mxu0
  %2155 = vmatpush.bf16.msra.mxu0 %v2083
  %2156 = vmatpush.bf16.msra.mxu0 %v2079
  %2157 = vmatpush.bf16.msra.mxu0 %v2075
  %2158 = vmatpush.bf16.msra.mxu0 %v2071
  %2159 = vmatpush.bf16.msra.mxu0 %v2067
  %2160 = vmatpush.bf16.msra.mxu0 %v2063
  %2161 = vmatpush.bf16.msra.mxu0 %v2059
  %2162 = vmatpush.bf16.msra.mxu0 %v2055
  %2163 = vmatmul.bf16.gmra.mxu0 %v1920
  %v2164 = vpop.f32.mrf.mxu0
  %v2165 = vadd.f32 %v2123, %v2164
  %v2166 = vpop.f32.mrf.mxu0
  %2167 = vdwg.mxu0
  %2168 = vmatpush.bf16.msra.mxu0 %v2084
  %2169 = vmatpush.bf16.msra.mxu0 %v2080
  %2170 = vmatpush.bf16.msra.mxu0 %v2076
  %2171 = vmatpush.bf16.msra.mxu0 %v2072
  %2172 = vmatpush.bf16.msra.mxu0 %v2068
  %2173 = vmatpush.bf16.msra.mxu0 %v2064
  %2174 = vmatpush.bf16.msra.mxu0 %v2060
  %2175 = vmatpush.bf16.msra.mxu0 %v2056
  %2176 = vmatmul.bf16.gmra.mxu0 %v1920
  %v2177 = vpop.f32.mrf.mxu0
  %v2178 = vadd.f32 %v2124, %v2177
  %v2179 = vpop.f32.mrf.mxu0
  %2180 = vdwg.mxu0
  %v2181 = vld [vmem:[%s4] sm:$0xff]
  %v2182 = vld [vmem:[%s4 + $0x8] sm:$0xff]
  %v2183 = vld [vmem:[%s4 + $0x10] sm:$0xff]
  %v2184 = vld [vmem:[%s4 + $0x18] sm:$0xff]
  %v2185 = vld [vmem:[%s4 + $0x20] sm:$0xff]
  %v2186 = vld [vmem:[%s4 + $0x28] sm:$0xff]
  %v2187 = vld [vmem:[%s4 + $0x30] sm:$0xff]
  %v2188 = vld [vmem:[%s4 + $0x38] sm:$0xff]
  %v2189 = vld [vmem:[%s4 + $0x40] sm:$0xff]
  %v2190 = vld [vmem:[%s4 + $0x48] sm:$0xff]
  %v2191 = vld [vmem:[%s4 + $0x50] sm:$0xff]
  %v2192 = vld [vmem:[%s4 + $0x58] sm:$0xff]
  %v2193 = vld [vmem:[%s4 + $0x60] sm:$0xff]
  %v2194 = vld [vmem:[%s4 + $0x68] sm:$0xff]
  %v2195 = vld [vmem:[%s4 + $0x70] sm:$0xff]
  %v2196 = vld [vmem:[%s4 + $0x78] sm:$0xff]
  %v2197 = vld [vmem:[%s4 + $0x80] sm:$0xff]
  %v2198 = vld [vmem:[%s4 + $0x88] sm:$0xff]
  %v2199 = vld [vmem:[%s4 + $0x90] sm:$0xff]
  %v2200 = vld [vmem:[%s4 + $0x98] sm:$0xff]
  %v2201 = vld [vmem:[%s4 + $0xa0] sm:$0xff]
  %v2202 = vld [vmem:[%s4 + $0xa8] sm:$0xff]
  %v2203 = vld [vmem:[%s4 + $0xb0] sm:$0xff]
  %v2204 = vld [vmem:[%s4 + $0xb8] sm:$0xff]
  %v2205 = vld [vmem:[%s4 + $0xc0] sm:$0xff]
  %v2206 = vld [vmem:[%s4 + $0xc8] sm:$0xff]
  %v2207 = vld [vmem:[%s4 + $0xd0] sm:$0xff]
  %v2208 = vld [vmem:[%s4 + $0xd8] sm:$0xff]
  %v2209 = vld [vmem:[%s4 + $0xe0] sm:$0xff]
  %v2210 = vld [vmem:[%s4 + $0xe8] sm:$0xff]
  %v2211 = vld [vmem:[%s4 + $0xf0] sm:$0xff]
  %v2212 = vld [vmem:[%s4 + $0xf8] sm:$0xff]
  %v2213 = vld [vmem:[#allocation4 + $0x60] sm:$0xc]
  %v2214 = vld [vmem:[#allocation4 + $0x68] sm:$0xc]
  %v2215 = vld [vmem:[#allocation4 + $0x70] sm:$0xc]
  %v2216 = vld [vmem:[#allocation4 + $0x78] sm:$0xc]
  %v2218 = vrot.slane %v1920, 1
  %v2252 = vunpack.c.l.b16 %v2181
  %v2253 = vunpack.c.h.b16 %v2181
  %v2254 = vunpack.c.l.b16 %v2182
  %v2255 = vunpack.c.h.b16 %v2182
  %v2256 = vunpack.c.l.b16 %v2183
  %v2257 = vunpack.c.h.b16 %v2183
  %v2258 = vunpack.c.l.b16 %v2184
  %v2259 = vunpack.c.h.b16 %v2184
  %v2260 = vunpack.c.l.b16 %v2185
  %v2261 = vunpack.c.h.b16 %v2185
  %v2262 = vunpack.c.l.b16 %v2186
  %v2263 = vunpack.c.h.b16 %v2186
  %v2264 = vunpack.c.l.b16 %v2187
  %v2265 = vunpack.c.h.b16 %v2187
  %v2266 = vunpack.c.l.b16 %v2188
  %v2267 = vunpack.c.h.b16 %v2188
  %v2268 = vunpack.c.l.b16 %v2189
  %v2269 = vunpack.c.h.b16 %v2189
  %v2270 = vunpack.c.l.b16 %v2190
  %v2271 = vunpack.c.h.b16 %v2190
  %v2272 = vunpack.c.l.b16 %v2191
  %v2273 = vunpack.c.h.b16 %v2191
  %v2274 = vunpack.c.l.b16 %v2192
  %v2275 = vunpack.c.h.b16 %v2192
  %v2276 = vunpack.c.l.b16 %v2193
  %v2277 = vunpack.c.h.b16 %v2193
  %v2278 = vunpack.c.l.b16 %v2194
  %v2279 = vunpack.c.h.b16 %v2194
  %v2280 = vunpack.c.l.b16 %v2195
  %v2281 = vunpack.c.h.b16 %v2195
  %v2282 = vunpack.c.l.b16 %v2196
  %v2283 = vunpack.c.h.b16 %v2196
  %v2284 = vunpack.c.l.b16 %v2197
  %v2285 = vunpack.c.h.b16 %v2197
  %v2286 = vunpack.c.l.b16 %v2198
  %v2287 = vunpack.c.h.b16 %v2198
  %v2288 = vunpack.c.l.b16 %v2199
  %v2289 = vunpack.c.h.b16 %v2199
  %v2290 = vunpack.c.l.b16 %v2200
  %v2291 = vunpack.c.h.b16 %v2200
  %v2292 = vunpack.c.l.b16 %v2201
  %v2293 = vunpack.c.h.b16 %v2201
  %v2294 = vunpack.c.l.b16 %v2202
  %v2295 = vunpack.c.h.b16 %v2202
  %v2296 = vunpack.c.l.b16 %v2203
  %v2297 = vunpack.c.h.b16 %v2203
  %v2298 = vunpack.c.l.b16 %v2204
  %v2299 = vunpack.c.h.b16 %v2204
  %v2300 = vunpack.c.l.b16 %v2205
  %v2301 = vunpack.c.h.b16 %v2205
  %v2302 = vunpack.c.l.b16 %v2206
  %v2303 = vunpack.c.h.b16 %v2206
  %v2304 = vunpack.c.l.b16 %v2207
  %v2305 = vunpack.c.h.b16 %v2207
  %v2306 = vunpack.c.l.b16 %v2208
  %v2307 = vunpack.c.h.b16 %v2208
  %v2308 = vunpack.c.l.b16 %v2209
  %v2309 = vunpack.c.h.b16 %v2209
  %v2310 = vunpack.c.l.b16 %v2210
  %v2311 = vunpack.c.h.b16 %v2210
  %v2312 = vunpack.c.l.b16 %v2211
  %v2313 = vunpack.c.h.b16 %v2211
  %v2314 = vunpack.c.l.b16 %v2212
  %v2315 = vunpack.c.h.b16 %v2212
  %v2316 = vpack.c.b16 %v2256, %v2252
  %v2317 = vpack.c.b16 %v2257, %v2253
  %v2318 = vpack.c.b16 %v2258, %v2254
  %v2319 = vpack.c.b16 %v2259, %v2255
  %v2320 = vpack.c.b16 %v2264, %v2260
  %v2321 = vpack.c.b16 %v2265, %v2261
  %v2322 = vpack.c.b16 %v2266, %v2262
  %v2323 = vpack.c.b16 %v2267, %v2263
  %v2324 = vpack.c.b16 %v2272, %v2268
  %v2325 = vpack.c.b16 %v2273, %v2269
  %v2326 = vpack.c.b16 %v2274, %v2270
  %v2327 = vpack.c.b16 %v2275, %v2271
  %v2328 = vpack.c.b16 %v2280, %v2276
  %v2329 = vpack.c.b16 %v2281, %v2277
  %v2330 = vpack.c.b16 %v2282, %v2278
  %v2331 = vpack.c.b16 %v2283, %v2279
  %v2332 = vpack.c.b16 %v2288, %v2284
  %v2333 = vpack.c.b16 %v2289, %v2285
  %v2334 = vpack.c.b16 %v2290, %v2286
  %v2335 = vpack.c.b16 %v2291, %v2287
  %v2336 = vpack.c.b16 %v2296, %v2292
  %v2337 = vpack.c.b16 %v2297, %v2293
  %v2338 = vpack.c.b16 %v2298, %v2294
  %v2339 = vpack.c.b16 %v2299, %v2295
  %v2340 = vpack.c.b16 %v2304, %v2300
  %v2341 = vpack.c.b16 %v2305, %v2301
  %v2342 = vpack.c.b16 %v2306, %v2302
  %v2343 = vpack.c.b16 %v2307, %v2303
  %v2344 = vpack.c.b16 %v2312, %v2308
  %v2345 = vpack.c.b16 %v2313, %v2309
  %v2346 = vpack.c.b16 %v2314, %v2310
  %v2347 = vpack.c.b16 %v2315, %v2311
  %v2384 = vrot.slane %v2213, 2
  %v2385 = vrot.slane %v2214, 2
  %v2386 = vrot.slane %v2215, 2
  %v2387 = vrot.slane %v2216, 2
  %2392 = vmatpush.bf16.msra.mxu0 %v2344
  %2393 = vmatpush.bf16.msra.mxu0 %v2340
  %2394 = vmatpush.bf16.msra.mxu0 %v2336
  %2395 = vmatpush.bf16.msra.mxu0 %v2332
  %2396 = vmatpush.bf16.msra.mxu0 %v2328
  %2397 = vmatpush.bf16.msra.mxu0 %v2324
  %2398 = vmatpush.bf16.msra.mxu0 %v2320
  %2399 = vmatpush.bf16.msra.mxu0 %v2316
  %2400 = vmatmul.bf16.gmra.mxu0 %v2218
  %v2401 = vpop.f32.mrf.mxu0
  %v2402 = vadd.f32 %v2384, %v2401
  %v2403 = vpop.f32.mrf.mxu0
  %2404 = vdwg.mxu0
  %2405 = vmatpush.bf16.msra.mxu0 %v2345
  %2406 = vmatpush.bf16.msra.mxu0 %v2341
  %2407 = vmatpush.bf16.msra.mxu0 %v2337
  %2408 = vmatpush.bf16.msra.mxu0 %v2333
  %2409 = vmatpush.bf16.msra.mxu0 %v2329
  %2410 = vmatpush.bf16.msra.mxu0 %v2325
  %2411 = vmatpush.bf16.msra.mxu0 %v2321
  %2412 = vmatpush.bf16.msra.mxu0 %v2317
  %2413 = vmatmul.bf16.gmra.mxu0 %v2218
  %v2414 = vpop.f32.mrf.mxu0
  %v2415 = vadd.f32 %v2385, %v2414
  %v2416 = vpop.f32.mrf.mxu0
  %2417 = vdwg.mxu0
  %2418 = vmatpush.bf16.msra.mxu0 %v2346
  %2419 = vmatpush.bf16.msra.mxu0 %v2342
  %2420 = vmatpush.bf16.msra.mxu0 %v2338
  %2421 = vmatpush.bf16.msra.mxu0 %v2334
  %2422 = vmatpush.bf16.msra.mxu0 %v2330
  %2423 = vmatpush.bf16.msra.mxu0 %v2326
  %2424 = vmatpush.bf16.msra.mxu0 %v2322
  %2425 = vmatpush.bf16.msra.mxu0 %v2318
  %2426 = vmatmul.bf16.gmra.mxu0 %v2218
  %v2427 = vpop.f32.mrf.mxu0
  %v2428 = vadd.f32 %v2386, %v2427
  %v2429 = vpop.f32.mrf.mxu0
  %2430 = vdwg.mxu0
  %2431 = vmatpush.bf16.msra.mxu0 %v2347
  %2432 = vmatpush.bf16.msra.mxu0 %v2343
  %2433 = vmatpush.bf16.msra.mxu0 %v2339
  %2434 = vmatpush.bf16.msra.mxu0 %v2335
  %2435 = vmatpush.bf16.msra.mxu0 %v2331
  %2436 = vmatpush.bf16.msra.mxu0 %v2327
  %2437 = vmatpush.bf16.msra.mxu0 %v2323
  %2438 = vmatpush.bf16.msra.mxu0 %v2319
  %2439 = vmatmul.bf16.gmra.mxu0 %v2218
  %v2440 = vpop.f32.mrf.mxu0
  %v2441 = vadd.f32 %v2387, %v2440
  %v2442 = vpop.f32.mrf.mxu0
  %2443 = vdwg.mxu0
  %v2448 = vrot.slane %v2402, 6
  %v2449 = vrot.slane %v2415, 6
  %v2450 = vrot.slane %v2428, 6
  %v2451 = vrot.slane %v2441, 6
  %v2456 = vsel %vm1239, %v2139, %v2448
  %v2457 = vsel %vm1239, %v2152, %v2449
  %v2458 = vsel %vm1239, %v2165, %v2450
  %v2459 = vsel %vm1239, %v2178, %v2451
  %v2460 = vxor.u32 %v2456, 2147483648
  %v2461 = vmul.f32 %v2460, 1.442695
  %v2462 = vpow.pop %v2461
  %v2463 = vadd.f32 %v2462, 1.0
  %v2464 = vrcp.pop %v2463
  %v2465 = vmul.f32 %v2463, %v2464
  %v2466 = vsub.f32 1.0, %v2465
  %v2467 = vmul.f32 %v2464, %v2466
  %v2468 = vadd.f32 %v2464, %v2467
  %vm2469 = vweird.f32 %v2463
  %vm2470 = vweird.f32 %v2464
  %vm2471 = vmor %vm2469, %vm2470
  %v2472 = vsel %vm2471, %v2464, %v2468
  %v2473 = vand.u32 2147483647, %v2463
  %vm2474 = vcmp.eq.f32.partialorder %v2473, 8.507059e+37
  %v2475 = vand.u32 %v2463, 2147483648
  %v2476 = vor.u32 1.1754944e-38, %v2475
  %v2477 = vsel %vm2474, %v2476, %v2472
  %v2478 = vmul.f32 1.0, %v2477
  %v2479 = vxor.u32 %v2457, 2147483648
  %v2480 = vmul.f32 %v2479, 1.442695
  %v2481 = vpow.pop %v2480
  %v2482 = vadd.f32 %v2481, 1.0
  %v2483 = vrcp.pop %v2482
  %v2484 = vmul.f32 %v2482, %v2483
  %v2485 = vsub.f32 1.0, %v2484
  %v2486 = vmul.f32 %v2483, %v2485
  %v2487 = vadd.f32 %v2483, %v2486
  %vm2488 = vweird.f32 %v2482
  %vm2489 = vweird.f32 %v2483
  %vm2490 = vmor %vm2488, %vm2489
  %v2491 = vsel %vm2490, %v2483, %v2487
  %v2492 = vand.u32 2147483647, %v2482
  %vm2493 = vcmp.eq.f32.partialorder %v2492, 8.507059e+37
  %v2494 = vand.u32 %v2482, 2147483648
  %v2495 = vor.u32 1.1754944e-38, %v2494
  %v2496 = vsel %vm2493, %v2495, %v2491
  %v2497 = vmul.f32 1.0, %v2496
  %v2498 = vtanh.pop %v2458
  %v2499 = vxor.u32 %v2459, 2147483648
  %v2500 = vmul.f32 %v2499, 1.442695
  %v2501 = vpow.pop %v2500
  %v2502 = vadd.f32 %v2501, 1.0
  %v2503 = vrcp.pop %v2502
  %v2504 = vmul.f32 %v2502, %v2503
  %v2505 = vsub.f32 1.0, %v2504
  %v2506 = vmul.f32 %v2503, %v2505
  %v2507 = vadd.f32 %v2503, %v2506
  %vm2508 = vweird.f32 %v2502
  %vm2509 = vweird.f32 %v2503
  %vm2510 = vmor %vm2508, %vm2509
  %v2511 = vsel %vm2510, %v2503, %v2507
  %v2512 = vand.u32 2147483647, %v2502
  %vm2513 = vcmp.eq.f32.partialorder %v2512, 8.507059e+37
  %v2514 = vand.u32 %v2502, 2147483648
  %v2515 = vor.u32 1.1754944e-38, %v2514
  %v2516 = vsel %vm2513, %v2515, %v2511
  %v2517 = vmul.f32 1.0, %v2516
  %v2518 = vmul.f32 %v2497, %v1912
  %v2519 = vmul.f32 %v2478, %v2498
  %v2520 = vadd.f32 %v2518, %v2519
  %v2521 = vtanh.pop %v2520
  %v2522 = vmul.f32 %v2517, %v2521
  %v2524 = vrot.slane %v2522, 4
  %2526 = vst [vmem:[#allocation2] sm:$0x30] %v2524
  %2527 = vst [vmem:[#allocation2 + $0x18] sm:$0xc] %v2522
  %v2528 = vpack.c.bf16 %v2522, %v2522
  %v2529 = vld [vmem:[%s3] sm:$0xff]
  %v2530 = vld [vmem:[%s3 + $0x8] sm:$0xff]
  %v2531 = vld [vmem:[%s3 + $0x10] sm:$0xff]
  %v2532 = vld [vmem:[%s3 + $0x18] sm:$0xff]
  %v2533 = vld [vmem:[%s3 + $0x20] sm:$0xff]
  %v2534 = vld [vmem:[%s3 + $0x28] sm:$0xff]
  %v2535 = vld [vmem:[%s3 + $0x30] sm:$0xff]
  %v2536 = vld [vmem:[%s3 + $0x38] sm:$0xff]
  %v2537 = vld [vmem:[%s3 + $0x40] sm:$0xff]
  %v2538 = vld [vmem:[%s3 + $0x48] sm:$0xff]
  %v2539 = vld [vmem:[%s3 + $0x50] sm:$0xff]
  %v2540 = vld [vmem:[%s3 + $0x58] sm:$0xff]
  %v2541 = vld [vmem:[%s3 + $0x60] sm:$0xff]
  %v2542 = vld [vmem:[%s3 + $0x68] sm:$0xff]
  %v2543 = vld [vmem:[%s3 + $0x70] sm:$0xff]
  %v2544 = vld [vmem:[%s3 + $0x78] sm:$0xff]
  %v2545 = vld [vmem:[%s3 + $0x80] sm:$0xff]
  %v2546 = vld [vmem:[%s3 + $0x88] sm:$0xff]
  %v2547 = vld [vmem:[%s3 + $0x90] sm:$0xff]
  %v2548 = vld [vmem:[%s3 + $0x98] sm:$0xff]
  %v2549 = vld [vmem:[%s3 + $0xa0] sm:$0xff]
  %v2550 = vld [vmem:[%s3 + $0xa8] sm:$0xff]
  %v2551 = vld [vmem:[%s3 + $0xb0] sm:$0xff]
  %v2552 = vld [vmem:[%s3 + $0xb8] sm:$0xff]
  %v2553 = vld [vmem:[%s3 + $0xc0] sm:$0xff]
  %v2554 = vld [vmem:[%s3 + $0xc8] sm:$0xff]
  %v2555 = vld [vmem:[%s3 + $0xd0] sm:$0xff]
  %v2556 = vld [vmem:[%s3 + $0xd8] sm:$0xff]
  %v2557 = vld [vmem:[%s3 + $0xe0] sm:$0xff]
  %v2558 = vld [vmem:[%s3 + $0xe8] sm:$0xff]
  %v2559 = vld [vmem:[%s3 + $0xf0] sm:$0xff]
  %v2560 = vld [vmem:[%s3 + $0xf8] sm:$0xff]
  %v2561 = vld [vmem:[#allocation4] sm:$0xc0]
  %v2562 = vld [vmem:[#allocation4 + $0x8] sm:$0xc0]
  %v2563 = vld [vmem:[#allocation4 + $0x10] sm:$0xc0]
  %v2564 = vld [vmem:[#allocation4 + $0x18] sm:$0xc0]
  %v2597 = vunpack.c.l.b16 %v2529
  %v2598 = vunpack.c.h.b16 %v2529
  %v2599 = vunpack.c.l.b16 %v2530
  %v2600 = vunpack.c.h.b16 %v2530
  %v2601 = vunpack.c.l.b16 %v2531
  %v2602 = vunpack.c.h.b16 %v2531
  %v2603 = vunpack.c.l.b16 %v2532
  %v2604 = vunpack.c.h.b16 %v2532
  %v2605 = vunpack.c.l.b16 %v2533
  %v2606 = vunpack.c.h.b16 %v2533
  %v2607 = vunpack.c.l.b16 %v2534
  %v2608 = vunpack.c.h.b16 %v2534
  %v2609 = vunpack.c.l.b16 %v2535
  %v2610 = vunpack.c.h.b16 %v2535
  %v2611 = vunpack.c.l.b16 %v2536
  %v2612 = vunpack.c.h.b16 %v2536
  %v2613 = vunpack.c.l.b16 %v2537
  %v2614 = vunpack.c.h.b16 %v2537
  %v2615 = vunpack.c.l.b16 %v2538
  %v2616 = vunpack.c.h.b16 %v2538
  %v2617 = vunpack.c.l.b16 %v2539
  %v2618 = vunpack.c.h.b16 %v2539
  %v2619 = vunpack.c.l.b16 %v2540
  %v2620 = vunpack.c.h.b16 %v2540
  %v2621 = vunpack.c.l.b16 %v2541
  %v2622 = vunpack.c.h.b16 %v2541
  %v2623 = vunpack.c.l.b16 %v2542
  %v2624 = vunpack.c.h.b16 %v2542
  %v2625 = vunpack.c.l.b16 %v2543
  %v2626 = vunpack.c.h.b16 %v2543
  %v2627 = vunpack.c.l.b16 %v2544
  %v2628 = vunpack.c.h.b16 %v2544
  %v2629 = vunpack.c.l.b16 %v2545
  %v2630 = vunpack.c.h.b16 %v2545
  %v2631 = vunpack.c.l.b16 %v2546
  %v2632 = vunpack.c.h.b16 %v2546
  %v2633 = vunpack.c.l.b16 %v2547
  %v2634 = vunpack.c.h.b16 %v2547
  %v2635 = vunpack.c.l.b16 %v2548
  %v2636 = vunpack.c.h.b16 %v2548
  %v2637 = vunpack.c.l.b16 %v2549
  %v2638 = vunpack.c.h.b16 %v2549
  %v2639 = vunpack.c.l.b16 %v2550
  %v2640 = vunpack.c.h.b16 %v2550
  %v2641 = vunpack.c.l.b16 %v2551
  %v2642 = vunpack.c.h.b16 %v2551
  %v2643 = vunpack.c.l.b16 %v2552
  %v2644 = vunpack.c.h.b16 %v2552
  %v2645 = vunpack.c.l.b16 %v2553
  %v2646 = vunpack.c.h.b16 %v2553
  %v2647 = vunpack.c.l.b16 %v2554
  %v2648 = vunpack.c.h.b16 %v2554
  %v2649 = vunpack.c.l.b16 %v2555
  %v2650 = vunpack.c.h.b16 %v2555
  %v2651 = vunpack.c.l.b16 %v2556
  %v2652 = vunpack.c.h.b16 %v2556
  %v2653 = vunpack.c.l.b16 %v2557
  %v2654 = vunpack.c.h.b16 %v2557
  %v2655 = vunpack.c.l.b16 %v2558
  %v2656 = vunpack.c.h.b16 %v2558
  %v2657 = vunpack.c.l.b16 %v2559
  %v2658 = vunpack.c.h.b16 %v2559
  %v2659 = vunpack.c.l.b16 %v2560
  %v2660 = vunpack.c.h.b16 %v2560
  %v2661 = vpack.c.b16 %v2601, %v2597
  %v2662 = vpack.c.b16 %v2602, %v2598
  %v2663 = vpack.c.b16 %v2603, %v2599
  %v2664 = vpack.c.b16 %v2604, %v2600
  %v2665 = vpack.c.b16 %v2609, %v2605
  %v2666 = vpack.c.b16 %v2610, %v2606
  %v2667 = vpack.c.b16 %v2611, %v2607
  %v2668 = vpack.c.b16 %v2612, %v2608
  %v2669 = vpack.c.b16 %v2617, %v2613
  %v2670 = vpack.c.b16 %v2618, %v2614
  %v2671 = vpack.c.b16 %v2619, %v2615
  %v2672 = vpack.c.b16 %v2620, %v2616
  %v2673 = vpack.c.b16 %v2625, %v2621
  %v2674 = vpack.c.b16 %v2626, %v2622
  %v2675 = vpack.c.b16 %v2627, %v2623
  %v2676 = vpack.c.b16 %v2628, %v2624
  %v2677 = vpack.c.b16 %v2633, %v2629
  %v2678 = vpack.c.b16 %v2634, %v2630
  %v2679 = vpack.c.b16 %v2635, %v2631
  %v2680 = vpack.c.b16 %v2636, %v2632
  %v2681 = vpack.c.b16 %v2641, %v2637
  %v2682 = vpack.c.b16 %v2642, %v2638
  %v2683 = vpack.c.b16 %v2643, %v2639
  %v2684 = vpack.c.b16 %v2644, %v2640
  %v2685 = vpack.c.b16 %v2649, %v2645
  %v2686 = vpack.c.b16 %v2650, %v2646
  %v2687 = vpack.c.b16 %v2651, %v2647
  %v2688 = vpack.c.b16 %v2652, %v2648
  %v2689 = vpack.c.b16 %v2657, %v2653
  %v2690 = vpack.c.b16 %v2658, %v2654
  %v2691 = vpack.c.b16 %v2659, %v2655
  %v2692 = vpack.c.b16 %v2660, %v2656
  %v2729 = vrot.slane %v2561, 6
  %v2730 = vrot.slane %v2562, 6
  %v2731 = vrot.slane %v2563, 6
  %v2732 = vrot.slane %v2564, 6
  %2737 = vmatpush.bf16.msra.mxu0 %v2689
  %2738 = vmatpush.bf16.msra.mxu0 %v2685
  %2739 = vmatpush.bf16.msra.mxu0 %v2681
  %2740 = vmatpush.bf16.msra.mxu0 %v2677
  %2741 = vmatpush.bf16.msra.mxu0 %v2673
  %2742 = vmatpush.bf16.msra.mxu0 %v2669
  %2743 = vmatpush.bf16.msra.mxu0 %v2665
  %2744 = vmatpush.bf16.msra.mxu0 %v2661
  %2745 = vmatmul.bf16.gmra.mxu0 %v2528
  %v2746 = vpop.f32.mrf.mxu0
  %v2747 = vadd.f32 %v2729, %v2746
  %v2748 = vpop.f32.mrf.mxu0
  %2749 = vdwg.mxu0
  %2750 = vmatpush.bf16.msra.mxu0 %v2690
  %2751 = vmatpush.bf16.msra.mxu0 %v2686
  %2752 = vmatpush.bf16.msra.mxu0 %v2682
  %2753 = vmatpush.bf16.msra.mxu0 %v2678
  %2754 = vmatpush.bf16.msra.mxu0 %v2674
  %2755 = vmatpush.bf16.msra.mxu0 %v2670
  %2756 = vmatpush.bf16.msra.mxu0 %v2666
  %2757 = vmatpush.bf16.msra.mxu0 %v2662
  %2758 = vmatmul.bf16.gmra.mxu0 %v2528
  %v2759 = vpop.f32.mrf.mxu0
  %v2760 = vadd.f32 %v2730, %v2759
  %v2761 = vpop.f32.mrf.mxu0
  %2762 = vdwg.mxu0
  %2763 = vmatpush.bf16.msra.mxu0 %v2691
  %2764 = vmatpush.bf16.msra.mxu0 %v2687
  %2765 = vmatpush.bf16.msra.mxu0 %v2683
  %2766 = vmatpush.bf16.msra.mxu0 %v2679
  %2767 = vmatpush.bf16.msra.mxu0 %v2675
  %2768 = vmatpush.bf16.msra.mxu0 %v2671
  %2769 = vmatpush.bf16.msra.mxu0 %v2667
  %2770 = vmatpush.bf16.msra.mxu0 %v2663
  %2771 = vmatmul.bf16.gmra.mxu0 %v2528
  %v2772 = vpop.f32.mrf.mxu0
  %v2773 = vadd.f32 %v2731, %v2772
  %v2774 = vpop.f32.mrf.mxu0
  %2775 = vdwg.mxu0
  %2776 = vmatpush.bf16.msra.mxu0 %v2692
  %2777 = vmatpush.bf16.msra.mxu0 %v2688
  %2778 = vmatpush.bf16.msra.mxu0 %v2684
  %2779 = vmatpush.bf16.msra.mxu0 %v2680
  %2780 = vmatpush.bf16.msra.mxu0 %v2676
  %2781 = vmatpush.bf16.msra.mxu0 %v2672
  %2782 = vmatpush.bf16.msra.mxu0 %v2668
  %2783 = vmatpush.bf16.msra.mxu0 %v2664
  %2784 = vmatmul.bf16.gmra.mxu0 %v2528
  %v2785 = vpop.f32.mrf.mxu0
  %v2786 = vadd.f32 %v2732, %v2785
  %v2787 = vpop.f32.mrf.mxu0
  %2788 = vdwg.mxu0
  %v2789 = vld [vmem:[%s4] sm:$0xff]
  %v2790 = vld [vmem:[%s4 + $0x8] sm:$0xff]
  %v2791 = vld [vmem:[%s4 + $0x10] sm:$0xff]
  %v2792 = vld [vmem:[%s4 + $0x18] sm:$0xff]
  %v2793 = vld [vmem:[%s4 + $0x20] sm:$0xff]
  %v2794 = vld [vmem:[%s4 + $0x28] sm:$0xff]
  %v2795 = vld [vmem:[%s4 + $0x30] sm:$0xff]
  %v2796 = vld [vmem:[%s4 + $0x38] sm:$0xff]
  %v2797 = vld [vmem:[%s4 + $0x40] sm:$0xff]
  %v2798 = vld [vmem:[%s4 + $0x48] sm:$0xff]
  %v2799 = vld [vmem:[%s4 + $0x50] sm:$0xff]
  %v2800 = vld [vmem:[%s4 + $0x58] sm:$0xff]
  %v2801 = vld [vmem:[%s4 + $0x60] sm:$0xff]
  %v2802 = vld [vmem:[%s4 + $0x68] sm:$0xff]
  %v2803 = vld [vmem:[%s4 + $0x70] sm:$0xff]
  %v2804 = vld [vmem:[%s4 + $0x78] sm:$0xff]
  %v2805 = vld [vmem:[%s4 + $0x80] sm:$0xff]
  %v2806 = vld [vmem:[%s4 + $0x88] sm:$0xff]
  %v2807 = vld [vmem:[%s4 + $0x90] sm:$0xff]
  %v2808 = vld [vmem:[%s4 + $0x98] sm:$0xff]
  %v2809 = vld [vmem:[%s4 + $0xa0] sm:$0xff]
  %v2810 = vld [vmem:[%s4 + $0xa8] sm:$0xff]
  %v2811 = vld [vmem:[%s4 + $0xb0] sm:$0xff]
  %v2812 = vld [vmem:[%s4 + $0xb8] sm:$0xff]
  %v2813 = vld [vmem:[%s4 + $0xc0] sm:$0xff]
  %v2814 = vld [vmem:[%s4 + $0xc8] sm:$0xff]
  %v2815 = vld [vmem:[%s4 + $0xd0] sm:$0xff]
  %v2816 = vld [vmem:[%s4 + $0xd8] sm:$0xff]
  %v2817 = vld [vmem:[%s4 + $0xe0] sm:$0xff]
  %v2818 = vld [vmem:[%s4 + $0xe8] sm:$0xff]
  %v2819 = vld [vmem:[%s4 + $0xf0] sm:$0xff]
  %v2820 = vld [vmem:[%s4 + $0xf8] sm:$0xff]
  %v2821 = vld [vmem:[#allocation4 + $0x60] sm:$0x3]
  %v2822 = vld [vmem:[#allocation4 + $0x68] sm:$0x3]
  %v2823 = vld [vmem:[#allocation4 + $0x70] sm:$0x3]
  %v2824 = vld [vmem:[#allocation4 + $0x78] sm:$0x3]
  %v2826 = vrot.slane %v2528, 1
  %v2860 = vunpack.c.l.b16 %v2789
  %v2861 = vunpack.c.h.b16 %v2789
  %v2862 = vunpack.c.l.b16 %v2790
  %v2863 = vunpack.c.h.b16 %v2790
  %v2864 = vunpack.c.l.b16 %v2791
  %v2865 = vunpack.c.h.b16 %v2791
  %v2866 = vunpack.c.l.b16 %v2792
  %v2867 = vunpack.c.h.b16 %v2792
  %v2868 = vunpack.c.l.b16 %v2793
  %v2869 = vunpack.c.h.b16 %v2793
  %v2870 = vunpack.c.l.b16 %v2794
  %v2871 = vunpack.c.h.b16 %v2794
  %v2872 = vunpack.c.l.b16 %v2795
  %v2873 = vunpack.c.h.b16 %v2795
  %v2874 = vunpack.c.l.b16 %v2796
  %v2875 = vunpack.c.h.b16 %v2796
  %v2876 = vunpack.c.l.b16 %v2797
  %v2877 = vunpack.c.h.b16 %v2797
  %v2878 = vunpack.c.l.b16 %v2798
  %v2879 = vunpack.c.h.b16 %v2798
  %v2880 = vunpack.c.l.b16 %v2799
  %v2881 = vunpack.c.h.b16 %v2799
  %v2882 = vunpack.c.l.b16 %v2800
  %v2883 = vunpack.c.h.b16 %v2800
  %v2884 = vunpack.c.l.b16 %v2801
  %v2885 = vunpack.c.h.b16 %v2801
  %v2886 = vunpack.c.l.b16 %v2802
  %v2887 = vunpack.c.h.b16 %v2802
  %v2888 = vunpack.c.l.b16 %v2803
  %v2889 = vunpack.c.h.b16 %v2803
  %v2890 = vunpack.c.l.b16 %v2804
  %v2891 = vunpack.c.h.b16 %v2804
  %v2892 = vunpack.c.l.b16 %v2805
  %v2893 = vunpack.c.h.b16 %v2805
  %v2894 = vunpack.c.l.b16 %v2806
  %v2895 = vunpack.c.h.b16 %v2806
  %v2896 = vunpack.c.l.b16 %v2807
  %v2897 = vunpack.c.h.b16 %v2807
  %v2898 = vunpack.c.l.b16 %v2808
  %v2899 = vunpack.c.h.b16 %v2808
  %v2900 = vunpack.c.l.b16 %v2809
  %v2901 = vunpack.c.h.b16 %v2809
  %v2902 = vunpack.c.l.b16 %v2810
  %v2903 = vunpack.c.h.b16 %v2810
  %v2904 = vunpack.c.l.b16 %v2811
  %v2905 = vunpack.c.h.b16 %v2811
  %v2906 = vunpack.c.l.b16 %v2812
  %v2907 = vunpack.c.h.b16 %v2812
  %v2908 = vunpack.c.l.b16 %v2813
  %v2909 = vunpack.c.h.b16 %v2813
  %v2910 = vunpack.c.l.b16 %v2814
  %v2911 = vunpack.c.h.b16 %v2814
  %v2912 = vunpack.c.l.b16 %v2815
  %v2913 = vunpack.c.h.b16 %v2815
  %v2914 = vunpack.c.l.b16 %v2816
  %v2915 = vunpack.c.h.b16 %v2816
  %v2916 = vunpack.c.l.b16 %v2817
  %v2917 = vunpack.c.h.b16 %v2817
  %v2918 = vunpack.c.l.b16 %v2818
  %v2919 = vunpack.c.h.b16 %v2818
  %v2920 = vunpack.c.l.b16 %v2819
  %v2921 = vunpack.c.h.b16 %v2819
  %v2922 = vunpack.c.l.b16 %v2820
  %v2923 = vunpack.c.h.b16 %v2820
  %v2924 = vpack.c.b16 %v2864, %v2860
  %v2925 = vpack.c.b16 %v2865, %v2861
  %v2926 = vpack.c.b16 %v2866, %v2862
  %v2927 = vpack.c.b16 %v2867, %v2863
  %v2928 = vpack.c.b16 %v2872, %v2868
  %v2929 = vpack.c.b16 %v2873, %v2869
  %v2930 = vpack.c.b16 %v2874, %v2870
  %v2931 = vpack.c.b16 %v2875, %v2871
  %v2932 = vpack.c.b16 %v2880, %v2876
  %v2933 = vpack.c.b16 %v2881, %v2877
  %v2934 = vpack.c.b16 %v2882, %v2878
  %v2935 = vpack.c.b16 %v2883, %v2879
  %v2936 = vpack.c.b16 %v2888, %v2884
  %v2937 = vpack.c.b16 %v2889, %v2885
  %v2938 = vpack.c.b16 %v2890, %v2886
  %v2939 = vpack.c.b16 %v2891, %v2887
  %v2940 = vpack.c.b16 %v2896, %v2892
  %v2941 = vpack.c.b16 %v2897, %v2893
  %v2942 = vpack.c.b16 %v2898, %v2894
  %v2943 = vpack.c.b16 %v2899, %v2895
  %v2944 = vpack.c.b16 %v2904, %v2900
  %v2945 = vpack.c.b16 %v2905, %v2901
  %v2946 = vpack.c.b16 %v2906, %v2902
  %v2947 = vpack.c.b16 %v2907, %v2903
  %v2948 = vpack.c.b16 %v2912, %v2908
  %v2949 = vpack.c.b16 %v2913, %v2909
  %v2950 = vpack.c.b16 %v2914, %v2910
  %v2951 = vpack.c.b16 %v2915, %v2911
  %v2952 = vpack.c.b16 %v2920, %v2916
  %v2953 = vpack.c.b16 %v2921, %v2917
  %v2954 = vpack.c.b16 %v2922, %v2918
  %v2955 = vpack.c.b16 %v2923, %v2919
  %2988 = vmatpush.bf16.msra.mxu0 %v2952
  %2989 = vmatpush.bf16.msra.mxu0 %v2948
  %2990 = vmatpush.bf16.msra.mxu0 %v2944
  %2991 = vmatpush.bf16.msra.mxu0 %v2940
  %2992 = vmatpush.bf16.msra.mxu0 %v2936
  %2993 = vmatpush.bf16.msra.mxu0 %v2932
  %2994 = vmatpush.bf16.msra.mxu0 %v2928
  %2995 = vmatpush.bf16.msra.mxu0 %v2924
  %2996 = vmatmul.bf16.gmra.mxu0 %v2826
  %v2997 = vpop.f32.mrf.mxu0
  %v2998 = vadd.f32 %v2821, %v2997
  %v2999 = vpop.f32.mrf.mxu0
  %3000 = vdwg.mxu0
  %3001 = vmatpush.bf16.msra.mxu0 %v2953
  %3002 = vmatpush.bf16.msra.mxu0 %v2949
  %3003 = vmatpush.bf16.msra.mxu0 %v2945
  %3004 = vmatpush.bf16.msra.mxu0 %v2941
  %3005 = vmatpush.bf16.msra.mxu0 %v2937
  %3006 = vmatpush.bf16.msra.mxu0 %v2933
  %3007 = vmatpush.bf16.msra.mxu0 %v2929
  %3008 = vmatpush.bf16.msra.mxu0 %v2925
  %3009 = vmatmul.bf16.gmra.mxu0 %v2826
  %v3010 = vpop.f32.mrf.mxu0
  %v3011 = vadd.f32 %v2822, %v3010
  %v3012 = vpop.f32.mrf.mxu0
  %3013 = vdwg.mxu0
  %3014 = vmatpush.bf16.msra.mxu0 %v2954
  %3015 = vmatpush.bf16.msra.mxu0 %v2950
  %3016 = vmatpush.bf16.msra.mxu0 %v2946
  %3017 = vmatpush.bf16.msra.mxu0 %v2942
  %3018 = vmatpush.bf16.msra.mxu0 %v2938
  %3019 = vmatpush.bf16.msra.mxu0 %v2934
  %3020 = vmatpush.bf16.msra.mxu0 %v2930
  %3021 = vmatpush.bf16.msra.mxu0 %v2926
  %3022 = vmatmul.bf16.gmra.mxu0 %v2826
  %v3023 = vpop.f32.mrf.mxu0
  %v3024 = vadd.f32 %v2823, %v3023
  %v3025 = vpop.f32.mrf.mxu0
  %3026 = vdwg.mxu0
  %3027 = vmatpush.bf16.msra.mxu0 %v2955
  %3028 = vmatpush.bf16.msra.mxu0 %v2951
  %3029 = vmatpush.bf16.msra.mxu0 %v2947
  %3030 = vmatpush.bf16.msra.mxu0 %v2943
  %3031 = vmatpush.bf16.msra.mxu0 %v2939
  %3032 = vmatpush.bf16.msra.mxu0 %v2935
  %3033 = vmatpush.bf16.msra.mxu0 %v2931
  %3034 = vmatpush.bf16.msra.mxu0 %v2927
  %3035 = vmatmul.bf16.gmra.mxu0 %v2826
  %v3036 = vpop.f32.mrf.mxu0
  %v3037 = vadd.f32 %v2824, %v3036
  %v3038 = vpop.f32.mrf.mxu0
  %3039 = vdwg.mxu0
  %v3044 = vrot.slane %v2998, 6
  %v3045 = vrot.slane %v3011, 6
  %v3046 = vrot.slane %v3024, 6
  %v3047 = vrot.slane %v3037, 6
  %v3052 = vsel %vm1239, %v2747, %v3044
  %v3053 = vsel %vm1239, %v2760, %v3045
  %v3054 = vsel %vm1239, %v2773, %v3046
  %v3055 = vsel %vm1239, %v2786, %v3047
  %v3056 = vxor.u32 %v3052, 2147483648
  %v3057 = vmul.f32 %v3056, 1.442695
  %v3058 = vpow.pop %v3057
  %v3059 = vadd.f32 %v3058, 1.0
  %v3060 = vrcp.pop %v3059
  %v3061 = vmul.f32 %v3059, %v3060
  %v3062 = vsub.f32 1.0, %v3061
  %v3063 = vmul.f32 %v3060, %v3062
  %v3064 = vadd.f32 %v3060, %v3063
  %vm3065 = vweird.f32 %v3059
  %vm3066 = vweird.f32 %v3060
  %vm3067 = vmor %vm3065, %vm3066
  %v3068 = vsel %vm3067, %v3060, %v3064
  %v3069 = vand.u32 2147483647, %v3059
  %vm3070 = vcmp.eq.f32.partialorder %v3069, 8.507059e+37
  %v3071 = vand.u32 %v3059, 2147483648
  %v3072 = vor.u32 1.1754944e-38, %v3071
  %v3073 = vsel %vm3070, %v3072, %v3068
  %v3074 = vmul.f32 1.0, %v3073
  %v3075 = vxor.u32 %v3053, 2147483648
  %v3076 = vmul.f32 %v3075, 1.442695
  %v3077 = vpow.pop %v3076
  %v3078 = vadd.f32 %v3077, 1.0
  %v3079 = vrcp.pop %v3078
  %v3080 = vmul.f32 %v3078, %v3079
  %v3081 = vsub.f32 1.0, %v3080
  %v3082 = vmul.f32 %v3079, %v3081
  %v3083 = vadd.f32 %v3079, %v3082
  %vm3084 = vweird.f32 %v3078
  %vm3085 = vweird.f32 %v3079
  %vm3086 = vmor %vm3084, %vm3085
  %v3087 = vsel %vm3086, %v3079, %v3083
  %v3088 = vand.u32 2147483647, %v3078
  %vm3089 = vcmp.eq.f32.partialorder %v3088, 8.507059e+37
  %v3090 = vand.u32 %v3078, 2147483648
  %v3091 = vor.u32 1.1754944e-38, %v3090
  %v3092 = vsel %vm3089, %v3091, %v3087
  %v3093 = vmul.f32 1.0, %v3092
  %v3094 = vtanh.pop %v3054
  %v3095 = vxor.u32 %v3055, 2147483648
  %v3096 = vmul.f32 %v3095, 1.442695
  %v3097 = vpow.pop %v3096
  %v3098 = vadd.f32 %v3097, 1.0
  %v3099 = vrcp.pop %v3098
  %v3100 = vmul.f32 %v3098, %v3099
  %v3101 = vsub.f32 1.0, %v3100
  %v3102 = vmul.f32 %v3099, %v3101
  %v3103 = vadd.f32 %v3099, %v3102
  %vm3104 = vweird.f32 %v3098
  %vm3105 = vweird.f32 %v3099
  %vm3106 = vmor %vm3104, %vm3105
  %v3107 = vsel %vm3106, %v3099, %v3103
  %v3108 = vand.u32 2147483647, %v3098
  %vm3109 = vcmp.eq.f32.partialorder %v3108, 8.507059e+37
  %v3110 = vand.u32 %v3098, 2147483648
  %v3111 = vor.u32 1.1754944e-38, %v3110
  %v3112 = vsel %vm3109, %v3111, %v3107
  %v3113 = vmul.f32 1.0, %v3112
  %v3114 = vmul.f32 %v3093, %v2520
  %v3115 = vmul.f32 %v3074, %v3094
  %v3116 = vadd.f32 %v3114, %v3115
  %v3117 = vtanh.pop %v3116
  %v3118 = vmul.f32 %v3113, %v3117
  %v3120 = vrot.slane %v3118, 2
  %3122 = vst [vmem:[#allocation2] sm:$0xc0] %v3120
  %3123 = vst [vmem:[#allocation2 + $0x18] sm:$0x3] %v3120
  %v3124 = vpack.c.bf16 %v3118, %v3118
  %v3125 = vld [vmem:[%s3] sm:$0xff]
  %v3126 = vld [vmem:[%s3 + $0x8] sm:$0xff]
  %v3127 = vld [vmem:[%s3 + $0x10] sm:$0xff]
  %v3128 = vld [vmem:[%s3 + $0x18] sm:$0xff]
  %v3129 = vld [vmem:[%s3 + $0x20] sm:$0xff]
  %v3130 = vld [vmem:[%s3 + $0x28] sm:$0xff]
  %v3131 = vld [vmem:[%s3 + $0x30] sm:$0xff]
  %v3132 = vld [vmem:[%s3 + $0x38] sm:$0xff]
  %v3133 = vld [vmem:[%s3 + $0x40] sm:$0xff]
  %v3134 = vld [vmem:[%s3 + $0x48] sm:$0xff]
  %v3135 = vld [vmem:[%s3 + $0x50] sm:$0xff]
  %v3136 = vld [vmem:[%s3 + $0x58] sm:$0xff]
  %v3137 = vld [vmem:[%s3 + $0x60] sm:$0xff]
  %v3138 = vld [vmem:[%s3 + $0x68] sm:$0xff]
  %v3139 = vld [vmem:[%s3 + $0x70] sm:$0xff]
  %v3140 = vld [vmem:[%s3 + $0x78] sm:$0xff]
  %v3141 = vld [vmem:[%s3 + $0x80] sm:$0xff]
  %v3142 = vld [vmem:[%s3 + $0x88] sm:$0xff]
  %v3143 = vld [vmem:[%s3 + $0x90] sm:$0xff]
  %v3144 = vld [vmem:[%s3 + $0x98] sm:$0xff]
  %v3145 = vld [vmem:[%s3 + $0xa0] sm:$0xff]
  %v3146 = vld [vmem:[%s3 + $0xa8] sm:$0xff]
  %v3147 = vld [vmem:[%s3 + $0xb0] sm:$0xff]
  %v3148 = vld [vmem:[%s3 + $0xb8] sm:$0xff]
  %v3149 = vld [vmem:[%s3 + $0xc0] sm:$0xff]
  %v3150 = vld [vmem:[%s3 + $0xc8] sm:$0xff]
  %v3151 = vld [vmem:[%s3 + $0xd0] sm:$0xff]
  %v3152 = vld [vmem:[%s3 + $0xd8] sm:$0xff]
  %v3153 = vld [vmem:[%s3 + $0xe0] sm:$0xff]
  %v3154 = vld [vmem:[%s3 + $0xe8] sm:$0xff]
  %v3155 = vld [vmem:[%s3 + $0xf0] sm:$0xff]
  %v3156 = vld [vmem:[%s3 + $0xf8] sm:$0xff]
  %v3157 = vld [vmem:[#allocation4 + $0x40] sm:$0x3]
  %v3158 = vld [vmem:[#allocation4 + $0x48] sm:$0x3]
  %v3159 = vld [vmem:[#allocation4 + $0x50] sm:$0x3]
  %v3160 = vld [vmem:[#allocation4 + $0x58] sm:$0x3]
  %v3193 = vunpack.c.l.b16 %v3125
  %v3194 = vunpack.c.h.b16 %v3125
  %v3195 = vunpack.c.l.b16 %v3126
  %v3196 = vunpack.c.h.b16 %v3126
  %v3197 = vunpack.c.l.b16 %v3127
  %v3198 = vunpack.c.h.b16 %v3127
  %v3199 = vunpack.c.l.b16 %v3128
  %v3200 = vunpack.c.h.b16 %v3128
  %v3201 = vunpack.c.l.b16 %v3129
  %v3202 = vunpack.c.h.b16 %v3129
  %v3203 = vunpack.c.l.b16 %v3130
  %v3204 = vunpack.c.h.b16 %v3130
  %v3205 = vunpack.c.l.b16 %v3131
  %v3206 = vunpack.c.h.b16 %v3131
  %v3207 = vunpack.c.l.b16 %v3132
  %v3208 = vunpack.c.h.b16 %v3132
  %v3209 = vunpack.c.l.b16 %v3133
  %v3210 = vunpack.c.h.b16 %v3133
  %v3211 = vunpack.c.l.b16 %v3134
  %v3212 = vunpack.c.h.b16 %v3134
  %v3213 = vunpack.c.l.b16 %v3135
  %v3214 = vunpack.c.h.b16 %v3135
  %v3215 = vunpack.c.l.b16 %v3136
  %v3216 = vunpack.c.h.b16 %v3136
  %v3217 = vunpack.c.l.b16 %v3137
  %v3218 = vunpack.c.h.b16 %v3137
  %v3219 = vunpack.c.l.b16 %v3138
  %v3220 = vunpack.c.h.b16 %v3138
  %v3221 = vunpack.c.l.b16 %v3139
  %v3222 = vunpack.c.h.b16 %v3139
  %v3223 = vunpack.c.l.b16 %v3140
  %v3224 = vunpack.c.h.b16 %v3140
  %v3225 = vunpack.c.l.b16 %v3141
  %v3226 = vunpack.c.h.b16 %v3141
  %v3227 = vunpack.c.l.b16 %v3142
  %v3228 = vunpack.c.h.b16 %v3142
  %v3229 = vunpack.c.l.b16 %v3143
  %v3230 = vunpack.c.h.b16 %v3143
  %v3231 = vunpack.c.l.b16 %v3144
  %v3232 = vunpack.c.h.b16 %v3144
  %v3233 = vunpack.c.l.b16 %v3145
  %v3234 = vunpack.c.h.b16 %v3145
  %v3235 = vunpack.c.l.b16 %v3146
  %v3236 = vunpack.c.h.b16 %v3146
  %v3237 = vunpack.c.l.b16 %v3147
  %v3238 = vunpack.c.h.b16 %v3147
  %v3239 = vunpack.c.l.b16 %v3148
  %v3240 = vunpack.c.h.b16 %v3148
  %v3241 = vunpack.c.l.b16 %v3149
  %v3242 = vunpack.c.h.b16 %v3149
  %v3243 = vunpack.c.l.b16 %v3150
  %v3244 = vunpack.c.h.b16 %v3150
  %v3245 = vunpack.c.l.b16 %v3151
  %v3246 = vunpack.c.h.b16 %v3151
  %v3247 = vunpack.c.l.b16 %v3152
  %v3248 = vunpack.c.h.b16 %v3152
  %v3249 = vunpack.c.l.b16 %v3153
  %v3250 = vunpack.c.h.b16 %v3153
  %v3251 = vunpack.c.l.b16 %v3154
  %v3252 = vunpack.c.h.b16 %v3154
  %v3253 = vunpack.c.l.b16 %v3155
  %v3254 = vunpack.c.h.b16 %v3155
  %v3255 = vunpack.c.l.b16 %v3156
  %v3256 = vunpack.c.h.b16 %v3156
  %v3257 = vpack.c.b16 %v3197, %v3193
  %v3258 = vpack.c.b16 %v3198, %v3194
  %v3259 = vpack.c.b16 %v3199, %v3195
  %v3260 = vpack.c.b16 %v3200, %v3196
  %v3261 = vpack.c.b16 %v3205, %v3201
  %v3262 = vpack.c.b16 %v3206, %v3202
  %v3263 = vpack.c.b16 %v3207, %v3203
  %v3264 = vpack.c.b16 %v3208, %v3204
  %v3265 = vpack.c.b16 %v3213, %v3209
  %v3266 = vpack.c.b16 %v3214, %v3210
  %v3267 = vpack.c.b16 %v3215, %v3211
  %v3268 = vpack.c.b16 %v3216, %v3212
  %v3269 = vpack.c.b16 %v3221, %v3217
  %v3270 = vpack.c.b16 %v3222, %v3218
  %v3271 = vpack.c.b16 %v3223, %v3219
  %v3272 = vpack.c.b16 %v3224, %v3220
  %v3273 = vpack.c.b16 %v3229, %v3225
  %v3274 = vpack.c.b16 %v3230, %v3226
  %v3275 = vpack.c.b16 %v3231, %v3227
  %v3276 = vpack.c.b16 %v3232, %v3228
  %v3277 = vpack.c.b16 %v3237, %v3233
  %v3278 = vpack.c.b16 %v3238, %v3234
  %v3279 = vpack.c.b16 %v3239, %v3235
  %v3280 = vpack.c.b16 %v3240, %v3236
  %v3281 = vpack.c.b16 %v3245, %v3241
  %v3282 = vpack.c.b16 %v3246, %v3242
  %v3283 = vpack.c.b16 %v3247, %v3243
  %v3284 = vpack.c.b16 %v3248, %v3244
  %v3285 = vpack.c.b16 %v3253, %v3249
  %v3286 = vpack.c.b16 %v3254, %v3250
  %v3287 = vpack.c.b16 %v3255, %v3251
  %v3288 = vpack.c.b16 %v3256, %v3252
  %3321 = vmatpush.bf16.msra.mxu0 %v3285
  %3322 = vmatpush.bf16.msra.mxu0 %v3281
  %3323 = vmatpush.bf16.msra.mxu0 %v3277
  %3324 = vmatpush.bf16.msra.mxu0 %v3273
  %3325 = vmatpush.bf16.msra.mxu0 %v3269
  %3326 = vmatpush.bf16.msra.mxu0 %v3265
  %3327 = vmatpush.bf16.msra.mxu0 %v3261
  %3328 = vmatpush.bf16.msra.mxu0 %v3257
  %3329 = vmatmul.bf16.gmra.mxu0 %v3124
  %v3330 = vpop.f32.mrf.mxu0
  %v3331 = vadd.f32 %v3157, %v3330
  %v3332 = vpop.f32.mrf.mxu0
  %3333 = vdwg.mxu0
  %3334 = vmatpush.bf16.msra.mxu0 %v3286
  %3335 = vmatpush.bf16.msra.mxu0 %v3282
  %3336 = vmatpush.bf16.msra.mxu0 %v3278
  %3337 = vmatpush.bf16.msra.mxu0 %v3274
  %3338 = vmatpush.bf16.msra.mxu0 %v3270
  %3339 = vmatpush.bf16.msra.mxu0 %v3266
  %3340 = vmatpush.bf16.msra.mxu0 %v3262
  %3341 = vmatpush.bf16.msra.mxu0 %v3258
  %3342 = vmatmul.bf16.gmra.mxu0 %v3124
  %v3343 = vpop.f32.mrf.mxu0
  %v3344 = vadd.f32 %v3158, %v3343
  %v3345 = vpop.f32.mrf.mxu0
  %3346 = vdwg.mxu0
  %3347 = vmatpush.bf16.msra.mxu0 %v3287
  %3348 = vmatpush.bf16.msra.mxu0 %v3283
  %3349 = vmatpush.bf16.msra.mxu0 %v3279
  %3350 = vmatpush.bf16.msra.mxu0 %v3275
  %3351 = vmatpush.bf16.msra.mxu0 %v3271
  %3352 = vmatpush.bf16.msra.mxu0 %v3267
  %3353 = vmatpush.bf16.msra.mxu0 %v3263
  %3354 = vmatpush.bf16.msra.mxu0 %v3259
  %3355 = vmatmul.bf16.gmra.mxu0 %v3124
  %v3356 = vpop.f32.mrf.mxu0
  %v3357 = vadd.f32 %v3159, %v3356
  %v3358 = vpop.f32.mrf.mxu0
  %3359 = vdwg.mxu0
  %3360 = vmatpush.bf16.msra.mxu0 %v3288
  %3361 = vmatpush.bf16.msra.mxu0 %v3284
  %3362 = vmatpush.bf16.msra.mxu0 %v3280
  %3363 = vmatpush.bf16.msra.mxu0 %v3276
  %3364 = vmatpush.bf16.msra.mxu0 %v3272
  %3365 = vmatpush.bf16.msra.mxu0 %v3268
  %3366 = vmatpush.bf16.msra.mxu0 %v3264
  %3367 = vmatpush.bf16.msra.mxu0 %v3260
  %3368 = vmatmul.bf16.gmra.mxu0 %v3124
  %v3369 = vpop.f32.mrf.mxu0
  %v3370 = vadd.f32 %v3160, %v3369
  %v3371 = vpop.f32.mrf.mxu0
  %3372 = vdwg.mxu0
  %v3373 = vld [vmem:[%s4] sm:$0xff]
  %v3374 = vld [vmem:[%s4 + $0x8] sm:$0xff]
  %v3375 = vld [vmem:[%s4 + $0x10] sm:$0xff]
  %v3376 = vld [vmem:[%s4 + $0x18] sm:$0xff]
  %v3377 = vld [vmem:[%s4 + $0x20] sm:$0xff]
  %v3378 = vld [vmem:[%s4 + $0x28] sm:$0xff]
  %v3379 = vld [vmem:[%s4 + $0x30] sm:$0xff]
  %v3380 = vld [vmem:[%s4 + $0x38] sm:$0xff]
  %v3381 = vld [vmem:[%s4 + $0x40] sm:$0xff]
  %v3382 = vld [vmem:[%s4 + $0x48] sm:$0xff]
  %v3383 = vld [vmem:[%s4 + $0x50] sm:$0xff]
  %v3384 = vld [vmem:[%s4 + $0x58] sm:$0xff]
  %v3385 = vld [vmem:[%s4 + $0x60] sm:$0xff]
  %v3386 = vld [vmem:[%s4 + $0x68] sm:$0xff]
  %v3387 = vld [vmem:[%s4 + $0x70] sm:$0xff]
  %v3388 = vld [vmem:[%s4 + $0x78] sm:$0xff]
  %v3389 = vld [vmem:[%s4 + $0x80] sm:$0xff]
  %v3390 = vld [vmem:[%s4 + $0x88] sm:$0xff]
  %v3391 = vld [vmem:[%s4 + $0x90] sm:$0xff]
  %v3392 = vld [vmem:[%s4 + $0x98] sm:$0xff]
  %v3393 = vld [vmem:[%s4 + $0xa0] sm:$0xff]
  %v3394 = vld [vmem:[%s4 + $0xa8] sm:$0xff]
  %v3395 = vld [vmem:[%s4 + $0xb0] sm:$0xff]
  %v3396 = vld [vmem:[%s4 + $0xb8] sm:$0xff]
  %v3397 = vld [vmem:[%s4 + $0xc0] sm:$0xff]
  %v3398 = vld [vmem:[%s4 + $0xc8] sm:$0xff]
  %v3399 = vld [vmem:[%s4 + $0xd0] sm:$0xff]
  %v3400 = vld [vmem:[%s4 + $0xd8] sm:$0xff]
  %v3401 = vld [vmem:[%s4 + $0xe0] sm:$0xff]
  %v3402 = vld [vmem:[%s4 + $0xe8] sm:$0xff]
  %v3403 = vld [vmem:[%s4 + $0xf0] sm:$0xff]
  %v3404 = vld [vmem:[%s4 + $0xf8] sm:$0xff]
  %v3405 = vld [vmem:[#allocation4 + $0x20] sm:$0xc0]
  %v3406 = vld [vmem:[#allocation4 + $0x28] sm:$0xc0]
  %v3407 = vld [vmem:[#allocation4 + $0x30] sm:$0xc0]
  %v3408 = vld [vmem:[#allocation4 + $0x38] sm:$0xc0]
  %v3410 = vrot.slane %v3124, 1
  %v3444 = vunpack.c.l.b16 %v3373
  %v3445 = vunpack.c.h.b16 %v3373
  %v3446 = vunpack.c.l.b16 %v3374
  %v3447 = vunpack.c.h.b16 %v3374
  %v3448 = vunpack.c.l.b16 %v3375
  %v3449 = vunpack.c.h.b16 %v3375
  %v3450 = vunpack.c.l.b16 %v3376
  %v3451 = vunpack.c.h.b16 %v3376
  %v3452 = vunpack.c.l.b16 %v3377
  %v3453 = vunpack.c.h.b16 %v3377
  %v3454 = vunpack.c.l.b16 %v3378
  %v3455 = vunpack.c.h.b16 %v3378
  %v3456 = vunpack.c.l.b16 %v3379
  %v3457 = vunpack.c.h.b16 %v3379
  %v3458 = vunpack.c.l.b16 %v3380
  %v3459 = vunpack.c.h.b16 %v3380
  %v3460 = vunpack.c.l.b16 %v3381
  %v3461 = vunpack.c.h.b16 %v3381
  %v3462 = vunpack.c.l.b16 %v3382
  %v3463 = vunpack.c.h.b16 %v3382
  %v3464 = vunpack.c.l.b16 %v3383
  %v3465 = vunpack.c.h.b16 %v3383
  %v3466 = vunpack.c.l.b16 %v3384
  %v3467 = vunpack.c.h.b16 %v3384
  %v3468 = vunpack.c.l.b16 %v3385
  %v3469 = vunpack.c.h.b16 %v3385
  %v3470 = vunpack.c.l.b16 %v3386
  %v3471 = vunpack.c.h.b16 %v3386
  %v3472 = vunpack.c.l.b16 %v3387
  %v3473 = vunpack.c.h.b16 %v3387
  %v3474 = vunpack.c.l.b16 %v3388
  %v3475 = vunpack.c.h.b16 %v3388
  %v3476 = vunpack.c.l.b16 %v3389
  %v3477 = vunpack.c.h.b16 %v3389
  %v3478 = vunpack.c.l.b16 %v3390
  %v3479 = vunpack.c.h.b16 %v3390
  %v3480 = vunpack.c.l.b16 %v3391
  %v3481 = vunpack.c.h.b16 %v3391
  %v3482 = vunpack.c.l.b16 %v3392
  %v3483 = vunpack.c.h.b16 %v3392
  %v3484 = vunpack.c.l.b16 %v3393
  %v3485 = vunpack.c.h.b16 %v3393
  %v3486 = vunpack.c.l.b16 %v3394
  %v3487 = vunpack.c.h.b16 %v3394
  %v3488 = vunpack.c.l.b16 %v3395
  %v3489 = vunpack.c.h.b16 %v3395
  %v3490 = vunpack.c.l.b16 %v3396
  %v3491 = vunpack.c.h.b16 %v3396
  %v3492 = vunpack.c.l.b16 %v3397
  %v3493 = vunpack.c.h.b16 %v3397
  %v3494 = vunpack.c.l.b16 %v3398
  %v3495 = vunpack.c.h.b16 %v3398
  %v3496 = vunpack.c.l.b16 %v3399
  %v3497 = vunpack.c.h.b16 %v3399
  %v3498 = vunpack.c.l.b16 %v3400
  %v3499 = vunpack.c.h.b16 %v3400
  %v3500 = vunpack.c.l.b16 %v3401
  %v3501 = vunpack.c.h.b16 %v3401
  %v3502 = vunpack.c.l.b16 %v3402
  %v3503 = vunpack.c.h.b16 %v3402
  %v3504 = vunpack.c.l.b16 %v3403
  %v3505 = vunpack.c.h.b16 %v3403
  %v3506 = vunpack.c.l.b16 %v3404
  %v3507 = vunpack.c.h.b16 %v3404
  %v3508 = vpack.c.b16 %v3448, %v3444
  %v3509 = vpack.c.b16 %v3449, %v3445
  %v3510 = vpack.c.b16 %v3450, %v3446
  %v3511 = vpack.c.b16 %v3451, %v3447
  %v3512 = vpack.c.b16 %v3456, %v3452
  %v3513 = vpack.c.b16 %v3457, %v3453
  %v3514 = vpack.c.b16 %v3458, %v3454
  %v3515 = vpack.c.b16 %v3459, %v3455
  %v3516 = vpack.c.b16 %v3464, %v3460
  %v3517 = vpack.c.b16 %v3465, %v3461
  %v3518 = vpack.c.b16 %v3466, %v3462
  %v3519 = vpack.c.b16 %v3467, %v3463
  %v3520 = vpack.c.b16 %v3472, %v3468
  %v3521 = vpack.c.b16 %v3473, %v3469
  %v3522 = vpack.c.b16 %v3474, %v3470
  %v3523 = vpack.c.b16 %v3475, %v3471
  %v3524 = vpack.c.b16 %v3480, %v3476
  %v3525 = vpack.c.b16 %v3481, %v3477
  %v3526 = vpack.c.b16 %v3482, %v3478
  %v3527 = vpack.c.b16 %v3483, %v3479
  %v3528 = vpack.c.b16 %v3488, %v3484
  %v3529 = vpack.c.b16 %v3489, %v3485
  %v3530 = vpack.c.b16 %v3490, %v3486
  %v3531 = vpack.c.b16 %v3491, %v3487
  %v3532 = vpack.c.b16 %v3496, %v3492
  %v3533 = vpack.c.b16 %v3497, %v3493
  %v3534 = vpack.c.b16 %v3498, %v3494
  %v3535 = vpack.c.b16 %v3499, %v3495
  %v3536 = vpack.c.b16 %v3504, %v3500
  %v3537 = vpack.c.b16 %v3505, %v3501
  %v3538 = vpack.c.b16 %v3506, %v3502
  %v3539 = vpack.c.b16 %v3507, %v3503
  %v3576 = vrot.slane %v3405, 6
  %v3577 = vrot.slane %v3406, 6
  %v3578 = vrot.slane %v3407, 6
  %v3579 = vrot.slane %v3408, 6
  %3584 = vmatpush.bf16.msra.mxu0 %v3536
  %3585 = vmatpush.bf16.msra.mxu0 %v3532
  %3586 = vmatpush.bf16.msra.mxu0 %v3528
  %3587 = vmatpush.bf16.msra.mxu0 %v3524
  %3588 = vmatpush.bf16.msra.mxu0 %v3520
  %3589 = vmatpush.bf16.msra.mxu0 %v3516
  %3590 = vmatpush.bf16.msra.mxu0 %v3512
  %3591 = vmatpush.bf16.msra.mxu0 %v3508
  %3592 = vmatmul.bf16.gmra.mxu0 %v3410
  %v3593 = vpop.f32.mrf.mxu0
  %v3594 = vadd.f32 %v3576, %v3593
  %v3595 = vpop.f32.mrf.mxu0
  %3596 = vdwg.mxu0
  %3597 = vmatpush.bf16.msra.mxu0 %v3537
  %3598 = vmatpush.bf16.msra.mxu0 %v3533
  %3599 = vmatpush.bf16.msra.mxu0 %v3529
  %3600 = vmatpush.bf16.msra.mxu0 %v3525
  %3601 = vmatpush.bf16.msra.mxu0 %v3521
  %3602 = vmatpush.bf16.msra.mxu0 %v3517
  %3603 = vmatpush.bf16.msra.mxu0 %v3513
  %3604 = vmatpush.bf16.msra.mxu0 %v3509
  %3605 = vmatmul.bf16.gmra.mxu0 %v3410
  %v3606 = vpop.f32.mrf.mxu0
  %v3607 = vadd.f32 %v3577, %v3606
  %v3608 = vpop.f32.mrf.mxu0
  %3609 = vdwg.mxu0
  %3610 = vmatpush.bf16.msra.mxu0 %v3538
  %3611 = vmatpush.bf16.msra.mxu0 %v3534
  %3612 = vmatpush.bf16.msra.mxu0 %v3530
  %3613 = vmatpush.bf16.msra.mxu0 %v3526
  %3614 = vmatpush.bf16.msra.mxu0 %v3522
  %3615 = vmatpush.bf16.msra.mxu0 %v3518
  %3616 = vmatpush.bf16.msra.mxu0 %v3514
  %3617 = vmatpush.bf16.msra.mxu0 %v3510
  %3618 = vmatmul.bf16.gmra.mxu0 %v3410
  %v3619 = vpop.f32.mrf.mxu0
  %v3620 = vadd.f32 %v3578, %v3619
  %v3621 = vpop.f32.mrf.mxu0
  %3622 = vdwg.mxu0
  %3623 = vmatpush.bf16.msra.mxu0 %v3539
  %3624 = vmatpush.bf16.msra.mxu0 %v3535
  %3625 = vmatpush.bf16.msra.mxu0 %v3531
  %3626 = vmatpush.bf16.msra.mxu0 %v3527
  %3627 = vmatpush.bf16.msra.mxu0 %v3523
  %3628 = vmatpush.bf16.msra.mxu0 %v3519
  %3629 = vmatpush.bf16.msra.mxu0 %v3515
  %3630 = vmatpush.bf16.msra.mxu0 %v3511
  %3631 = vmatmul.bf16.gmra.mxu0 %v3410
  %v3632 = vpop.f32.mrf.mxu0
  %v3633 = vadd.f32 %v3579, %v3632
  %v3634 = vpop.f32.mrf.mxu0
  %3635 = vdwg.mxu0
  %v3640 = vrot.slane %v3594, 6
  %v3641 = vrot.slane %v3607, 6
  %v3642 = vrot.slane %v3620, 6
  %v3643 = vrot.slane %v3633, 6
  %v3648 = vsel %vm1239, %v3331, %v3640
  %v3649 = vsel %vm1239, %v3344, %v3641
  %v3650 = vsel %vm1239, %v3357, %v3642
  %v3651 = vsel %vm1239, %v3370, %v3643
  %v3652 = vxor.u32 %v3648, 2147483648
  %v3653 = vmul.f32 %v3652, 1.442695
  %v3654 = vpow.pop %v3653
  %v3655 = vadd.f32 %v3654, 1.0
  %v3656 = vrcp.pop %v3655
  %v3657 = vmul.f32 %v3655, %v3656
  %v3658 = vsub.f32 1.0, %v3657
  %v3659 = vmul.f32 %v3656, %v3658
  %v3660 = vadd.f32 %v3656, %v3659
  %vm3661 = vweird.f32 %v3655
  %vm3662 = vweird.f32 %v3656
  %vm3663 = vmor %vm3661, %vm3662
  %v3664 = vsel %vm3663, %v3656, %v3660
  %v3665 = vand.u32 2147483647, %v3655
  %vm3666 = vcmp.eq.f32.partialorder %v3665, 8.507059e+37
  %v3667 = vand.u32 %v3655, 2147483648
  %v3668 = vor.u32 1.1754944e-38, %v3667
  %v3669 = vsel %vm3666, %v3668, %v3664
  %v3670 = vmul.f32 1.0, %v3669
  %v3671 = vxor.u32 %v3649, 2147483648
  %v3672 = vmul.f32 %v3671, 1.442695
  %v3673 = vpow.pop %v3672
  %v3674 = vadd.f32 %v3673, 1.0
  %v3675 = vrcp.pop %v3674
  %v3676 = vmul.f32 %v3674, %v3675
  %v3677 = vsub.f32 1.0, %v3676
  %v3678 = vmul.f32 %v3675, %v3677
  %v3679 = vadd.f32 %v3675, %v3678
  %vm3680 = vweird.f32 %v3674
  %vm3681 = vweird.f32 %v3675
  %vm3682 = vmor %vm3680, %vm3681
  %v3683 = vsel %vm3682, %v3675, %v3679
  %v3684 = vand.u32 2147483647, %v3674
  %vm3685 = vcmp.eq.f32.partialorder %v3684, 8.507059e+37
  %v3686 = vand.u32 %v3674, 2147483648
  %v3687 = vor.u32 1.1754944e-38, %v3686
  %v3688 = vsel %vm3685, %v3687, %v3683
  %v3689 = vmul.f32 1.0, %v3688
  %v3690 = vtanh.pop %v3650
  %v3691 = vxor.u32 %v3651, 2147483648
  %v3692 = vmul.f32 %v3691, 1.442695
  %v3693 = vpow.pop %v3692
  %v3694 = vadd.f32 %v3693, 1.0
  %v3695 = vrcp.pop %v3694
  %v3696 = vmul.f32 %v3694, %v3695
  %v3697 = vsub.f32 1.0, %v3696
  %v3698 = vmul.f32 %v3695, %v3697
  %v3699 = vadd.f32 %v3695, %v3698
  %vm3700 = vweird.f32 %v3694
  %vm3701 = vweird.f32 %v3695
  %vm3702 = vmor %vm3700, %vm3701
  %v3703 = vsel %vm3702, %v3695, %v3699
  %v3704 = vand.u32 2147483647, %v3694
  %vm3705 = vcmp.eq.f32.partialorder %v3704, 8.507059e+37
  %v3706 = vand.u32 %v3694, 2147483648
  %v3707 = vor.u32 1.1754944e-38, %v3706
  %v3708 = vsel %vm3705, %v3707, %v3703
  %v3709 = vmul.f32 1.0, %v3708
  %v3710 = vmul.f32 %v3689, %v3116
  %v3711 = vmul.f32 %v3670, %v3690
  %v3712 = vadd.f32 %v3710, %v3711
  %v3713 = vtanh.pop %v3712
  %v3714 = vmul.f32 %v3709, %v3713
  %3715 = vst [vmem:[#allocation2 + $0x10] sm:$0x3] %v3714
  %v3717 = vrot.slane %v3714, 4
  %3719 = vst [vmem:[#allocation2 + $0x8] sm:$0xc0] %v3717
  %v3720 = vpack.c.bf16 %v3714, %v3714
  %v3721 = vld [vmem:[%s3] sm:$0xff]
  %v3722 = vld [vmem:[%s3 + $0x8] sm:$0xff]
  %v3723 = vld [vmem:[%s3 + $0x10] sm:$0xff]
  %v3724 = vld [vmem:[%s3 + $0x18] sm:$0xff]
  %v3725 = vld [vmem:[%s3 + $0x20] sm:$0xff]
  %v3726 = vld [vmem:[%s3 + $0x28] sm:$0xff]
  %v3727 = vld [vmem:[%s3 + $0x30] sm:$0xff]
  %v3728 = vld [vmem:[%s3 + $0x38] sm:$0xff]
  %v3729 = vld [vmem:[%s3 + $0x40] sm:$0xff]
  %v3730 = vld [vmem:[%s3 + $0x48] sm:$0xff]
  %v3731 = vld [vmem:[%s3 + $0x50] sm:$0xff]
  %v3732 = vld [vmem:[%s3 + $0x58] sm:$0xff]
  %v3733 = vld [vmem:[%s3 + $0x60] sm:$0xff]
  %v3734 = vld [vmem:[%s3 + $0x68] sm:$0xff]
  %v3735 = vld [vmem:[%s3 + $0x70] sm:$0xff]
  %v3736 = vld [vmem:[%s3 + $0x78] sm:$0xff]
  %v3737 = vld [vmem:[%s3 + $0x80] sm:$0xff]
  %v3738 = vld [vmem:[%s3 + $0x88] sm:$0xff]
  %v3739 = vld [vmem:[%s3 + $0x90] sm:$0xff]
  %v3740 = vld [vmem:[%s3 + $0x98] sm:$0xff]
  %v3741 = vld [vmem:[%s3 + $0xa0] sm:$0xff]
  %v3742 = vld [vmem:[%s3 + $0xa8] sm:$0xff]
  %v3743 = vld [vmem:[%s3 + $0xb0] sm:$0xff]
  %v3744 = vld [vmem:[%s3 + $0xb8] sm:$0xff]
  %v3745 = vld [vmem:[%s3 + $0xc0] sm:$0xff]
  %v3746 = vld [vmem:[%s3 + $0xc8] sm:$0xff]
  %v3747 = vld [vmem:[%s3 + $0xd0] sm:$0xff]
  %v3748 = vld [vmem:[%s3 + $0xd8] sm:$0xff]
  %v3749 = vld [vmem:[%s3 + $0xe0] sm:$0xff]
  %v3750 = vld [vmem:[%s3 + $0xe8] sm:$0xff]
  %v3751 = vld [vmem:[%s3 + $0xf0] sm:$0xff]
  %v3752 = vld [vmem:[%s3 + $0xf8] sm:$0xff]
  %v3753 = vld [vmem:[#allocation4 + $0x40] sm:$0xc]
  %v3754 = vld [vmem:[#allocation4 + $0x48] sm:$0xc]
  %v3755 = vld [vmem:[#allocation4 + $0x50] sm:$0xc]
  %v3756 = vld [vmem:[#allocation4 + $0x58] sm:$0xc]
  %v3789 = vunpack.c.l.b16 %v3721
  %v3790 = vunpack.c.h.b16 %v3721
  %v3791 = vunpack.c.l.b16 %v3722
  %v3792 = vunpack.c.h.b16 %v3722
  %v3793 = vunpack.c.l.b16 %v3723
  %v3794 = vunpack.c.h.b16 %v3723
  %v3795 = vunpack.c.l.b16 %v3724
  %v3796 = vunpack.c.h.b16 %v3724
  %v3797 = vunpack.c.l.b16 %v3725
  %v3798 = vunpack.c.h.b16 %v3725
  %v3799 = vunpack.c.l.b16 %v3726
  %v3800 = vunpack.c.h.b16 %v3726
  %v3801 = vunpack.c.l.b16 %v3727
  %v3802 = vunpack.c.h.b16 %v3727
  %v3803 = vunpack.c.l.b16 %v3728
  %v3804 = vunpack.c.h.b16 %v3728
  %v3805 = vunpack.c.l.b16 %v3729
  %v3806 = vunpack.c.h.b16 %v3729
  %v3807 = vunpack.c.l.b16 %v3730
  %v3808 = vunpack.c.h.b16 %v3730
  %v3809 = vunpack.c.l.b16 %v3731
  %v3810 = vunpack.c.h.b16 %v3731
  %v3811 = vunpack.c.l.b16 %v3732
  %v3812 = vunpack.c.h.b16 %v3732
  %v3813 = vunpack.c.l.b16 %v3733
  %v3814 = vunpack.c.h.b16 %v3733
  %v3815 = vunpack.c.l.b16 %v3734
  %v3816 = vunpack.c.h.b16 %v3734
  %v3817 = vunpack.c.l.b16 %v3735
  %v3818 = vunpack.c.h.b16 %v3735
  %v3819 = vunpack.c.l.b16 %v3736
  %v3820 = vunpack.c.h.b16 %v3736
  %v3821 = vunpack.c.l.b16 %v3737
  %v3822 = vunpack.c.h.b16 %v3737
  %v3823 = vunpack.c.l.b16 %v3738
  %v3824 = vunpack.c.h.b16 %v3738
  %v3825 = vunpack.c.l.b16 %v3739
  %v3826 = vunpack.c.h.b16 %v3739
  %v3827 = vunpack.c.l.b16 %v3740
  %v3828 = vunpack.c.h.b16 %v3740
  %v3829 = vunpack.c.l.b16 %v3741
  %v3830 = vunpack.c.h.b16 %v3741
  %v3831 = vunpack.c.l.b16 %v3742
  %v3832 = vunpack.c.h.b16 %v3742
  %v3833 = vunpack.c.l.b16 %v3743
  %v3834 = vunpack.c.h.b16 %v3743
  %v3835 = vunpack.c.l.b16 %v3744
  %v3836 = vunpack.c.h.b16 %v3744
  %v3837 = vunpack.c.l.b16 %v3745
  %v3838 = vunpack.c.h.b16 %v3745
  %v3839 = vunpack.c.l.b16 %v3746
  %v3840 = vunpack.c.h.b16 %v3746
  %v3841 = vunpack.c.l.b16 %v3747
  %v3842 = vunpack.c.h.b16 %v3747
  %v3843 = vunpack.c.l.b16 %v3748
  %v3844 = vunpack.c.h.b16 %v3748
  %v3845 = vunpack.c.l.b16 %v3749
  %v3846 = vunpack.c.h.b16 %v3749
  %v3847 = vunpack.c.l.b16 %v3750
  %v3848 = vunpack.c.h.b16 %v3750
  %v3849 = vunpack.c.l.b16 %v3751
  %v3850 = vunpack.c.h.b16 %v3751
  %v3851 = vunpack.c.l.b16 %v3752
  %v3852 = vunpack.c.h.b16 %v3752
  %v3853 = vpack.c.b16 %v3793, %v3789
  %v3854 = vpack.c.b16 %v3794, %v3790
  %v3855 = vpack.c.b16 %v3795, %v3791
  %v3856 = vpack.c.b16 %v3796, %v3792
  %v3857 = vpack.c.b16 %v3801, %v3797
  %v3858 = vpack.c.b16 %v3802, %v3798
  %v3859 = vpack.c.b16 %v3803, %v3799
  %v3860 = vpack.c.b16 %v3804, %v3800
  %v3861 = vpack.c.b16 %v3809, %v3805
  %v3862 = vpack.c.b16 %v3810, %v3806
  %v3863 = vpack.c.b16 %v3811, %v3807
  %v3864 = vpack.c.b16 %v3812, %v3808
  %v3865 = vpack.c.b16 %v3817, %v3813
  %v3866 = vpack.c.b16 %v3818, %v3814
  %v3867 = vpack.c.b16 %v3819, %v3815
  %v3868 = vpack.c.b16 %v3820, %v3816
  %v3869 = vpack.c.b16 %v3825, %v3821
  %v3870 = vpack.c.b16 %v3826, %v3822
  %v3871 = vpack.c.b16 %v3827, %v3823
  %v3872 = vpack.c.b16 %v3828, %v3824
  %v3873 = vpack.c.b16 %v3833, %v3829
  %v3874 = vpack.c.b16 %v3834, %v3830
  %v3875 = vpack.c.b16 %v3835, %v3831
  %v3876 = vpack.c.b16 %v3836, %v3832
  %v3877 = vpack.c.b16 %v3841, %v3837
  %v3878 = vpack.c.b16 %v3842, %v3838
  %v3879 = vpack.c.b16 %v3843, %v3839
  %v3880 = vpack.c.b16 %v3844, %v3840
  %v3881 = vpack.c.b16 %v3849, %v3845
  %v3882 = vpack.c.b16 %v3850, %v3846
  %v3883 = vpack.c.b16 %v3851, %v3847
  %v3884 = vpack.c.b16 %v3852, %v3848
  %v3921 = vrot.slane %v3753, 2
  %v3922 = vrot.slane %v3754, 2
  %v3923 = vrot.slane %v3755, 2
  %v3924 = vrot.slane %v3756, 2
  %3929 = vmatpush.bf16.msra.mxu0 %v3881
  %3930 = vmatpush.bf16.msra.mxu0 %v3877
  %3931 = vmatpush.bf16.msra.mxu0 %v3873
  %3932 = vmatpush.bf16.msra.mxu0 %v3869
  %3933 = vmatpush.bf16.msra.mxu0 %v3865
  %3934 = vmatpush.bf16.msra.mxu0 %v3861
  %3935 = vmatpush.bf16.msra.mxu0 %v3857
  %3936 = vmatpush.bf16.msra.mxu0 %v3853
  %3937 = vmatmul.bf16.gmra.mxu0 %v3720
  %v3938 = vpop.f32.mrf.mxu0
  %v3939 = vadd.f32 %v3921, %v3938
  %v3940 = vpop.f32.mrf.mxu0
  %3941 = vdwg.mxu0
  %3942 = vmatpush.bf16.msra.mxu0 %v3882
  %3943 = vmatpush.bf16.msra.mxu0 %v3878
  %3944 = vmatpush.bf16.msra.mxu0 %v3874
  %3945 = vmatpush.bf16.msra.mxu0 %v3870
  %3946 = vmatpush.bf16.msra.mxu0 %v3866
  %3947 = vmatpush.bf16.msra.mxu0 %v3862
  %3948 = vmatpush.bf16.msra.mxu0 %v3858
  %3949 = vmatpush.bf16.msra.mxu0 %v3854
  %3950 = vmatmul.bf16.gmra.mxu0 %v3720
  %v3951 = vpop.f32.mrf.mxu0
  %v3952 = vadd.f32 %v3922, %v3951
  %v3953 = vpop.f32.mrf.mxu0
  %3954 = vdwg.mxu0
  %3955 = vmatpush.bf16.msra.mxu0 %v3883
  %3956 = vmatpush.bf16.msra.mxu0 %v3879
  %3957 = vmatpush.bf16.msra.mxu0 %v3875
  %3958 = vmatpush.bf16.msra.mxu0 %v3871
  %3959 = vmatpush.bf16.msra.mxu0 %v3867
  %3960 = vmatpush.bf16.msra.mxu0 %v3863
  %3961 = vmatpush.bf16.msra.mxu0 %v3859
  %3962 = vmatpush.bf16.msra.mxu0 %v3855
  %3963 = vmatmul.bf16.gmra.mxu0 %v3720
  %v3964 = vpop.f32.mrf.mxu0
  %v3965 = vadd.f32 %v3923, %v3964
  %v3966 = vpop.f32.mrf.mxu0
  %3967 = vdwg.mxu0
  %3968 = vmatpush.bf16.msra.mxu0 %v3884
  %3969 = vmatpush.bf16.msra.mxu0 %v3880
  %3970 = vmatpush.bf16.msra.mxu0 %v3876
  %3971 = vmatpush.bf16.msra.mxu0 %v3872
  %3972 = vmatpush.bf16.msra.mxu0 %v3868
  %3973 = vmatpush.bf16.msra.mxu0 %v3864
  %3974 = vmatpush.bf16.msra.mxu0 %v3860
  %3975 = vmatpush.bf16.msra.mxu0 %v3856
  %3976 = vmatmul.bf16.gmra.mxu0 %v3720
  %v3977 = vpop.f32.mrf.mxu0
  %v3978 = vadd.f32 %v3924, %v3977
  %v3979 = vpop.f32.mrf.mxu0
  %3980 = vdwg.mxu0
  %v3981 = vld [vmem:[%s4] sm:$0xff]
  %v3982 = vld [vmem:[%s4 + $0x8] sm:$0xff]
  %v3983 = vld [vmem:[%s4 + $0x10] sm:$0xff]
  %v3984 = vld [vmem:[%s4 + $0x18] sm:$0xff]
  %v3985 = vld [vmem:[%s4 + $0x20] sm:$0xff]
  %v3986 = vld [vmem:[%s4 + $0x28] sm:$0xff]
  %v3987 = vld [vmem:[%s4 + $0x30] sm:$0xff]
  %v3988 = vld [vmem:[%s4 + $0x38] sm:$0xff]
  %v3989 = vld [vmem:[%s4 + $0x40] sm:$0xff]
  %v3990 = vld [vmem:[%s4 + $0x48] sm:$0xff]
  %v3991 = vld [vmem:[%s4 + $0x50] sm:$0xff]
  %v3992 = vld [vmem:[%s4 + $0x58] sm:$0xff]
  %v3993 = vld [vmem:[%s4 + $0x60] sm:$0xff]
  %v3994 = vld [vmem:[%s4 + $0x68] sm:$0xff]
  %v3995 = vld [vmem:[%s4 + $0x70] sm:$0xff]
  %v3996 = vld [vmem:[%s4 + $0x78] sm:$0xff]
  %v3997 = vld [vmem:[%s4 + $0x80] sm:$0xff]
  %v3998 = vld [vmem:[%s4 + $0x88] sm:$0xff]
  %v3999 = vld [vmem:[%s4 + $0x90] sm:$0xff]
  %v4000 = vld [vmem:[%s4 + $0x98] sm:$0xff]
  %v4001 = vld [vmem:[%s4 + $0xa0] sm:$0xff]
  %v4002 = vld [vmem:[%s4 + $0xa8] sm:$0xff]
  %v4003 = vld [vmem:[%s4 + $0xb0] sm:$0xff]
  %v4004 = vld [vmem:[%s4 + $0xb8] sm:$0xff]
  %v4005 = vld [vmem:[%s4 + $0xc0] sm:$0xff]
  %v4006 = vld [vmem:[%s4 + $0xc8] sm:$0xff]
  %v4007 = vld [vmem:[%s4 + $0xd0] sm:$0xff]
  %v4008 = vld [vmem:[%s4 + $0xd8] sm:$0xff]
  %v4009 = vld [vmem:[%s4 + $0xe0] sm:$0xff]
  %v4010 = vld [vmem:[%s4 + $0xe8] sm:$0xff]
  %v4011 = vld [vmem:[%s4 + $0xf0] sm:$0xff]
  %v4012 = vld [vmem:[%s4 + $0xf8] sm:$0xff]
  %v4013 = vld [vmem:[#allocation4 + $0x20] sm:$0x30]
  %v4014 = vld [vmem:[#allocation4 + $0x28] sm:$0x30]
  %v4015 = vld [vmem:[#allocation4 + $0x30] sm:$0x30]
  %v4016 = vld [vmem:[#allocation4 + $0x38] sm:$0x30]
  %v4018 = vrot.slane %v3720, 1
  %v4052 = vunpack.c.l.b16 %v3981
  %v4053 = vunpack.c.h.b16 %v3981
  %v4054 = vunpack.c.l.b16 %v3982
  %v4055 = vunpack.c.h.b16 %v3982
  %v4056 = vunpack.c.l.b16 %v3983
  %v4057 = vunpack.c.h.b16 %v3983
  %v4058 = vunpack.c.l.b16 %v3984
  %v4059 = vunpack.c.h.b16 %v3984
  %v4060 = vunpack.c.l.b16 %v3985
  %v4061 = vunpack.c.h.b16 %v3985
  %v4062 = vunpack.c.l.b16 %v3986
  %v4063 = vunpack.c.h.b16 %v3986
  %v4064 = vunpack.c.l.b16 %v3987
  %v4065 = vunpack.c.h.b16 %v3987
  %v4066 = vunpack.c.l.b16 %v3988
  %v4067 = vunpack.c.h.b16 %v3988
  %v4068 = vunpack.c.l.b16 %v3989
  %v4069 = vunpack.c.h.b16 %v3989
  %v4070 = vunpack.c.l.b16 %v3990
  %v4071 = vunpack.c.h.b16 %v3990
  %v4072 = vunpack.c.l.b16 %v3991
  %v4073 = vunpack.c.h.b16 %v3991
  %v4074 = vunpack.c.l.b16 %v3992
  %v4075 = vunpack.c.h.b16 %v3992
  %v4076 = vunpack.c.l.b16 %v3993
  %v4077 = vunpack.c.h.b16 %v3993
  %v4078 = vunpack.c.l.b16 %v3994
  %v4079 = vunpack.c.h.b16 %v3994
  %v4080 = vunpack.c.l.b16 %v3995
  %v4081 = vunpack.c.h.b16 %v3995
  %v4082 = vunpack.c.l.b16 %v3996
  %v4083 = vunpack.c.h.b16 %v3996
  %v4084 = vunpack.c.l.b16 %v3997
  %v4085 = vunpack.c.h.b16 %v3997
  %v4086 = vunpack.c.l.b16 %v3998
  %v4087 = vunpack.c.h.b16 %v3998
  %v4088 = vunpack.c.l.b16 %v3999
  %v4089 = vunpack.c.h.b16 %v3999
  %v4090 = vunpack.c.l.b16 %v4000
  %v4091 = vunpack.c.h.b16 %v4000
  %v4092 = vunpack.c.l.b16 %v4001
  %v4093 = vunpack.c.h.b16 %v4001
  %v4094 = vunpack.c.l.b16 %v4002
  %v4095 = vunpack.c.h.b16 %v4002
  %v4096 = vunpack.c.l.b16 %v4003
  %v4097 = vunpack.c.h.b16 %v4003
  %v4098 = vunpack.c.l.b16 %v4004
  %v4099 = vunpack.c.h.b16 %v4004
  %v4100 = vunpack.c.l.b16 %v4005
  %v4101 = vunpack.c.h.b16 %v4005
  %v4102 = vunpack.c.l.b16 %v4006
  %v4103 = vunpack.c.h.b16 %v4006
  %v4104 = vunpack.c.l.b16 %v4007
  %v4105 = vunpack.c.h.b16 %v4007
  %v4106 = vunpack.c.l.b16 %v4008
  %v4107 = vunpack.c.h.b16 %v4008
  %v4108 = vunpack.c.l.b16 %v4009
  %v4109 = vunpack.c.h.b16 %v4009
  %v4110 = vunpack.c.l.b16 %v4010
  %v4111 = vunpack.c.h.b16 %v4010
  %v4112 = vunpack.c.l.b16 %v4011
  %v4113 = vunpack.c.h.b16 %v4011
  %v4114 = vunpack.c.l.b16 %v4012
  %v4115 = vunpack.c.h.b16 %v4012
  %v4116 = vpack.c.b16 %v4056, %v4052
  %v4117 = vpack.c.b16 %v4057, %v4053
  %v4118 = vpack.c.b16 %v4058, %v4054
  %v4119 = vpack.c.b16 %v4059, %v4055
  %v4120 = vpack.c.b16 %v4064, %v4060
  %v4121 = vpack.c.b16 %v4065, %v4061
  %v4122 = vpack.c.b16 %v4066, %v4062
  %v4123 = vpack.c.b16 %v4067, %v4063
  %v4124 = vpack.c.b16 %v4072, %v4068
  %v4125 = vpack.c.b16 %v4073, %v4069
  %v4126 = vpack.c.b16 %v4074, %v4070
  %v4127 = vpack.c.b16 %v4075, %v4071
  %v4128 = vpack.c.b16 %v4080, %v4076
  %v4129 = vpack.c.b16 %v4081, %v4077
  %v4130 = vpack.c.b16 %v4082, %v4078
  %v4131 = vpack.c.b16 %v4083, %v4079
  %v4132 = vpack.c.b16 %v4088, %v4084
  %v4133 = vpack.c.b16 %v4089, %v4085
  %v4134 = vpack.c.b16 %v4090, %v4086
  %v4135 = vpack.c.b16 %v4091, %v4087
  %v4136 = vpack.c.b16 %v4096, %v4092
  %v4137 = vpack.c.b16 %v4097, %v4093
  %v4138 = vpack.c.b16 %v4098, %v4094
  %v4139 = vpack.c.b16 %v4099, %v4095
  %v4140 = vpack.c.b16 %v4104, %v4100
  %v4141 = vpack.c.b16 %v4105, %v4101
  %v4142 = vpack.c.b16 %v4106, %v4102
  %v4143 = vpack.c.b16 %v4107, %v4103
  %v4144 = vpack.c.b16 %v4112, %v4108
  %v4145 = vpack.c.b16 %v4113, %v4109
  %v4146 = vpack.c.b16 %v4114, %v4110
  %v4147 = vpack.c.b16 %v4115, %v4111
  %v4184 = vrot.slane %v4013, 4
  %v4185 = vrot.slane %v4014, 4
  %v4186 = vrot.slane %v4015, 4
  %v4187 = vrot.slane %v4016, 4
  %4192 = vmatpush.bf16.msra.mxu0 %v4144
  %4193 = vmatpush.bf16.msra.mxu0 %v4140
  %4194 = vmatpush.bf16.msra.mxu0 %v4136
  %4195 = vmatpush.bf16.msra.mxu0 %v4132
  %4196 = vmatpush.bf16.msra.mxu0 %v4128
  %4197 = vmatpush.bf16.msra.mxu0 %v4124
  %4198 = vmatpush.bf16.msra.mxu0 %v4120
  %4199 = vmatpush.bf16.msra.mxu0 %v4116
  %4200 = vmatmul.bf16.gmra.mxu0 %v4018
  %v4201 = vpop.f32.mrf.mxu0
  %v4202 = vadd.f32 %v4184, %v4201
  %v4203 = vpop.f32.mrf.mxu0
  %4204 = vdwg.mxu0
  %4205 = vmatpush.bf16.msra.mxu0 %v4145
  %4206 = vmatpush.bf16.msra.mxu0 %v4141
  %4207 = vmatpush.bf16.msra.mxu0 %v4137
  %4208 = vmatpush.bf16.msra.mxu0 %v4133
  %4209 = vmatpush.bf16.msra.mxu0 %v4129
  %4210 = vmatpush.bf16.msra.mxu0 %v4125
  %4211 = vmatpush.bf16.msra.mxu0 %v4121
  %4212 = vmatpush.bf16.msra.mxu0 %v4117
  %4213 = vmatmul.bf16.gmra.mxu0 %v4018
  %v4214 = vpop.f32.mrf.mxu0
  %v4215 = vadd.f32 %v4185, %v4214
  %v4216 = vpop.f32.mrf.mxu0
  %4217 = vdwg.mxu0
  %4218 = vmatpush.bf16.msra.mxu0 %v4146
  %4219 = vmatpush.bf16.msra.mxu0 %v4142
  %4220 = vmatpush.bf16.msra.mxu0 %v4138
  %4221 = vmatpush.bf16.msra.mxu0 %v4134
  %4222 = vmatpush.bf16.msra.mxu0 %v4130
  %4223 = vmatpush.bf16.msra.mxu0 %v4126
  %4224 = vmatpush.bf16.msra.mxu0 %v4122
  %4225 = vmatpush.bf16.msra.mxu0 %v4118
  %4226 = vmatmul.bf16.gmra.mxu0 %v4018
  %v4227 = vpop.f32.mrf.mxu0
  %v4228 = vadd.f32 %v4186, %v4227
  %v4229 = vpop.f32.mrf.mxu0
  %4230 = vdwg.mxu0
  %4231 = vmatpush.bf16.msra.mxu0 %v4147
  %4232 = vmatpush.bf16.msra.mxu0 %v4143
  %4233 = vmatpush.bf16.msra.mxu0 %v4139
  %4234 = vmatpush.bf16.msra.mxu0 %v4135
  %4235 = vmatpush.bf16.msra.mxu0 %v4131
  %4236 = vmatpush.bf16.msra.mxu0 %v4127
  %4237 = vmatpush.bf16.msra.mxu0 %v4123
  %4238 = vmatpush.bf16.msra.mxu0 %v4119
  %4239 = vmatmul.bf16.gmra.mxu0 %v4018
  %v4240 = vpop.f32.mrf.mxu0
  %v4241 = vadd.f32 %v4187, %v4240
  %v4242 = vpop.f32.mrf.mxu0
  %4243 = vdwg.mxu0
  %v4248 = vrot.slane %v4202, 6
  %v4249 = vrot.slane %v4215, 6
  %v4250 = vrot.slane %v4228, 6
  %v4251 = vrot.slane %v4241, 6
  %v4256 = vsel %vm1239, %v3939, %v4248
  %v4257 = vsel %vm1239, %v3952, %v4249
  %v4258 = vsel %vm1239, %v3965, %v4250
  %v4259 = vsel %vm1239, %v3978, %v4251
  %v4260 = vxor.u32 %v4256, 2147483648
  %v4261 = vmul.f32 %v4260, 1.442695
  %v4262 = vpow.pop %v4261
  %v4263 = vadd.f32 %v4262, 1.0
  %v4264 = vrcp.pop %v4263
  %v4265 = vmul.f32 %v4263, %v4264
  %v4266 = vsub.f32 1.0, %v4265
  %v4267 = vmul.f32 %v4264, %v4266
  %v4268 = vadd.f32 %v4264, %v4267
  %vm4269 = vweird.f32 %v4263
  %vm4270 = vweird.f32 %v4264
  %vm4271 = vmor %vm4269, %vm4270
  %v4272 = vsel %vm4271, %v4264, %v4268
  %v4273 = vand.u32 2147483647, %v4263
  %vm4274 = vcmp.eq.f32.partialorder %v4273, 8.507059e+37
  %v4275 = vand.u32 %v4263, 2147483648
  %v4276 = vor.u32 1.1754944e-38, %v4275
  %v4277 = vsel %vm4274, %v4276, %v4272
  %v4278 = vmul.f32 1.0, %v4277
  %v4279 = vxor.u32 %v4257, 2147483648
  %v4280 = vmul.f32 %v4279, 1.442695
  %v4281 = vpow.pop %v4280
  %v4282 = vadd.f32 %v4281, 1.0
  %v4283 = vrcp.pop %v4282
  %v4284 = vmul.f32 %v4282, %v4283
  %v4285 = vsub.f32 1.0, %v4284
  %v4286 = vmul.f32 %v4283, %v4285
  %v4287 = vadd.f32 %v4283, %v4286
  %vm4288 = vweird.f32 %v4282
  %vm4289 = vweird.f32 %v4283
  %vm4290 = vmor %vm4288, %vm4289
  %v4291 = vsel %vm4290, %v4283, %v4287
  %v4292 = vand.u32 2147483647, %v4282
  %vm4293 = vcmp.eq.f32.partialorder %v4292, 8.507059e+37
  %v4294 = vand.u32 %v4282, 2147483648
  %v4295 = vor.u32 1.1754944e-38, %v4294
  %v4296 = vsel %vm4293, %v4295, %v4291
  %v4297 = vmul.f32 1.0, %v4296
  %v4298 = vtanh.pop %v4258
  %v4299 = vxor.u32 %v4259, 2147483648
  %v4300 = vmul.f32 %v4299, 1.442695
  %v4301 = vpow.pop %v4300
  %v4302 = vadd.f32 %v4301, 1.0
  %v4303 = vrcp.pop %v4302
  %v4304 = vmul.f32 %v4302, %v4303
  %v4305 = vsub.f32 1.0, %v4304
  %v4306 = vmul.f32 %v4303, %v4305
  %v4307 = vadd.f32 %v4303, %v4306
  %vm4308 = vweird.f32 %v4302
  %vm4309 = vweird.f32 %v4303
  %vm4310 = vmor %vm4308, %vm4309
  %v4311 = vsel %vm4310, %v4303, %v4307
  %v4312 = vand.u32 2147483647, %v4302
  %vm4313 = vcmp.eq.f32.partialorder %v4312, 8.507059e+37
  %v4314 = vand.u32 %v4302, 2147483648
  %v4315 = vor.u32 1.1754944e-38, %v4314
  %v4316 = vsel %vm4313, %v4315, %v4311
  %v4317 = vmul.f32 1.0, %v4316
  %v4318 = vmul.f32 %v4297, %v3712
  %v4319 = vmul.f32 %v4278, %v4298
  %v4320 = vadd.f32 %v4318, %v4319
  %v4321 = vtanh.pop %v4320
  %v4322 = vmul.f32 %v4317, %v4321
  %v4324 = vrot.slane %v4322, 6
  %4326 = vst [vmem:[#allocation2 + $0x10] sm:$0xc] %v4324
  %4327 = vst [vmem:[#allocation2 + $0x8] sm:$0x30] %v4324
  %v4328 = vpack.c.bf16 %v4322, %v4322
  %v4329 = vld [vmem:[%s3] sm:$0xff]
  %v4330 = vld [vmem:[%s3 + $0x8] sm:$0xff]
  %v4331 = vld [vmem:[%s3 + $0x10] sm:$0xff]
  %v4332 = vld [vmem:[%s3 + $0x18] sm:$0xff]
  %v4333 = vld [vmem:[%s3 + $0x20] sm:$0xff]
  %v4334 = vld [vmem:[%s3 + $0x28] sm:$0xff]
  %v4335 = vld [vmem:[%s3 + $0x30] sm:$0xff]
  %v4336 = vld [vmem:[%s3 + $0x38] sm:$0xff]
  %v4337 = vld [vmem:[%s3 + $0x40] sm:$0xff]
  %v4338 = vld [vmem:[%s3 + $0x48] sm:$0xff]
  %v4339 = vld [vmem:[%s3 + $0x50] sm:$0xff]
  %v4340 = vld [vmem:[%s3 + $0x58] sm:$0xff]
  %v4341 = vld [vmem:[%s3 + $0x60] sm:$0xff]
  %v4342 = vld [vmem:[%s3 + $0x68] sm:$0xff]
  %v4343 = vld [vmem:[%s3 + $0x70] sm:$0xff]
  %v4344 = vld [vmem:[%s3 + $0x78] sm:$0xff]
  %v4345 = vld [vmem:[%s3 + $0x80] sm:$0xff]
  %v4346 = vld [vmem:[%s3 + $0x88] sm:$0xff]
  %v4347 = vld [vmem:[%s3 + $0x90] sm:$0xff]
  %v4348 = vld [vmem:[%s3 + $0x98] sm:$0xff]
  %v4349 = vld [vmem:[%s3 + $0xa0] sm:$0xff]
  %v4350 = vld [vmem:[%s3 + $0xa8] sm:$0xff]
  %v4351 = vld [vmem:[%s3 + $0xb0] sm:$0xff]
  %v4352 = vld [vmem:[%s3 + $0xb8] sm:$0xff]
  %v4353 = vld [vmem:[%s3 + $0xc0] sm:$0xff]
  %v4354 = vld [vmem:[%s3 + $0xc8] sm:$0xff]
  %v4355 = vld [vmem:[%s3 + $0xd0] sm:$0xff]
  %v4356 = vld [vmem:[%s3 + $0xd8] sm:$0xff]
  %v4357 = vld [vmem:[%s3 + $0xe0] sm:$0xff]
  %v4358 = vld [vmem:[%s3 + $0xe8] sm:$0xff]
  %v4359 = vld [vmem:[%s3 + $0xf0] sm:$0xff]
  %v4360 = vld [vmem:[%s3 + $0xf8] sm:$0xff]
  %v4361 = vld [vmem:[#allocation4 + $0x40] sm:$0x30]
  %v4362 = vld [vmem:[#allocation4 + $0x48] sm:$0x30]
  %v4363 = vld [vmem:[#allocation4 + $0x50] sm:$0x30]
  %v4364 = vld [vmem:[#allocation4 + $0x58] sm:$0x30]
  %v4397 = vunpack.c.l.b16 %v4329
  %v4398 = vunpack.c.h.b16 %v4329
  %v4399 = vunpack.c.l.b16 %v4330
  %v4400 = vunpack.c.h.b16 %v4330
  %v4401 = vunpack.c.l.b16 %v4331
  %v4402 = vunpack.c.h.b16 %v4331
  %v4403 = vunpack.c.l.b16 %v4332
  %v4404 = vunpack.c.h.b16 %v4332
  %v4405 = vunpack.c.l.b16 %v4333
  %v4406 = vunpack.c.h.b16 %v4333
  %v4407 = vunpack.c.l.b16 %v4334
  %v4408 = vunpack.c.h.b16 %v4334
  %v4409 = vunpack.c.l.b16 %v4335
  %v4410 = vunpack.c.h.b16 %v4335
  %v4411 = vunpack.c.l.b16 %v4336
  %v4412 = vunpack.c.h.b16 %v4336
  %v4413 = vunpack.c.l.b16 %v4337
  %v4414 = vunpack.c.h.b16 %v4337
  %v4415 = vunpack.c.l.b16 %v4338
  %v4416 = vunpack.c.h.b16 %v4338
  %v4417 = vunpack.c.l.b16 %v4339
  %v4418 = vunpack.c.h.b16 %v4339
  %v4419 = vunpack.c.l.b16 %v4340
  %v4420 = vunpack.c.h.b16 %v4340
  %v4421 = vunpack.c.l.b16 %v4341
  %v4422 = vunpack.c.h.b16 %v4341
  %v4423 = vunpack.c.l.b16 %v4342
  %v4424 = vunpack.c.h.b16 %v4342
  %v4425 = vunpack.c.l.b16 %v4343
  %v4426 = vunpack.c.h.b16 %v4343
  %v4427 = vunpack.c.l.b16 %v4344
  %v4428 = vunpack.c.h.b16 %v4344
  %v4429 = vunpack.c.l.b16 %v4345
  %v4430 = vunpack.c.h.b16 %v4345
  %v4431 = vunpack.c.l.b16 %v4346
  %v4432 = vunpack.c.h.b16 %v4346
  %v4433 = vunpack.c.l.b16 %v4347
  %v4434 = vunpack.c.h.b16 %v4347
  %v4435 = vunpack.c.l.b16 %v4348
  %v4436 = vunpack.c.h.b16 %v4348
  %v4437 = vunpack.c.l.b16 %v4349
  %v4438 = vunpack.c.h.b16 %v4349
  %v4439 = vunpack.c.l.b16 %v4350
  %v4440 = vunpack.c.h.b16 %v4350
  %v4441 = vunpack.c.l.b16 %v4351
  %v4442 = vunpack.c.h.b16 %v4351
  %v4443 = vunpack.c.l.b16 %v4352
  %v4444 = vunpack.c.h.b16 %v4352
  %v4445 = vunpack.c.l.b16 %v4353
  %v4446 = vunpack.c.h.b16 %v4353
  %v4447 = vunpack.c.l.b16 %v4354
  %v4448 = vunpack.c.h.b16 %v4354
  %v4449 = vunpack.c.l.b16 %v4355
  %v4450 = vunpack.c.h.b16 %v4355
  %v4451 = vunpack.c.l.b16 %v4356
  %v4452 = vunpack.c.h.b16 %v4356
  %v4453 = vunpack.c.l.b16 %v4357
  %v4454 = vunpack.c.h.b16 %v4357
  %v4455 = vunpack.c.l.b16 %v4358
  %v4456 = vunpack.c.h.b16 %v4358
  %v4457 = vunpack.c.l.b16 %v4359
  %v4458 = vunpack.c.h.b16 %v4359
  %v4459 = vunpack.c.l.b16 %v4360
  %v4460 = vunpack.c.h.b16 %v4360
  %v4461 = vpack.c.b16 %v4401, %v4397
  %v4462 = vpack.c.b16 %v4402, %v4398
  %v4463 = vpack.c.b16 %v4403, %v4399
  %v4464 = vpack.c.b16 %v4404, %v4400
  %v4465 = vpack.c.b16 %v4409, %v4405
  %v4466 = vpack.c.b16 %v4410, %v4406
  %v4467 = vpack.c.b16 %v4411, %v4407
  %v4468 = vpack.c.b16 %v4412, %v4408
  %v4469 = vpack.c.b16 %v4417, %v4413
  %v4470 = vpack.c.b16 %v4418, %v4414
  %v4471 = vpack.c.b16 %v4419, %v4415
  %v4472 = vpack.c.b16 %v4420, %v4416
  %v4473 = vpack.c.b16 %v4425, %v4421
  %v4474 = vpack.c.b16 %v4426, %v4422
  %v4475 = vpack.c.b16 %v4427, %v4423
  %v4476 = vpack.c.b16 %v4428, %v4424
  %v4477 = vpack.c.b16 %v4433, %v4429
  %v4478 = vpack.c.b16 %v4434, %v4430
  %v4479 = vpack.c.b16 %v4435, %v4431
  %v4480 = vpack.c.b16 %v4436, %v4432
  %v4481 = vpack.c.b16 %v4441, %v4437
  %v4482 = vpack.c.b16 %v4442, %v4438
  %v4483 = vpack.c.b16 %v4443, %v4439
  %v4484 = vpack.c.b16 %v4444, %v4440
  %v4485 = vpack.c.b16 %v4449, %v4445
  %v4486 = vpack.c.b16 %v4450, %v4446
  %v4487 = vpack.c.b16 %v4451, %v4447
  %v4488 = vpack.c.b16 %v4452, %v4448
  %v4489 = vpack.c.b16 %v4457, %v4453
  %v4490 = vpack.c.b16 %v4458, %v4454
  %v4491 = vpack.c.b16 %v4459, %v4455
  %v4492 = vpack.c.b16 %v4460, %v4456
  %v4529 = vrot.slane %v4361, 4
  %v4530 = vrot.slane %v4362, 4
  %v4531 = vrot.slane %v4363, 4
  %v4532 = vrot.slane %v4364, 4
  %4537 = vmatpush.bf16.msra.mxu0 %v4489
  %4538 = vmatpush.bf16.msra.mxu0 %v4485
  %4539 = vmatpush.bf16.msra.mxu0 %v4481
  %4540 = vmatpush.bf16.msra.mxu0 %v4477
  %4541 = vmatpush.bf16.msra.mxu0 %v4473
  %4542 = vmatpush.bf16.msra.mxu0 %v4469
  %4543 = vmatpush.bf16.msra.mxu0 %v4465
  %4544 = vmatpush.bf16.msra.mxu0 %v4461
  %4545 = vmatmul.bf16.gmra.mxu0 %v4328
  %v4546 = vpop.f32.mrf.mxu0
  %v4547 = vadd.f32 %v4529, %v4546
  %v4548 = vpop.f32.mrf.mxu0
  %4549 = vdwg.mxu0
  %4550 = vmatpush.bf16.msra.mxu0 %v4490
  %4551 = vmatpush.bf16.msra.mxu0 %v4486
  %4552 = vmatpush.bf16.msra.mxu0 %v4482
  %4553 = vmatpush.bf16.msra.mxu0 %v4478
  %4554 = vmatpush.bf16.msra.mxu0 %v4474
  %4555 = vmatpush.bf16.msra.mxu0 %v4470
  %4556 = vmatpush.bf16.msra.mxu0 %v4466
  %4557 = vmatpush.bf16.msra.mxu0 %v4462
  %4558 = vmatmul.bf16.gmra.mxu0 %v4328
  %v4559 = vpop.f32.mrf.mxu0
  %v4560 = vadd.f32 %v4530, %v4559
  %v4561 = vpop.f32.mrf.mxu0
  %4562 = vdwg.mxu0
  %4563 = vmatpush.bf16.msra.mxu0 %v4491
  %4564 = vmatpush.bf16.msra.mxu0 %v4487
  %4565 = vmatpush.bf16.msra.mxu0 %v4483
  %4566 = vmatpush.bf16.msra.mxu0 %v4479
  %4567 = vmatpush.bf16.msra.mxu0 %v4475
  %4568 = vmatpush.bf16.msra.mxu0 %v4471
  %4569 = vmatpush.bf16.msra.mxu0 %v4467
  %4570 = vmatpush.bf16.msra.mxu0 %v4463
  %4571 = vmatmul.bf16.gmra.mxu0 %v4328
  %v4572 = vpop.f32.mrf.mxu0
  %v4573 = vadd.f32 %v4531, %v4572
  %v4574 = vpop.f32.mrf.mxu0
  %4575 = vdwg.mxu0
  %4576 = vmatpush.bf16.msra.mxu0 %v4492
  %4577 = vmatpush.bf16.msra.mxu0 %v4488
  %4578 = vmatpush.bf16.msra.mxu0 %v4484
  %4579 = vmatpush.bf16.msra.mxu0 %v4480
  %4580 = vmatpush.bf16.msra.mxu0 %v4476
  %4581 = vmatpush.bf16.msra.mxu0 %v4472
  %4582 = vmatpush.bf16.msra.mxu0 %v4468
  %4583 = vmatpush.bf16.msra.mxu0 %v4464
  %4584 = vmatmul.bf16.gmra.mxu0 %v4328
  %v4585 = vpop.f32.mrf.mxu0
  %v4586 = vadd.f32 %v4532, %v4585
  %v4587 = vpop.f32.mrf.mxu0
  %4588 = vdwg.mxu0
  %v4589 = vld [vmem:[%s4] sm:$0xff]
  %v4590 = vld [vmem:[%s4 + $0x8] sm:$0xff]
  %v4591 = vld [vmem:[%s4 + $0x10] sm:$0xff]
  %v4592 = vld [vmem:[%s4 + $0x18] sm:$0xff]
  %v4593 = vld [vmem:[%s4 + $0x20] sm:$0xff]
  %v4594 = vld [vmem:[%s4 + $0x28] sm:$0xff]
  %v4595 = vld [vmem:[%s4 + $0x30] sm:$0xff]
  %v4596 = vld [vmem:[%s4 + $0x38] sm:$0xff]
  %v4597 = vld [vmem:[%s4 + $0x40] sm:$0xff]
  %v4598 = vld [vmem:[%s4 + $0x48] sm:$0xff]
  %v4599 = vld [vmem:[%s4 + $0x50] sm:$0xff]
  %v4600 = vld [vmem:[%s4 + $0x58] sm:$0xff]
  %v4601 = vld [vmem:[%s4 + $0x60] sm:$0xff]
  %v4602 = vld [vmem:[%s4 + $0x68] sm:$0xff]
  %v4603 = vld [vmem:[%s4 + $0x70] sm:$0xff]
  %v4604 = vld [vmem:[%s4 + $0x78] sm:$0xff]
  %v4605 = vld [vmem:[%s4 + $0x80] sm:$0xff]
  %v4606 = vld [vmem:[%s4 + $0x88] sm:$0xff]
  %v4607 = vld [vmem:[%s4 + $0x90] sm:$0xff]
  %v4608 = vld [vmem:[%s4 + $0x98] sm:$0xff]
  %v4609 = vld [vmem:[%s4 + $0xa0] sm:$0xff]
  %v4610 = vld [vmem:[%s4 + $0xa8] sm:$0xff]
  %v4611 = vld [vmem:[%s4 + $0xb0] sm:$0xff]
  %v4612 = vld [vmem:[%s4 + $0xb8] sm:$0xff]
  %v4613 = vld [vmem:[%s4 + $0xc0] sm:$0xff]
  %v4614 = vld [vmem:[%s4 + $0xc8] sm:$0xff]
  %v4615 = vld [vmem:[%s4 + $0xd0] sm:$0xff]
  %v4616 = vld [vmem:[%s4 + $0xd8] sm:$0xff]
  %v4617 = vld [vmem:[%s4 + $0xe0] sm:$0xff]
  %v4618 = vld [vmem:[%s4 + $0xe8] sm:$0xff]
  %v4619 = vld [vmem:[%s4 + $0xf0] sm:$0xff]
  %v4620 = vld [vmem:[%s4 + $0xf8] sm:$0xff]
  %v4621 = vld [vmem:[#allocation4 + $0x20] sm:$0xc]
  %v4622 = vld [vmem:[#allocation4 + $0x28] sm:$0xc]
  %v4623 = vld [vmem:[#allocation4 + $0x30] sm:$0xc]
  %v4624 = vld [vmem:[#allocation4 + $0x38] sm:$0xc]
  %v4626 = vrot.slane %v4328, 1
  %v4660 = vunpack.c.l.b16 %v4589
  %v4661 = vunpack.c.h.b16 %v4589
  %v4662 = vunpack.c.l.b16 %v4590
  %v4663 = vunpack.c.h.b16 %v4590
  %v4664 = vunpack.c.l.b16 %v4591
  %v4665 = vunpack.c.h.b16 %v4591
  %v4666 = vunpack.c.l.b16 %v4592
  %v4667 = vunpack.c.h.b16 %v4592
  %v4668 = vunpack.c.l.b16 %v4593
  %v4669 = vunpack.c.h.b16 %v4593
  %v4670 = vunpack.c.l.b16 %v4594
  %v4671 = vunpack.c.h.b16 %v4594
  %v4672 = vunpack.c.l.b16 %v4595
  %v4673 = vunpack.c.h.b16 %v4595
  %v4674 = vunpack.c.l.b16 %v4596
  %v4675 = vunpack.c.h.b16 %v4596
  %v4676 = vunpack.c.l.b16 %v4597
  %v4677 = vunpack.c.h.b16 %v4597
  %v4678 = vunpack.c.l.b16 %v4598
  %v4679 = vunpack.c.h.b16 %v4598
  %v4680 = vunpack.c.l.b16 %v4599
  %v4681 = vunpack.c.h.b16 %v4599
  %v4682 = vunpack.c.l.b16 %v4600
  %v4683 = vunpack.c.h.b16 %v4600
  %v4684 = vunpack.c.l.b16 %v4601
  %v4685 = vunpack.c.h.b16 %v4601
  %v4686 = vunpack.c.l.b16 %v4602
  %v4687 = vunpack.c.h.b16 %v4602
  %v4688 = vunpack.c.l.b16 %v4603
  %v4689 = vunpack.c.h.b16 %v4603
  %v4690 = vunpack.c.l.b16 %v4604
  %v4691 = vunpack.c.h.b16 %v4604
  %v4692 = vunpack.c.l.b16 %v4605
  %v4693 = vunpack.c.h.b16 %v4605
  %v4694 = vunpack.c.l.b16 %v4606
  %v4695 = vunpack.c.h.b16 %v4606
  %v4696 = vunpack.c.l.b16 %v4607
  %v4697 = vunpack.c.h.b16 %v4607
  %v4698 = vunpack.c.l.b16 %v4608
  %v4699 = vunpack.c.h.b16 %v4608
  %v4700 = vunpack.c.l.b16 %v4609
  %v4701 = vunpack.c.h.b16 %v4609
  %v4702 = vunpack.c.l.b16 %v4610
  %v4703 = vunpack.c.h.b16 %v4610
  %v4704 = vunpack.c.l.b16 %v4611
  %v4705 = vunpack.c.h.b16 %v4611
  %v4706 = vunpack.c.l.b16 %v4612
  %v4707 = vunpack.c.h.b16 %v4612
  %v4708 = vunpack.c.l.b16 %v4613
  %v4709 = vunpack.c.h.b16 %v4613
  %v4710 = vunpack.c.l.b16 %v4614
  %v4711 = vunpack.c.h.b16 %v4614
  %v4712 = vunpack.c.l.b16 %v4615
  %v4713 = vunpack.c.h.b16 %v4615
  %v4714 = vunpack.c.l.b16 %v4616
  %v4715 = vunpack.c.h.b16 %v4616
  %v4716 = vunpack.c.l.b16 %v4617
  %v4717 = vunpack.c.h.b16 %v4617
  %v4718 = vunpack.c.l.b16 %v4618
  %v4719 = vunpack.c.h.b16 %v4618
  %v4720 = vunpack.c.l.b16 %v4619
  %v4721 = vunpack.c.h.b16 %v4619
  %v4722 = vunpack.c.l.b16 %v4620
  %v4723 = vunpack.c.h.b16 %v4620
  %v4724 = vpack.c.b16 %v4664, %v4660
  %v4725 = vpack.c.b16 %v4665, %v4661
  %v4726 = vpack.c.b16 %v4666, %v4662
  %v4727 = vpack.c.b16 %v4667, %v4663
  %v4728 = vpack.c.b16 %v4672, %v4668
  %v4729 = vpack.c.b16 %v4673, %v4669
  %v4730 = vpack.c.b16 %v4674, %v4670
  %v4731 = vpack.c.b16 %v4675, %v4671
  %v4732 = vpack.c.b16 %v4680, %v4676
  %v4733 = vpack.c.b16 %v4681, %v4677
  %v4734 = vpack.c.b16 %v4682, %v4678
  %v4735 = vpack.c.b16 %v4683, %v4679
  %v4736 = vpack.c.b16 %v4688, %v4684
  %v4737 = vpack.c.b16 %v4689, %v4685
  %v4738 = vpack.c.b16 %v4690, %v4686
  %v4739 = vpack.c.b16 %v4691, %v4687
  %v4740 = vpack.c.b16 %v4696, %v4692
  %v4741 = vpack.c.b16 %v4697, %v4693
  %v4742 = vpack.c.b16 %v4698, %v4694
  %v4743 = vpack.c.b16 %v4699, %v4695
  %v4744 = vpack.c.b16 %v4704, %v4700
  %v4745 = vpack.c.b16 %v4705, %v4701
  %v4746 = vpack.c.b16 %v4706, %v4702
  %v4747 = vpack.c.b16 %v4707, %v4703
  %v4748 = vpack.c.b16 %v4712, %v4708
  %v4749 = vpack.c.b16 %v4713, %v4709
  %v4750 = vpack.c.b16 %v4714, %v4710
  %v4751 = vpack.c.b16 %v4715, %v4711
  %v4752 = vpack.c.b16 %v4720, %v4716
  %v4753 = vpack.c.b16 %v4721, %v4717
  %v4754 = vpack.c.b16 %v4722, %v4718
  %v4755 = vpack.c.b16 %v4723, %v4719
  %v4792 = vrot.slane %v4621, 2
  %v4793 = vrot.slane %v4622, 2
  %v4794 = vrot.slane %v4623, 2
  %v4795 = vrot.slane %v4624, 2
  %4800 = vmatpush.bf16.msra.mxu0 %v4752
  %4801 = vmatpush.bf16.msra.mxu0 %v4748
  %4802 = vmatpush.bf16.msra.mxu0 %v4744
  %4803 = vmatpush.bf16.msra.mxu0 %v4740
  %4804 = vmatpush.bf16.msra.mxu0 %v4736
  %4805 = vmatpush.bf16.msra.mxu0 %v4732
  %4806 = vmatpush.bf16.msra.mxu0 %v4728
  %4807 = vmatpush.bf16.msra.mxu0 %v4724
  %4808 = vmatmul.bf16.gmra.mxu0 %v4626
  %v4809 = vpop.f32.mrf.mxu0
  %v4810 = vadd.f32 %v4792, %v4809
  %v4811 = vpop.f32.mrf.mxu0
  %4812 = vdwg.mxu0
  %4813 = vmatpush.bf16.msra.mxu0 %v4753
  %4814 = vmatpush.bf16.msra.mxu0 %v4749
  %4815 = vmatpush.bf16.msra.mxu0 %v4745
  %4816 = vmatpush.bf16.msra.mxu0 %v4741
  %4817 = vmatpush.bf16.msra.mxu0 %v4737
  %4818 = vmatpush.bf16.msra.mxu0 %v4733
  %4819 = vmatpush.bf16.msra.mxu0 %v4729
  %4820 = vmatpush.bf16.msra.mxu0 %v4725
  %4821 = vmatmul.bf16.gmra.mxu0 %v4626
  %v4822 = vpop.f32.mrf.mxu0
  %v4823 = vadd.f32 %v4793, %v4822
  %v4824 = vpop.f32.mrf.mxu0
  %4825 = vdwg.mxu0
  %4826 = vmatpush.bf16.msra.mxu0 %v4754
  %4827 = vmatpush.bf16.msra.mxu0 %v4750
  %4828 = vmatpush.bf16.msra.mxu0 %v4746
  %4829 = vmatpush.bf16.msra.mxu0 %v4742
  %4830 = vmatpush.bf16.msra.mxu0 %v4738
  %4831 = vmatpush.bf16.msra.mxu0 %v4734
  %4832 = vmatpush.bf16.msra.mxu0 %v4730
  %4833 = vmatpush.bf16.msra.mxu0 %v4726
  %4834 = vmatmul.bf16.gmra.mxu0 %v4626
  %v4835 = vpop.f32.mrf.mxu0
  %v4836 = vadd.f32 %v4794, %v4835
  %v4837 = vpop.f32.mrf.mxu0
  %4838 = vdwg.mxu0
  %4839 = vmatpush.bf16.msra.mxu0 %v4755
  %4840 = vmatpush.bf16.msra.mxu0 %v4751
  %4841 = vmatpush.bf16.msra.mxu0 %v4747
  %4842 = vmatpush.bf16.msra.mxu0 %v4743
  %4843 = vmatpush.bf16.msra.mxu0 %v4739
  %4844 = vmatpush.bf16.msra.mxu0 %v4735
  %4845 = vmatpush.bf16.msra.mxu0 %v4731
  %4846 = vmatpush.bf16.msra.mxu0 %v4727
  %4847 = vmatmul.bf16.gmra.mxu0 %v4626
  %v4848 = vpop.f32.mrf.mxu0
  %v4849 = vadd.f32 %v4795, %v4848
  %v4850 = vpop.f32.mrf.mxu0
  %4851 = vdwg.mxu0
  %v4856 = vrot.slane %v4810, 6
  %v4857 = vrot.slane %v4823, 6
  %v4858 = vrot.slane %v4836, 6
  %v4859 = vrot.slane %v4849, 6
  %v4864 = vsel %vm1239, %v4547, %v4856
  %v4865 = vsel %vm1239, %v4560, %v4857
  %v4866 = vsel %vm1239, %v4573, %v4858
  %v4867 = vsel %vm1239, %v4586, %v4859
  %v4868 = vxor.u32 %v4864, 2147483648
  %v4869 = vmul.f32 %v4868, 1.442695
  %v4870 = vpow.pop %v4869
  %v4871 = vadd.f32 %v4870, 1.0
  %v4872 = vrcp.pop %v4871
  %v4873 = vmul.f32 %v4871, %v4872
  %v4874 = vsub.f32 1.0, %v4873
  %v4875 = vmul.f32 %v4872, %v4874
  %v4876 = vadd.f32 %v4872, %v4875
  %vm4877 = vweird.f32 %v4871
  %vm4878 = vweird.f32 %v4872
  %vm4879 = vmor %vm4877, %vm4878
  %v4880 = vsel %vm4879, %v4872, %v4876
  %v4881 = vand.u32 2147483647, %v4871
  %vm4882 = vcmp.eq.f32.partialorder %v4881, 8.507059e+37
  %v4883 = vand.u32 %v4871, 2147483648
  %v4884 = vor.u32 1.1754944e-38, %v4883
  %v4885 = vsel %vm4882, %v4884, %v4880
  %v4886 = vmul.f32 1.0, %v4885
  %v4887 = vxor.u32 %v4865, 2147483648
  %v4888 = vmul.f32 %v4887, 1.442695
  %v4889 = vpow.pop %v4888
  %v4890 = vadd.f32 %v4889, 1.0
  %v4891 = vrcp.pop %v4890
  %v4892 = vmul.f32 %v4890, %v4891
  %v4893 = vsub.f32 1.0, %v4892
  %v4894 = vmul.f32 %v4891, %v4893
  %v4895 = vadd.f32 %v4891, %v4894
  %vm4896 = vweird.f32 %v4890
  %vm4897 = vweird.f32 %v4891
  %vm4898 = vmor %vm4896, %vm4897
  %v4899 = vsel %vm4898, %v4891, %v4895
  %v4900 = vand.u32 2147483647, %v4890
  %vm4901 = vcmp.eq.f32.partialorder %v4900, 8.507059e+37
  %v4902 = vand.u32 %v4890, 2147483648
  %v4903 = vor.u32 1.1754944e-38, %v4902
  %v4904 = vsel %vm4901, %v4903, %v4899
  %v4905 = vmul.f32 1.0, %v4904
  %v4906 = vtanh.pop %v4866
  %v4907 = vxor.u32 %v4867, 2147483648
  %v4908 = vmul.f32 %v4907, 1.442695
  %v4909 = vpow.pop %v4908
  %v4910 = vadd.f32 %v4909, 1.0
  %v4911 = vrcp.pop %v4910
  %v4912 = vmul.f32 %v4910, %v4911
  %v4913 = vsub.f32 1.0, %v4912
  %v4914 = vmul.f32 %v4911, %v4913
  %v4915 = vadd.f32 %v4911, %v4914
  %vm4916 = vweird.f32 %v4910
  %vm4917 = vweird.f32 %v4911
  %vm4918 = vmor %vm4916, %vm4917
  %v4919 = vsel %vm4918, %v4911, %v4915
  %v4920 = vand.u32 2147483647, %v4910
  %vm4921 = vcmp.eq.f32.partialorder %v4920, 8.507059e+37
  %v4922 = vand.u32 %v4910, 2147483648
  %v4923 = vor.u32 1.1754944e-38, %v4922
  %v4924 = vsel %vm4921, %v4923, %v4919
  %v4925 = vmul.f32 1.0, %v4924
  %v4926 = vmul.f32 %v4905, %v4320
  %v4927 = vmul.f32 %v4886, %v4906
  %v4928 = vadd.f32 %v4926, %v4927
  %v4929 = vtanh.pop %v4928
  %v4930 = vmul.f32 %v4925, %v4929
  %v4932 = vrot.slane %v4930, 4
  %4934 = vst [vmem:[#allocation2 + $0x10] sm:$0x30] %v4932
  %4935 = vst [vmem:[#allocation2 + $0x8] sm:$0xc] %v4930
  %v4936 = vpack.c.bf16 %v4930, %v4930
  %v4937 = vld [vmem:[%s3] sm:$0xff]
  %v4938 = vld [vmem:[%s3 + $0x8] sm:$0xff]
  %v4939 = vld [vmem:[%s3 + $0x10] sm:$0xff]
  %v4940 = vld [vmem:[%s3 + $0x18] sm:$0xff]
  %v4941 = vld [vmem:[%s3 + $0x20] sm:$0xff]
  %v4942 = vld [vmem:[%s3 + $0x28] sm:$0xff]
  %v4943 = vld [vmem:[%s3 + $0x30] sm:$0xff]
  %v4944 = vld [vmem:[%s3 + $0x38] sm:$0xff]
  %v4945 = vld [vmem:[%s3 + $0x40] sm:$0xff]
  %v4946 = vld [vmem:[%s3 + $0x48] sm:$0xff]
  %v4947 = vld [vmem:[%s3 + $0x50] sm:$0xff]
  %v4948 = vld [vmem:[%s3 + $0x58] sm:$0xff]
  %v4949 = vld [vmem:[%s3 + $0x60] sm:$0xff]
  %v4950 = vld [vmem:[%s3 + $0x68] sm:$0xff]
  %v4951 = vld [vmem:[%s3 + $0x70] sm:$0xff]
  %v4952 = vld [vmem:[%s3 + $0x78] sm:$0xff]
  %v4953 = vld [vmem:[%s3 + $0x80] sm:$0xff]
  %v4954 = vld [vmem:[%s3 + $0x88] sm:$0xff]
  %v4955 = vld [vmem:[%s3 + $0x90] sm:$0xff]
  %v4956 = vld [vmem:[%s3 + $0x98] sm:$0xff]
  %v4957 = vld [vmem:[%s3 + $0xa0] sm:$0xff]
  %v4958 = vld [vmem:[%s3 + $0xa8] sm:$0xff]
  %v4959 = vld [vmem:[%s3 + $0xb0] sm:$0xff]
  %v4960 = vld [vmem:[%s3 + $0xb8] sm:$0xff]
  %v4961 = vld [vmem:[%s3 + $0xc0] sm:$0xff]
  %v4962 = vld [vmem:[%s3 + $0xc8] sm:$0xff]
  %v4963 = vld [vmem:[%s3 + $0xd0] sm:$0xff]
  %v4964 = vld [vmem:[%s3 + $0xd8] sm:$0xff]
  %v4965 = vld [vmem:[%s3 + $0xe0] sm:$0xff]
  %v4966 = vld [vmem:[%s3 + $0xe8] sm:$0xff]
  %v4967 = vld [vmem:[%s3 + $0xf0] sm:$0xff]
  %v4968 = vld [vmem:[%s3 + $0xf8] sm:$0xff]
  %v4969 = vld [vmem:[#allocation4 + $0x40] sm:$0xc0]
  %v4970 = vld [vmem:[#allocation4 + $0x48] sm:$0xc0]
  %v4971 = vld [vmem:[#allocation4 + $0x50] sm:$0xc0]
  %v4972 = vld [vmem:[#allocation4 + $0x58] sm:$0xc0]
  %v5005 = vunpack.c.l.b16 %v4937
  %v5006 = vunpack.c.h.b16 %v4937
  %v5007 = vunpack.c.l.b16 %v4938
  %v5008 = vunpack.c.h.b16 %v4938
  %v5009 = vunpack.c.l.b16 %v4939
  %v5010 = vunpack.c.h.b16 %v4939
  %v5011 = vunpack.c.l.b16 %v4940
  %v5012 = vunpack.c.h.b16 %v4940
  %v5013 = vunpack.c.l.b16 %v4941
  %v5014 = vunpack.c.h.b16 %v4941
  %v5015 = vunpack.c.l.b16 %v4942
  %v5016 = vunpack.c.h.b16 %v4942
  %v5017 = vunpack.c.l.b16 %v4943
  %v5018 = vunpack.c.h.b16 %v4943
  %v5019 = vunpack.c.l.b16 %v4944
  %v5020 = vunpack.c.h.b16 %v4944
  %v5021 = vunpack.c.l.b16 %v4945
  %v5022 = vunpack.c.h.b16 %v4945
  %v5023 = vunpack.c.l.b16 %v4946
  %v5024 = vunpack.c.h.b16 %v4946
  %v5025 = vunpack.c.l.b16 %v4947
  %v5026 = vunpack.c.h.b16 %v4947
  %v5027 = vunpack.c.l.b16 %v4948
  %v5028 = vunpack.c.h.b16 %v4948
  %v5029 = vunpack.c.l.b16 %v4949
  %v5030 = vunpack.c.h.b16 %v4949
  %v5031 = vunpack.c.l.b16 %v4950
  %v5032 = vunpack.c.h.b16 %v4950
  %v5033 = vunpack.c.l.b16 %v4951
  %v5034 = vunpack.c.h.b16 %v4951
  %v5035 = vunpack.c.l.b16 %v4952
  %v5036 = vunpack.c.h.b16 %v4952
  %v5037 = vunpack.c.l.b16 %v4953
  %v5038 = vunpack.c.h.b16 %v4953
  %v5039 = vunpack.c.l.b16 %v4954
  %v5040 = vunpack.c.h.b16 %v4954
  %v5041 = vunpack.c.l.b16 %v4955
  %v5042 = vunpack.c.h.b16 %v4955
  %v5043 = vunpack.c.l.b16 %v4956
  %v5044 = vunpack.c.h.b16 %v4956
  %v5045 = vunpack.c.l.b16 %v4957
  %v5046 = vunpack.c.h.b16 %v4957
  %v5047 = vunpack.c.l.b16 %v4958
  %v5048 = vunpack.c.h.b16 %v4958
  %v5049 = vunpack.c.l.b16 %v4959
  %v5050 = vunpack.c.h.b16 %v4959
  %v5051 = vunpack.c.l.b16 %v4960
  %v5052 = vunpack.c.h.b16 %v4960
  %v5053 = vunpack.c.l.b16 %v4961
  %v5054 = vunpack.c.h.b16 %v4961
  %v5055 = vunpack.c.l.b16 %v4962
  %v5056 = vunpack.c.h.b16 %v4962
  %v5057 = vunpack.c.l.b16 %v4963
  %v5058 = vunpack.c.h.b16 %v4963
  %v5059 = vunpack.c.l.b16 %v4964
  %v5060 = vunpack.c.h.b16 %v4964
  %v5061 = vunpack.c.l.b16 %v4965
  %v5062 = vunpack.c.h.b16 %v4965
  %v5063 = vunpack.c.l.b16 %v4966
  %v5064 = vunpack.c.h.b16 %v4966
  %v5065 = vunpack.c.l.b16 %v4967
  %v5066 = vunpack.c.h.b16 %v4967
  %v5067 = vunpack.c.l.b16 %v4968
  %v5068 = vunpack.c.h.b16 %v4968
  %v5069 = vpack.c.b16 %v5009, %v5005
  %v5070 = vpack.c.b16 %v5010, %v5006
  %v5071 = vpack.c.b16 %v5011, %v5007
  %v5072 = vpack.c.b16 %v5012, %v5008
  %v5073 = vpack.c.b16 %v5017, %v5013
  %v5074 = vpack.c.b16 %v5018, %v5014
  %v5075 = vpack.c.b16 %v5019, %v5015
  %v5076 = vpack.c.b16 %v5020, %v5016
  %v5077 = vpack.c.b16 %v5025, %v5021
  %v5078 = vpack.c.b16 %v5026, %v5022
  %v5079 = vpack.c.b16 %v5027, %v5023
  %v5080 = vpack.c.b16 %v5028, %v5024
  %v5081 = vpack.c.b16 %v5033, %v5029
  %v5082 = vpack.c.b16 %v5034, %v5030
  %v5083 = vpack.c.b16 %v5035, %v5031
  %v5084 = vpack.c.b16 %v5036, %v5032
  %v5085 = vpack.c.b16 %v5041, %v5037
  %v5086 = vpack.c.b16 %v5042, %v5038
  %v5087 = vpack.c.b16 %v5043, %v5039
  %v5088 = vpack.c.b16 %v5044, %v5040
  %v5089 = vpack.c.b16 %v5049, %v5045
  %v5090 = vpack.c.b16 %v5050, %v5046
  %v5091 = vpack.c.b16 %v5051, %v5047
  %v5092 = vpack.c.b16 %v5052, %v5048
  %v5093 = vpack.c.b16 %v5057, %v5053
  %v5094 = vpack.c.b16 %v5058, %v5054
  %v5095 = vpack.c.b16 %v5059, %v5055
  %v5096 = vpack.c.b16 %v5060, %v5056
  %v5097 = vpack.c.b16 %v5065, %v5061
  %v5098 = vpack.c.b16 %v5066, %v5062
  %v5099 = vpack.c.b16 %v5067, %v5063
  %v5100 = vpack.c.b16 %v5068, %v5064
  %v5137 = vrot.slane %v4969, 6
  %v5138 = vrot.slane %v4970, 6
  %v5139 = vrot.slane %v4971, 6
  %v5140 = vrot.slane %v4972, 6
  %5145 = vmatpush.bf16.msra.mxu0 %v5097
  %5146 = vmatpush.bf16.msra.mxu0 %v5093
  %5147 = vmatpush.bf16.msra.mxu0 %v5089
  %5148 = vmatpush.bf16.msra.mxu0 %v5085
  %5149 = vmatpush.bf16.msra.mxu0 %v5081
  %5150 = vmatpush.bf16.msra.mxu0 %v5077
  %5151 = vmatpush.bf16.msra.mxu0 %v5073
  %5152 = vmatpush.bf16.msra.mxu0 %v5069
  %5153 = vmatmul.bf16.gmra.mxu0 %v4936
  %v5154 = vpop.f32.mrf.mxu0
  %v5155 = vadd.f32 %v5137, %v5154
  %v5156 = vpop.f32.mrf.mxu0
  %5157 = vdwg.mxu0
  %5158 = vmatpush.bf16.msra.mxu0 %v5098
  %5159 = vmatpush.bf16.msra.mxu0 %v5094
  %5160 = vmatpush.bf16.msra.mxu0 %v5090
  %5161 = vmatpush.bf16.msra.mxu0 %v5086
  %5162 = vmatpush.bf16.msra.mxu0 %v5082
  %5163 = vmatpush.bf16.msra.mxu0 %v5078
  %5164 = vmatpush.bf16.msra.mxu0 %v5074
  %5165 = vmatpush.bf16.msra.mxu0 %v5070
  %5166 = vmatmul.bf16.gmra.mxu0 %v4936
  %v5167 = vpop.f32.mrf.mxu0
  %v5168 = vadd.f32 %v5138, %v5167
  %v5169 = vpop.f32.mrf.mxu0
  %5170 = vdwg.mxu0
  %5171 = vmatpush.bf16.msra.mxu0 %v5099
  %5172 = vmatpush.bf16.msra.mxu0 %v5095
  %5173 = vmatpush.bf16.msra.mxu0 %v5091
  %5174 = vmatpush.bf16.msra.mxu0 %v5087
  %5175 = vmatpush.bf16.msra.mxu0 %v5083
  %5176 = vmatpush.bf16.msra.mxu0 %v5079
  %5177 = vmatpush.bf16.msra.mxu0 %v5075
  %5178 = vmatpush.bf16.msra.mxu0 %v5071
  %5179 = vmatmul.bf16.gmra.mxu0 %v4936
  %v5180 = vpop.f32.mrf.mxu0
  %v5181 = vadd.f32 %v5139, %v5180
  %v5182 = vpop.f32.mrf.mxu0
  %5183 = vdwg.mxu0
  %5184 = vmatpush.bf16.msra.mxu0 %v5100
  %5185 = vmatpush.bf16.msra.mxu0 %v5096
  %5186 = vmatpush.bf16.msra.mxu0 %v5092
  %5187 = vmatpush.bf16.msra.mxu0 %v5088
  %5188 = vmatpush.bf16.msra.mxu0 %v5084
  %5189 = vmatpush.bf16.msra.mxu0 %v5080
  %5190 = vmatpush.bf16.msra.mxu0 %v5076
  %5191 = vmatpush.bf16.msra.mxu0 %v5072
  %5192 = vmatmul.bf16.gmra.mxu0 %v4936
  %v5193 = vpop.f32.mrf.mxu0
  %v5194 = vadd.f32 %v5140, %v5193
  %v5195 = vpop.f32.mrf.mxu0
  %5196 = vdwg.mxu0
  %v5197 = vld [vmem:[%s4] sm:$0xff]
  %v5198 = vld [vmem:[%s4 + $0x8] sm:$0xff]
  %v5199 = vld [vmem:[%s4 + $0x10] sm:$0xff]
  %v5200 = vld [vmem:[%s4 + $0x18] sm:$0xff]
  %v5201 = vld [vmem:[%s4 + $0x20] sm:$0xff]
  %v5202 = vld [vmem:[%s4 + $0x28] sm:$0xff]
  %v5203 = vld [vmem:[%s4 + $0x30] sm:$0xff]
  %v5204 = vld [vmem:[%s4 + $0x38] sm:$0xff]
  %v5205 = vld [vmem:[%s4 + $0x40] sm:$0xff]
  %v5206 = vld [vmem:[%s4 + $0x48] sm:$0xff]
  %v5207 = vld [vmem:[%s4 + $0x50] sm:$0xff]
  %v5208 = vld [vmem:[%s4 + $0x58] sm:$0xff]
  %v5209 = vld [vmem:[%s4 + $0x60] sm:$0xff]
  %v5210 = vld [vmem:[%s4 + $0x68] sm:$0xff]
  %v5211 = vld [vmem:[%s4 + $0x70] sm:$0xff]
  %v5212 = vld [vmem:[%s4 + $0x78] sm:$0xff]
  %v5213 = vld [vmem:[%s4 + $0x80] sm:$0xff]
  %v5214 = vld [vmem:[%s4 + $0x88] sm:$0xff]
  %v5215 = vld [vmem:[%s4 + $0x90] sm:$0xff]
  %v5216 = vld [vmem:[%s4 + $0x98] sm:$0xff]
  %v5217 = vld [vmem:[%s4 + $0xa0] sm:$0xff]
  %v5218 = vld [vmem:[%s4 + $0xa8] sm:$0xff]
  %v5219 = vld [vmem:[%s4 + $0xb0] sm:$0xff]
  %v5220 = vld [vmem:[%s4 + $0xb8] sm:$0xff]
  %v5221 = vld [vmem:[%s4 + $0xc0] sm:$0xff]
  %v5222 = vld [vmem:[%s4 + $0xc8] sm:$0xff]
  %v5223 = vld [vmem:[%s4 + $0xd0] sm:$0xff]
  %v5224 = vld [vmem:[%s4 + $0xd8] sm:$0xff]
  %v5225 = vld [vmem:[%s4 + $0xe0] sm:$0xff]
  %v5226 = vld [vmem:[%s4 + $0xe8] sm:$0xff]
  %v5227 = vld [vmem:[%s4 + $0xf0] sm:$0xff]
  %v5228 = vld [vmem:[%s4 + $0xf8] sm:$0xff]
  %v5229 = vld [vmem:[#allocation4 + $0x20] sm:$0x3]
  %v5230 = vld [vmem:[#allocation4 + $0x28] sm:$0x3]
  %v5231 = vld [vmem:[#allocation4 + $0x30] sm:$0x3]
  %v5232 = vld [vmem:[#allocation4 + $0x38] sm:$0x3]
  %v5234 = vrot.slane %v4936, 1
  %v5268 = vunpack.c.l.b16 %v5197
  %v5269 = vunpack.c.h.b16 %v5197
  %v5270 = vunpack.c.l.b16 %v5198
  %v5271 = vunpack.c.h.b16 %v5198
  %v5272 = vunpack.c.l.b16 %v5199
  %v5273 = vunpack.c.h.b16 %v5199
  %v5274 = vunpack.c.l.b16 %v5200
  %v5275 = vunpack.c.h.b16 %v5200
  %v5276 = vunpack.c.l.b16 %v5201
  %v5277 = vunpack.c.h.b16 %v5201
  %v5278 = vunpack.c.l.b16 %v5202
  %v5279 = vunpack.c.h.b16 %v5202
  %v5280 = vunpack.c.l.b16 %v5203
  %v5281 = vunpack.c.h.b16 %v5203
  %v5282 = vunpack.c.l.b16 %v5204
  %v5283 = vunpack.c.h.b16 %v5204
  %v5284 = vunpack.c.l.b16 %v5205
  %v5285 = vunpack.c.h.b16 %v5205
  %v5286 = vunpack.c.l.b16 %v5206
  %v5287 = vunpack.c.h.b16 %v5206
  %v5288 = vunpack.c.l.b16 %v5207
  %v5289 = vunpack.c.h.b16 %v5207
  %v5290 = vunpack.c.l.b16 %v5208
  %v5291 = vunpack.c.h.b16 %v5208
  %v5292 = vunpack.c.l.b16 %v5209
  %v5293 = vunpack.c.h.b16 %v5209
  %v5294 = vunpack.c.l.b16 %v5210
  %v5295 = vunpack.c.h.b16 %v5210
  %v5296 = vunpack.c.l.b16 %v5211
  %v5297 = vunpack.c.h.b16 %v5211
  %v5298 = vunpack.c.l.b16 %v5212
  %v5299 = vunpack.c.h.b16 %v5212
  %v5300 = vunpack.c.l.b16 %v5213
  %v5301 = vunpack.c.h.b16 %v5213
  %v5302 = vunpack.c.l.b16 %v5214
  %v5303 = vunpack.c.h.b16 %v5214
  %v5304 = vunpack.c.l.b16 %v5215
  %v5305 = vunpack.c.h.b16 %v5215
  %v5306 = vunpack.c.l.b16 %v5216
  %v5307 = vunpack.c.h.b16 %v5216
  %v5308 = vunpack.c.l.b16 %v5217
  %v5309 = vunpack.c.h.b16 %v5217
  %v5310 = vunpack.c.l.b16 %v5218
  %v5311 = vunpack.c.h.b16 %v5218
  %v5312 = vunpack.c.l.b16 %v5219
  %v5313 = vunpack.c.h.b16 %v5219
  %v5314 = vunpack.c.l.b16 %v5220
  %v5315 = vunpack.c.h.b16 %v5220
  %v5316 = vunpack.c.l.b16 %v5221
  %v5317 = vunpack.c.h.b16 %v5221
  %v5318 = vunpack.c.l.b16 %v5222
  %v5319 = vunpack.c.h.b16 %v5222
  %v5320 = vunpack.c.l.b16 %v5223
  %v5321 = vunpack.c.h.b16 %v5223
  %v5322 = vunpack.c.l.b16 %v5224
  %v5323 = vunpack.c.h.b16 %v5224
  %v5324 = vunpack.c.l.b16 %v5225
  %v5325 = vunpack.c.h.b16 %v5225
  %v5326 = vunpack.c.l.b16 %v5226
  %v5327 = vunpack.c.h.b16 %v5226
  %v5328 = vunpack.c.l.b16 %v5227
  %v5329 = vunpack.c.h.b16 %v5227
  %v5330 = vunpack.c.l.b16 %v5228
  %v5331 = vunpack.c.h.b16 %v5228
  %v5332 = vpack.c.b16 %v5272, %v5268
  %v5333 = vpack.c.b16 %v5273, %v5269
  %v5334 = vpack.c.b16 %v5274, %v5270
  %v5335 = vpack.c.b16 %v5275, %v5271
  %v5336 = vpack.c.b16 %v5280, %v5276
  %v5337 = vpack.c.b16 %v5281, %v5277
  %v5338 = vpack.c.b16 %v5282, %v5278
  %v5339 = vpack.c.b16 %v5283, %v5279
  %v5340 = vpack.c.b16 %v5288, %v5284
  %v5341 = vpack.c.b16 %v5289, %v5285
  %v5342 = vpack.c.b16 %v5290, %v5286
  %v5343 = vpack.c.b16 %v5291, %v5287
  %v5344 = vpack.c.b16 %v5296, %v5292
  %v5345 = vpack.c.b16 %v5297, %v5293
  %v5346 = vpack.c.b16 %v5298, %v5294
  %v5347 = vpack.c.b16 %v5299, %v5295
  %v5348 = vpack.c.b16 %v5304, %v5300
  %v5349 = vpack.c.b16 %v5305, %v5301
  %v5350 = vpack.c.b16 %v5306, %v5302
  %v5351 = vpack.c.b16 %v5307, %v5303
  %v5352 = vpack.c.b16 %v5312, %v5308
  %v5353 = vpack.c.b16 %v5313, %v5309
  %v5354 = vpack.c.b16 %v5314, %v5310
  %v5355 = vpack.c.b16 %v5315, %v5311
  %v5356 = vpack.c.b16 %v5320, %v5316
  %v5357 = vpack.c.b16 %v5321, %v5317
  %v5358 = vpack.c.b16 %v5322, %v5318
  %v5359 = vpack.c.b16 %v5323, %v5319
  %v5360 = vpack.c.b16 %v5328, %v5324
  %v5361 = vpack.c.b16 %v5329, %v5325
  %v5362 = vpack.c.b16 %v5330, %v5326
  %v5363 = vpack.c.b16 %v5331, %v5327
  %5396 = vmatpush.bf16.msra.mxu0 %v5360
  %5397 = vmatpush.bf16.msra.mxu0 %v5356
  %5398 = vmatpush.bf16.msra.mxu0 %v5352
  %5399 = vmatpush.bf16.msra.mxu0 %v5348
  %5400 = vmatpush.bf16.msra.mxu0 %v5344
  %5401 = vmatpush.bf16.msra.mxu0 %v5340
  %5402 = vmatpush.bf16.msra.mxu0 %v5336
  %5403 = vmatpush.bf16.msra.mxu0 %v5332
  %5404 = vmatmul.bf16.gmra.mxu0 %v5234
  %v5405 = vpop.f32.mrf.mxu0
  %v5406 = vadd.f32 %v5229, %v5405
  %v5407 = vpop.f32.mrf.mxu0
  %5408 = vdwg.mxu0
  %5409 = vmatpush.bf16.msra.mxu0 %v5361
  %5410 = vmatpush.bf16.msra.mxu0 %v5357
  %5411 = vmatpush.bf16.msra.mxu0 %v5353
  %5412 = vmatpush.bf16.msra.mxu0 %v5349
  %5413 = vmatpush.bf16.msra.mxu0 %v5345
  %5414 = vmatpush.bf16.msra.mxu0 %v5341
  %5415 = vmatpush.bf16.msra.mxu0 %v5337
  %5416 = vmatpush.bf16.msra.mxu0 %v5333
  %5417 = vmatmul.bf16.gmra.mxu0 %v5234
  %v5418 = vpop.f32.mrf.mxu0
  %v5419 = vadd.f32 %v5230, %v5418
  %v5420 = vpop.f32.mrf.mxu0
  %5421 = vdwg.mxu0
  %5422 = vmatpush.bf16.msra.mxu0 %v5362
  %5423 = vmatpush.bf16.msra.mxu0 %v5358
  %5424 = vmatpush.bf16.msra.mxu0 %v5354
  %5425 = vmatpush.bf16.msra.mxu0 %v5350
  %5426 = vmatpush.bf16.msra.mxu0 %v5346
  %5427 = vmatpush.bf16.msra.mxu0 %v5342
  %5428 = vmatpush.bf16.msra.mxu0 %v5338
  %5429 = vmatpush.bf16.msra.mxu0 %v5334
  %5430 = vmatmul.bf16.gmra.mxu0 %v5234
  %v5431 = vpop.f32.mrf.mxu0
  %v5432 = vadd.f32 %v5231, %v5431
  %v5433 = vpop.f32.mrf.mxu0
  %5434 = vdwg.mxu0
  %5435 = vmatpush.bf16.msra.mxu0 %v5363
  %5436 = vmatpush.bf16.msra.mxu0 %v5359
  %5437 = vmatpush.bf16.msra.mxu0 %v5355
  %5438 = vmatpush.bf16.msra.mxu0 %v5351
  %5439 = vmatpush.bf16.msra.mxu0 %v5347
  %5440 = vmatpush.bf16.msra.mxu0 %v5343
  %5441 = vmatpush.bf16.msra.mxu0 %v5339
  %5442 = vmatpush.bf16.msra.mxu0 %v5335
  %5443 = vmatmul.bf16.gmra.mxu0 %v5234
  %v5444 = vpop.f32.mrf.mxu0
  %v5445 = vadd.f32 %v5232, %v5444
  %v5446 = vpop.f32.mrf.mxu0
  %5447 = vdwg.mxu0
  %v5452 = vrot.slane %v5406, 6
  %v5453 = vrot.slane %v5419, 6
  %v5454 = vrot.slane %v5432, 6
  %v5455 = vrot.slane %v5445, 6
  %v5460 = vsel %vm1239, %v5155, %v5452
  %v5461 = vsel %vm1239, %v5168, %v5453
  %v5462 = vsel %vm1239, %v5181, %v5454
  %v5463 = vsel %vm1239, %v5194, %v5455
  %v5464 = vxor.u32 %v5460, 2147483648
  %v5465 = vmul.f32 %v5464, 1.442695
  %v5466 = vpow.pop %v5465
  %v5467 = vadd.f32 %v5466, 1.0
  %v5468 = vrcp.pop %v5467
  %v5469 = vmul.f32 %v5467, %v5468
  %v5470 = vsub.f32 1.0, %v5469
  %v5471 = vmul.f32 %v5468, %v5470
  %v5472 = vadd.f32 %v5468, %v5471
  %vm5473 = vweird.f32 %v5467
  %vm5474 = vweird.f32 %v5468
  %vm5475 = vmor %vm5473, %vm5474
  %v5476 = vsel %vm5475, %v5468, %v5472
  %v5477 = vand.u32 2147483647, %v5467
  %vm5478 = vcmp.eq.f32.partialorder %v5477, 8.507059e+37
  %v5479 = vand.u32 %v5467, 2147483648
  %v5480 = vor.u32 1.1754944e-38, %v5479
  %v5481 = vsel %vm5478, %v5480, %v5476
  %v5482 = vmul.f32 1.0, %v5481
  %v5483 = vxor.u32 %v5461, 2147483648
  %v5484 = vmul.f32 %v5483, 1.442695
  %v5485 = vpow.pop %v5484
  %v5486 = vadd.f32 %v5485, 1.0
  %v5487 = vrcp.pop %v5486
  %v5488 = vmul.f32 %v5486, %v5487
  %v5489 = vsub.f32 1.0, %v5488
  %v5490 = vmul.f32 %v5487, %v5489
  %v5491 = vadd.f32 %v5487, %v5490
  %vm5492 = vweird.f32 %v5486
  %vm5493 = vweird.f32 %v5487
  %vm5494 = vmor %vm5492, %vm5493
  %v5495 = vsel %vm5494, %v5487, %v5491
  %v5496 = vand.u32 2147483647, %v5486
  %vm5497 = vcmp.eq.f32.partialorder %v5496, 8.507059e+37
  %v5498 = vand.u32 %v5486, 2147483648
  %v5499 = vor.u32 1.1754944e-38, %v5498
  %v5500 = vsel %vm5497, %v5499, %v5495
  %v5501 = vmul.f32 1.0, %v5500
  %v5502 = vtanh.pop %v5462
  %v5503 = vxor.u32 %v5463, 2147483648
  %v5504 = vmul.f32 %v5503, 1.442695
  %v5505 = vpow.pop %v5504
  %v5506 = vadd.f32 %v5505, 1.0
  %v5507 = vrcp.pop %v5506
  %v5508 = vmul.f32 %v5506, %v5507
  %v5509 = vsub.f32 1.0, %v5508
  %v5510 = vmul.f32 %v5507, %v5509
  %v5511 = vadd.f32 %v5507, %v5510
  %vm5512 = vweird.f32 %v5506
  %vm5513 = vweird.f32 %v5507
  %vm5514 = vmor %vm5512, %vm5513
  %v5515 = vsel %vm5514, %v5507, %v5511
  %v5516 = vand.u32 2147483647, %v5506
  %vm5517 = vcmp.eq.f32.partialorder %v5516, 8.507059e+37
  %v5518 = vand.u32 %v5506, 2147483648
  %v5519 = vor.u32 1.1754944e-38, %v5518
  %v5520 = vsel %vm5517, %v5519, %v5515
  %v5521 = vmul.f32 1.0, %v5520
  %v5522 = vmul.f32 %v5501, %v4928
  %v5523 = vmul.f32 %v5482, %v5502
  %v5524 = vadd.f32 %v5522, %v5523
  %v5525 = vtanh.pop %v5524
  %v5526 = vmul.f32 %v5521, %v5525
  %v5528 = vrot.slane %v5526, 2
  %5530 = vst [vmem:[#allocation2 + $0x10] sm:$0xc0] %v5528
  %5531 = vst [vmem:[#allocation2 + $0x8] sm:$0x3] %v5528
  %s5532 = smul.u32 4, 32
  %s5533 = smul.u32 %s5532, 8
  %s5534 = sshll.u32 %s5533, 4
  %5535 = dma.done [#allocation9], %s5534
  %s5536 = smul.u32 4, 16
  %s5537 = smul.u32 %s5536, 4
  %s5538 = sshll.u32 %s5537, 4
  %5539 = dma.done %s303, %s5538
  %s5540 = sshll.u32 %s5537, 4
  %5541 = dma.done %s384, %s5540
  %v5542 = vld [vmem:[#allocation2] sm:$0xff]
  %v5543 = vld [vmem:[#allocation2 + $0x8] sm:$0xff]
  %v5544 = vld [vmem:[#allocation2 + $0x10] sm:$0xff]
  %v5545 = vld [vmem:[#allocation2 + $0x18] sm:$0xff]
  %v5546 = vpack.c.bf16 %v5544, %v5542
  %v5547 = vpack.c.bf16 %v5545, %v5543
  %v5548 = vld [vmem:[#allocation5] sm:$0xff]
  %v5549 = vld [vmem:[#allocation5 + $0x8] sm:$0xff]
  %v5550 = vld [vmem:[#allocation5 + $0x10] sm:$0xff]
  %v5551 = vld [vmem:[#allocation5 + $0x18] sm:$0xff]
  %v5552 = vld [vmem:[#allocation5 + $0x20] sm:$0xff]
  %v5553 = vld [vmem:[#allocation5 + $0x28] sm:$0xff]
  %v5554 = vld [vmem:[#allocation5 + $0x30] sm:$0xff]
  %v5555 = vld [vmem:[#allocation5 + $0x38] sm:$0xff]
  %v5556 = vld [vmem:[#allocation5 + $0x40] sm:$0xff]
  %v5557 = vld [vmem:[#allocation5 + $0x48] sm:$0xff]
  %v5558 = vld [vmem:[#allocation5 + $0x50] sm:$0xff]
  %v5559 = vld [vmem:[#allocation5 + $0x58] sm:$0xff]
  %v5560 = vld [vmem:[#allocation5 + $0x60] sm:$0xff]
  %v5561 = vld [vmem:[#allocation5 + $0x68] sm:$0xff]
  %v5562 = vld [vmem:[#allocation5 + $0x70] sm:$0xff]
  %v5563 = vld [vmem:[#allocation5 + $0x78] sm:$0xff]
  %v5564 = vld [vmem:[#allocation5 + $0x80] sm:$0xff]
  %v5565 = vld [vmem:[#allocation5 + $0x88] sm:$0xff]
  %v5566 = vld [vmem:[#allocation5 + $0x90] sm:$0xff]
  %v5567 = vld [vmem:[#allocation5 + $0x98] sm:$0xff]
  %v5568 = vld [vmem:[#allocation5 + $0xa0] sm:$0xff]
  %v5569 = vld [vmem:[#allocation5 + $0xa8] sm:$0xff]
  %v5570 = vld [vmem:[#allocation5 + $0xb0] sm:$0xff]
  %v5571 = vld [vmem:[#allocation5 + $0xb8] sm:$0xff]
  %v5572 = vld [vmem:[#allocation5 + $0xc0] sm:$0xff]
  %v5573 = vld [vmem:[#allocation5 + $0xc8] sm:$0xff]
  %v5574 = vld [vmem:[#allocation5 + $0xd0] sm:$0xff]
  %v5575 = vld [vmem:[#allocation5 + $0xd8] sm:$0xff]
  %v5576 = vld [vmem:[#allocation5 + $0xe0] sm:$0xff]
  %v5577 = vld [vmem:[#allocation5 + $0xe8] sm:$0xff]
  %v5578 = vld [vmem:[#allocation5 + $0xf0] sm:$0xff]
  %v5579 = vld [vmem:[#allocation5 + $0xf8] sm:$0xff]
  %v5580 = vld [vmem:[#allocation5 + $0x100] sm:$0xff]
  %v5581 = vld [vmem:[#allocation5 + $0x108] sm:$0xff]
  %v5582 = vld [vmem:[#allocation5 + $0x110] sm:$0xff]
  %v5583 = vld [vmem:[#allocation5 + $0x118] sm:$0xff]
  %v5584 = vld [vmem:[#allocation5 + $0x120] sm:$0xff]
  %v5585 = vld [vmem:[#allocation5 + $0x128] sm:$0xff]
  %v5586 = vld [vmem:[#allocation5 + $0x130] sm:$0xff]
  %v5587 = vld [vmem:[#allocation5 + $0x138] sm:$0xff]
  %v5588 = vld [vmem:[#allocation5 + $0x140] sm:$0xff]
  %v5589 = vld [vmem:[#allocation5 + $0x148] sm:$0xff]
  %v5590 = vld [vmem:[#allocation5 + $0x150] sm:$0xff]
  %v5591 = vld [vmem:[#allocation5 + $0x158] sm:$0xff]
  %v5592 = vld [vmem:[#allocation5 + $0x160] sm:$0xff]
  %v5593 = vld [vmem:[#allocation5 + $0x168] sm:$0xff]
  %v5594 = vld [vmem:[#allocation5 + $0x170] sm:$0xff]
  %v5595 = vld [vmem:[#allocation5 + $0x178] sm:$0xff]
  %v5596 = vld [vmem:[#allocation5 + $0x180] sm:$0xff]
  %v5597 = vld [vmem:[#allocation5 + $0x188] sm:$0xff]
  %v5598 = vld [vmem:[#allocation5 + $0x190] sm:$0xff]
  %v5599 = vld [vmem:[#allocation5 + $0x198] sm:$0xff]
  %v5600 = vld [vmem:[#allocation5 + $0x1a0] sm:$0xff]
  %v5601 = vld [vmem:[#allocation5 + $0x1a8] sm:$0xff]
  %v5602 = vld [vmem:[#allocation5 + $0x1b0] sm:$0xff]
  %v5603 = vld [vmem:[#allocation5 + $0x1b8] sm:$0xff]
  %v5604 = vld [vmem:[#allocation5 + $0x1c0] sm:$0xff]
  %v5605 = vld [vmem:[#allocation5 + $0x1c8] sm:$0xff]
  %v5606 = vld [vmem:[#allocation5 + $0x1d0] sm:$0xff]
  %v5607 = vld [vmem:[#allocation5 + $0x1d8] sm:$0xff]
  %v5608 = vld [vmem:[#allocation5 + $0x1e0] sm:$0xff]
  %v5609 = vld [vmem:[#allocation5 + $0x1e8] sm:$0xff]
  %v5610 = vld [vmem:[#allocation5 + $0x1f0] sm:$0xff]
  %v5611 = vld [vmem:[#allocation5 + $0x1f8] sm:$0xff]
  %v5612 = vld [vmem:[#allocation5 + $0x200] sm:$0xff]
  %v5613 = vld [vmem:[#allocation5 + $0x208] sm:$0xff]
  %v5614 = vld [vmem:[#allocation5 + $0x210] sm:$0xff]
  %v5615 = vld [vmem:[#allocation5 + $0x218] sm:$0xff]
  %v5616 = vld [vmem:[#allocation5 + $0x220] sm:$0xff]
  %v5617 = vld [vmem:[#allocation5 + $0x228] sm:$0xff]
  %v5618 = vld [vmem:[#allocation5 + $0x230] sm:$0xff]
  %v5619 = vld [vmem:[#allocation5 + $0x238] sm:$0xff]
  %v5620 = vld [vmem:[#allocation5 + $0x240] sm:$0xff]
  %v5621 = vld [vmem:[#allocation5 + $0x248] sm:$0xff]
  %v5622 = vld [vmem:[#allocation5 + $0x250] sm:$0xff]
  %v5623 = vld [vmem:[#allocation5 + $0x258] sm:$0xff]
  %v5624 = vld [vmem:[#allocation5 + $0x260] sm:$0xff]
  %v5625 = vld [vmem:[#allocation5 + $0x268] sm:$0xff]
  %v5626 = vld [vmem:[#allocation5 + $0x270] sm:$0xff]
  %v5627 = vld [vmem:[#allocation5 + $0x278] sm:$0xff]
  %v5628 = vld [vmem:[#allocation5 + $0x280] sm:$0xff]
  %v5629 = vld [vmem:[#allocation5 + $0x288] sm:$0xff]
  %v5630 = vld [vmem:[#allocation5 + $0x290] sm:$0xff]
  %v5631 = vld [vmem:[#allocation5 + $0x298] sm:$0xff]
  %v5632 = vld [vmem:[#allocation5 + $0x2a0] sm:$0xff]
  %v5633 = vld [vmem:[#allocation5 + $0x2a8] sm:$0xff]
  %v5634 = vld [vmem:[#allocation5 + $0x2b0] sm:$0xff]
  %v5635 = vld [vmem:[#allocation5 + $0x2b8] sm:$0xff]
  %v5636 = vld [vmem:[#allocation5 + $0x2c0] sm:$0xff]
  %v5637 = vld [vmem:[#allocation5 + $0x2c8] sm:$0xff]
  %v5638 = vld [vmem:[#allocation5 + $0x2d0] sm:$0xff]
  %v5639 = vld [vmem:[#allocation5 + $0x2d8] sm:$0xff]
  %v5640 = vld [vmem:[#allocation5 + $0x2e0] sm:$0xff]
  %v5641 = vld [vmem:[#allocation5 + $0x2e8] sm:$0xff]
  %v5642 = vld [vmem:[#allocation5 + $0x2f0] sm:$0xff]
  %v5643 = vld [vmem:[#allocation5 + $0x2f8] sm:$0xff]
  %v5644 = vld [vmem:[#allocation5 + $0x300] sm:$0xff]
  %v5645 = vld [vmem:[#allocation5 + $0x308] sm:$0xff]
  %v5646 = vld [vmem:[#allocation5 + $0x310] sm:$0xff]
  %v5647 = vld [vmem:[#allocation5 + $0x318] sm:$0xff]
  %v5648 = vld [vmem:[#allocation5 + $0x320] sm:$0xff]
  %v5649 = vld [vmem:[#allocation5 + $0x328] sm:$0xff]
  %v5650 = vld [vmem:[#allocation5 + $0x330] sm:$0xff]
  %v5651 = vld [vmem:[#allocation5 + $0x338] sm:$0xff]
  %v5652 = vld [vmem:[#allocation5 + $0x340] sm:$0xff]
  %v5653 = vld [vmem:[#allocation5 + $0x348] sm:$0xff]
  %v5654 = vld [vmem:[#allocation5 + $0x350] sm:$0xff]
  %v5655 = vld [vmem:[#allocation5 + $0x358] sm:$0xff]
  %v5656 = vld [vmem:[#allocation5 + $0x360] sm:$0xff]
  %v5657 = vld [vmem:[#allocation5 + $0x368] sm:$0xff]
  %v5658 = vld [vmem:[#allocation5 + $0x370] sm:$0xff]
  %v5659 = vld [vmem:[#allocation5 + $0x378] sm:$0xff]
  %v5660 = vld [vmem:[#allocation5 + $0x380] sm:$0xff]
  %v5661 = vld [vmem:[#allocation5 + $0x388] sm:$0xff]
  %v5662 = vld [vmem:[#allocation5 + $0x390] sm:$0xff]
  %v5663 = vld [vmem:[#allocation5 + $0x398] sm:$0xff]
  %v5664 = vld [vmem:[#allocation5 + $0x3a0] sm:$0xff]
  %v5665 = vld [vmem:[#allocation5 + $0x3a8] sm:$0xff]
  %v5666 = vld [vmem:[#allocation5 + $0x3b0] sm:$0xff]
  %v5667 = vld [vmem:[#allocation5 + $0x3b8] sm:$0xff]
  %v5668 = vld [vmem:[#allocation5 + $0x3c0] sm:$0xff]
  %v5669 = vld [vmem:[#allocation5 + $0x3c8] sm:$0xff]
  %v5670 = vld [vmem:[#allocation5 + $0x3d0] sm:$0xff]
  %v5671 = vld [vmem:[#allocation5 + $0x3d8] sm:$0xff]
  %v5672 = vld [vmem:[#allocation5 + $0x3e0] sm:$0xff]
  %v5673 = vld [vmem:[#allocation5 + $0x3e8] sm:$0xff]
  %v5674 = vld [vmem:[#allocation5 + $0x3f0] sm:$0xff]
  %v5675 = vld [vmem:[#allocation5 + $0x3f8] sm:$0xff]
  %v5676 = vld [vmem:[%s6] sm:$0xff]
  %v5678 = vperm.slane %v5676, 0
  %v5679 = vperm.slane %v5676, 1
  %v5680 = vperm.slane %v5676, 2
  %v5681 = vperm.slane %v5676, 3
  %v5682 = vperm.slane %v5676, 4
  %v5683 = vperm.slane %v5676, 5
  %v5684 = vperm.slane %v5676, 6
  %v5685 = vperm.slane %v5676, 7
  %v5822 = vunpack.c.l.b16 %v5548
  %v5823 = vunpack.c.h.b16 %v5548
  %v5824 = vunpack.c.l.b16 %v5549
  %v5825 = vunpack.c.h.b16 %v5549
  %v5826 = vunpack.c.l.b16 %v5550
  %v5827 = vunpack.c.h.b16 %v5550
  %v5828 = vunpack.c.l.b16 %v5551
  %v5829 = vunpack.c.h.b16 %v5551
  %v5830 = vunpack.c.l.b16 %v5552
  %v5831 = vunpack.c.h.b16 %v5552
  %v5832 = vunpack.c.l.b16 %v5553
  %v5833 = vunpack.c.h.b16 %v5553
  %v5834 = vunpack.c.l.b16 %v5554
  %v5835 = vunpack.c.h.b16 %v5554
  %v5836 = vunpack.c.l.b16 %v5555
  %v5837 = vunpack.c.h.b16 %v5555
  %v5838 = vunpack.c.l.b16 %v5556
  %v5839 = vunpack.c.h.b16 %v5556
  %v5840 = vunpack.c.l.b16 %v5557
  %v5841 = vunpack.c.h.b16 %v5557
  %v5842 = vunpack.c.l.b16 %v5558
  %v5843 = vunpack.c.h.b16 %v5558
  %v5844 = vunpack.c.l.b16 %v5559
  %v5845 = vunpack.c.h.b16 %v5559
  %v5846 = vunpack.c.l.b16 %v5560
  %v5847 = vunpack.c.h.b16 %v5560
  %v5848 = vunpack.c.l.b16 %v5561
  %v5849 = vunpack.c.h.b16 %v5561
  %v5850 = vunpack.c.l.b16 %v5562
  %v5851 = vunpack.c.h.b16 %v5562
  %v5852 = vunpack.c.l.b16 %v5563
  %v5853 = vunpack.c.h.b16 %v5563
  %v5854 = vunpack.c.l.b16 %v5564
  %v5855 = vunpack.c.h.b16 %v5564
  %v5856 = vunpack.c.l.b16 %v5565
  %v5857 = vunpack.c.h.b16 %v5565
  %v5858 = vunpack.c.l.b16 %v5566
  %v5859 = vunpack.c.h.b16 %v5566
  %v5860 = vunpack.c.l.b16 %v5567
  %v5861 = vunpack.c.h.b16 %v5567
  %v5862 = vunpack.c.l.b16 %v5568
  %v5863 = vunpack.c.h.b16 %v5568
  %v5864 = vunpack.c.l.b16 %v5569
  %v5865 = vunpack.c.h.b16 %v5569
  %v5866 = vunpack.c.l.b16 %v5570
  %v5867 = vunpack.c.h.b16 %v5570
  %v5868 = vunpack.c.l.b16 %v5571
  %v5869 = vunpack.c.h.b16 %v5571
  %v5870 = vunpack.c.l.b16 %v5572
  %v5871 = vunpack.c.h.b16 %v5572
  %v5872 = vunpack.c.l.b16 %v5573
  %v5873 = vunpack.c.h.b16 %v5573
  %v5874 = vunpack.c.l.b16 %v5574
  %v5875 = vunpack.c.h.b16 %v5574
  %v5876 = vunpack.c.l.b16 %v5575
  %v5877 = vunpack.c.h.b16 %v5575
  %v5878 = vunpack.c.l.b16 %v5576
  %v5879 = vunpack.c.h.b16 %v5576
  %v5880 = vunpack.c.l.b16 %v5577
  %v5881 = vunpack.c.h.b16 %v5577
  %v5882 = vunpack.c.l.b16 %v5578
  %v5883 = vunpack.c.h.b16 %v5578
  %v5884 = vunpack.c.l.b16 %v5579
  %v5885 = vunpack.c.h.b16 %v5579
  %v5886 = vunpack.c.l.b16 %v5580
  %v5887 = vunpack.c.h.b16 %v5580
  %v5888 = vunpack.c.l.b16 %v5581
  %v5889 = vunpack.c.h.b16 %v5581
  %v5890 = vunpack.c.l.b16 %v5582
  %v5891 = vunpack.c.h.b16 %v5582
  %v5892 = vunpack.c.l.b16 %v5583
  %v5893 = vunpack.c.h.b16 %v5583
  %v5894 = vunpack.c.l.b16 %v5584
  %v5895 = vunpack.c.h.b16 %v5584
  %v5896 = vunpack.c.l.b16 %v5585
  %v5897 = vunpack.c.h.b16 %v5585
  %v5898 = vunpack.c.l.b16 %v5586
  %v5899 = vunpack.c.h.b16 %v5586
  %v5900 = vunpack.c.l.b16 %v5587
  %v5901 = vunpack.c.h.b16 %v5587
  %v5902 = vunpack.c.l.b16 %v5588
  %v5903 = vunpack.c.h.b16 %v5588
  %v5904 = vunpack.c.l.b16 %v5589
  %v5905 = vunpack.c.h.b16 %v5589
  %v5906 = vunpack.c.l.b16 %v5590
  %v5907 = vunpack.c.h.b16 %v5590
  %v5908 = vunpack.c.l.b16 %v5591
  %v5909 = vunpack.c.h.b16 %v5591
  %v5910 = vunpack.c.l.b16 %v5592
  %v5911 = vunpack.c.h.b16 %v5592
  %v5912 = vunpack.c.l.b16 %v5593
  %v5913 = vunpack.c.h.b16 %v5593
  %v5914 = vunpack.c.l.b16 %v5594
  %v5915 = vunpack.c.h.b16 %v5594
  %v5916 = vunpack.c.l.b16 %v5595
  %v5917 = vunpack.c.h.b16 %v5595
  %v5918 = vunpack.c.l.b16 %v5596
  %v5919 = vunpack.c.h.b16 %v5596
  %v5920 = vunpack.c.l.b16 %v5597
  %v5921 = vunpack.c.h.b16 %v5597
  %v5922 = vunpack.c.l.b16 %v5598
  %v5923 = vunpack.c.h.b16 %v5598
  %v5924 = vunpack.c.l.b16 %v5599
  %v5925 = vunpack.c.h.b16 %v5599
  %v5926 = vunpack.c.l.b16 %v5600
  %v5927 = vunpack.c.h.b16 %v5600
  %v5928 = vunpack.c.l.b16 %v5601
  %v5929 = vunpack.c.h.b16 %v5601
  %v5930 = vunpack.c.l.b16 %v5602
  %v5931 = vunpack.c.h.b16 %v5602
  %v5932 = vunpack.c.l.b16 %v5603
  %v5933 = vunpack.c.h.b16 %v5603
  %v5934 = vunpack.c.l.b16 %v5604
  %v5935 = vunpack.c.h.b16 %v5604
  %v5936 = vunpack.c.l.b16 %v5605
  %v5937 = vunpack.c.h.b16 %v5605
  %v5938 = vunpack.c.l.b16 %v5606
  %v5939 = vunpack.c.h.b16 %v5606
  %v5940 = vunpack.c.l.b16 %v5607
  %v5941 = vunpack.c.h.b16 %v5607
  %v5942 = vunpack.c.l.b16 %v5608
  %v5943 = vunpack.c.h.b16 %v5608
  %v5944 = vunpack.c.l.b16 %v5609
  %v5945 = vunpack.c.h.b16 %v5609
  %v5946 = vunpack.c.l.b16 %v5610
  %v5947 = vunpack.c.h.b16 %v5610
  %v5948 = vunpack.c.l.b16 %v5611
  %v5949 = vunpack.c.h.b16 %v5611
  %v5950 = vunpack.c.l.b16 %v5612
  %v5951 = vunpack.c.h.b16 %v5612
  %v5952 = vunpack.c.l.b16 %v5613
  %v5953 = vunpack.c.h.b16 %v5613
  %v5954 = vunpack.c.l.b16 %v5614
  %v5955 = vunpack.c.h.b16 %v5614
  %v5956 = vunpack.c.l.b16 %v5615
  %v5957 = vunpack.c.h.b16 %v5615
  %v5958 = vunpack.c.l.b16 %v5616
  %v5959 = vunpack.c.h.b16 %v5616
  %v5960 = vunpack.c.l.b16 %v5617
  %v5961 = vunpack.c.h.b16 %v5617
  %v5962 = vunpack.c.l.b16 %v5618
  %v5963 = vunpack.c.h.b16 %v5618
  %v5964 = vunpack.c.l.b16 %v5619
  %v5965 = vunpack.c.h.b16 %v5619
  %v5966 = vunpack.c.l.b16 %v5620
  %v5967 = vunpack.c.h.b16 %v5620
  %v5968 = vunpack.c.l.b16 %v5621
  %v5969 = vunpack.c.h.b16 %v5621
  %v5970 = vunpack.c.l.b16 %v5622
  %v5971 = vunpack.c.h.b16 %v5622
  %v5972 = vunpack.c.l.b16 %v5623
  %v5973 = vunpack.c.h.b16 %v5623
  %v5974 = vunpack.c.l.b16 %v5624
  %v5975 = vunpack.c.h.b16 %v5624
  %v5976 = vunpack.c.l.b16 %v5625
  %v5977 = vunpack.c.h.b16 %v5625
  %v5978 = vunpack.c.l.b16 %v5626
  %v5979 = vunpack.c.h.b16 %v5626
  %v5980 = vunpack.c.l.b16 %v5627
  %v5981 = vunpack.c.h.b16 %v5627
  %v5982 = vunpack.c.l.b16 %v5628
  %v5983 = vunpack.c.h.b16 %v5628
  %v5984 = vunpack.c.l.b16 %v5629
  %v5985 = vunpack.c.h.b16 %v5629
  %v5986 = vunpack.c.l.b16 %v5630
  %v5987 = vunpack.c.h.b16 %v5630
  %v5988 = vunpack.c.l.b16 %v5631
  %v5989 = vunpack.c.h.b16 %v5631
  %v5990 = vunpack.c.l.b16 %v5632
  %v5991 = vunpack.c.h.b16 %v5632
  %v5992 = vunpack.c.l.b16 %v5633
  %v5993 = vunpack.c.h.b16 %v5633
  %v5994 = vunpack.c.l.b16 %v5634
  %v5995 = vunpack.c.h.b16 %v5634
  %v5996 = vunpack.c.l.b16 %v5635
  %v5997 = vunpack.c.h.b16 %v5635
  %v5998 = vunpack.c.l.b16 %v5636
  %v5999 = vunpack.c.h.b16 %v5636
  %v6000 = vunpack.c.l.b16 %v5637
  %v6001 = vunpack.c.h.b16 %v5637
  %v6002 = vunpack.c.l.b16 %v5638
  %v6003 = vunpack.c.h.b16 %v5638
  %v6004 = vunpack.c.l.b16 %v5639
  %v6005 = vunpack.c.h.b16 %v5639
  %v6006 = vunpack.c.l.b16 %v5640
  %v6007 = vunpack.c.h.b16 %v5640
  %v6008 = vunpack.c.l.b16 %v5641
  %v6009 = vunpack.c.h.b16 %v5641
  %v6010 = vunpack.c.l.b16 %v5642
  %v6011 = vunpack.c.h.b16 %v5642
  %v6012 = vunpack.c.l.b16 %v5643
  %v6013 = vunpack.c.h.b16 %v5643
  %v6014 = vunpack.c.l.b16 %v5644
  %v6015 = vunpack.c.h.b16 %v5644
  %v6016 = vunpack.c.l.b16 %v5645
  %v6017 = vunpack.c.h.b16 %v5645
  %v6018 = vunpack.c.l.b16 %v5646
  %v6019 = vunpack.c.h.b16 %v5646
  %v6020 = vunpack.c.l.b16 %v5647
  %v6021 = vunpack.c.h.b16 %v5647
  %v6022 = vunpack.c.l.b16 %v5648
  %v6023 = vunpack.c.h.b16 %v5648
  %v6024 = vunpack.c.l.b16 %v5649
  %v6025 = vunpack.c.h.b16 %v5649
  %v6026 = vunpack.c.l.b16 %v5650
  %v6027 = vunpack.c.h.b16 %v5650
  %v6028 = vunpack.c.l.b16 %v5651
  %v6029 = vunpack.c.h.b16 %v5651
  %v6030 = vunpack.c.l.b16 %v5652
  %v6031 = vunpack.c.h.b16 %v5652
  %v6032 = vunpack.c.l.b16 %v5653
  %v6033 = vunpack.c.h.b16 %v5653
  %v6034 = vunpack.c.l.b16 %v5654
  %v6035 = vunpack.c.h.b16 %v5654
  %v6036 = vunpack.c.l.b16 %v5655
  %v6037 = vunpack.c.h.b16 %v5655
  %v6038 = vunpack.c.l.b16 %v5656
  %v6039 = vunpack.c.h.b16 %v5656
  %v6040 = vunpack.c.l.b16 %v5657
  %v6041 = vunpack.c.h.b16 %v5657
  %v6042 = vunpack.c.l.b16 %v5658
  %v6043 = vunpack.c.h.b16 %v5658
  %v6044 = vunpack.c.l.b16 %v5659
  %v6045 = vunpack.c.h.b16 %v5659
  %v6046 = vunpack.c.l.b16 %v5660
  %v6047 = vunpack.c.h.b16 %v5660
  %v6048 = vunpack.c.l.b16 %v5661
  %v6049 = vunpack.c.h.b16 %v5661
  %v6050 = vunpack.c.l.b16 %v5662
  %v6051 = vunpack.c.h.b16 %v5662
  %v6052 = vunpack.c.l.b16 %v5663
  %v6053 = vunpack.c.h.b16 %v5663
  %v6054 = vunpack.c.l.b16 %v5664
  %v6055 = vunpack.c.h.b16 %v5664
  %v6056 = vunpack.c.l.b16 %v5665
  %v6057 = vunpack.c.h.b16 %v5665
  %v6058 = vunpack.c.l.b16 %v5666
  %v6059 = vunpack.c.h.b16 %v5666
  %v6060 = vunpack.c.l.b16 %v5667
  %v6061 = vunpack.c.h.b16 %v5667
  %v6062 = vunpack.c.l.b16 %v5668
  %v6063 = vunpack.c.h.b16 %v5668
  %v6064 = vunpack.c.l.b16 %v5669
  %v6065 = vunpack.c.h.b16 %v5669
  %v6066 = vunpack.c.l.b16 %v5670
  %v6067 = vunpack.c.h.b16 %v5670
  %v6068 = vunpack.c.l.b16 %v5671
  %v6069 = vunpack.c.h.b16 %v5671
  %v6070 = vunpack.c.l.b16 %v5672
  %v6071 = vunpack.c.h.b16 %v5672
  %v6072 = vunpack.c.l.b16 %v5673
  %v6073 = vunpack.c.h.b16 %v5673
  %v6074 = vunpack.c.l.b16 %v5674
  %v6075 = vunpack.c.h.b16 %v5674
  %v6076 = vunpack.c.l.b16 %v5675
  %v6077 = vunpack.c.h.b16 %v5675
  %v6078 = vpack.c.b16 %v5830, %v5822
  %v6079 = vpack.c.b16 %v5831, %v5823
  %v6080 = vpack.c.b16 %v5832, %v5824
  %v6081 = vpack.c.b16 %v5833, %v5825
  %v6082 = vpack.c.b16 %v5834, %v5826
  %v6083 = vpack.c.b16 %v5835, %v5827
  %v6084 = vpack.c.b16 %v5836, %v5828
  %v6085 = vpack.c.b16 %v5837, %v5829
  %v6086 = vpack.c.b16 %v5846, %v5838
  %v6087 = vpack.c.b16 %v5847, %v5839
  %v6088 = vpack.c.b16 %v5848, %v5840
  %v6089 = vpack.c.b16 %v5849, %v5841
  %v6090 = vpack.c.b16 %v5850, %v5842
  %v6091 = vpack.c.b16 %v5851, %v5843
  %v6092 = vpack.c.b16 %v5852, %v5844
  %v6093 = vpack.c.b16 %v5853, %v5845
  %v6094 = vpack.c.b16 %v5862, %v5854
  %v6095 = vpack.c.b16 %v5863, %v5855
  %v6096 = vpack.c.b16 %v5864, %v5856
  %v6097 = vpack.c.b16 %v5865, %v5857
  %v6098 = vpack.c.b16 %v5866, %v5858
  %v6099 = vpack.c.b16 %v5867, %v5859
  %v6100 = vpack.c.b16 %v5868, %v5860
  %v6101 = vpack.c.b16 %v5869, %v5861
  %v6102 = vpack.c.b16 %v5878, %v5870
  %v6103 = vpack.c.b16 %v5879, %v5871
  %v6104 = vpack.c.b16 %v5880, %v5872
  %v6105 = vpack.c.b16 %v5881, %v5873
  %v6106 = vpack.c.b16 %v5882, %v5874
  %v6107 = vpack.c.b16 %v5883, %v5875
  %v6108 = vpack.c.b16 %v5884, %v5876
  %v6109 = vpack.c.b16 %v5885, %v5877
  %v6110 = vpack.c.b16 %v5894, %v5886
  %v6111 = vpack.c.b16 %v5895, %v5887
  %v6112 = vpack.c.b16 %v5896, %v5888
  %v6113 = vpack.c.b16 %v5897, %v5889
  %v6114 = vpack.c.b16 %v5898, %v5890
  %v6115 = vpack.c.b16 %v5899, %v5891
  %v6116 = vpack.c.b16 %v5900, %v5892
  %v6117 = vpack.c.b16 %v5901, %v5893
  %v6118 = vpack.c.b16 %v5910, %v5902
  %v6119 = vpack.c.b16 %v5911, %v5903
  %v6120 = vpack.c.b16 %v5912, %v5904
  %v6121 = vpack.c.b16 %v5913, %v5905
  %v6122 = vpack.c.b16 %v5914, %v5906
  %v6123 = vpack.c.b16 %v5915, %v5907
  %v6124 = vpack.c.b16 %v5916, %v5908
  %v6125 = vpack.c.b16 %v5917, %v5909
  %v6126 = vpack.c.b16 %v5926, %v5918
  %v6127 = vpack.c.b16 %v5927, %v5919
  %v6128 = vpack.c.b16 %v5928, %v5920
  %v6129 = vpack.c.b16 %v5929, %v5921
  %v6130 = vpack.c.b16 %v5930, %v5922
  %v6131 = vpack.c.b16 %v5931, %v5923
  %v6132 = vpack.c.b16 %v5932, %v5924
  %v6133 = vpack.c.b16 %v5933, %v5925
  %v6134 = vpack.c.b16 %v5942, %v5934
  %v6135 = vpack.c.b16 %v5943, %v5935
  %v6136 = vpack.c.b16 %v5944, %v5936
  %v6137 = vpack.c.b16 %v5945, %v5937
  %v6138 = vpack.c.b16 %v5946, %v5938
  %v6139 = vpack.c.b16 %v5947, %v5939
  %v6140 = vpack.c.b16 %v5948, %v5940
  %v6141 = vpack.c.b16 %v5949, %v5941
  %v6142 = vpack.c.b16 %v5958, %v5950
  %v6143 = vpack.c.b16 %v5959, %v5951
  %v6144 = vpack.c.b16 %v5960, %v5952
  %v6145 = vpack.c.b16 %v5961, %v5953
  %v6146 = vpack.c.b16 %v5962, %v5954
  %v6147 = vpack.c.b16 %v5963, %v5955
  %v6148 = vpack.c.b16 %v5964, %v5956
  %v6149 = vpack.c.b16 %v5965, %v5957
  %v6150 = vpack.c.b16 %v5974, %v5966
  %v6151 = vpack.c.b16 %v5975, %v5967
  %v6152 = vpack.c.b16 %v5976, %v5968
  %v6153 = vpack.c.b16 %v5977, %v5969
  %v6154 = vpack.c.b16 %v5978, %v5970
  %v6155 = vpack.c.b16 %v5979, %v5971
  %v6156 = vpack.c.b16 %v5980, %v5972
  %v6157 = vpack.c.b16 %v5981, %v5973
  %v6158 = vpack.c.b16 %v5990, %v5982
  %v6159 = vpack.c.b16 %v5991, %v5983
  %v6160 = vpack.c.b16 %v5992, %v5984
  %v6161 = vpack.c.b16 %v5993, %v5985
  %v6162 = vpack.c.b16 %v5994, %v5986
  %v6163 = vpack.c.b16 %v5995, %v5987
  %v6164 = vpack.c.b16 %v5996, %v5988
  %v6165 = vpack.c.b16 %v5997, %v5989
  %v6166 = vpack.c.b16 %v6006, %v5998
  %v6167 = vpack.c.b16 %v6007, %v5999
  %v6168 = vpack.c.b16 %v6008, %v6000
  %v6169 = vpack.c.b16 %v6009, %v6001
  %v6170 = vpack.c.b16 %v6010, %v6002
  %v6171 = vpack.c.b16 %v6011, %v6003
  %v6172 = vpack.c.b16 %v6012, %v6004
  %v6173 = vpack.c.b16 %v6013, %v6005
  %v6174 = vpack.c.b16 %v6022, %v6014
  %v6175 = vpack.c.b16 %v6023, %v6015
  %v6176 = vpack.c.b16 %v6024, %v6016
  %v6177 = vpack.c.b16 %v6025, %v6017
  %v6178 = vpack.c.b16 %v6026, %v6018
  %v6179 = vpack.c.b16 %v6027, %v6019
  %v6180 = vpack.c.b16 %v6028, %v6020
  %v6181 = vpack.c.b16 %v6029, %v6021
  %v6182 = vpack.c.b16 %v6038, %v6030
  %v6183 = vpack.c.b16 %v6039, %v6031
  %v6184 = vpack.c.b16 %v6040, %v6032
  %v6185 = vpack.c.b16 %v6041, %v6033
  %v6186 = vpack.c.b16 %v6042, %v6034
  %v6187 = vpack.c.b16 %v6043, %v6035
  %v6188 = vpack.c.b16 %v6044, %v6036
  %v6189 = vpack.c.b16 %v6045, %v6037
  %v6190 = vpack.c.b16 %v6054, %v6046
  %v6191 = vpack.c.b16 %v6055, %v6047
  %v6192 = vpack.c.b16 %v6056, %v6048
  %v6193 = vpack.c.b16 %v6057, %v6049
  %v6194 = vpack.c.b16 %v6058, %v6050
  %v6195 = vpack.c.b16 %v6059, %v6051
  %v6196 = vpack.c.b16 %v6060, %v6052
  %v6197 = vpack.c.b16 %v6061, %v6053
  %v6198 = vpack.c.b16 %v6070, %v6062
  %v6199 = vpack.c.b16 %v6071, %v6063
  %v6200 = vpack.c.b16 %v6072, %v6064
  %v6201 = vpack.c.b16 %v6073, %v6065
  %v6202 = vpack.c.b16 %v6074, %v6066
  %v6203 = vpack.c.b16 %v6075, %v6067
  %v6204 = vpack.c.b16 %v6076, %v6068
  %v6205 = vpack.c.b16 %v6077, %v6069
  %6334 = vmatpush.bf16.msra.mxu0 %v6134
  %6335 = vmatpush.bf16.msra.mxu0 %v6126
  %6336 = vmatpush.bf16.msra.mxu0 %v6118
  %6337 = vmatpush.bf16.msra.mxu0 %v6110
  %6338 = vmatpush.bf16.msra.mxu0 %v6102
  %6339 = vmatpush.bf16.msra.mxu0 %v6094
  %6340 = vmatpush.bf16.msra.mxu0 %v6086
  %6341 = vmatpush.bf16.msra.mxu0 %v6078
  %6342 = vmatmul.bf16.gmra.mxu0 %v5546
  %v6343 = vpop.f32.mrf.mxu0
  %v6344 = vadd.f32 %v5678, %v6343
  %v6345 = vpop.f32.mrf.mxu0
  %v6346 = vadd.f32 %v5678, %v6345
  %6347 = vdwg.mxu0
  %6348 = vmatpush.bf16.msra.mxu0 %v6198
  %6349 = vmatpush.bf16.msra.mxu0 %v6190
  %6350 = vmatpush.bf16.msra.mxu0 %v6182
  %6351 = vmatpush.bf16.msra.mxu0 %v6174
  %6352 = vmatpush.bf16.msra.mxu0 %v6166
  %6353 = vmatpush.bf16.msra.mxu0 %v6158
  %6354 = vmatpush.bf16.msra.mxu0 %v6150
  %6355 = vmatpush.bf16.msra.mxu0 %v6142
  %6356 = vmatmul.bf16.gmra.mxu0 %v5547
  %v6357 = vpop.f32.mrf.mxu0
  %v6358 = vadd.f32 %v6344, %v6357
  %v6359 = vpop.f32.mrf.mxu0
  %v6360 = vadd.f32 %v6346, %v6359
  %6361 = vdwg.mxu0
  %6362 = vmatpush.bf16.msra.mxu0 %v6135
  %6363 = vmatpush.bf16.msra.mxu0 %v6127
  %6364 = vmatpush.bf16.msra.mxu0 %v6119
  %6365 = vmatpush.bf16.msra.mxu0 %v6111
  %6366 = vmatpush.bf16.msra.mxu0 %v6103
  %6367 = vmatpush.bf16.msra.mxu0 %v6095
  %6368 = vmatpush.bf16.msra.mxu0 %v6087
  %6369 = vmatpush.bf16.msra.mxu0 %v6079
  %6370 = vmatmul.bf16.gmra.mxu0 %v5546
  %v6371 = vpop.f32.mrf.mxu0
  %v6372 = vadd.f32 %v5679, %v6371
  %v6373 = vpop.f32.mrf.mxu0
  %v6374 = vadd.f32 %v5679, %v6373
  %6375 = vdwg.mxu0
  %6376 = vmatpush.bf16.msra.mxu0 %v6199
  %6377 = vmatpush.bf16.msra.mxu0 %v6191
  %6378 = vmatpush.bf16.msra.mxu0 %v6183
  %6379 = vmatpush.bf16.msra.mxu0 %v6175
  %6380 = vmatpush.bf16.msra.mxu0 %v6167
  %6381 = vmatpush.bf16.msra.mxu0 %v6159
  %6382 = vmatpush.bf16.msra.mxu0 %v6151
  %6383 = vmatpush.bf16.msra.mxu0 %v6143
  %6384 = vmatmul.bf16.gmra.mxu0 %v5547
  %v6385 = vpop.f32.mrf.mxu0
  %v6386 = vadd.f32 %v6372, %v6385
  %v6387 = vpop.f32.mrf.mxu0
  %v6388 = vadd.f32 %v6374, %v6387
  %6389 = vdwg.mxu0
  %6390 = vmatpush.bf16.msra.mxu0 %v6136
  %6391 = vmatpush.bf16.msra.mxu0 %v6128
  %6392 = vmatpush.bf16.msra.mxu0 %v6120
  %6393 = vmatpush.bf16.msra.mxu0 %v6112
  %6394 = vmatpush.bf16.msra.mxu0 %v6104
  %6395 = vmatpush.bf16.msra.mxu0 %v6096
  %6396 = vmatpush.bf16.msra.mxu0 %v6088
  %6397 = vmatpush.bf16.msra.mxu0 %v6080
  %6398 = vmatmul.bf16.gmra.mxu0 %v5546
  %v6399 = vpop.f32.mrf.mxu0
  %v6400 = vadd.f32 %v5680, %v6399
  %v6401 = vpop.f32.mrf.mxu0
  %v6402 = vadd.f32 %v5680, %v6401
  %6403 = vdwg.mxu0
  %6404 = vmatpush.bf16.msra.mxu0 %v6200
  %6405 = vmatpush.bf16.msra.mxu0 %v6192
  %6406 = vmatpush.bf16.msra.mxu0 %v6184
  %6407 = vmatpush.bf16.msra.mxu0 %v6176
  %6408 = vmatpush.bf16.msra.mxu0 %v6168
  %6409 = vmatpush.bf16.msra.mxu0 %v6160
  %6410 = vmatpush.bf16.msra.mxu0 %v6152
  %6411 = vmatpush.bf16.msra.mxu0 %v6144
  %6412 = vmatmul.bf16.gmra.mxu0 %v5547
  %v6413 = vpop.f32.mrf.mxu0
  %v6414 = vadd.f32 %v6400, %v6413
  %v6415 = vpop.f32.mrf.mxu0
  %v6416 = vadd.f32 %v6402, %v6415
  %6417 = vdwg.mxu0
  %6418 = vmatpush.bf16.msra.mxu0 %v6137
  %6419 = vmatpush.bf16.msra.mxu0 %v6129
  %6420 = vmatpush.bf16.msra.mxu0 %v6121
  %6421 = vmatpush.bf16.msra.mxu0 %v6113
  %6422 = vmatpush.bf16.msra.mxu0 %v6105
  %6423 = vmatpush.bf16.msra.mxu0 %v6097
  %6424 = vmatpush.bf16.msra.mxu0 %v6089
  %6425 = vmatpush.bf16.msra.mxu0 %v6081
  %6426 = vmatmul.bf16.gmra.mxu0 %v5546
  %v6427 = vpop.f32.mrf.mxu0
  %v6428 = vadd.f32 %v5681, %v6427
  %v6429 = vpop.f32.mrf.mxu0
  %v6430 = vadd.f32 %v5681, %v6429
  %6431 = vdwg.mxu0
  %6432 = vmatpush.bf16.msra.mxu0 %v6201
  %6433 = vmatpush.bf16.msra.mxu0 %v6193
  %6434 = vmatpush.bf16.msra.mxu0 %v6185
  %6435 = vmatpush.bf16.msra.mxu0 %v6177
  %6436 = vmatpush.bf16.msra.mxu0 %v6169
  %6437 = vmatpush.bf16.msra.mxu0 %v6161
  %6438 = vmatpush.bf16.msra.mxu0 %v6153
  %6439 = vmatpush.bf16.msra.mxu0 %v6145
  %6440 = vmatmul.bf16.gmra.mxu0 %v5547
  %v6441 = vpop.f32.mrf.mxu0
  %v6442 = vadd.f32 %v6428, %v6441
  %v6443 = vpop.f32.mrf.mxu0
  %v6444 = vadd.f32 %v6430, %v6443
  %6445 = vdwg.mxu0
  %6446 = vmatpush.bf16.msra.mxu0 %v6138
  %6447 = vmatpush.bf16.msra.mxu0 %v6130
  %6448 = vmatpush.bf16.msra.mxu0 %v6122
  %6449 = vmatpush.bf16.msra.mxu0 %v6114
  %6450 = vmatpush.bf16.msra.mxu0 %v6106
  %6451 = vmatpush.bf16.msra.mxu0 %v6098
  %6452 = vmatpush.bf16.msra.mxu0 %v6090
  %6453 = vmatpush.bf16.msra.mxu0 %v6082
  %6454 = vmatmul.bf16.gmra.mxu0 %v5546
  %v6455 = vpop.f32.mrf.mxu0
  %v6456 = vadd.f32 %v5682, %v6455
  %v6457 = vpop.f32.mrf.mxu0
  %v6458 = vadd.f32 %v5682, %v6457
  %6459 = vdwg.mxu0
  %6460 = vmatpush.bf16.msra.mxu0 %v6202
  %6461 = vmatpush.bf16.msra.mxu0 %v6194
  %6462 = vmatpush.bf16.msra.mxu0 %v6186
  %6463 = vmatpush.bf16.msra.mxu0 %v6178
  %6464 = vmatpush.bf16.msra.mxu0 %v6170
  %6465 = vmatpush.bf16.msra.mxu0 %v6162
  %6466 = vmatpush.bf16.msra.mxu0 %v6154
  %6467 = vmatpush.bf16.msra.mxu0 %v6146
  %6468 = vmatmul.bf16.gmra.mxu0 %v5547
  %v6469 = vpop.f32.mrf.mxu0
  %v6470 = vadd.f32 %v6456, %v6469
  %v6471 = vpop.f32.mrf.mxu0
  %v6472 = vadd.f32 %v6458, %v6471
  %6473 = vdwg.mxu0
  %6474 = vmatpush.bf16.msra.mxu0 %v6139
  %6475 = vmatpush.bf16.msra.mxu0 %v6131
  %6476 = vmatpush.bf16.msra.mxu0 %v6123
  %6477 = vmatpush.bf16.msra.mxu0 %v6115
  %6478 = vmatpush.bf16.msra.mxu0 %v6107
  %6479 = vmatpush.bf16.msra.mxu0 %v6099
  %6480 = vmatpush.bf16.msra.mxu0 %v6091
  %6481 = vmatpush.bf16.msra.mxu0 %v6083
  %6482 = vmatmul.bf16.gmra.mxu0 %v5546
  %v6483 = vpop.f32.mrf.mxu0
  %v6484 = vadd.f32 %v5683, %v6483
  %v6485 = vpop.f32.mrf.mxu0
  %v6486 = vadd.f32 %v5683, %v6485
  %6487 = vdwg.mxu0
  %6488 = vmatpush.bf16.msra.mxu0 %v6203
  %6489 = vmatpush.bf16.msra.mxu0 %v6195
  %6490 = vmatpush.bf16.msra.mxu0 %v6187
  %6491 = vmatpush.bf16.msra.mxu0 %v6179
  %6492 = vmatpush.bf16.msra.mxu0 %v6171
  %6493 = vmatpush.bf16.msra.mxu0 %v6163
  %6494 = vmatpush.bf16.msra.mxu0 %v6155
  %6495 = vmatpush.bf16.msra.mxu0 %v6147
  %6496 = vmatmul.bf16.gmra.mxu0 %v5547
  %v6497 = vpop.f32.mrf.mxu0
  %v6498 = vadd.f32 %v6484, %v6497
  %v6499 = vpop.f32.mrf.mxu0
  %v6500 = vadd.f32 %v6486, %v6499
  %6501 = vdwg.mxu0
  %6502 = vmatpush.bf16.msra.mxu0 %v6140
  %6503 = vmatpush.bf16.msra.mxu0 %v6132
  %6504 = vmatpush.bf16.msra.mxu0 %v6124
  %6505 = vmatpush.bf16.msra.mxu0 %v6116
  %6506 = vmatpush.bf16.msra.mxu0 %v6108
  %6507 = vmatpush.bf16.msra.mxu0 %v6100
  %6508 = vmatpush.bf16.msra.mxu0 %v6092
  %6509 = vmatpush.bf16.msra.mxu0 %v6084
  %6510 = vmatmul.bf16.gmra.mxu0 %v5546
  %v6511 = vpop.f32.mrf.mxu0
  %v6512 = vadd.f32 %v5684, %v6511
  %v6513 = vpop.f32.mrf.mxu0
  %v6514 = vadd.f32 %v5684, %v6513
  %6515 = vdwg.mxu0
  %6516 = vmatpush.bf16.msra.mxu0 %v6204
  %6517 = vmatpush.bf16.msra.mxu0 %v6196
  %6518 = vmatpush.bf16.msra.mxu0 %v6188
  %6519 = vmatpush.bf16.msra.mxu0 %v6180
  %6520 = vmatpush.bf16.msra.mxu0 %v6172
  %6521 = vmatpush.bf16.msra.mxu0 %v6164
  %6522 = vmatpush.bf16.msra.mxu0 %v6156
  %6523 = vmatpush.bf16.msra.mxu0 %v6148
  %6524 = vmatmul.bf16.gmra.mxu0 %v5547
  %v6525 = vpop.f32.mrf.mxu0
  %v6526 = vadd.f32 %v6512, %v6525
  %v6527 = vpop.f32.mrf.mxu0
  %v6528 = vadd.f32 %v6514, %v6527
  %6529 = vdwg.mxu0
  %6530 = vmatpush.bf16.msra.mxu0 %v6141
  %6531 = vmatpush.bf16.msra.mxu0 %v6133
  %6532 = vmatpush.bf16.msra.mxu0 %v6125
  %6533 = vmatpush.bf16.msra.mxu0 %v6117
  %6534 = vmatpush.bf16.msra.mxu0 %v6109
  %6535 = vmatpush.bf16.msra.mxu0 %v6101
  %6536 = vmatpush.bf16.msra.mxu0 %v6093
  %6537 = vmatpush.bf16.msra.mxu0 %v6085
  %6538 = vmatmul.bf16.gmra.mxu0 %v5546
  %v6539 = vpop.f32.mrf.mxu0
  %v6540 = vadd.f32 %v5685, %v6539
  %v6541 = vpop.f32.mrf.mxu0
  %v6542 = vadd.f32 %v5685, %v6541
  %6543 = vdwg.mxu0
  %6544 = vmatpush.bf16.msra.mxu0 %v6205
  %6545 = vmatpush.bf16.msra.mxu0 %v6197
  %6546 = vmatpush.bf16.msra.mxu0 %v6189
  %6547 = vmatpush.bf16.msra.mxu0 %v6181
  %6548 = vmatpush.bf16.msra.mxu0 %v6173
  %6549 = vmatpush.bf16.msra.mxu0 %v6165
  %6550 = vmatpush.bf16.msra.mxu0 %v6157
  %6551 = vmatpush.bf16.msra.mxu0 %v6149
  %6552 = vmatmul.bf16.gmra.mxu0 %v5547
  %v6553 = vpop.f32.mrf.mxu0
  %v6554 = vadd.f32 %v6540, %v6553
  %v6555 = vpop.f32.mrf.mxu0
  %v6556 = vadd.f32 %v6542, %v6555
  %6557 = vdwg.mxu0
  %6558 = vst [vmem:[#allocation4] sm:$0xff] %v6358
  %6559 = vst [vmem:[#allocation4 + $0x8] sm:$0xff] %v6386
  %6560 = vst [vmem:[#allocation4 + $0x10] sm:$0xff] %v6414
  %6561 = vst [vmem:[#allocation4 + $0x18] sm:$0xff] %v6442
  %6562 = vst [vmem:[#allocation4 + $0x20] sm:$0xff] %v6470
  %6563 = vst [vmem:[#allocation4 + $0x28] sm:$0xff] %v6498
  %6564 = vst [vmem:[#allocation4 + $0x30] sm:$0xff] %v6526
  %6565 = vst [vmem:[#allocation4 + $0x38] sm:$0xff] %v6554
  %6566 = vst [vmem:[#allocation4 + $0x40] sm:$0xff] %v6360
  %6567 = vst [vmem:[#allocation4 + $0x48] sm:$0xff] %v6388
  %6568 = vst [vmem:[#allocation4 + $0x50] sm:$0xff] %v6416
  %6569 = vst [vmem:[#allocation4 + $0x58] sm:$0xff] %v6444
  %6570 = vst [vmem:[#allocation4 + $0x60] sm:$0xff] %v6472
  %6571 = vst [vmem:[#allocation4 + $0x68] sm:$0xff] %v6500
  %6572 = vst [vmem:[#allocation4 + $0x70] sm:$0xff] %v6528
  %6573 = vst [vmem:[#allocation4 + $0x78] sm:$0xff] %v6556
  %v6574 = vld [vmem:[#allocation6] sm:$0xff]
  %v6575 = vld [vmem:[#allocation6 + $0x8] sm:$0xff]
  %v6576 = vld [vmem:[#allocation6 + $0x10] sm:$0xff]
  %v6577 = vld [vmem:[#allocation6 + $0x18] sm:$0xff]
  %v6578 = vld [vmem:[#allocation6 + $0x20] sm:$0xff]
  %v6579 = vld [vmem:[#allocation6 + $0x28] sm:$0xff]
  %v6580 = vld [vmem:[#allocation6 + $0x30] sm:$0xff]
  %v6581 = vld [vmem:[#allocation6 + $0x38] sm:$0xff]
  %v6582 = vld [vmem:[#allocation6 + $0x40] sm:$0xff]
  %v6583 = vld [vmem:[#allocation6 + $0x48] sm:$0xff]
  %v6584 = vld [vmem:[#allocation6 + $0x50] sm:$0xff]
  %v6585 = vld [vmem:[#allocation6 + $0x58] sm:$0xff]
  %v6586 = vld [vmem:[#allocation6 + $0x60] sm:$0xff]
  %v6587 = vld [vmem:[#allocation6 + $0x68] sm:$0xff]
  %v6588 = vld [vmem:[#allocation6 + $0x70] sm:$0xff]
  %v6589 = vld [vmem:[#allocation6 + $0x78] sm:$0xff]
  %v6590 = vld [vmem:[#allocation6 + $0x80] sm:$0xff]
  %v6591 = vld [vmem:[#allocation6 + $0x88] sm:$0xff]
  %v6592 = vld [vmem:[#allocation6 + $0x90] sm:$0xff]
  %v6593 = vld [vmem:[#allocation6 + $0x98] sm:$0xff]
  %v6594 = vld [vmem:[#allocation6 + $0xa0] sm:$0xff]
  %v6595 = vld [vmem:[#allocation6 + $0xa8] sm:$0xff]
  %v6596 = vld [vmem:[#allocation6 + $0xb0] sm:$0xff]
  %v6597 = vld [vmem:[#allocation6 + $0xb8] sm:$0xff]
  %v6598 = vld [vmem:[#allocation6 + $0xc0] sm:$0xff]
  %v6599 = vld [vmem:[#allocation6 + $0xc8] sm:$0xff]
  %v6600 = vld [vmem:[#allocation6 + $0xd0] sm:$0xff]
  %v6601 = vld [vmem:[#allocation6 + $0xd8] sm:$0xff]
  %v6602 = vld [vmem:[#allocation6 + $0xe0] sm:$0xff]
  %v6603 = vld [vmem:[#allocation6 + $0xe8] sm:$0xff]
  %v6604 = vld [vmem:[#allocation6 + $0xf0] sm:$0xff]
  %v6605 = vld [vmem:[#allocation6 + $0xf8] sm:$0xff]
  %v6606 = vld [vmem:[#allocation4] sm:$0x3]
  %v6607 = vld [vmem:[#allocation4 + $0x8] sm:$0x3]
  %v6608 = vld [vmem:[#allocation4 + $0x10] sm:$0x3]
  %v6609 = vld [vmem:[#allocation4 + $0x18] sm:$0x3]
  %v6642 = vunpack.c.l.b16 %v6574
  %v6643 = vunpack.c.h.b16 %v6574
  %v6644 = vunpack.c.l.b16 %v6575
  %v6645 = vunpack.c.h.b16 %v6575
  %v6646 = vunpack.c.l.b16 %v6576
  %v6647 = vunpack.c.h.b16 %v6576
  %v6648 = vunpack.c.l.b16 %v6577
  %v6649 = vunpack.c.h.b16 %v6577
  %v6650 = vunpack.c.l.b16 %v6578
  %v6651 = vunpack.c.h.b16 %v6578
  %v6652 = vunpack.c.l.b16 %v6579
  %v6653 = vunpack.c.h.b16 %v6579
  %v6654 = vunpack.c.l.b16 %v6580
  %v6655 = vunpack.c.h.b16 %v6580
  %v6656 = vunpack.c.l.b16 %v6581
  %v6657 = vunpack.c.h.b16 %v6581
  %v6658 = vunpack.c.l.b16 %v6582
  %v6659 = vunpack.c.h.b16 %v6582
  %v6660 = vunpack.c.l.b16 %v6583
  %v6661 = vunpack.c.h.b16 %v6583
  %v6662 = vunpack.c.l.b16 %v6584
  %v6663 = vunpack.c.h.b16 %v6584
  %v6664 = vunpack.c.l.b16 %v6585
  %v6665 = vunpack.c.h.b16 %v6585
  %v6666 = vunpack.c.l.b16 %v6586
  %v6667 = vunpack.c.h.b16 %v6586
  %v6668 = vunpack.c.l.b16 %v6587
  %v6669 = vunpack.c.h.b16 %v6587
  %v6670 = vunpack.c.l.b16 %v6588
  %v6671 = vunpack.c.h.b16 %v6588
  %v6672 = vunpack.c.l.b16 %v6589
  %v6673 = vunpack.c.h.b16 %v6589
  %v6674 = vunpack.c.l.b16 %v6590
  %v6675 = vunpack.c.h.b16 %v6590
  %v6676 = vunpack.c.l.b16 %v6591
  %v6677 = vunpack.c.h.b16 %v6591
  %v6678 = vunpack.c.l.b16 %v6592
  %v6679 = vunpack.c.h.b16 %v6592
  %v6680 = vunpack.c.l.b16 %v6593
  %v6681 = vunpack.c.h.b16 %v6593
  %v6682 = vunpack.c.l.b16 %v6594
  %v6683 = vunpack.c.h.b16 %v6594
  %v6684 = vunpack.c.l.b16 %v6595
  %v6685 = vunpack.c.h.b16 %v6595
  %v6686 = vunpack.c.l.b16 %v6596
  %v6687 = vunpack.c.h.b16 %v6596
  %v6688 = vunpack.c.l.b16 %v6597
  %v6689 = vunpack.c.h.b16 %v6597
  %v6690 = vunpack.c.l.b16 %v6598
  %v6691 = vunpack.c.h.b16 %v6598
  %v6692 = vunpack.c.l.b16 %v6599
  %v6693 = vunpack.c.h.b16 %v6599
  %v6694 = vunpack.c.l.b16 %v6600
  %v6695 = vunpack.c.h.b16 %v6600
  %v6696 = vunpack.c.l.b16 %v6601
  %v6697 = vunpack.c.h.b16 %v6601
  %v6698 = vunpack.c.l.b16 %v6602
  %v6699 = vunpack.c.h.b16 %v6602
  %v6700 = vunpack.c.l.b16 %v6603
  %v6701 = vunpack.c.h.b16 %v6603
  %v6702 = vunpack.c.l.b16 %v6604
  %v6703 = vunpack.c.h.b16 %v6604
  %v6704 = vunpack.c.l.b16 %v6605
  %v6705 = vunpack.c.h.b16 %v6605
  %v6706 = vpack.c.b16 %v6646, %v6642
  %v6707 = vpack.c.b16 %v6647, %v6643
  %v6708 = vpack.c.b16 %v6648, %v6644
  %v6709 = vpack.c.b16 %v6649, %v6645
  %v6710 = vpack.c.b16 %v6654, %v6650
  %v6711 = vpack.c.b16 %v6655, %v6651
  %v6712 = vpack.c.b16 %v6656, %v6652
  %v6713 = vpack.c.b16 %v6657, %v6653
  %v6714 = vpack.c.b16 %v6662, %v6658
  %v6715 = vpack.c.b16 %v6663, %v6659
  %v6716 = vpack.c.b16 %v6664, %v6660
  %v6717 = vpack.c.b16 %v6665, %v6661
  %v6718 = vpack.c.b16 %v6670, %v6666
  %v6719 = vpack.c.b16 %v6671, %v6667
  %v6720 = vpack.c.b16 %v6672, %v6668
  %v6721 = vpack.c.b16 %v6673, %v6669
  %v6722 = vpack.c.b16 %v6678, %v6674
  %v6723 = vpack.c.b16 %v6679, %v6675
  %v6724 = vpack.c.b16 %v6680, %v6676
  %v6725 = vpack.c.b16 %v6681, %v6677
  %v6726 = vpack.c.b16 %v6686, %v6682
  %v6727 = vpack.c.b16 %v6687, %v6683
  %v6728 = vpack.c.b16 %v6688, %v6684
  %v6729 = vpack.c.b16 %v6689, %v6685
  %v6730 = vpack.c.b16 %v6694, %v6690
  %v6731 = vpack.c.b16 %v6695, %v6691
  %v6732 = vpack.c.b16 %v6696, %v6692
  %v6733 = vpack.c.b16 %v6697, %v6693
  %v6734 = vpack.c.b16 %v6702, %v6698
  %v6735 = vpack.c.b16 %v6703, %v6699
  %v6736 = vpack.c.b16 %v6704, %v6700
  %v6737 = vpack.c.b16 %v6705, %v6701
  %6770 = vmatpush.bf16.msra.mxu0 %v6734
  %6771 = vmatpush.bf16.msra.mxu0 %v6730
  %6772 = vmatpush.bf16.msra.mxu0 %v6726
  %6773 = vmatpush.bf16.msra.mxu0 %v6722
  %6774 = vmatpush.bf16.msra.mxu0 %v6718
  %6775 = vmatpush.bf16.msra.mxu0 %v6714
  %6776 = vmatpush.bf16.msra.mxu0 %v6710
  %6777 = vmatpush.bf16.msra.mxu0 %v6706
  %6778 = vmatmul.bf16.gmra.mxu0 0
  %v6779 = vpop.f32.mrf.mxu0
  %v6780 = vadd.f32 %v6606, %v6779
  %v6781 = vpop.f32.mrf.mxu0
  %6782 = vdwg.mxu0
  %6783 = vmatpush.bf16.msra.mxu0 %v6735
  %6784 = vmatpush.bf16.msra.mxu0 %v6731
  %6785 = vmatpush.bf16.msra.mxu0 %v6727
  %6786 = vmatpush.bf16.msra.mxu0 %v6723
  %6787 = vmatpush.bf16.msra.mxu0 %v6719
  %6788 = vmatpush.bf16.msra.mxu0 %v6715
  %6789 = vmatpush.bf16.msra.mxu0 %v6711
  %6790 = vmatpush.bf16.msra.mxu0 %v6707
  %6791 = vmatmul.bf16.gmra.mxu0 0
  %v6792 = vpop.f32.mrf.mxu0
  %v6793 = vadd.f32 %v6607, %v6792
  %v6794 = vpop.f32.mrf.mxu0
  %6795 = vdwg.mxu0
  %6796 = vmatpush.bf16.msra.mxu0 %v6736
  %6797 = vmatpush.bf16.msra.mxu0 %v6732
  %6798 = vmatpush.bf16.msra.mxu0 %v6728
  %6799 = vmatpush.bf16.msra.mxu0 %v6724
  %6800 = vmatpush.bf16.msra.mxu0 %v6720
  %6801 = vmatpush.bf16.msra.mxu0 %v6716
  %6802 = vmatpush.bf16.msra.mxu0 %v6712
  %6803 = vmatpush.bf16.msra.mxu0 %v6708
  %6804 = vmatmul.bf16.gmra.mxu0 0
  %v6805 = vpop.f32.mrf.mxu0
  %v6806 = vadd.f32 %v6608, %v6805
  %v6807 = vpop.f32.mrf.mxu0
  %6808 = vdwg.mxu0
  %6809 = vmatpush.bf16.msra.mxu0 %v6737
  %6810 = vmatpush.bf16.msra.mxu0 %v6733
  %6811 = vmatpush.bf16.msra.mxu0 %v6729
  %6812 = vmatpush.bf16.msra.mxu0 %v6725
  %6813 = vmatpush.bf16.msra.mxu0 %v6721
  %6814 = vmatpush.bf16.msra.mxu0 %v6717
  %6815 = vmatpush.bf16.msra.mxu0 %v6713
  %6816 = vmatpush.bf16.msra.mxu0 %v6709
  %6817 = vmatmul.bf16.gmra.mxu0 0
  %v6818 = vpop.f32.mrf.mxu0
  %v6819 = vadd.f32 %v6609, %v6818
  %v6820 = vpop.f32.mrf.mxu0
  %6821 = vdwg.mxu0
  %v6822 = vld [vmem:[#allocation7] sm:$0xff]
  %v6823 = vld [vmem:[#allocation7 + $0x8] sm:$0xff]
  %v6824 = vld [vmem:[#allocation7 + $0x10] sm:$0xff]
  %v6825 = vld [vmem:[#allocation7 + $0x18] sm:$0xff]
  %v6826 = vld [vmem:[#allocation7 + $0x20] sm:$0xff]
  %v6827 = vld [vmem:[#allocation7 + $0x28] sm:$0xff]
  %v6828 = vld [vmem:[#allocation7 + $0x30] sm:$0xff]
  %v6829 = vld [vmem:[#allocation7 + $0x38] sm:$0xff]
  %v6830 = vld [vmem:[#allocation7 + $0x40] sm:$0xff]
  %v6831 = vld [vmem:[#allocation7 + $0x48] sm:$0xff]
  %v6832 = vld [vmem:[#allocation7 + $0x50] sm:$0xff]
  %v6833 = vld [vmem:[#allocation7 + $0x58] sm:$0xff]
  %v6834 = vld [vmem:[#allocation7 + $0x60] sm:$0xff]
  %v6835 = vld [vmem:[#allocation7 + $0x68] sm:$0xff]
  %v6836 = vld [vmem:[#allocation7 + $0x70] sm:$0xff]
  %v6837 = vld [vmem:[#allocation7 + $0x78] sm:$0xff]
  %v6838 = vld [vmem:[#allocation7 + $0x80] sm:$0xff]
  %v6839 = vld [vmem:[#allocation7 + $0x88] sm:$0xff]
  %v6840 = vld [vmem:[#allocation7 + $0x90] sm:$0xff]
  %v6841 = vld [vmem:[#allocation7 + $0x98] sm:$0xff]
  %v6842 = vld [vmem:[#allocation7 + $0xa0] sm:$0xff]
  %v6843 = vld [vmem:[#allocation7 + $0xa8] sm:$0xff]
  %v6844 = vld [vmem:[#allocation7 + $0xb0] sm:$0xff]
  %v6845 = vld [vmem:[#allocation7 + $0xb8] sm:$0xff]
  %v6846 = vld [vmem:[#allocation7 + $0xc0] sm:$0xff]
  %v6847 = vld [vmem:[#allocation7 + $0xc8] sm:$0xff]
  %v6848 = vld [vmem:[#allocation7 + $0xd0] sm:$0xff]
  %v6849 = vld [vmem:[#allocation7 + $0xd8] sm:$0xff]
  %v6850 = vld [vmem:[#allocation7 + $0xe0] sm:$0xff]
  %v6851 = vld [vmem:[#allocation7 + $0xe8] sm:$0xff]
  %v6852 = vld [vmem:[#allocation7 + $0xf0] sm:$0xff]
  %v6853 = vld [vmem:[#allocation7 + $0xf8] sm:$0xff]
  %v6854 = vld [vmem:[#allocation4 + $0x60] sm:$0xc0]
  %v6855 = vld [vmem:[#allocation4 + $0x68] sm:$0xc0]
  %v6856 = vld [vmem:[#allocation4 + $0x70] sm:$0xc0]
  %v6857 = vld [vmem:[#allocation4 + $0x78] sm:$0xc0]
  %v6890 = vunpack.c.l.b16 %v6822
  %v6891 = vunpack.c.h.b16 %v6822
  %v6892 = vunpack.c.l.b16 %v6823
  %v6893 = vunpack.c.h.b16 %v6823
  %v6894 = vunpack.c.l.b16 %v6824
  %v6895 = vunpack.c.h.b16 %v6824
  %v6896 = vunpack.c.l.b16 %v6825
  %v6897 = vunpack.c.h.b16 %v6825
  %v6898 = vunpack.c.l.b16 %v6826
  %v6899 = vunpack.c.h.b16 %v6826
  %v6900 = vunpack.c.l.b16 %v6827
  %v6901 = vunpack.c.h.b16 %v6827
  %v6902 = vunpack.c.l.b16 %v6828
  %v6903 = vunpack.c.h.b16 %v6828
  %v6904 = vunpack.c.l.b16 %v6829
  %v6905 = vunpack.c.h.b16 %v6829
  %v6906 = vunpack.c.l.b16 %v6830
  %v6907 = vunpack.c.h.b16 %v6830
  %v6908 = vunpack.c.l.b16 %v6831
  %v6909 = vunpack.c.h.b16 %v6831
  %v6910 = vunpack.c.l.b16 %v6832
  %v6911 = vunpack.c.h.b16 %v6832
  %v6912 = vunpack.c.l.b16 %v6833
  %v6913 = vunpack.c.h.b16 %v6833
  %v6914 = vunpack.c.l.b16 %v6834
  %v6915 = vunpack.c.h.b16 %v6834
  %v6916 = vunpack.c.l.b16 %v6835
  %v6917 = vunpack.c.h.b16 %v6835
  %v6918 = vunpack.c.l.b16 %v6836
  %v6919 = vunpack.c.h.b16 %v6836
  %v6920 = vunpack.c.l.b16 %v6837
  %v6921 = vunpack.c.h.b16 %v6837
  %v6922 = vunpack.c.l.b16 %v6838
  %v6923 = vunpack.c.h.b16 %v6838
  %v6924 = vunpack.c.l.b16 %v6839
  %v6925 = vunpack.c.h.b16 %v6839
  %v6926 = vunpack.c.l.b16 %v6840
  %v6927 = vunpack.c.h.b16 %v6840
  %v6928 = vunpack.c.l.b16 %v6841
  %v6929 = vunpack.c.h.b16 %v6841
  %v6930 = vunpack.c.l.b16 %v6842
  %v6931 = vunpack.c.h.b16 %v6842
  %v6932 = vunpack.c.l.b16 %v6843
  %v6933 = vunpack.c.h.b16 %v6843
  %v6934 = vunpack.c.l.b16 %v6844
  %v6935 = vunpack.c.h.b16 %v6844
  %v6936 = vunpack.c.l.b16 %v6845
  %v6937 = vunpack.c.h.b16 %v6845
  %v6938 = vunpack.c.l.b16 %v6846
  %v6939 = vunpack.c.h.b16 %v6846
  %v6940 = vunpack.c.l.b16 %v6847
  %v6941 = vunpack.c.h.b16 %v6847
  %v6942 = vunpack.c.l.b16 %v6848
  %v6943 = vunpack.c.h.b16 %v6848
  %v6944 = vunpack.c.l.b16 %v6849
  %v6945 = vunpack.c.h.b16 %v6849
  %v6946 = vunpack.c.l.b16 %v6850
  %v6947 = vunpack.c.h.b16 %v6850
  %v6948 = vunpack.c.l.b16 %v6851
  %v6949 = vunpack.c.h.b16 %v6851
  %v6950 = vunpack.c.l.b16 %v6852
  %v6951 = vunpack.c.h.b16 %v6852
  %v6952 = vunpack.c.l.b16 %v6853
  %v6953 = vunpack.c.h.b16 %v6853
  %v6954 = vpack.c.b16 %v6894, %v6890
  %v6955 = vpack.c.b16 %v6895, %v6891
  %v6956 = vpack.c.b16 %v6896, %v6892
  %v6957 = vpack.c.b16 %v6897, %v6893
  %v6958 = vpack.c.b16 %v6902, %v6898
  %v6959 = vpack.c.b16 %v6903, %v6899
  %v6960 = vpack.c.b16 %v6904, %v6900
  %v6961 = vpack.c.b16 %v6905, %v6901
  %v6962 = vpack.c.b16 %v6910, %v6906
  %v6963 = vpack.c.b16 %v6911, %v6907
  %v6964 = vpack.c.b16 %v6912, %v6908
  %v6965 = vpack.c.b16 %v6913, %v6909
  %v6966 = vpack.c.b16 %v6918, %v6914
  %v6967 = vpack.c.b16 %v6919, %v6915
  %v6968 = vpack.c.b16 %v6920, %v6916
  %v6969 = vpack.c.b16 %v6921, %v6917
  %v6970 = vpack.c.b16 %v6926, %v6922
  %v6971 = vpack.c.b16 %v6927, %v6923
  %v6972 = vpack.c.b16 %v6928, %v6924
  %v6973 = vpack.c.b16 %v6929, %v6925
  %v6974 = vpack.c.b16 %v6934, %v6930
  %v6975 = vpack.c.b16 %v6935, %v6931
  %v6976 = vpack.c.b16 %v6936, %v6932
  %v6977 = vpack.c.b16 %v6937, %v6933
  %v6978 = vpack.c.b16 %v6942, %v6938
  %v6979 = vpack.c.b16 %v6943, %v6939
  %v6980 = vpack.c.b16 %v6944, %v6940
  %v6981 = vpack.c.b16 %v6945, %v6941
  %v6982 = vpack.c.b16 %v6950, %v6946
  %v6983 = vpack.c.b16 %v6951, %v6947
  %v6984 = vpack.c.b16 %v6952, %v6948
  %v6985 = vpack.c.b16 %v6953, %v6949
  %v7022 = vrot.slane %v6854, 6
  %v7023 = vrot.slane %v6855, 6
  %v7024 = vrot.slane %v6856, 6
  %v7025 = vrot.slane %v6857, 6
  %7030 = vmatpush.bf16.msra.mxu0 %v6982
  %7031 = vmatpush.bf16.msra.mxu0 %v6978
  %7032 = vmatpush.bf16.msra.mxu0 %v6974
  %7033 = vmatpush.bf16.msra.mxu0 %v6970
  %7034 = vmatpush.bf16.msra.mxu0 %v6966
  %7035 = vmatpush.bf16.msra.mxu0 %v6962
  %7036 = vmatpush.bf16.msra.mxu0 %v6958
  %7037 = vmatpush.bf16.msra.mxu0 %v6954
  %7038 = vmatmul.bf16.gmra.mxu0 0
  %v7039 = vpop.f32.mrf.mxu0
  %v7040 = vadd.f32 %v7022, %v7039
  %v7041 = vpop.f32.mrf.mxu0
  %7042 = vdwg.mxu0
  %7043 = vmatpush.bf16.msra.mxu0 %v6983
  %7044 = vmatpush.bf16.msra.mxu0 %v6979
  %7045 = vmatpush.bf16.msra.mxu0 %v6975
  %7046 = vmatpush.bf16.msra.mxu0 %v6971
  %7047 = vmatpush.bf16.msra.mxu0 %v6967
  %7048 = vmatpush.bf16.msra.mxu0 %v6963
  %7049 = vmatpush.bf16.msra.mxu0 %v6959
  %7050 = vmatpush.bf16.msra.mxu0 %v6955
  %7051 = vmatmul.bf16.gmra.mxu0 0
  %v7052 = vpop.f32.mrf.mxu0
  %v7053 = vadd.f32 %v7023, %v7052
  %v7054 = vpop.f32.mrf.mxu0
  %7055 = vdwg.mxu0
  %7056 = vmatpush.bf16.msra.mxu0 %v6984
  %7057 = vmatpush.bf16.msra.mxu0 %v6980
  %7058 = vmatpush.bf16.msra.mxu0 %v6976
  %7059 = vmatpush.bf16.msra.mxu0 %v6972
  %7060 = vmatpush.bf16.msra.mxu0 %v6968
  %7061 = vmatpush.bf16.msra.mxu0 %v6964
  %7062 = vmatpush.bf16.msra.mxu0 %v6960
  %7063 = vmatpush.bf16.msra.mxu0 %v6956
  %7064 = vmatmul.bf16.gmra.mxu0 0
  %v7065 = vpop.f32.mrf.mxu0
  %v7066 = vadd.f32 %v7024, %v7065
  %v7067 = vpop.f32.mrf.mxu0
  %7068 = vdwg.mxu0
  %7069 = vmatpush.bf16.msra.mxu0 %v6985
  %7070 = vmatpush.bf16.msra.mxu0 %v6981
  %7071 = vmatpush.bf16.msra.mxu0 %v6977
  %7072 = vmatpush.bf16.msra.mxu0 %v6973
  %7073 = vmatpush.bf16.msra.mxu0 %v6969
  %7074 = vmatpush.bf16.msra.mxu0 %v6965
  %7075 = vmatpush.bf16.msra.mxu0 %v6961
  %7076 = vmatpush.bf16.msra.mxu0 %v6957
  %7077 = vmatmul.bf16.gmra.mxu0 0
  %v7078 = vpop.f32.mrf.mxu0
  %v7079 = vadd.f32 %v7025, %v7078
  %v7080 = vpop.f32.mrf.mxu0
  %7081 = vdwg.mxu0
  %v7086 = vrot.slane %v7040, 6
  %v7087 = vrot.slane %v7053, 6
  %v7088 = vrot.slane %v7066, 6
  %v7089 = vrot.slane %v7079, 6
  %v7094 = vsel %vm1239, %v6780, %v7086
  %v7095 = vsel %vm1239, %v6793, %v7087
  %v7096 = vsel %vm1239, %v6806, %v7088
  %v7097 = vsel %vm1239, %v6819, %v7089
  %v7098 = vxor.u32 %v7094, 2147483648
  %v7099 = vmul.f32 %v7098, 1.442695
  %v7100 = vpow.pop %v7099
  %v7101 = vadd.f32 %v7100, 1.0
  %v7102 = vrcp.pop %v7101
  %v7103 = vmul.f32 %v7101, %v7102
  %v7104 = vsub.f32 1.0, %v7103
  %v7105 = vmul.f32 %v7102, %v7104
  %v7106 = vadd.f32 %v7102, %v7105
  %vm7107 = vweird.f32 %v7101
  %vm7108 = vweird.f32 %v7102
  %vm7109 = vmor %vm7107, %vm7108
  %v7110 = vsel %vm7109, %v7102, %v7106
  %v7111 = vand.u32 2147483647, %v7101
  %vm7112 = vcmp.eq.f32.partialorder %v7111, 8.507059e+37
  %v7113 = vand.u32 %v7101, 2147483648
  %v7114 = vor.u32 1.1754944e-38, %v7113
  %v7115 = vsel %vm7112, %v7114, %v7110
  %v7116 = vmul.f32 1.0, %v7115
  %v7117 = vxor.u32 %v7095, 2147483648
  %v7118 = vmul.f32 %v7117, 1.442695
  %v7119 = vpow.pop %v7118
  %v7120 = vadd.f32 %v7119, 1.0
  %v7121 = vrcp.pop %v7120
  %v7122 = vmul.f32 %v7120, %v7121
  %v7123 = vsub.f32 1.0, %v7122
  %v7124 = vmul.f32 %v7121, %v7123
  %v7125 = vadd.f32 %v7121, %v7124
  %vm7126 = vweird.f32 %v7120
  %vm7127 = vweird.f32 %v7121
  %vm7128 = vmor %vm7126, %vm7127
  %v7129 = vsel %vm7128, %v7121, %v7125
  %v7130 = vand.u32 2147483647, %v7120
  %vm7131 = vcmp.eq.f32.partialorder %v7130, 8.507059e+37
  %v7132 = vand.u32 %v7120, 2147483648
  %v7133 = vor.u32 1.1754944e-38, %v7132
  %v7134 = vsel %vm7131, %v7133, %v7129
  %v7135 = vmul.f32 1.0, %v7134
  %v7136 = vtanh.pop %v7096
  %v7137 = vxor.u32 %v7097, 2147483648
  %v7138 = vmul.f32 %v7137, 1.442695
  %v7139 = vpow.pop %v7138
  %v7140 = vadd.f32 %v7139, 1.0
  %v7141 = vrcp.pop %v7140
  %v7142 = vmul.f32 %v7140, %v7141
  %v7143 = vsub.f32 1.0, %v7142
  %v7144 = vmul.f32 %v7141, %v7143
  %v7145 = vadd.f32 %v7141, %v7144
  %vm7146 = vweird.f32 %v7140
  %vm7147 = vweird.f32 %v7141
  %vm7148 = vmor %vm7146, %vm7147
  %v7149 = vsel %vm7148, %v7141, %v7145
  %v7150 = vand.u32 2147483647, %v7140
  %vm7151 = vcmp.eq.f32.partialorder %v7150, 8.507059e+37
  %v7152 = vand.u32 %v7140, 2147483648
  %v7153 = vor.u32 1.1754944e-38, %v7152
  %v7154 = vsel %vm7151, %v7153, %v7149
  %v7155 = vmul.f32 1.0, %v7154
  %v7156 = vmul.f32 %v7135, 0.0
  %v7157 = vmul.f32 %v7116, %v7136
  %v7158 = vadd.f32 %v7156, %v7157
  %v7159 = vtanh.pop %v7158
  %v7160 = vmul.f32 %v7155, %v7159
  %7161 = vst [vmem:[#allocation3] sm:$0x3] %v7160
  %v7163 = vrot.slane %v7160, 4
  %7165 = vst [vmem:[#allocation3 + $0x18] sm:$0xc0] %v7163
  %v7166 = vpack.c.bf16 %v7160, %v7160
  %v7167 = vld [vmem:[#allocation6] sm:$0xff]
  %v7168 = vld [vmem:[#allocation6 + $0x8] sm:$0xff]
  %v7169 = vld [vmem:[#allocation6 + $0x10] sm:$0xff]
  %v7170 = vld [vmem:[#allocation6 + $0x18] sm:$0xff]
  %v7171 = vld [vmem:[#allocation6 + $0x20] sm:$0xff]
  %v7172 = vld [vmem:[#allocation6 + $0x28] sm:$0xff]
  %v7173 = vld [vmem:[#allocation6 + $0x30] sm:$0xff]
  %v7174 = vld [vmem:[#allocation6 + $0x38] sm:$0xff]
  %v7175 = vld [vmem:[#allocation6 + $0x40] sm:$0xff]
  %v7176 = vld [vmem:[#allocation6 + $0x48] sm:$0xff]
  %v7177 = vld [vmem:[#allocation6 + $0x50] sm:$0xff]
  %v7178 = vld [vmem:[#allocation6 + $0x58] sm:$0xff]
  %v7179 = vld [vmem:[#allocation6 + $0x60] sm:$0xff]
  %v7180 = vld [vmem:[#allocation6 + $0x68] sm:$0xff]
  %v7181 = vld [vmem:[#allocation6 + $0x70] sm:$0xff]
  %v7182 = vld [vmem:[#allocation6 + $0x78] sm:$0xff]
  %v7183 = vld [vmem:[#allocation6 + $0x80] sm:$0xff]
  %v7184 = vld [vmem:[#allocation6 + $0x88] sm:$0xff]
  %v7185 = vld [vmem:[#allocation6 + $0x90] sm:$0xff]
  %v7186 = vld [vmem:[#allocation6 + $0x98] sm:$0xff]
  %v7187 = vld [vmem:[#allocation6 + $0xa0] sm:$0xff]
  %v7188 = vld [vmem:[#allocation6 + $0xa8] sm:$0xff]
  %v7189 = vld [vmem:[#allocation6 + $0xb0] sm:$0xff]
  %v7190 = vld [vmem:[#allocation6 + $0xb8] sm:$0xff]
  %v7191 = vld [vmem:[#allocation6 + $0xc0] sm:$0xff]
  %v7192 = vld [vmem:[#allocation6 + $0xc8] sm:$0xff]
  %v7193 = vld [vmem:[#allocation6 + $0xd0] sm:$0xff]
  %v7194 = vld [vmem:[#allocation6 + $0xd8] sm:$0xff]
  %v7195 = vld [vmem:[#allocation6 + $0xe0] sm:$0xff]
  %v7196 = vld [vmem:[#allocation6 + $0xe8] sm:$0xff]
  %v7197 = vld [vmem:[#allocation6 + $0xf0] sm:$0xff]
  %v7198 = vld [vmem:[#allocation6 + $0xf8] sm:$0xff]
  %v7199 = vld [vmem:[#allocation4] sm:$0xc]
  %v7200 = vld [vmem:[#allocation4 + $0x8] sm:$0xc]
  %v7201 = vld [vmem:[#allocation4 + $0x10] sm:$0xc]
  %v7202 = vld [vmem:[#allocation4 + $0x18] sm:$0xc]
  %v7235 = vunpack.c.l.b16 %v7167
  %v7236 = vunpack.c.h.b16 %v7167
  %v7237 = vunpack.c.l.b16 %v7168
  %v7238 = vunpack.c.h.b16 %v7168
  %v7239 = vunpack.c.l.b16 %v7169
  %v7240 = vunpack.c.h.b16 %v7169
  %v7241 = vunpack.c.l.b16 %v7170
  %v7242 = vunpack.c.h.b16 %v7170
  %v7243 = vunpack.c.l.b16 %v7171
  %v7244 = vunpack.c.h.b16 %v7171
  %v7245 = vunpack.c.l.b16 %v7172
  %v7246 = vunpack.c.h.b16 %v7172
  %v7247 = vunpack.c.l.b16 %v7173
  %v7248 = vunpack.c.h.b16 %v7173
  %v7249 = vunpack.c.l.b16 %v7174
  %v7250 = vunpack.c.h.b16 %v7174
  %v7251 = vunpack.c.l.b16 %v7175
  %v7252 = vunpack.c.h.b16 %v7175
  %v7253 = vunpack.c.l.b16 %v7176
  %v7254 = vunpack.c.h.b16 %v7176
  %v7255 = vunpack.c.l.b16 %v7177
  %v7256 = vunpack.c.h.b16 %v7177
  %v7257 = vunpack.c.l.b16 %v7178
  %v7258 = vunpack.c.h.b16 %v7178
  %v7259 = vunpack.c.l.b16 %v7179
  %v7260 = vunpack.c.h.b16 %v7179
  %v7261 = vunpack.c.l.b16 %v7180
  %v7262 = vunpack.c.h.b16 %v7180
  %v7263 = vunpack.c.l.b16 %v7181
  %v7264 = vunpack.c.h.b16 %v7181
  %v7265 = vunpack.c.l.b16 %v7182
  %v7266 = vunpack.c.h.b16 %v7182
  %v7267 = vunpack.c.l.b16 %v7183
  %v7268 = vunpack.c.h.b16 %v7183
  %v7269 = vunpack.c.l.b16 %v7184
  %v7270 = vunpack.c.h.b16 %v7184
  %v7271 = vunpack.c.l.b16 %v7185
  %v7272 = vunpack.c.h.b16 %v7185
  %v7273 = vunpack.c.l.b16 %v7186
  %v7274 = vunpack.c.h.b16 %v7186
  %v7275 = vunpack.c.l.b16 %v7187
  %v7276 = vunpack.c.h.b16 %v7187
  %v7277 = vunpack.c.l.b16 %v7188
  %v7278 = vunpack.c.h.b16 %v7188
  %v7279 = vunpack.c.l.b16 %v7189
  %v7280 = vunpack.c.h.b16 %v7189
  %v7281 = vunpack.c.l.b16 %v7190
  %v7282 = vunpack.c.h.b16 %v7190
  %v7283 = vunpack.c.l.b16 %v7191
  %v7284 = vunpack.c.h.b16 %v7191
  %v7285 = vunpack.c.l.b16 %v7192
  %v7286 = vunpack.c.h.b16 %v7192
  %v7287 = vunpack.c.l.b16 %v7193
  %v7288 = vunpack.c.h.b16 %v7193
  %v7289 = vunpack.c.l.b16 %v7194
  %v7290 = vunpack.c.h.b16 %v7194
  %v7291 = vunpack.c.l.b16 %v7195
  %v7292 = vunpack.c.h.b16 %v7195
  %v7293 = vunpack.c.l.b16 %v7196
  %v7294 = vunpack.c.h.b16 %v7196
  %v7295 = vunpack.c.l.b16 %v7197
  %v7296 = vunpack.c.h.b16 %v7197
  %v7297 = vunpack.c.l.b16 %v7198
  %v7298 = vunpack.c.h.b16 %v7198
  %v7299 = vpack.c.b16 %v7239, %v7235
  %v7300 = vpack.c.b16 %v7240, %v7236
  %v7301 = vpack.c.b16 %v7241, %v7237
  %v7302 = vpack.c.b16 %v7242, %v7238
  %v7303 = vpack.c.b16 %v7247, %v7243
  %v7304 = vpack.c.b16 %v7248, %v7244
  %v7305 = vpack.c.b16 %v7249, %v7245
  %v7306 = vpack.c.b16 %v7250, %v7246
  %v7307 = vpack.c.b16 %v7255, %v7251
  %v7308 = vpack.c.b16 %v7256, %v7252
  %v7309 = vpack.c.b16 %v7257, %v7253
  %v7310 = vpack.c.b16 %v7258, %v7254
  %v7311 = vpack.c.b16 %v7263, %v7259
  %v7312 = vpack.c.b16 %v7264, %v7260
  %v7313 = vpack.c.b16 %v7265, %v7261
  %v7314 = vpack.c.b16 %v7266, %v7262
  %v7315 = vpack.c.b16 %v7271, %v7267
  %v7316 = vpack.c.b16 %v7272, %v7268
  %v7317 = vpack.c.b16 %v7273, %v7269
  %v7318 = vpack.c.b16 %v7274, %v7270
  %v7319 = vpack.c.b16 %v7279, %v7275
  %v7320 = vpack.c.b16 %v7280, %v7276
  %v7321 = vpack.c.b16 %v7281, %v7277
  %v7322 = vpack.c.b16 %v7282, %v7278
  %v7323 = vpack.c.b16 %v7287, %v7283
  %v7324 = vpack.c.b16 %v7288, %v7284
  %v7325 = vpack.c.b16 %v7289, %v7285
  %v7326 = vpack.c.b16 %v7290, %v7286
  %v7327 = vpack.c.b16 %v7295, %v7291
  %v7328 = vpack.c.b16 %v7296, %v7292
  %v7329 = vpack.c.b16 %v7297, %v7293
  %v7330 = vpack.c.b16 %v7298, %v7294
  %v7367 = vrot.slane %v7199, 2
  %v7368 = vrot.slane %v7200, 2
  %v7369 = vrot.slane %v7201, 2
  %v7370 = vrot.slane %v7202, 2
  %7375 = vmatpush.bf16.msra.mxu0 %v7327
  %7376 = vmatpush.bf16.msra.mxu0 %v7323
  %7377 = vmatpush.bf16.msra.mxu0 %v7319
  %7378 = vmatpush.bf16.msra.mxu0 %v7315
  %7379 = vmatpush.bf16.msra.mxu0 %v7311
  %7380 = vmatpush.bf16.msra.mxu0 %v7307
  %7381 = vmatpush.bf16.msra.mxu0 %v7303
  %7382 = vmatpush.bf16.msra.mxu0 %v7299
  %7383 = vmatmul.bf16.gmra.mxu0 %v7166
  %v7384 = vpop.f32.mrf.mxu0
  %v7385 = vadd.f32 %v7367, %v7384
  %v7386 = vpop.f32.mrf.mxu0
  %7387 = vdwg.mxu0
  %7388 = vmatpush.bf16.msra.mxu0 %v7328
  %7389 = vmatpush.bf16.msra.mxu0 %v7324
  %7390 = vmatpush.bf16.msra.mxu0 %v7320
  %7391 = vmatpush.bf16.msra.mxu0 %v7316
  %7392 = vmatpush.bf16.msra.mxu0 %v7312
  %7393 = vmatpush.bf16.msra.mxu0 %v7308
  %7394 = vmatpush.bf16.msra.mxu0 %v7304
  %7395 = vmatpush.bf16.msra.mxu0 %v7300
  %7396 = vmatmul.bf16.gmra.mxu0 %v7166
  %v7397 = vpop.f32.mrf.mxu0
  %v7398 = vadd.f32 %v7368, %v7397
  %v7399 = vpop.f32.mrf.mxu0
  %7400 = vdwg.mxu0
  %7401 = vmatpush.bf16.msra.mxu0 %v7329
  %7402 = vmatpush.bf16.msra.mxu0 %v7325
  %7403 = vmatpush.bf16.msra.mxu0 %v7321
  %7404 = vmatpush.bf16.msra.mxu0 %v7317
  %7405 = vmatpush.bf16.msra.mxu0 %v7313
  %7406 = vmatpush.bf16.msra.mxu0 %v7309
  %7407 = vmatpush.bf16.msra.mxu0 %v7305
  %7408 = vmatpush.bf16.msra.mxu0 %v7301
  %7409 = vmatmul.bf16.gmra.mxu0 %v7166
  %v7410 = vpop.f32.mrf.mxu0
  %v7411 = vadd.f32 %v7369, %v7410
  %v7412 = vpop.f32.mrf.mxu0
  %7413 = vdwg.mxu0
  %7414 = vmatpush.bf16.msra.mxu0 %v7330
  %7415 = vmatpush.bf16.msra.mxu0 %v7326
  %7416 = vmatpush.bf16.msra.mxu0 %v7322
  %7417 = vmatpush.bf16.msra.mxu0 %v7318
  %7418 = vmatpush.bf16.msra.mxu0 %v7314
  %7419 = vmatpush.bf16.msra.mxu0 %v7310
  %7420 = vmatpush.bf16.msra.mxu0 %v7306
  %7421 = vmatpush.bf16.msra.mxu0 %v7302
  %7422 = vmatmul.bf16.gmra.mxu0 %v7166
  %v7423 = vpop.f32.mrf.mxu0
  %v7424 = vadd.f32 %v7370, %v7423
  %v7425 = vpop.f32.mrf.mxu0
  %7426 = vdwg.mxu0
  %v7427 = vld [vmem:[#allocation7] sm:$0xff]
  %v7428 = vld [vmem:[#allocation7 + $0x8] sm:$0xff]
  %v7429 = vld [vmem:[#allocation7 + $0x10] sm:$0xff]
  %v7430 = vld [vmem:[#allocation7 + $0x18] sm:$0xff]
  %v7431 = vld [vmem:[#allocation7 + $0x20] sm:$0xff]
  %v7432 = vld [vmem:[#allocation7 + $0x28] sm:$0xff]
  %v7433 = vld [vmem:[#allocation7 + $0x30] sm:$0xff]
  %v7434 = vld [vmem:[#allocation7 + $0x38] sm:$0xff]
  %v7435 = vld [vmem:[#allocation7 + $0x40] sm:$0xff]
  %v7436 = vld [vmem:[#allocation7 + $0x48] sm:$0xff]
  %v7437 = vld [vmem:[#allocation7 + $0x50] sm:$0xff]
  %v7438 = vld [vmem:[#allocation7 + $0x58] sm:$0xff]
  %v7439 = vld [vmem:[#allocation7 + $0x60] sm:$0xff]
  %v7440 = vld [vmem:[#allocation7 + $0x68] sm:$0xff]
  %v7441 = vld [vmem:[#allocation7 + $0x70] sm:$0xff]
  %v7442 = vld [vmem:[#allocation7 + $0x78] sm:$0xff]
  %v7443 = vld [vmem:[#allocation7 + $0x80] sm:$0xff]
  %v7444 = vld [vmem:[#allocation7 + $0x88] sm:$0xff]
  %v7445 = vld [vmem:[#allocation7 + $0x90] sm:$0xff]
  %v7446 = vld [vmem:[#allocation7 + $0x98] sm:$0xff]
  %v7447 = vld [vmem:[#allocation7 + $0xa0] sm:$0xff]
  %v7448 = vld [vmem:[#allocation7 + $0xa8] sm:$0xff]
  %v7449 = vld [vmem:[#allocation7 + $0xb0] sm:$0xff]
  %v7450 = vld [vmem:[#allocation7 + $0xb8] sm:$0xff]
  %v7451 = vld [vmem:[#allocation7 + $0xc0] sm:$0xff]
  %v7452 = vld [vmem:[#allocation7 + $0xc8] sm:$0xff]
  %v7453 = vld [vmem:[#allocation7 + $0xd0] sm:$0xff]
  %v7454 = vld [vmem:[#allocation7 + $0xd8] sm:$0xff]
  %v7455 = vld [vmem:[#allocation7 + $0xe0] sm:$0xff]
  %v7456 = vld [vmem:[#allocation7 + $0xe8] sm:$0xff]
  %v7457 = vld [vmem:[#allocation7 + $0xf0] sm:$0xff]
  %v7458 = vld [vmem:[#allocation7 + $0xf8] sm:$0xff]
  %v7459 = vld [vmem:[#allocation4 + $0x60] sm:$0x30]
  %v7460 = vld [vmem:[#allocation4 + $0x68] sm:$0x30]
  %v7461 = vld [vmem:[#allocation4 + $0x70] sm:$0x30]
  %v7462 = vld [vmem:[#allocation4 + $0x78] sm:$0x30]
  %v7464 = vrot.slane %v7166, 1
  %v7498 = vunpack.c.l.b16 %v7427
  %v7499 = vunpack.c.h.b16 %v7427
  %v7500 = vunpack.c.l.b16 %v7428
  %v7501 = vunpack.c.h.b16 %v7428
  %v7502 = vunpack.c.l.b16 %v7429
  %v7503 = vunpack.c.h.b16 %v7429
  %v7504 = vunpack.c.l.b16 %v7430
  %v7505 = vunpack.c.h.b16 %v7430
  %v7506 = vunpack.c.l.b16 %v7431
  %v7507 = vunpack.c.h.b16 %v7431
  %v7508 = vunpack.c.l.b16 %v7432
  %v7509 = vunpack.c.h.b16 %v7432
  %v7510 = vunpack.c.l.b16 %v7433
  %v7511 = vunpack.c.h.b16 %v7433
  %v7512 = vunpack.c.l.b16 %v7434
  %v7513 = vunpack.c.h.b16 %v7434
  %v7514 = vunpack.c.l.b16 %v7435
  %v7515 = vunpack.c.h.b16 %v7435
  %v7516 = vunpack.c.l.b16 %v7436
  %v7517 = vunpack.c.h.b16 %v7436
  %v7518 = vunpack.c.l.b16 %v7437
  %v7519 = vunpack.c.h.b16 %v7437
  %v7520 = vunpack.c.l.b16 %v7438
  %v7521 = vunpack.c.h.b16 %v7438
  %v7522 = vunpack.c.l.b16 %v7439
  %v7523 = vunpack.c.h.b16 %v7439
  %v7524 = vunpack.c.l.b16 %v7440
  %v7525 = vunpack.c.h.b16 %v7440
  %v7526 = vunpack.c.l.b16 %v7441
  %v7527 = vunpack.c.h.b16 %v7441
  %v7528 = vunpack.c.l.b16 %v7442
  %v7529 = vunpack.c.h.b16 %v7442
  %v7530 = vunpack.c.l.b16 %v7443
  %v7531 = vunpack.c.h.b16 %v7443
  %v7532 = vunpack.c.l.b16 %v7444
  %v7533 = vunpack.c.h.b16 %v7444
  %v7534 = vunpack.c.l.b16 %v7445
  %v7535 = vunpack.c.h.b16 %v7445
  %v7536 = vunpack.c.l.b16 %v7446
  %v7537 = vunpack.c.h.b16 %v7446
  %v7538 = vunpack.c.l.b16 %v7447
  %v7539 = vunpack.c.h.b16 %v7447
  %v7540 = vunpack.c.l.b16 %v7448
  %v7541 = vunpack.c.h.b16 %v7448
  %v7542 = vunpack.c.l.b16 %v7449
  %v7543 = vunpack.c.h.b16 %v7449
  %v7544 = vunpack.c.l.b16 %v7450
  %v7545 = vunpack.c.h.b16 %v7450
  %v7546 = vunpack.c.l.b16 %v7451
  %v7547 = vunpack.c.h.b16 %v7451
  %v7548 = vunpack.c.l.b16 %v7452
  %v7549 = vunpack.c.h.b16 %v7452
  %v7550 = vunpack.c.l.b16 %v7453
  %v7551 = vunpack.c.h.b16 %v7453
  %v7552 = vunpack.c.l.b16 %v7454
  %v7553 = vunpack.c.h.b16 %v7454
  %v7554 = vunpack.c.l.b16 %v7455
  %v7555 = vunpack.c.h.b16 %v7455
  %v7556 = vunpack.c.l.b16 %v7456
  %v7557 = vunpack.c.h.b16 %v7456
  %v7558 = vunpack.c.l.b16 %v7457
  %v7559 = vunpack.c.h.b16 %v7457
  %v7560 = vunpack.c.l.b16 %v7458
  %v7561 = vunpack.c.h.b16 %v7458
  %v7562 = vpack.c.b16 %v7502, %v7498
  %v7563 = vpack.c.b16 %v7503, %v7499
  %v7564 = vpack.c.b16 %v7504, %v7500
  %v7565 = vpack.c.b16 %v7505, %v7501
  %v7566 = vpack.c.b16 %v7510, %v7506
  %v7567 = vpack.c.b16 %v7511, %v7507
  %v7568 = vpack.c.b16 %v7512, %v7508
  %v7569 = vpack.c.b16 %v7513, %v7509
  %v7570 = vpack.c.b16 %v7518, %v7514
  %v7571 = vpack.c.b16 %v7519, %v7515
  %v7572 = vpack.c.b16 %v7520, %v7516
  %v7573 = vpack.c.b16 %v7521, %v7517
  %v7574 = vpack.c.b16 %v7526, %v7522
  %v7575 = vpack.c.b16 %v7527, %v7523
  %v7576 = vpack.c.b16 %v7528, %v7524
  %v7577 = vpack.c.b16 %v7529, %v7525
  %v7578 = vpack.c.b16 %v7534, %v7530
  %v7579 = vpack.c.b16 %v7535, %v7531
  %v7580 = vpack.c.b16 %v7536, %v7532
  %v7581 = vpack.c.b16 %v7537, %v7533
  %v7582 = vpack.c.b16 %v7542, %v7538
  %v7583 = vpack.c.b16 %v7543, %v7539
  %v7584 = vpack.c.b16 %v7544, %v7540
  %v7585 = vpack.c.b16 %v7545, %v7541
  %v7586 = vpack.c.b16 %v7550, %v7546
  %v7587 = vpack.c.b16 %v7551, %v7547
  %v7588 = vpack.c.b16 %v7552, %v7548
  %v7589 = vpack.c.b16 %v7553, %v7549
  %v7590 = vpack.c.b16 %v7558, %v7554
  %v7591 = vpack.c.b16 %v7559, %v7555
  %v7592 = vpack.c.b16 %v7560, %v7556
  %v7593 = vpack.c.b16 %v7561, %v7557
  %v7630 = vrot.slane %v7459, 4
  %v7631 = vrot.slane %v7460, 4
  %v7632 = vrot.slane %v7461, 4
  %v7633 = vrot.slane %v7462, 4
  %7638 = vmatpush.bf16.msra.mxu0 %v7590
  %7639 = vmatpush.bf16.msra.mxu0 %v7586
  %7640 = vmatpush.bf16.msra.mxu0 %v7582
  %7641 = vmatpush.bf16.msra.mxu0 %v7578
  %7642 = vmatpush.bf16.msra.mxu0 %v7574
  %7643 = vmatpush.bf16.msra.mxu0 %v7570
  %7644 = vmatpush.bf16.msra.mxu0 %v7566
  %7645 = vmatpush.bf16.msra.mxu0 %v7562
  %7646 = vmatmul.bf16.gmra.mxu0 %v7464
  %v7647 = vpop.f32.mrf.mxu0
  %v7648 = vadd.f32 %v7630, %v7647
  %v7649 = vpop.f32.mrf.mxu0
  %7650 = vdwg.mxu0
  %7651 = vmatpush.bf16.msra.mxu0 %v7591
  %7652 = vmatpush.bf16.msra.mxu0 %v7587
  %7653 = vmatpush.bf16.msra.mxu0 %v7583
  %7654 = vmatpush.bf16.msra.mxu0 %v7579
  %7655 = vmatpush.bf16.msra.mxu0 %v7575
  %7656 = vmatpush.bf16.msra.mxu0 %v7571
  %7657 = vmatpush.bf16.msra.mxu0 %v7567
  %7658 = vmatpush.bf16.msra.mxu0 %v7563
  %7659 = vmatmul.bf16.gmra.mxu0 %v7464
  %v7660 = vpop.f32.mrf.mxu0
  %v7661 = vadd.f32 %v7631, %v7660
  %v7662 = vpop.f32.mrf.mxu0
  %7663 = vdwg.mxu0
  %7664 = vmatpush.bf16.msra.mxu0 %v7592
  %7665 = vmatpush.bf16.msra.mxu0 %v7588
  %7666 = vmatpush.bf16.msra.mxu0 %v7584
  %7667 = vmatpush.bf16.msra.mxu0 %v7580
  %7668 = vmatpush.bf16.msra.mxu0 %v7576
  %7669 = vmatpush.bf16.msra.mxu0 %v7572
  %7670 = vmatpush.bf16.msra.mxu0 %v7568
  %7671 = vmatpush.bf16.msra.mxu0 %v7564
  %7672 = vmatmul.bf16.gmra.mxu0 %v7464
  %v7673 = vpop.f32.mrf.mxu0
  %v7674 = vadd.f32 %v7632, %v7673
  %v7675 = vpop.f32.mrf.mxu0
  %7676 = vdwg.mxu0
  %7677 = vmatpush.bf16.msra.mxu0 %v7593
  %7678 = vmatpush.bf16.msra.mxu0 %v7589
  %7679 = vmatpush.bf16.msra.mxu0 %v7585
  %7680 = vmatpush.bf16.msra.mxu0 %v7581
  %7681 = vmatpush.bf16.msra.mxu0 %v7577
  %7682 = vmatpush.bf16.msra.mxu0 %v7573
  %7683 = vmatpush.bf16.msra.mxu0 %v7569
  %7684 = vmatpush.bf16.msra.mxu0 %v7565
  %7685 = vmatmul.bf16.gmra.mxu0 %v7464
  %v7686 = vpop.f32.mrf.mxu0
  %v7687 = vadd.f32 %v7633, %v7686
  %v7688 = vpop.f32.mrf.mxu0
  %7689 = vdwg.mxu0
  %v7694 = vrot.slane %v7648, 6
  %v7695 = vrot.slane %v7661, 6
  %v7696 = vrot.slane %v7674, 6
  %v7697 = vrot.slane %v7687, 6
  %v7702 = vsel %vm1239, %v7385, %v7694
  %v7703 = vsel %vm1239, %v7398, %v7695
  %v7704 = vsel %vm1239, %v7411, %v7696
  %v7705 = vsel %vm1239, %v7424, %v7697
  %v7706 = vxor.u32 %v7702, 2147483648
  %v7707 = vmul.f32 %v7706, 1.442695
  %v7708 = vpow.pop %v7707
  %v7709 = vadd.f32 %v7708, 1.0
  %v7710 = vrcp.pop %v7709
  %v7711 = vmul.f32 %v7709, %v7710
  %v7712 = vsub.f32 1.0, %v7711
  %v7713 = vmul.f32 %v7710, %v7712
  %v7714 = vadd.f32 %v7710, %v7713
  %vm7715 = vweird.f32 %v7709
  %vm7716 = vweird.f32 %v7710
  %vm7717 = vmor %vm7715, %vm7716
  %v7718 = vsel %vm7717, %v7710, %v7714
  %v7719 = vand.u32 2147483647, %v7709
  %vm7720 = vcmp.eq.f32.partialorder %v7719, 8.507059e+37
  %v7721 = vand.u32 %v7709, 2147483648
  %v7722 = vor.u32 1.1754944e-38, %v7721
  %v7723 = vsel %vm7720, %v7722, %v7718
  %v7724 = vmul.f32 1.0, %v7723
  %v7725 = vxor.u32 %v7703, 2147483648
  %v7726 = vmul.f32 %v7725, 1.442695
  %v7727 = vpow.pop %v7726
  %v7728 = vadd.f32 %v7727, 1.0
  %v7729 = vrcp.pop %v7728
  %v7730 = vmul.f32 %v7728, %v7729
  %v7731 = vsub.f32 1.0, %v7730
  %v7732 = vmul.f32 %v7729, %v7731
  %v7733 = vadd.f32 %v7729, %v7732
  %vm7734 = vweird.f32 %v7728
  %vm7735 = vweird.f32 %v7729
  %vm7736 = vmor %vm7734, %vm7735
  %v7737 = vsel %vm7736, %v7729, %v7733
  %v7738 = vand.u32 2147483647, %v7728
  %vm7739 = vcmp.eq.f32.partialorder %v7738, 8.507059e+37
  %v7740 = vand.u32 %v7728, 2147483648
  %v7741 = vor.u32 1.1754944e-38, %v7740
  %v7742 = vsel %vm7739, %v7741, %v7737
  %v7743 = vmul.f32 1.0, %v7742
  %v7744 = vtanh.pop %v7704
  %v7745 = vxor.u32 %v7705, 2147483648
  %v7746 = vmul.f32 %v7745, 1.442695
  %v7747 = vpow.pop %v7746
  %v7748 = vadd.f32 %v7747, 1.0
  %v7749 = vrcp.pop %v7748
  %v7750 = vmul.f32 %v7748, %v7749
  %v7751 = vsub.f32 1.0, %v7750
  %v7752 = vmul.f32 %v7749, %v7751
  %v7753 = vadd.f32 %v7749, %v7752
  %vm7754 = vweird.f32 %v7748
  %vm7755 = vweird.f32 %v7749
  %vm7756 = vmor %vm7754, %vm7755
  %v7757 = vsel %vm7756, %v7749, %v7753
  %v7758 = vand.u32 2147483647, %v7748
  %vm7759 = vcmp.eq.f32.partialorder %v7758, 8.507059e+37
  %v7760 = vand.u32 %v7748, 2147483648
  %v7761 = vor.u32 1.1754944e-38, %v7760
  %v7762 = vsel %vm7759, %v7761, %v7757
  %v7763 = vmul.f32 1.0, %v7762
  %v7764 = vmul.f32 %v7743, %v7158
  %v7765 = vmul.f32 %v7724, %v7744
  %v7766 = vadd.f32 %v7764, %v7765
  %v7767 = vtanh.pop %v7766
  %v7768 = vmul.f32 %v7763, %v7767
  %v7770 = vrot.slane %v7768, 6
  %7772 = vst [vmem:[#allocation3] sm:$0xc] %v7770
  %7773 = vst [vmem:[#allocation3 + $0x18] sm:$0x30] %v7770
  %v7774 = vpack.c.bf16 %v7768, %v7768
  %v7775 = vld [vmem:[#allocation6] sm:$0xff]
  %v7776 = vld [vmem:[#allocation6 + $0x8] sm:$0xff]
  %v7777 = vld [vmem:[#allocation6 + $0x10] sm:$0xff]
  %v7778 = vld [vmem:[#allocation6 + $0x18] sm:$0xff]
  %v7779 = vld [vmem:[#allocation6 + $0x20] sm:$0xff]
  %v7780 = vld [vmem:[#allocation6 + $0x28] sm:$0xff]
  %v7781 = vld [vmem:[#allocation6 + $0x30] sm:$0xff]
  %v7782 = vld [vmem:[#allocation6 + $0x38] sm:$0xff]
  %v7783 = vld [vmem:[#allocation6 + $0x40] sm:$0xff]
  %v7784 = vld [vmem:[#allocation6 + $0x48] sm:$0xff]
  %v7785 = vld [vmem:[#allocation6 + $0x50] sm:$0xff]
  %v7786 = vld [vmem:[#allocation6 + $0x58] sm:$0xff]
  %v7787 = vld [vmem:[#allocation6 + $0x60] sm:$0xff]
  %v7788 = vld [vmem:[#allocation6 + $0x68] sm:$0xff]
  %v7789 = vld [vmem:[#allocation6 + $0x70] sm:$0xff]
  %v7790 = vld [vmem:[#allocation6 + $0x78] sm:$0xff]
  %v7791 = vld [vmem:[#allocation6 + $0x80] sm:$0xff]
  %v7792 = vld [vmem:[#allocation6 + $0x88] sm:$0xff]
  %v7793 = vld [vmem:[#allocation6 + $0x90] sm:$0xff]
  %v7794 = vld [vmem:[#allocation6 + $0x98] sm:$0xff]
  %v7795 = vld [vmem:[#allocation6 + $0xa0] sm:$0xff]
  %v7796 = vld [vmem:[#allocation6 + $0xa8] sm:$0xff]
  %v7797 = vld [vmem:[#allocation6 + $0xb0] sm:$0xff]
  %v7798 = vld [vmem:[#allocation6 + $0xb8] sm:$0xff]
  %v7799 = vld [vmem:[#allocation6 + $0xc0] sm:$0xff]
  %v7800 = vld [vmem:[#allocation6 + $0xc8] sm:$0xff]
  %v7801 = vld [vmem:[#allocation6 + $0xd0] sm:$0xff]
  %v7802 = vld [vmem:[#allocation6 + $0xd8] sm:$0xff]
  %v7803 = vld [vmem:[#allocation6 + $0xe0] sm:$0xff]
  %v7804 = vld [vmem:[#allocation6 + $0xe8] sm:$0xff]
  %v7805 = vld [vmem:[#allocation6 + $0xf0] sm:$0xff]
  %v7806 = vld [vmem:[#allocation6 + $0xf8] sm:$0xff]
  %v7807 = vld [vmem:[#allocation4] sm:$0x30]
  %v7808 = vld [vmem:[#allocation4 + $0x8] sm:$0x30]
  %v7809 = vld [vmem:[#allocation4 + $0x10] sm:$0x30]
  %v7810 = vld [vmem:[#allocation4 + $0x18] sm:$0x30]
  %v7843 = vunpack.c.l.b16 %v7775
  %v7844 = vunpack.c.h.b16 %v7775
  %v7845 = vunpack.c.l.b16 %v7776
  %v7846 = vunpack.c.h.b16 %v7776
  %v7847 = vunpack.c.l.b16 %v7777
  %v7848 = vunpack.c.h.b16 %v7777
  %v7849 = vunpack.c.l.b16 %v7778
  %v7850 = vunpack.c.h.b16 %v7778
  %v7851 = vunpack.c.l.b16 %v7779
  %v7852 = vunpack.c.h.b16 %v7779
  %v7853 = vunpack.c.l.b16 %v7780
  %v7854 = vunpack.c.h.b16 %v7780
  %v7855 = vunpack.c.l.b16 %v7781
  %v7856 = vunpack.c.h.b16 %v7781
  %v7857 = vunpack.c.l.b16 %v7782
  %v7858 = vunpack.c.h.b16 %v7782
  %v7859 = vunpack.c.l.b16 %v7783
  %v7860 = vunpack.c.h.b16 %v7783
  %v7861 = vunpack.c.l.b16 %v7784
  %v7862 = vunpack.c.h.b16 %v7784
  %v7863 = vunpack.c.l.b16 %v7785
  %v7864 = vunpack.c.h.b16 %v7785
  %v7865 = vunpack.c.l.b16 %v7786
  %v7866 = vunpack.c.h.b16 %v7786
  %v7867 = vunpack.c.l.b16 %v7787
  %v7868 = vunpack.c.h.b16 %v7787
  %v7869 = vunpack.c.l.b16 %v7788
  %v7870 = vunpack.c.h.b16 %v7788
  %v7871 = vunpack.c.l.b16 %v7789
  %v7872 = vunpack.c.h.b16 %v7789
  %v7873 = vunpack.c.l.b16 %v7790
  %v7874 = vunpack.c.h.b16 %v7790
  %v7875 = vunpack.c.l.b16 %v7791
  %v7876 = vunpack.c.h.b16 %v7791
  %v7877 = vunpack.c.l.b16 %v7792
  %v7878 = vunpack.c.h.b16 %v7792
  %v7879 = vunpack.c.l.b16 %v7793
  %v7880 = vunpack.c.h.b16 %v7793
  %v7881 = vunpack.c.l.b16 %v7794
  %v7882 = vunpack.c.h.b16 %v7794
  %v7883 = vunpack.c.l.b16 %v7795
  %v7884 = vunpack.c.h.b16 %v7795
  %v7885 = vunpack.c.l.b16 %v7796
  %v7886 = vunpack.c.h.b16 %v7796
  %v7887 = vunpack.c.l.b16 %v7797
  %v7888 = vunpack.c.h.b16 %v7797
  %v7889 = vunpack.c.l.b16 %v7798
  %v7890 = vunpack.c.h.b16 %v7798
  %v7891 = vunpack.c.l.b16 %v7799
  %v7892 = vunpack.c.h.b16 %v7799
  %v7893 = vunpack.c.l.b16 %v7800
  %v7894 = vunpack.c.h.b16 %v7800
  %v7895 = vunpack.c.l.b16 %v7801
  %v7896 = vunpack.c.h.b16 %v7801
  %v7897 = vunpack.c.l.b16 %v7802
  %v7898 = vunpack.c.h.b16 %v7802
  %v7899 = vunpack.c.l.b16 %v7803
  %v7900 = vunpack.c.h.b16 %v7803
  %v7901 = vunpack.c.l.b16 %v7804
  %v7902 = vunpack.c.h.b16 %v7804
  %v7903 = vunpack.c.l.b16 %v7805
  %v7904 = vunpack.c.h.b16 %v7805
  %v7905 = vunpack.c.l.b16 %v7806
  %v7906 = vunpack.c.h.b16 %v7806
  %v7907 = vpack.c.b16 %v7847, %v7843
  %v7908 = vpack.c.b16 %v7848, %v7844
  %v7909 = vpack.c.b16 %v7849, %v7845
  %v7910 = vpack.c.b16 %v7850, %v7846
  %v7911 = vpack.c.b16 %v7855, %v7851
  %v7912 = vpack.c.b16 %v7856, %v7852
  %v7913 = vpack.c.b16 %v7857, %v7853
  %v7914 = vpack.c.b16 %v7858, %v7854
  %v7915 = vpack.c.b16 %v7863, %v7859
  %v7916 = vpack.c.b16 %v7864, %v7860
  %v7917 = vpack.c.b16 %v7865, %v7861
  %v7918 = vpack.c.b16 %v7866, %v7862
  %v7919 = vpack.c.b16 %v7871, %v7867
  %v7920 = vpack.c.b16 %v7872, %v7868
  %v7921 = vpack.c.b16 %v7873, %v7869
  %v7922 = vpack.c.b16 %v7874, %v7870
  %v7923 = vpack.c.b16 %v7879, %v7875
  %v7924 = vpack.c.b16 %v7880, %v7876
  %v7925 = vpack.c.b16 %v7881, %v7877
  %v7926 = vpack.c.b16 %v7882, %v7878
  %v7927 = vpack.c.b16 %v7887, %v7883
  %v7928 = vpack.c.b16 %v7888, %v7884
  %v7929 = vpack.c.b16 %v7889, %v7885
  %v7930 = vpack.c.b16 %v7890, %v7886
  %v7931 = vpack.c.b16 %v7895, %v7891
  %v7932 = vpack.c.b16 %v7896, %v7892
  %v7933 = vpack.c.b16 %v7897, %v7893
  %v7934 = vpack.c.b16 %v7898, %v7894
  %v7935 = vpack.c.b16 %v7903, %v7899
  %v7936 = vpack.c.b16 %v7904, %v7900
  %v7937 = vpack.c.b16 %v7905, %v7901
  %v7938 = vpack.c.b16 %v7906, %v7902
  %v7975 = vrot.slane %v7807, 4
  %v7976 = vrot.slane %v7808, 4
  %v7977 = vrot.slane %v7809, 4
  %v7978 = vrot.slane %v7810, 4
  %7983 = vmatpush.bf16.msra.mxu0 %v7935
  %7984 = vmatpush.bf16.msra.mxu0 %v7931
  %7985 = vmatpush.bf16.msra.mxu0 %v7927
  %7986 = vmatpush.bf16.msra.mxu0 %v7923
  %7987 = vmatpush.bf16.msra.mxu0 %v7919
  %7988 = vmatpush.bf16.msra.mxu0 %v7915
  %7989 = vmatpush.bf16.msra.mxu0 %v7911
  %7990 = vmatpush.bf16.msra.mxu0 %v7907
  %7991 = vmatmul.bf16.gmra.mxu0 %v7774
  %v7992 = vpop.f32.mrf.mxu0
  %v7993 = vadd.f32 %v7975, %v7992
  %v7994 = vpop.f32.mrf.mxu0
  %7995 = vdwg.mxu0
  %7996 = vmatpush.bf16.msra.mxu0 %v7936
  %7997 = vmatpush.bf16.msra.mxu0 %v7932
  %7998 = vmatpush.bf16.msra.mxu0 %v7928
  %7999 = vmatpush.bf16.msra.mxu0 %v7924
  %8000 = vmatpush.bf16.msra.mxu0 %v7920
  %8001 = vmatpush.bf16.msra.mxu0 %v7916
  %8002 = vmatpush.bf16.msra.mxu0 %v7912
  %8003 = vmatpush.bf16.msra.mxu0 %v7908
  %8004 = vmatmul.bf16.gmra.mxu0 %v7774
  %v8005 = vpop.f32.mrf.mxu0
  %v8006 = vadd.f32 %v7976, %v8005
  %v8007 = vpop.f32.mrf.mxu0
  %8008 = vdwg.mxu0
  %8009 = vmatpush.bf16.msra.mxu0 %v7937
  %8010 = vmatpush.bf16.msra.mxu0 %v7933
  %8011 = vmatpush.bf16.msra.mxu0 %v7929
  %8012 = vmatpush.bf16.msra.mxu0 %v7925
  %8013 = vmatpush.bf16.msra.mxu0 %v7921
  %8014 = vmatpush.bf16.msra.mxu0 %v7917
  %8015 = vmatpush.bf16.msra.mxu0 %v7913
  %8016 = vmatpush.bf16.msra.mxu0 %v7909
  %8017 = vmatmul.bf16.gmra.mxu0 %v7774
  %v8018 = vpop.f32.mrf.mxu0
  %v8019 = vadd.f32 %v7977, %v8018
  %v8020 = vpop.f32.mrf.mxu0
  %8021 = vdwg.mxu0
  %8022 = vmatpush.bf16.msra.mxu0 %v7938
  %8023 = vmatpush.bf16.msra.mxu0 %v7934
  %8024 = vmatpush.bf16.msra.mxu0 %v7930
  %8025 = vmatpush.bf16.msra.mxu0 %v7926
  %8026 = vmatpush.bf16.msra.mxu0 %v7922
  %8027 = vmatpush.bf16.msra.mxu0 %v7918
  %8028 = vmatpush.bf16.msra.mxu0 %v7914
  %8029 = vmatpush.bf16.msra.mxu0 %v7910
  %8030 = vmatmul.bf16.gmra.mxu0 %v7774
  %v8031 = vpop.f32.mrf.mxu0
  %v8032 = vadd.f32 %v7978, %v8031
  %v8033 = vpop.f32.mrf.mxu0
  %8034 = vdwg.mxu0
  %v8035 = vld [vmem:[#allocation7] sm:$0xff]
  %v8036 = vld [vmem:[#allocation7 + $0x8] sm:$0xff]
  %v8037 = vld [vmem:[#allocation7 + $0x10] sm:$0xff]
  %v8038 = vld [vmem:[#allocation7 + $0x18] sm:$0xff]
  %v8039 = vld [vmem:[#allocation7 + $0x20] sm:$0xff]
  %v8040 = vld [vmem:[#allocation7 + $0x28] sm:$0xff]
  %v8041 = vld [vmem:[#allocation7 + $0x30] sm:$0xff]
  %v8042 = vld [vmem:[#allocation7 + $0x38] sm:$0xff]
  %v8043 = vld [vmem:[#allocation7 + $0x40] sm:$0xff]
  %v8044 = vld [vmem:[#allocation7 + $0x48] sm:$0xff]
  %v8045 = vld [vmem:[#allocation7 + $0x50] sm:$0xff]
  %v8046 = vld [vmem:[#allocation7 + $0x58] sm:$0xff]
  %v8047 = vld [vmem:[#allocation7 + $0x60] sm:$0xff]
  %v8048 = vld [vmem:[#allocation7 + $0x68] sm:$0xff]
  %v8049 = vld [vmem:[#allocation7 + $0x70] sm:$0xff]
  %v8050 = vld [vmem:[#allocation7 + $0x78] sm:$0xff]
  %v8051 = vld [vmem:[#allocation7 + $0x80] sm:$0xff]
  %v8052 = vld [vmem:[#allocation7 + $0x88] sm:$0xff]
  %v8053 = vld [vmem:[#allocation7 + $0x90] sm:$0xff]
  %v8054 = vld [vmem:[#allocation7 + $0x98] sm:$0xff]
  %v8055 = vld [vmem:[#allocation7 + $0xa0] sm:$0xff]
  %v8056 = vld [vmem:[#allocation7 + $0xa8] sm:$0xff]
  %v8057 = vld [vmem:[#allocation7 + $0xb0] sm:$0xff]
  %v8058 = vld [vmem:[#allocation7 + $0xb8] sm:$0xff]
  %v8059 = vld [vmem:[#allocation7 + $0xc0] sm:$0xff]
  %v8060 = vld [vmem:[#allocation7 + $0xc8] sm:$0xff]
  %v8061 = vld [vmem:[#allocation7 + $0xd0] sm:$0xff]
  %v8062 = vld [vmem:[#allocation7 + $0xd8] sm:$0xff]
  %v8063 = vld [vmem:[#allocation7 + $0xe0] sm:$0xff]
  %v8064 = vld [vmem:[#allocation7 + $0xe8] sm:$0xff]
  %v8065 = vld [vmem:[#allocation7 + $0xf0] sm:$0xff]
  %v8066 = vld [vmem:[#allocation7 + $0xf8] sm:$0xff]
  %v8067 = vld [vmem:[#allocation4 + $0x60] sm:$0xc]
  %v8068 = vld [vmem:[#allocation4 + $0x68] sm:$0xc]
  %v8069 = vld [vmem:[#allocation4 + $0x70] sm:$0xc]
  %v8070 = vld [vmem:[#allocation4 + $0x78] sm:$0xc]
  %v8072 = vrot.slane %v7774, 1
  %v8106 = vunpack.c.l.b16 %v8035
  %v8107 = vunpack.c.h.b16 %v8035
  %v8108 = vunpack.c.l.b16 %v8036
  %v8109 = vunpack.c.h.b16 %v8036
  %v8110 = vunpack.c.l.b16 %v8037
  %v8111 = vunpack.c.h.b16 %v8037
  %v8112 = vunpack.c.l.b16 %v8038
  %v8113 = vunpack.c.h.b16 %v8038
  %v8114 = vunpack.c.l.b16 %v8039
  %v8115 = vunpack.c.h.b16 %v8039
  %v8116 = vunpack.c.l.b16 %v8040
  %v8117 = vunpack.c.h.b16 %v8040
  %v8118 = vunpack.c.l.b16 %v8041
  %v8119 = vunpack.c.h.b16 %v8041
  %v8120 = vunpack.c.l.b16 %v8042
  %v8121 = vunpack.c.h.b16 %v8042
  %v8122 = vunpack.c.l.b16 %v8043
  %v8123 = vunpack.c.h.b16 %v8043
  %v8124 = vunpack.c.l.b16 %v8044
  %v8125 = vunpack.c.h.b16 %v8044
  %v8126 = vunpack.c.l.b16 %v8045
  %v8127 = vunpack.c.h.b16 %v8045
  %v8128 = vunpack.c.l.b16 %v8046
  %v8129 = vunpack.c.h.b16 %v8046
  %v8130 = vunpack.c.l.b16 %v8047
  %v8131 = vunpack.c.h.b16 %v8047
  %v8132 = vunpack.c.l.b16 %v8048
  %v8133 = vunpack.c.h.b16 %v8048
  %v8134 = vunpack.c.l.b16 %v8049
  %v8135 = vunpack.c.h.b16 %v8049
  %v8136 = vunpack.c.l.b16 %v8050
  %v8137 = vunpack.c.h.b16 %v8050
  %v8138 = vunpack.c.l.b16 %v8051
  %v8139 = vunpack.c.h.b16 %v8051
  %v8140 = vunpack.c.l.b16 %v8052
  %v8141 = vunpack.c.h.b16 %v8052
  %v8142 = vunpack.c.l.b16 %v8053
  %v8143 = vunpack.c.h.b16 %v8053
  %v8144 = vunpack.c.l.b16 %v8054
  %v8145 = vunpack.c.h.b16 %v8054
  %v8146 = vunpack.c.l.b16 %v8055
  %v8147 = vunpack.c.h.b16 %v8055
  %v8148 = vunpack.c.l.b16 %v8056
  %v8149 = vunpack.c.h.b16 %v8056
  %v8150 = vunpack.c.l.b16 %v8057
  %v8151 = vunpack.c.h.b16 %v8057
  %v8152 = vunpack.c.l.b16 %v8058
  %v8153 = vunpack.c.h.b16 %v8058
  %v8154 = vunpack.c.l.b16 %v8059
  %v8155 = vunpack.c.h.b16 %v8059
  %v8156 = vunpack.c.l.b16 %v8060
  %v8157 = vunpack.c.h.b16 %v8060
  %v8158 = vunpack.c.l.b16 %v8061
  %v8159 = vunpack.c.h.b16 %v8061
  %v8160 = vunpack.c.l.b16 %v8062
  %v8161 = vunpack.c.h.b16 %v8062
  %v8162 = vunpack.c.l.b16 %v8063
  %v8163 = vunpack.c.h.b16 %v8063
  %v8164 = vunpack.c.l.b16 %v8064
  %v8165 = vunpack.c.h.b16 %v8064
  %v8166 = vunpack.c.l.b16 %v8065
  %v8167 = vunpack.c.h.b16 %v8065
  %v8168 = vunpack.c.l.b16 %v8066
  %v8169 = vunpack.c.h.b16 %v8066
  %v8170 = vpack.c.b16 %v8110, %v8106
  %v8171 = vpack.c.b16 %v8111, %v8107
  %v8172 = vpack.c.b16 %v8112, %v8108
  %v8173 = vpack.c.b16 %v8113, %v8109
  %v8174 = vpack.c.b16 %v8118, %v8114
  %v8175 = vpack.c.b16 %v8119, %v8115
  %v8176 = vpack.c.b16 %v8120, %v8116
  %v8177 = vpack.c.b16 %v8121, %v8117
  %v8178 = vpack.c.b16 %v8126, %v8122
  %v8179 = vpack.c.b16 %v8127, %v8123
  %v8180 = vpack.c.b16 %v8128, %v8124
  %v8181 = vpack.c.b16 %v8129, %v8125
  %v8182 = vpack.c.b16 %v8134, %v8130
  %v8183 = vpack.c.b16 %v8135, %v8131
  %v8184 = vpack.c.b16 %v8136, %v8132
  %v8185 = vpack.c.b16 %v8137, %v8133
  %v8186 = vpack.c.b16 %v8142, %v8138
  %v8187 = vpack.c.b16 %v8143, %v8139
  %v8188 = vpack.c.b16 %v8144, %v8140
  %v8189 = vpack.c.b16 %v8145, %v8141
  %v8190 = vpack.c.b16 %v8150, %v8146
  %v8191 = vpack.c.b16 %v8151, %v8147
  %v8192 = vpack.c.b16 %v8152, %v8148
  %v8193 = vpack.c.b16 %v8153, %v8149
  %v8194 = vpack.c.b16 %v8158, %v8154
  %v8195 = vpack.c.b16 %v8159, %v8155
  %v8196 = vpack.c.b16 %v8160, %v8156
  %v8197 = vpack.c.b16 %v8161, %v8157
  %v8198 = vpack.c.b16 %v8166, %v8162
  %v8199 = vpack.c.b16 %v8167, %v8163
  %v8200 = vpack.c.b16 %v8168, %v8164
  %v8201 = vpack.c.b16 %v8169, %v8165
  %v8238 = vrot.slane %v8067, 2
  %v8239 = vrot.slane %v8068, 2
  %v8240 = vrot.slane %v8069, 2
  %v8241 = vrot.slane %v8070, 2
  %8246 = vmatpush.bf16.msra.mxu0 %v8198
  %8247 = vmatpush.bf16.msra.mxu0 %v8194
  %8248 = vmatpush.bf16.msra.mxu0 %v8190
  %8249 = vmatpush.bf16.msra.mxu0 %v8186
  %8250 = vmatpush.bf16.msra.mxu0 %v8182
  %8251 = vmatpush.bf16.msra.mxu0 %v8178
  %8252 = vmatpush.bf16.msra.mxu0 %v8174
  %8253 = vmatpush.bf16.msra.mxu0 %v8170
  %8254 = vmatmul.bf16.gmra.mxu0 %v8072
  %v8255 = vpop.f32.mrf.mxu0
  %v8256 = vadd.f32 %v8238, %v8255
  %v8257 = vpop.f32.mrf.mxu0
  %8258 = vdwg.mxu0
  %8259 = vmatpush.bf16.msra.mxu0 %v8199
  %8260 = vmatpush.bf16.msra.mxu0 %v8195
  %8261 = vmatpush.bf16.msra.mxu0 %v8191
  %8262 = vmatpush.bf16.msra.mxu0 %v8187
  %8263 = vmatpush.bf16.msra.mxu0 %v8183
  %8264 = vmatpush.bf16.msra.mxu0 %v8179
  %8265 = vmatpush.bf16.msra.mxu0 %v8175
  %8266 = vmatpush.bf16.msra.mxu0 %v8171
  %8267 = vmatmul.bf16.gmra.mxu0 %v8072
  %v8268 = vpop.f32.mrf.mxu0
  %v8269 = vadd.f32 %v8239, %v8268
  %v8270 = vpop.f32.mrf.mxu0
  %8271 = vdwg.mxu0
  %8272 = vmatpush.bf16.msra.mxu0 %v8200
  %8273 = vmatpush.bf16.msra.mxu0 %v8196
  %8274 = vmatpush.bf16.msra.mxu0 %v8192
  %8275 = vmatpush.bf16.msra.mxu0 %v8188
  %8276 = vmatpush.bf16.msra.mxu0 %v8184
  %8277 = vmatpush.bf16.msra.mxu0 %v8180
  %8278 = vmatpush.bf16.msra.mxu0 %v8176
  %8279 = vmatpush.bf16.msra.mxu0 %v8172
  %8280 = vmatmul.bf16.gmra.mxu0 %v8072
  %v8281 = vpop.f32.mrf.mxu0
  %v8282 = vadd.f32 %v8240, %v8281
  %v8283 = vpop.f32.mrf.mxu0
  %8284 = vdwg.mxu0
  %8285 = vmatpush.bf16.msra.mxu0 %v8201
  %8286 = vmatpush.bf16.msra.mxu0 %v8197
  %8287 = vmatpush.bf16.msra.mxu0 %v8193
  %8288 = vmatpush.bf16.msra.mxu0 %v8189
  %8289 = vmatpush.bf16.msra.mxu0 %v8185
  %8290 = vmatpush.bf16.msra.mxu0 %v8181
  %8291 = vmatpush.bf16.msra.mxu0 %v8177
  %8292 = vmatpush.bf16.msra.mxu0 %v8173
  %8293 = vmatmul.bf16.gmra.mxu0 %v8072
  %v8294 = vpop.f32.mrf.mxu0
  %v8295 = vadd.f32 %v8241, %v8294
  %v8296 = vpop.f32.mrf.mxu0
  %8297 = vdwg.mxu0
  %v8302 = vrot.slane %v8256, 6
  %v8303 = vrot.slane %v8269, 6
  %v8304 = vrot.slane %v8282, 6
  %v8305 = vrot.slane %v8295, 6
  %v8310 = vsel %vm1239, %v7993, %v8302
  %v8311 = vsel %vm1239, %v8006, %v8303
  %v8312 = vsel %vm1239, %v8019, %v8304
  %v8313 = vsel %vm1239, %v8032, %v8305
  %v8314 = vxor.u32 %v8310, 2147483648
  %v8315 = vmul.f32 %v8314, 1.442695
  %v8316 = vpow.pop %v8315
  %v8317 = vadd.f32 %v8316, 1.0
  %v8318 = vrcp.pop %v8317
  %v8319 = vmul.f32 %v8317, %v8318
  %v8320 = vsub.f32 1.0, %v8319
  %v8321 = vmul.f32 %v8318, %v8320
  %v8322 = vadd.f32 %v8318, %v8321
  %vm8323 = vweird.f32 %v8317
  %vm8324 = vweird.f32 %v8318
  %vm8325 = vmor %vm8323, %vm8324
  %v8326 = vsel %vm8325, %v8318, %v8322
  %v8327 = vand.u32 2147483647, %v8317
  %vm8328 = vcmp.eq.f32.partialorder %v8327, 8.507059e+37
  %v8329 = vand.u32 %v8317, 2147483648
  %v8330 = vor.u32 1.1754944e-38, %v8329
  %v8331 = vsel %vm8328, %v8330, %v8326
  %v8332 = vmul.f32 1.0, %v8331
  %v8333 = vxor.u32 %v8311, 2147483648
  %v8334 = vmul.f32 %v8333, 1.442695
  %v8335 = vpow.pop %v8334
  %v8336 = vadd.f32 %v8335, 1.0
  %v8337 = vrcp.pop %v8336
  %v8338 = vmul.f32 %v8336, %v8337
  %v8339 = vsub.f32 1.0, %v8338
  %v8340 = vmul.f32 %v8337, %v8339
  %v8341 = vadd.f32 %v8337, %v8340
  %vm8342 = vweird.f32 %v8336
  %vm8343 = vweird.f32 %v8337
  %vm8344 = vmor %vm8342, %vm8343
  %v8345 = vsel %vm8344, %v8337, %v8341
  %v8346 = vand.u32 2147483647, %v8336
  %vm8347 = vcmp.eq.f32.partialorder %v8346, 8.507059e+37
  %v8348 = vand.u32 %v8336, 2147483648
  %v8349 = vor.u32 1.1754944e-38, %v8348
  %v8350 = vsel %vm8347, %v8349, %v8345
  %v8351 = vmul.f32 1.0, %v8350
  %v8352 = vtanh.pop %v8312
  %v8353 = vxor.u32 %v8313, 2147483648
  %v8354 = vmul.f32 %v8353, 1.442695
  %v8355 = vpow.pop %v8354
  %v8356 = vadd.f32 %v8355, 1.0
  %v8357 = vrcp.pop %v8356
  %v8358 = vmul.f32 %v8356, %v8357
  %v8359 = vsub.f32 1.0, %v8358
  %v8360 = vmul.f32 %v8357, %v8359
  %v8361 = vadd.f32 %v8357, %v8360
  %vm8362 = vweird.f32 %v8356
  %vm8363 = vweird.f32 %v8357
  %vm8364 = vmor %vm8362, %vm8363
  %v8365 = vsel %vm8364, %v8357, %v8361
  %v8366 = vand.u32 2147483647, %v8356
  %vm8367 = vcmp.eq.f32.partialorder %v8366, 8.507059e+37
  %v8368 = vand.u32 %v8356, 2147483648
  %v8369 = vor.u32 1.1754944e-38, %v8368
  %v8370 = vsel %vm8367, %v8369, %v8365
  %v8371 = vmul.f32 1.0, %v8370
  %v8372 = vmul.f32 %v8351, %v7766
  %v8373 = vmul.f32 %v8332, %v8352
  %v8374 = vadd.f32 %v8372, %v8373
  %v8375 = vtanh.pop %v8374
  %v8376 = vmul.f32 %v8371, %v8375
  %v8378 = vrot.slane %v8376, 4
  %8380 = vst [vmem:[#allocation3] sm:$0x30] %v8378
  %8381 = vst [vmem:[#allocation3 + $0x18] sm:$0xc] %v8376
  %v8382 = vpack.c.bf16 %v8376, %v8376
  %v8383 = vld [vmem:[#allocation6] sm:$0xff]
  %v8384 = vld [vmem:[#allocation6 + $0x8] sm:$0xff]
  %v8385 = vld [vmem:[#allocation6 + $0x10] sm:$0xff]
  %v8386 = vld [vmem:[#allocation6 + $0x18] sm:$0xff]
  %v8387 = vld [vmem:[#allocation6 + $0x20] sm:$0xff]
  %v8388 = vld [vmem:[#allocation6 + $0x28] sm:$0xff]
  %v8389 = vld [vmem:[#allocation6 + $0x30] sm:$0xff]
  %v8390 = vld [vmem:[#allocation6 + $0x38] sm:$0xff]
  %v8391 = vld [vmem:[#allocation6 + $0x40] sm:$0xff]
  %v8392 = vld [vmem:[#allocation6 + $0x48] sm:$0xff]
  %v8393 = vld [vmem:[#allocation6 + $0x50] sm:$0xff]
  %v8394 = vld [vmem:[#allocation6 + $0x58] sm:$0xff]
  %v8395 = vld [vmem:[#allocation6 + $0x60] sm:$0xff]
  %v8396 = vld [vmem:[#allocation6 + $0x68] sm:$0xff]
  %v8397 = vld [vmem:[#allocation6 + $0x70] sm:$0xff]
  %v8398 = vld [vmem:[#allocation6 + $0x78] sm:$0xff]
  %v8399 = vld [vmem:[#allocation6 + $0x80] sm:$0xff]
  %v8400 = vld [vmem:[#allocation6 + $0x88] sm:$0xff]
  %v8401 = vld [vmem:[#allocation6 + $0x90] sm:$0xff]
  %v8402 = vld [vmem:[#allocation6 + $0x98] sm:$0xff]
  %v8403 = vld [vmem:[#allocation6 + $0xa0] sm:$0xff]
  %v8404 = vld [vmem:[#allocation6 + $0xa8] sm:$0xff]
  %v8405 = vld [vmem:[#allocation6 + $0xb0] sm:$0xff]
  %v8406 = vld [vmem:[#allocation6 + $0xb8] sm:$0xff]
  %v8407 = vld [vmem:[#allocation6 + $0xc0] sm:$0xff]
  %v8408 = vld [vmem:[#allocation6 + $0xc8] sm:$0xff]
  %v8409 = vld [vmem:[#allocation6 + $0xd0] sm:$0xff]
  %v8410 = vld [vmem:[#allocation6 + $0xd8] sm:$0xff]
  %v8411 = vld [vmem:[#allocation6 + $0xe0] sm:$0xff]
  %v8412 = vld [vmem:[#allocation6 + $0xe8] sm:$0xff]
  %v8413 = vld [vmem:[#allocation6 + $0xf0] sm:$0xff]
  %v8414 = vld [vmem:[#allocation6 + $0xf8] sm:$0xff]
  %v8415 = vld [vmem:[#allocation4] sm:$0xc0]
  %v8416 = vld [vmem:[#allocation4 + $0x8] sm:$0xc0]
  %v8417 = vld [vmem:[#allocation4 + $0x10] sm:$0xc0]
  %v8418 = vld [vmem:[#allocation4 + $0x18] sm:$0xc0]
  %v8451 = vunpack.c.l.b16 %v8383
  %v8452 = vunpack.c.h.b16 %v8383
  %v8453 = vunpack.c.l.b16 %v8384
  %v8454 = vunpack.c.h.b16 %v8384
  %v8455 = vunpack.c.l.b16 %v8385
  %v8456 = vunpack.c.h.b16 %v8385
  %v8457 = vunpack.c.l.b16 %v8386
  %v8458 = vunpack.c.h.b16 %v8386
  %v8459 = vunpack.c.l.b16 %v8387
  %v8460 = vunpack.c.h.b16 %v8387
  %v8461 = vunpack.c.l.b16 %v8388
  %v8462 = vunpack.c.h.b16 %v8388
  %v8463 = vunpack.c.l.b16 %v8389
  %v8464 = vunpack.c.h.b16 %v8389
  %v8465 = vunpack.c.l.b16 %v8390
  %v8466 = vunpack.c.h.b16 %v8390
  %v8467 = vunpack.c.l.b16 %v8391
  %v8468 = vunpack.c.h.b16 %v8391
  %v8469 = vunpack.c.l.b16 %v8392
  %v8470 = vunpack.c.h.b16 %v8392
  %v8471 = vunpack.c.l.b16 %v8393
  %v8472 = vunpack.c.h.b16 %v8393
  %v8473 = vunpack.c.l.b16 %v8394
  %v8474 = vunpack.c.h.b16 %v8394
  %v8475 = vunpack.c.l.b16 %v8395
  %v8476 = vunpack.c.h.b16 %v8395
  %v8477 = vunpack.c.l.b16 %v8396
  %v8478 = vunpack.c.h.b16 %v8396
  %v8479 = vunpack.c.l.b16 %v8397
  %v8480 = vunpack.c.h.b16 %v8397
  %v8481 = vunpack.c.l.b16 %v8398
  %v8482 = vunpack.c.h.b16 %v8398
  %v8483 = vunpack.c.l.b16 %v8399
  %v8484 = vunpack.c.h.b16 %v8399
  %v8485 = vunpack.c.l.b16 %v8400
  %v8486 = vunpack.c.h.b16 %v8400
  %v8487 = vunpack.c.l.b16 %v8401
  %v8488 = vunpack.c.h.b16 %v8401
  %v8489 = vunpack.c.l.b16 %v8402
  %v8490 = vunpack.c.h.b16 %v8402
  %v8491 = vunpack.c.l.b16 %v8403
  %v8492 = vunpack.c.h.b16 %v8403
  %v8493 = vunpack.c.l.b16 %v8404
  %v8494 = vunpack.c.h.b16 %v8404
  %v8495 = vunpack.c.l.b16 %v8405
  %v8496 = vunpack.c.h.b16 %v8405
  %v8497 = vunpack.c.l.b16 %v8406
  %v8498 = vunpack.c.h.b16 %v8406
  %v8499 = vunpack.c.l.b16 %v8407
  %v8500 = vunpack.c.h.b16 %v8407
  %v8501 = vunpack.c.l.b16 %v8408
  %v8502 = vunpack.c.h.b16 %v8408
  %v8503 = vunpack.c.l.b16 %v8409
  %v8504 = vunpack.c.h.b16 %v8409
  %v8505 = vunpack.c.l.b16 %v8410
  %v8506 = vunpack.c.h.b16 %v8410
  %v8507 = vunpack.c.l.b16 %v8411
  %v8508 = vunpack.c.h.b16 %v8411
  %v8509 = vunpack.c.l.b16 %v8412
  %v8510 = vunpack.c.h.b16 %v8412
  %v8511 = vunpack.c.l.b16 %v8413
  %v8512 = vunpack.c.h.b16 %v8413
  %v8513 = vunpack.c.l.b16 %v8414
  %v8514 = vunpack.c.h.b16 %v8414
  %v8515 = vpack.c.b16 %v8455, %v8451
  %v8516 = vpack.c.b16 %v8456, %v8452
  %v8517 = vpack.c.b16 %v8457, %v8453
  %v8518 = vpack.c.b16 %v8458, %v8454
  %v8519 = vpack.c.b16 %v8463, %v8459
  %v8520 = vpack.c.b16 %v8464, %v8460
  %v8521 = vpack.c.b16 %v8465, %v8461
  %v8522 = vpack.c.b16 %v8466, %v8462
  %v8523 = vpack.c.b16 %v8471, %v8467
  %v8524 = vpack.c.b16 %v8472, %v8468
  %v8525 = vpack.c.b16 %v8473, %v8469
  %v8526 = vpack.c.b16 %v8474, %v8470
  %v8527 = vpack.c.b16 %v8479, %v8475
  %v8528 = vpack.c.b16 %v8480, %v8476
  %v8529 = vpack.c.b16 %v8481, %v8477
  %v8530 = vpack.c.b16 %v8482, %v8478
  %v8531 = vpack.c.b16 %v8487, %v8483
  %v8532 = vpack.c.b16 %v8488, %v8484
  %v8533 = vpack.c.b16 %v8489, %v8485
  %v8534 = vpack.c.b16 %v8490, %v8486
  %v8535 = vpack.c.b16 %v8495, %v8491
  %v8536 = vpack.c.b16 %v8496, %v8492
  %v8537 = vpack.c.b16 %v8497, %v8493
  %v8538 = vpack.c.b16 %v8498, %v8494
  %v8539 = vpack.c.b16 %v8503, %v8499
  %v8540 = vpack.c.b16 %v8504, %v8500
  %v8541 = vpack.c.b16 %v8505, %v8501
  %v8542 = vpack.c.b16 %v8506, %v8502
  %v8543 = vpack.c.b16 %v8511, %v8507
  %v8544 = vpack.c.b16 %v8512, %v8508
  %v8545 = vpack.c.b16 %v8513, %v8509
  %v8546 = vpack.c.b16 %v8514, %v8510
  %v8583 = vrot.slane %v8415, 6
  %v8584 = vrot.slane %v8416, 6
  %v8585 = vrot.slane %v8417, 6
  %v8586 = vrot.slane %v8418, 6
  %8591 = vmatpush.bf16.msra.mxu0 %v8543
  %8592 = vmatpush.bf16.msra.mxu0 %v8539
  %8593 = vmatpush.bf16.msra.mxu0 %v8535
  %8594 = vmatpush.bf16.msra.mxu0 %v8531
  %8595 = vmatpush.bf16.msra.mxu0 %v8527
  %8596 = vmatpush.bf16.msra.mxu0 %v8523
  %8597 = vmatpush.bf16.msra.mxu0 %v8519
  %8598 = vmatpush.bf16.msra.mxu0 %v8515
  %8599 = vmatmul.bf16.gmra.mxu0 %v8382
  %v8600 = vpop.f32.mrf.mxu0
  %v8601 = vadd.f32 %v8583, %v8600
  %v8602 = vpop.f32.mrf.mxu0
  %8603 = vdwg.mxu0
  %8604 = vmatpush.bf16.msra.mxu0 %v8544
  %8605 = vmatpush.bf16.msra.mxu0 %v8540
  %8606 = vmatpush.bf16.msra.mxu0 %v8536
  %8607 = vmatpush.bf16.msra.mxu0 %v8532
  %8608 = vmatpush.bf16.msra.mxu0 %v8528
  %8609 = vmatpush.bf16.msra.mxu0 %v8524
  %8610 = vmatpush.bf16.msra.mxu0 %v8520
  %8611 = vmatpush.bf16.msra.mxu0 %v8516
  %8612 = vmatmul.bf16.gmra.mxu0 %v8382
  %v8613 = vpop.f32.mrf.mxu0
  %v8614 = vadd.f32 %v8584, %v8613
  %v8615 = vpop.f32.mrf.mxu0
  %8616 = vdwg.mxu0
  %8617 = vmatpush.bf16.msra.mxu0 %v8545
  %8618 = vmatpush.bf16.msra.mxu0 %v8541
  %8619 = vmatpush.bf16.msra.mxu0 %v8537
  %8620 = vmatpush.bf16.msra.mxu0 %v8533
  %8621 = vmatpush.bf16.msra.mxu0 %v8529
  %8622 = vmatpush.bf16.msra.mxu0 %v8525
  %8623 = vmatpush.bf16.msra.mxu0 %v8521
  %8624 = vmatpush.bf16.msra.mxu0 %v8517
  %8625 = vmatmul.bf16.gmra.mxu0 %v8382
  %v8626 = vpop.f32.mrf.mxu0
  %v8627 = vadd.f32 %v8585, %v8626
  %v8628 = vpop.f32.mrf.mxu0
  %8629 = vdwg.mxu0
  %8630 = vmatpush.bf16.msra.mxu0 %v8546
  %8631 = vmatpush.bf16.msra.mxu0 %v8542
  %8632 = vmatpush.bf16.msra.mxu0 %v8538
  %8633 = vmatpush.bf16.msra.mxu0 %v8534
  %8634 = vmatpush.bf16.msra.mxu0 %v8530
  %8635 = vmatpush.bf16.msra.mxu0 %v8526
  %8636 = vmatpush.bf16.msra.mxu0 %v8522
  %8637 = vmatpush.bf16.msra.mxu0 %v8518
  %8638 = vmatmul.bf16.gmra.mxu0 %v8382
  %v8639 = vpop.f32.mrf.mxu0
  %v8640 = vadd.f32 %v8586, %v8639
  %v8641 = vpop.f32.mrf.mxu0
  %8642 = vdwg.mxu0
  %v8643 = vld [vmem:[#allocation7] sm:$0xff]
  %v8644 = vld [vmem:[#allocation7 + $0x8] sm:$0xff]
  %v8645 = vld [vmem:[#allocation7 + $0x10] sm:$0xff]
  %v8646 = vld [vmem:[#allocation7 + $0x18] sm:$0xff]
  %v8647 = vld [vmem:[#allocation7 + $0x20] sm:$0xff]
  %v8648 = vld [vmem:[#allocation7 + $0x28] sm:$0xff]
  %v8649 = vld [vmem:[#allocation7 + $0x30] sm:$0xff]
  %v8650 = vld [vmem:[#allocation7 + $0x38] sm:$0xff]
  %v8651 = vld [vmem:[#allocation7 + $0x40] sm:$0xff]
  %v8652 = vld [vmem:[#allocation7 + $0x48] sm:$0xff]
  %v8653 = vld [vmem:[#allocation7 + $0x50] sm:$0xff]
  %v8654 = vld [vmem:[#allocation7 + $0x58] sm:$0xff]
  %v8655 = vld [vmem:[#allocation7 + $0x60] sm:$0xff]
  %v8656 = vld [vmem:[#allocation7 + $0x68] sm:$0xff]
  %v8657 = vld [vmem:[#allocation7 + $0x70] sm:$0xff]
  %v8658 = vld [vmem:[#allocation7 + $0x78] sm:$0xff]
  %v8659 = vld [vmem:[#allocation7 + $0x80] sm:$0xff]
  %v8660 = vld [vmem:[#allocation7 + $0x88] sm:$0xff]
  %v8661 = vld [vmem:[#allocation7 + $0x90] sm:$0xff]
  %v8662 = vld [vmem:[#allocation7 + $0x98] sm:$0xff]
  %v8663 = vld [vmem:[#allocation7 + $0xa0] sm:$0xff]
  %v8664 = vld [vmem:[#allocation7 + $0xa8] sm:$0xff]
  %v8665 = vld [vmem:[#allocation7 + $0xb0] sm:$0xff]
  %v8666 = vld [vmem:[#allocation7 + $0xb8] sm:$0xff]
  %v8667 = vld [vmem:[#allocation7 + $0xc0] sm:$0xff]
  %v8668 = vld [vmem:[#allocation7 + $0xc8] sm:$0xff]
  %v8669 = vld [vmem:[#allocation7 + $0xd0] sm:$0xff]
  %v8670 = vld [vmem:[#allocation7 + $0xd8] sm:$0xff]
  %v8671 = vld [vmem:[#allocation7 + $0xe0] sm:$0xff]
  %v8672 = vld [vmem:[#allocation7 + $0xe8] sm:$0xff]
  %v8673 = vld [vmem:[#allocation7 + $0xf0] sm:$0xff]
  %v8674 = vld [vmem:[#allocation7 + $0xf8] sm:$0xff]
  %v8675 = vld [vmem:[#allocation4 + $0x60] sm:$0x3]
  %v8676 = vld [vmem:[#allocation4 + $0x68] sm:$0x3]
  %v8677 = vld [vmem:[#allocation4 + $0x70] sm:$0x3]
  %v8678 = vld [vmem:[#allocation4 + $0x78] sm:$0x3]
  %v8680 = vrot.slane %v8382, 1
  %v8714 = vunpack.c.l.b16 %v8643
  %v8715 = vunpack.c.h.b16 %v8643
  %v8716 = vunpack.c.l.b16 %v8644
  %v8717 = vunpack.c.h.b16 %v8644
  %v8718 = vunpack.c.l.b16 %v8645
  %v8719 = vunpack.c.h.b16 %v8645
  %v8720 = vunpack.c.l.b16 %v8646
  %v8721 = vunpack.c.h.b16 %v8646
  %v8722 = vunpack.c.l.b16 %v8647
  %v8723 = vunpack.c.h.b16 %v8647
  %v8724 = vunpack.c.l.b16 %v8648
  %v8725 = vunpack.c.h.b16 %v8648
  %v8726 = vunpack.c.l.b16 %v8649
  %v8727 = vunpack.c.h.b16 %v8649
  %v8728 = vunpack.c.l.b16 %v8650
  %v8729 = vunpack.c.h.b16 %v8650
  %v8730 = vunpack.c.l.b16 %v8651
  %v8731 = vunpack.c.h.b16 %v8651
  %v8732 = vunpack.c.l.b16 %v8652
  %v8733 = vunpack.c.h.b16 %v8652
  %v8734 = vunpack.c.l.b16 %v8653
  %v8735 = vunpack.c.h.b16 %v8653
  %v8736 = vunpack.c.l.b16 %v8654
  %v8737 = vunpack.c.h.b16 %v8654
  %v8738 = vunpack.c.l.b16 %v8655
  %v8739 = vunpack.c.h.b16 %v8655
  %v8740 = vunpack.c.l.b16 %v8656
  %v8741 = vunpack.c.h.b16 %v8656
  %v8742 = vunpack.c.l.b16 %v8657
  %v8743 = vunpack.c.h.b16 %v8657
  %v8744 = vunpack.c.l.b16 %v8658
  %v8745 = vunpack.c.h.b16 %v8658
  %v8746 = vunpack.c.l.b16 %v8659
  %v8747 = vunpack.c.h.b16 %v8659
  %v8748 = vunpack.c.l.b16 %v8660
  %v8749 = vunpack.c.h.b16 %v8660
  %v8750 = vunpack.c.l.b16 %v8661
  %v8751 = vunpack.c.h.b16 %v8661
  %v8752 = vunpack.c.l.b16 %v8662
  %v8753 = vunpack.c.h.b16 %v8662
  %v8754 = vunpack.c.l.b16 %v8663
  %v8755 = vunpack.c.h.b16 %v8663
  %v8756 = vunpack.c.l.b16 %v8664
  %v8757 = vunpack.c.h.b16 %v8664
  %v8758 = vunpack.c.l.b16 %v8665
  %v8759 = vunpack.c.h.b16 %v8665
  %v8760 = vunpack.c.l.b16 %v8666
  %v8761 = vunpack.c.h.b16 %v8666
  %v8762 = vunpack.c.l.b16 %v8667
  %v8763 = vunpack.c.h.b16 %v8667
  %v8764 = vunpack.c.l.b16 %v8668
  %v8765 = vunpack.c.h.b16 %v8668
  %v8766 = vunpack.c.l.b16 %v8669
  %v8767 = vunpack.c.h.b16 %v8669
  %v8768 = vunpack.c.l.b16 %v8670
  %v8769 = vunpack.c.h.b16 %v8670
  %v8770 = vunpack.c.l.b16 %v8671
  %v8771 = vunpack.c.h.b16 %v8671
  %v8772 = vunpack.c.l.b16 %v8672
  %v8773 = vunpack.c.h.b16 %v8672
  %v8774 = vunpack.c.l.b16 %v8673
  %v8775 = vunpack.c.h.b16 %v8673
  %v8776 = vunpack.c.l.b16 %v8674
  %v8777 = vunpack.c.h.b16 %v8674
  %v8778 = vpack.c.b16 %v8718, %v8714
  %v8779 = vpack.c.b16 %v8719, %v8715
  %v8780 = vpack.c.b16 %v8720, %v8716
  %v8781 = vpack.c.b16 %v8721, %v8717
  %v8782 = vpack.c.b16 %v8726, %v8722
  %v8783 = vpack.c.b16 %v8727, %v8723
  %v8784 = vpack.c.b16 %v8728, %v8724
  %v8785 = vpack.c.b16 %v8729, %v8725
  %v8786 = vpack.c.b16 %v8734, %v8730
  %v8787 = vpack.c.b16 %v8735, %v8731
  %v8788 = vpack.c.b16 %v8736, %v8732
  %v8789 = vpack.c.b16 %v8737, %v8733
  %v8790 = vpack.c.b16 %v8742, %v8738
  %v8791 = vpack.c.b16 %v8743, %v8739
  %v8792 = vpack.c.b16 %v8744, %v8740
  %v8793 = vpack.c.b16 %v8745, %v8741
  %v8794 = vpack.c.b16 %v8750, %v8746
  %v8795 = vpack.c.b16 %v8751, %v8747
  %v8796 = vpack.c.b16 %v8752, %v8748
  %v8797 = vpack.c.b16 %v8753, %v8749
  %v8798 = vpack.c.b16 %v8758, %v8754
  %v8799 = vpack.c.b16 %v8759, %v8755
  %v8800 = vpack.c.b16 %v8760, %v8756
  %v8801 = vpack.c.b16 %v8761, %v8757
  %v8802 = vpack.c.b16 %v8766, %v8762
  %v8803 = vpack.c.b16 %v8767, %v8763
  %v8804 = vpack.c.b16 %v8768, %v8764
  %v8805 = vpack.c.b16 %v8769, %v8765
  %v8806 = vpack.c.b16 %v8774, %v8770
  %v8807 = vpack.c.b16 %v8775, %v8771
  %v8808 = vpack.c.b16 %v8776, %v8772
  %v8809 = vpack.c.b16 %v8777, %v8773
  %8842 = vmatpush.bf16.msra.mxu0 %v8806
  %8843 = vmatpush.bf16.msra.mxu0 %v8802
  %8844 = vmatpush.bf16.msra.mxu0 %v8798
  %8845 = vmatpush.bf16.msra.mxu0 %v8794
  %8846 = vmatpush.bf16.msra.mxu0 %v8790
  %8847 = vmatpush.bf16.msra.mxu0 %v8786
  %8848 = vmatpush.bf16.msra.mxu0 %v8782
  %8849 = vmatpush.bf16.msra.mxu0 %v8778
  %8850 = vmatmul.bf16.gmra.mxu0 %v8680
  %v8851 = vpop.f32.mrf.mxu0
  %v8852 = vadd.f32 %v8675, %v8851
  %v8853 = vpop.f32.mrf.mxu0
  %8854 = vdwg.mxu0
  %8855 = vmatpush.bf16.msra.mxu0 %v8807
  %8856 = vmatpush.bf16.msra.mxu0 %v8803
  %8857 = vmatpush.bf16.msra.mxu0 %v8799
  %8858 = vmatpush.bf16.msra.mxu0 %v8795
  %8859 = vmatpush.bf16.msra.mxu0 %v8791
  %8860 = vmatpush.bf16.msra.mxu0 %v8787
  %8861 = vmatpush.bf16.msra.mxu0 %v8783
  %8862 = vmatpush.bf16.msra.mxu0 %v8779
  %8863 = vmatmul.bf16.gmra.mxu0 %v8680
  %v8864 = vpop.f32.mrf.mxu0
  %v8865 = vadd.f32 %v8676, %v8864
  %v8866 = vpop.f32.mrf.mxu0
  %8867 = vdwg.mxu0
  %8868 = vmatpush.bf16.msra.mxu0 %v8808
  %8869 = vmatpush.bf16.msra.mxu0 %v8804
  %8870 = vmatpush.bf16.msra.mxu0 %v8800
  %8871 = vmatpush.bf16.msra.mxu0 %v8796
  %8872 = vmatpush.bf16.msra.mxu0 %v8792
  %8873 = vmatpush.bf16.msra.mxu0 %v8788
  %8874 = vmatpush.bf16.msra.mxu0 %v8784
  %8875 = vmatpush.bf16.msra.mxu0 %v8780
  %8876 = vmatmul.bf16.gmra.mxu0 %v8680
  %v8877 = vpop.f32.mrf.mxu0
  %v8878 = vadd.f32 %v8677, %v8877
  %v8879 = vpop.f32.mrf.mxu0
  %8880 = vdwg.mxu0
  %8881 = vmatpush.bf16.msra.mxu0 %v8809
  %8882 = vmatpush.bf16.msra.mxu0 %v8805
  %8883 = vmatpush.bf16.msra.mxu0 %v8801
  %8884 = vmatpush.bf16.msra.mxu0 %v8797
  %8885 = vmatpush.bf16.msra.mxu0 %v8793
  %8886 = vmatpush.bf16.msra.mxu0 %v8789
  %8887 = vmatpush.bf16.msra.mxu0 %v8785
  %8888 = vmatpush.bf16.msra.mxu0 %v8781
  %8889 = vmatmul.bf16.gmra.mxu0 %v8680
  %v8890 = vpop.f32.mrf.mxu0
  %v8891 = vadd.f32 %v8678, %v8890
  %v8892 = vpop.f32.mrf.mxu0
  %8893 = vdwg.mxu0
  %v8898 = vrot.slane %v8852, 6
  %v8899 = vrot.slane %v8865, 6
  %v8900 = vrot.slane %v8878, 6
  %v8901 = vrot.slane %v8891, 6
  %v8906 = vsel %vm1239, %v8601, %v8898
  %v8907 = vsel %vm1239, %v8614, %v8899
  %v8908 = vsel %vm1239, %v8627, %v8900
  %v8909 = vsel %vm1239, %v8640, %v8901
  %v8910 = vxor.u32 %v8906, 2147483648
  %v8911 = vmul.f32 %v8910, 1.442695
  %v8912 = vpow.pop %v8911
  %v8913 = vadd.f32 %v8912, 1.0
  %v8914 = vrcp.pop %v8913
  %v8915 = vmul.f32 %v8913, %v8914
  %v8916 = vsub.f32 1.0, %v8915
  %v8917 = vmul.f32 %v8914, %v8916
  %v8918 = vadd.f32 %v8914, %v8917
  %vm8919 = vweird.f32 %v8913
  %vm8920 = vweird.f32 %v8914
  %vm8921 = vmor %vm8919, %vm8920
  %v8922 = vsel %vm8921, %v8914, %v8918
  %v8923 = vand.u32 2147483647, %v8913
  %vm8924 = vcmp.eq.f32.partialorder %v8923, 8.507059e+37
  %v8925 = vand.u32 %v8913, 2147483648
  %v8926 = vor.u32 1.1754944e-38, %v8925
  %v8927 = vsel %vm8924, %v8926, %v8922
  %v8928 = vmul.f32 1.0, %v8927
  %v8929 = vxor.u32 %v8907, 2147483648
  %v8930 = vmul.f32 %v8929, 1.442695
  %v8931 = vpow.pop %v8930
  %v8932 = vadd.f32 %v8931, 1.0
  %v8933 = vrcp.pop %v8932
  %v8934 = vmul.f32 %v8932, %v8933
  %v8935 = vsub.f32 1.0, %v8934
  %v8936 = vmul.f32 %v8933, %v8935
  %v8937 = vadd.f32 %v8933, %v8936
  %vm8938 = vweird.f32 %v8932
  %vm8939 = vweird.f32 %v8933
  %vm8940 = vmor %vm8938, %vm8939
  %v8941 = vsel %vm8940, %v8933, %v8937
  %v8942 = vand.u32 2147483647, %v8932
  %vm8943 = vcmp.eq.f32.partialorder %v8942, 8.507059e+37
  %v8944 = vand.u32 %v8932, 2147483648
  %v8945 = vor.u32 1.1754944e-38, %v8944
  %v8946 = vsel %vm8943, %v8945, %v8941
  %v8947 = vmul.f32 1.0, %v8946
  %v8948 = vtanh.pop %v8908
  %v8949 = vxor.u32 %v8909, 2147483648
  %v8950 = vmul.f32 %v8949, 1.442695
  %v8951 = vpow.pop %v8950
  %v8952 = vadd.f32 %v8951, 1.0
  %v8953 = vrcp.pop %v8952
  %v8954 = vmul.f32 %v8952, %v8953
  %v8955 = vsub.f32 1.0, %v8954
  %v8956 = vmul.f32 %v8953, %v8955
  %v8957 = vadd.f32 %v8953, %v8956
  %vm8958 = vweird.f32 %v8952
  %vm8959 = vweird.f32 %v8953
  %vm8960 = vmor %vm8958, %vm8959
  %v8961 = vsel %vm8960, %v8953, %v8957
  %v8962 = vand.u32 2147483647, %v8952
  %vm8963 = vcmp.eq.f32.partialorder %v8962, 8.507059e+37
  %v8964 = vand.u32 %v8952, 2147483648
  %v8965 = vor.u32 1.1754944e-38, %v8964
  %v8966 = vsel %vm8963, %v8965, %v8961
  %v8967 = vmul.f32 1.0, %v8966
  %v8968 = vmul.f32 %v8947, %v8374
  %v8969 = vmul.f32 %v8928, %v8948
  %v8970 = vadd.f32 %v8968, %v8969
  %v8971 = vtanh.pop %v8970
  %v8972 = vmul.f32 %v8967, %v8971
  %v8974 = vrot.slane %v8972, 2
  %8976 = vst [vmem:[#allocation3] sm:$0xc0] %v8974
  %8977 = vst [vmem:[#allocation3 + $0x18] sm:$0x3] %v8974
  %v8978 = vpack.c.bf16 %v8972, %v8972
  %v8979 = vld [vmem:[#allocation6] sm:$0xff]
  %v8980 = vld [vmem:[#allocation6 + $0x8] sm:$0xff]
  %v8981 = vld [vmem:[#allocation6 + $0x10] sm:$0xff]
  %v8982 = vld [vmem:[#allocation6 + $0x18] sm:$0xff]
  %v8983 = vld [vmem:[#allocation6 + $0x20] sm:$0xff]
  %v8984 = vld [vmem:[#allocation6 + $0x28] sm:$0xff]
  %v8985 = vld [vmem:[#allocation6 + $0x30] sm:$0xff]
  %v8986 = vld [vmem:[#allocation6 + $0x38] sm:$0xff]
  %v8987 = vld [vmem:[#allocation6 + $0x40] sm:$0xff]
  %v8988 = vld [vmem:[#allocation6 + $0x48] sm:$0xff]
  %v8989 = vld [vmem:[#allocation6 + $0x50] sm:$0xff]
  %v8990 = vld [vmem:[#allocation6 + $0x58] sm:$0xff]
  %v8991 = vld [vmem:[#allocation6 + $0x60] sm:$0xff]
  %v8992 = vld [vmem:[#allocation6 + $0x68] sm:$0xff]
  %v8993 = vld [vmem:[#allocation6 + $0x70] sm:$0xff]
  %v8994 = vld [vmem:[#allocation6 + $0x78] sm:$0xff]
  %v8995 = vld [vmem:[#allocation6 + $0x80] sm:$0xff]
  %v8996 = vld [vmem:[#allocation6 + $0x88] sm:$0xff]
  %v8997 = vld [vmem:[#allocation6 + $0x90] sm:$0xff]
  %v8998 = vld [vmem:[#allocation6 + $0x98] sm:$0xff]
  %v8999 = vld [vmem:[#allocation6 + $0xa0] sm:$0xff]
  %v9000 = vld [vmem:[#allocation6 + $0xa8] sm:$0xff]
  %v9001 = vld [vmem:[#allocation6 + $0xb0] sm:$0xff]
  %v9002 = vld [vmem:[#allocation6 + $0xb8] sm:$0xff]
  %v9003 = vld [vmem:[#allocation6 + $0xc0] sm:$0xff]
  %v9004 = vld [vmem:[#allocation6 + $0xc8] sm:$0xff]
  %v9005 = vld [vmem:[#allocation6 + $0xd0] sm:$0xff]
  %v9006 = vld [vmem:[#allocation6 + $0xd8] sm:$0xff]
  %v9007 = vld [vmem:[#allocation6 + $0xe0] sm:$0xff]
  %v9008 = vld [vmem:[#allocation6 + $0xe8] sm:$0xff]
  %v9009 = vld [vmem:[#allocation6 + $0xf0] sm:$0xff]
  %v9010 = vld [vmem:[#allocation6 + $0xf8] sm:$0xff]
  %v9011 = vld [vmem:[#allocation4 + $0x40] sm:$0x3]
  %v9012 = vld [vmem:[#allocation4 + $0x48] sm:$0x3]
  %v9013 = vld [vmem:[#allocation4 + $0x50] sm:$0x3]
  %v9014 = vld [vmem:[#allocation4 + $0x58] sm:$0x3]
  %v9047 = vunpack.c.l.b16 %v8979
  %v9048 = vunpack.c.h.b16 %v8979
  %v9049 = vunpack.c.l.b16 %v8980
  %v9050 = vunpack.c.h.b16 %v8980
  %v9051 = vunpack.c.l.b16 %v8981
  %v9052 = vunpack.c.h.b16 %v8981
  %v9053 = vunpack.c.l.b16 %v8982
  %v9054 = vunpack.c.h.b16 %v8982
  %v9055 = vunpack.c.l.b16 %v8983
  %v9056 = vunpack.c.h.b16 %v8983
  %v9057 = vunpack.c.l.b16 %v8984
  %v9058 = vunpack.c.h.b16 %v8984
  %v9059 = vunpack.c.l.b16 %v8985
  %v9060 = vunpack.c.h.b16 %v8985
  %v9061 = vunpack.c.l.b16 %v8986
  %v9062 = vunpack.c.h.b16 %v8986
  %v9063 = vunpack.c.l.b16 %v8987
  %v9064 = vunpack.c.h.b16 %v8987
  %v9065 = vunpack.c.l.b16 %v8988
  %v9066 = vunpack.c.h.b16 %v8988
  %v9067 = vunpack.c.l.b16 %v8989
  %v9068 = vunpack.c.h.b16 %v8989
  %v9069 = vunpack.c.l.b16 %v8990
  %v9070 = vunpack.c.h.b16 %v8990
  %v9071 = vunpack.c.l.b16 %v8991
  %v9072 = vunpack.c.h.b16 %v8991
  %v9073 = vunpack.c.l.b16 %v8992
  %v9074 = vunpack.c.h.b16 %v8992
  %v9075 = vunpack.c.l.b16 %v8993
  %v9076 = vunpack.c.h.b16 %v8993
  %v9077 = vunpack.c.l.b16 %v8994
  %v9078 = vunpack.c.h.b16 %v8994
  %v9079 = vunpack.c.l.b16 %v8995
  %v9080 = vunpack.c.h.b16 %v8995
  %v9081 = vunpack.c.l.b16 %v8996
  %v9082 = vunpack.c.h.b16 %v8996
  %v9083 = vunpack.c.l.b16 %v8997
  %v9084 = vunpack.c.h.b16 %v8997
  %v9085 = vunpack.c.l.b16 %v8998
  %v9086 = vunpack.c.h.b16 %v8998
  %v9087 = vunpack.c.l.b16 %v8999
  %v9088 = vunpack.c.h.b16 %v8999
  %v9089 = vunpack.c.l.b16 %v9000
  %v9090 = vunpack.c.h.b16 %v9000
  %v9091 = vunpack.c.l.b16 %v9001
  %v9092 = vunpack.c.h.b16 %v9001
  %v9093 = vunpack.c.l.b16 %v9002
  %v9094 = vunpack.c.h.b16 %v9002
  %v9095 = vunpack.c.l.b16 %v9003
  %v9096 = vunpack.c.h.b16 %v9003
  %v9097 = vunpack.c.l.b16 %v9004
  %v9098 = vunpack.c.h.b16 %v9004
  %v9099 = vunpack.c.l.b16 %v9005
  %v9100 = vunpack.c.h.b16 %v9005
  %v9101 = vunpack.c.l.b16 %v9006
  %v9102 = vunpack.c.h.b16 %v9006
  %v9103 = vunpack.c.l.b16 %v9007
  %v9104 = vunpack.c.h.b16 %v9007
  %v9105 = vunpack.c.l.b16 %v9008
  %v9106 = vunpack.c.h.b16 %v9008
  %v9107 = vunpack.c.l.b16 %v9009
  %v9108 = vunpack.c.h.b16 %v9009
  %v9109 = vunpack.c.l.b16 %v9010
  %v9110 = vunpack.c.h.b16 %v9010
  %v9111 = vpack.c.b16 %v9051, %v9047
  %v9112 = vpack.c.b16 %v9052, %v9048
  %v9113 = vpack.c.b16 %v9053, %v9049
  %v9114 = vpack.c.b16 %v9054, %v9050
  %v9115 = vpack.c.b16 %v9059, %v9055
  %v9116 = vpack.c.b16 %v9060, %v9056
  %v9117 = vpack.c.b16 %v9061, %v9057
  %v9118 = vpack.c.b16 %v9062, %v9058
  %v9119 = vpack.c.b16 %v9067, %v9063
  %v9120 = vpack.c.b16 %v9068, %v9064
  %v9121 = vpack.c.b16 %v9069, %v9065
  %v9122 = vpack.c.b16 %v9070, %v9066
  %v9123 = vpack.c.b16 %v9075, %v9071
  %v9124 = vpack.c.b16 %v9076, %v9072
  %v9125 = vpack.c.b16 %v9077, %v9073
  %v9126 = vpack.c.b16 %v9078, %v9074
  %v9127 = vpack.c.b16 %v9083, %v9079
  %v9128 = vpack.c.b16 %v9084, %v9080
  %v9129 = vpack.c.b16 %v9085, %v9081
  %v9130 = vpack.c.b16 %v9086, %v9082
  %v9131 = vpack.c.b16 %v9091, %v9087
  %v9132 = vpack.c.b16 %v9092, %v9088
  %v9133 = vpack.c.b16 %v9093, %v9089
  %v9134 = vpack.c.b16 %v9094, %v9090
  %v9135 = vpack.c.b16 %v9099, %v9095
  %v9136 = vpack.c.b16 %v9100, %v9096
  %v9137 = vpack.c.b16 %v9101, %v9097
  %v9138 = vpack.c.b16 %v9102, %v9098
  %v9139 = vpack.c.b16 %v9107, %v9103
  %v9140 = vpack.c.b16 %v9108, %v9104
  %v9141 = vpack.c.b16 %v9109, %v9105
  %v9142 = vpack.c.b16 %v9110, %v9106
  %9175 = vmatpush.bf16.msra.mxu0 %v9139
  %9176 = vmatpush.bf16.msra.mxu0 %v9135
  %9177 = vmatpush.bf16.msra.mxu0 %v9131
  %9178 = vmatpush.bf16.msra.mxu0 %v9127
  %9179 = vmatpush.bf16.msra.mxu0 %v9123
  %9180 = vmatpush.bf16.msra.mxu0 %v9119
  %9181 = vmatpush.bf16.msra.mxu0 %v9115
  %9182 = vmatpush.bf16.msra.mxu0 %v9111
  %9183 = vmatmul.bf16.gmra.mxu0 %v8978
  %v9184 = vpop.f32.mrf.mxu0
  %v9185 = vadd.f32 %v9011, %v9184
  %v9186 = vpop.f32.mrf.mxu0
  %9187 = vdwg.mxu0
  %9188 = vmatpush.bf16.msra.mxu0 %v9140
  %9189 = vmatpush.bf16.msra.mxu0 %v9136
  %9190 = vmatpush.bf16.msra.mxu0 %v9132
  %9191 = vmatpush.bf16.msra.mxu0 %v9128
  %9192 = vmatpush.bf16.msra.mxu0 %v9124
  %9193 = vmatpush.bf16.msra.mxu0 %v9120
  %9194 = vmatpush.bf16.msra.mxu0 %v9116
  %9195 = vmatpush.bf16.msra.mxu0 %v9112
  %9196 = vmatmul.bf16.gmra.mxu0 %v8978
  %v9197 = vpop.f32.mrf.mxu0
  %v9198 = vadd.f32 %v9012, %v9197
  %v9199 = vpop.f32.mrf.mxu0
  %9200 = vdwg.mxu0
  %9201 = vmatpush.bf16.msra.mxu0 %v9141
  %9202 = vmatpush.bf16.msra.mxu0 %v9137
  %9203 = vmatpush.bf16.msra.mxu0 %v9133
  %9204 = vmatpush.bf16.msra.mxu0 %v9129
  %9205 = vmatpush.bf16.msra.mxu0 %v9125
  %9206 = vmatpush.bf16.msra.mxu0 %v9121
  %9207 = vmatpush.bf16.msra.mxu0 %v9117
  %9208 = vmatpush.bf16.msra.mxu0 %v9113
  %9209 = vmatmul.bf16.gmra.mxu0 %v8978
  %v9210 = vpop.f32.mrf.mxu0
  %v9211 = vadd.f32 %v9013, %v9210
  %v9212 = vpop.f32.mrf.mxu0
  %9213 = vdwg.mxu0
  %9214 = vmatpush.bf16.msra.mxu0 %v9142
  %9215 = vmatpush.bf16.msra.mxu0 %v9138
  %9216 = vmatpush.bf16.msra.mxu0 %v9134
  %9217 = vmatpush.bf16.msra.mxu0 %v9130
  %9218 = vmatpush.bf16.msra.mxu0 %v9126
  %9219 = vmatpush.bf16.msra.mxu0 %v9122
  %9220 = vmatpush.bf16.msra.mxu0 %v9118
  %9221 = vmatpush.bf16.msra.mxu0 %v9114
  %9222 = vmatmul.bf16.gmra.mxu0 %v8978
  %v9223 = vpop.f32.mrf.mxu0
  %v9224 = vadd.f32 %v9014, %v9223
  %v9225 = vpop.f32.mrf.mxu0
  %9226 = vdwg.mxu0
  %v9227 = vld [vmem:[#allocation7] sm:$0xff]
  %v9228 = vld [vmem:[#allocation7 + $0x8] sm:$0xff]
  %v9229 = vld [vmem:[#allocation7 + $0x10] sm:$0xff]
  %v9230 = vld [vmem:[#allocation7 + $0x18] sm:$0xff]
  %v9231 = vld [vmem:[#allocation7 + $0x20] sm:$0xff]
  %v9232 = vld [vmem:[#allocation7 + $0x28] sm:$0xff]
  %v9233 = vld [vmem:[#allocation7 + $0x30] sm:$0xff]
  %v9234 = vld [vmem:[#allocation7 + $0x38] sm:$0xff]
  %v9235 = vld [vmem:[#allocation7 + $0x40] sm:$0xff]
  %v9236 = vld [vmem:[#allocation7 + $0x48] sm:$0xff]
  %v9237 = vld [vmem:[#allocation7 + $0x50] sm:$0xff]
  %v9238 = vld [vmem:[#allocation7 + $0x58] sm:$0xff]
  %v9239 = vld [vmem:[#allocation7 + $0x60] sm:$0xff]
  %v9240 = vld [vmem:[#allocation7 + $0x68] sm:$0xff]
  %v9241 = vld [vmem:[#allocation7 + $0x70] sm:$0xff]
  %v9242 = vld [vmem:[#allocation7 + $0x78] sm:$0xff]
  %v9243 = vld [vmem:[#allocation7 + $0x80] sm:$0xff]
  %v9244 = vld [vmem:[#allocation7 + $0x88] sm:$0xff]
  %v9245 = vld [vmem:[#allocation7 + $0x90] sm:$0xff]
  %v9246 = vld [vmem:[#allocation7 + $0x98] sm:$0xff]
  %v9247 = vld [vmem:[#allocation7 + $0xa0] sm:$0xff]
  %v9248 = vld [vmem:[#allocation7 + $0xa8] sm:$0xff]
  %v9249 = vld [vmem:[#allocation7 + $0xb0] sm:$0xff]
  %v9250 = vld [vmem:[#allocation7 + $0xb8] sm:$0xff]
  %v9251 = vld [vmem:[#allocation7 + $0xc0] sm:$0xff]
  %v9252 = vld [vmem:[#allocation7 + $0xc8] sm:$0xff]
  %v9253 = vld [vmem:[#allocation7 + $0xd0] sm:$0xff]
  %v9254 = vld [vmem:[#allocation7 + $0xd8] sm:$0xff]
  %v9255 = vld [vmem:[#allocation7 + $0xe0] sm:$0xff]
  %v9256 = vld [vmem:[#allocation7 + $0xe8] sm:$0xff]
  %v9257 = vld [vmem:[#allocation7 + $0xf0] sm:$0xff]
  %v9258 = vld [vmem:[#allocation7 + $0xf8] sm:$0xff]
  %v9259 = vld [vmem:[#allocation4 + $0x20] sm:$0xc0]
  %v9260 = vld [vmem:[#allocation4 + $0x28] sm:$0xc0]
  %v9261 = vld [vmem:[#allocation4 + $0x30] sm:$0xc0]
  %v9262 = vld [vmem:[#allocation4 + $0x38] sm:$0xc0]
  %v9264 = vrot.slane %v8978, 1
  %v9298 = vunpack.c.l.b16 %v9227
  %v9299 = vunpack.c.h.b16 %v9227
  %v9300 = vunpack.c.l.b16 %v9228
  %v9301 = vunpack.c.h.b16 %v9228
  %v9302 = vunpack.c.l.b16 %v9229
  %v9303 = vunpack.c.h.b16 %v9229
  %v9304 = vunpack.c.l.b16 %v9230
  %v9305 = vunpack.c.h.b16 %v9230
  %v9306 = vunpack.c.l.b16 %v9231
  %v9307 = vunpack.c.h.b16 %v9231
  %v9308 = vunpack.c.l.b16 %v9232
  %v9309 = vunpack.c.h.b16 %v9232
  %v9310 = vunpack.c.l.b16 %v9233
  %v9311 = vunpack.c.h.b16 %v9233
  %v9312 = vunpack.c.l.b16 %v9234
  %v9313 = vunpack.c.h.b16 %v9234
  %v9314 = vunpack.c.l.b16 %v9235
  %v9315 = vunpack.c.h.b16 %v9235
  %v9316 = vunpack.c.l.b16 %v9236
  %v9317 = vunpack.c.h.b16 %v9236
  %v9318 = vunpack.c.l.b16 %v9237
  %v9319 = vunpack.c.h.b16 %v9237
  %v9320 = vunpack.c.l.b16 %v9238
  %v9321 = vunpack.c.h.b16 %v9238
  %v9322 = vunpack.c.l.b16 %v9239
  %v9323 = vunpack.c.h.b16 %v9239
  %v9324 = vunpack.c.l.b16 %v9240
  %v9325 = vunpack.c.h.b16 %v9240
  %v9326 = vunpack.c.l.b16 %v9241
  %v9327 = vunpack.c.h.b16 %v9241
  %v9328 = vunpack.c.l.b16 %v9242
  %v9329 = vunpack.c.h.b16 %v9242
  %v9330 = vunpack.c.l.b16 %v9243
  %v9331 = vunpack.c.h.b16 %v9243
  %v9332 = vunpack.c.l.b16 %v9244
  %v9333 = vunpack.c.h.b16 %v9244
  %v9334 = vunpack.c.l.b16 %v9245
  %v9335 = vunpack.c.h.b16 %v9245
  %v9336 = vunpack.c.l.b16 %v9246
  %v9337 = vunpack.c.h.b16 %v9246
  %v9338 = vunpack.c.l.b16 %v9247
  %v9339 = vunpack.c.h.b16 %v9247
  %v9340 = vunpack.c.l.b16 %v9248
  %v9341 = vunpack.c.h.b16 %v9248
  %v9342 = vunpack.c.l.b16 %v9249
  %v9343 = vunpack.c.h.b16 %v9249
  %v9344 = vunpack.c.l.b16 %v9250
  %v9345 = vunpack.c.h.b16 %v9250
  %v9346 = vunpack.c.l.b16 %v9251
  %v9347 = vunpack.c.h.b16 %v9251
  %v9348 = vunpack.c.l.b16 %v9252
  %v9349 = vunpack.c.h.b16 %v9252
  %v9350 = vunpack.c.l.b16 %v9253
  %v9351 = vunpack.c.h.b16 %v9253
  %v9352 = vunpack.c.l.b16 %v9254
  %v9353 = vunpack.c.h.b16 %v9254
  %v9354 = vunpack.c.l.b16 %v9255
  %v9355 = vunpack.c.h.b16 %v9255
  %v9356 = vunpack.c.l.b16 %v9256
  %v9357 = vunpack.c.h.b16 %v9256
  %v9358 = vunpack.c.l.b16 %v9257
  %v9359 = vunpack.c.h.b16 %v9257
  %v9360 = vunpack.c.l.b16 %v9258
  %v9361 = vunpack.c.h.b16 %v9258
  %v9362 = vpack.c.b16 %v9302, %v9298
  %v9363 = vpack.c.b16 %v9303, %v9299
  %v9364 = vpack.c.b16 %v9304, %v9300
  %v9365 = vpack.c.b16 %v9305, %v9301
  %v9366 = vpack.c.b16 %v9310, %v9306
  %v9367 = vpack.c.b16 %v9311, %v9307
  %v9368 = vpack.c.b16 %v9312, %v9308
  %v9369 = vpack.c.b16 %v9313, %v9309
  %v9370 = vpack.c.b16 %v9318, %v9314
  %v9371 = vpack.c.b16 %v9319, %v9315
  %v9372 = vpack.c.b16 %v9320, %v9316
  %v9373 = vpack.c.b16 %v9321, %v9317
  %v9374 = vpack.c.b16 %v9326, %v9322
  %v9375 = vpack.c.b16 %v9327, %v9323
  %v9376 = vpack.c.b16 %v9328, %v9324
  %v9377 = vpack.c.b16 %v9329, %v9325
  %v9378 = vpack.c.b16 %v9334, %v9330
  %v9379 = vpack.c.b16 %v9335, %v9331
  %v9380 = vpack.c.b16 %v9336, %v9332
  %v9381 = vpack.c.b16 %v9337, %v9333
  %v9382 = vpack.c.b16 %v9342, %v9338
  %v9383 = vpack.c.b16 %v9343, %v9339
  %v9384 = vpack.c.b16 %v9344, %v9340
  %v9385 = vpack.c.b16 %v9345, %v9341
  %v9386 = vpack.c.b16 %v9350, %v9346
  %v9387 = vpack.c.b16 %v9351, %v9347
  %v9388 = vpack.c.b16 %v9352, %v9348
  %v9389 = vpack.c.b16 %v9353, %v9349
  %v9390 = vpack.c.b16 %v9358, %v9354
  %v9391 = vpack.c.b16 %v9359, %v9355
  %v9392 = vpack.c.b16 %v9360, %v9356
  %v9393 = vpack.c.b16 %v9361, %v9357
  %v9430 = vrot.slane %v9259, 6
  %v9431 = vrot.slane %v9260, 6
  %v9432 = vrot.slane %v9261, 6
  %v9433 = vrot.slane %v9262, 6
  %9438 = vmatpush.bf16.msra.mxu0 %v9390
  %9439 = vmatpush.bf16.msra.mxu0 %v9386
  %9440 = vmatpush.bf16.msra.mxu0 %v9382
  %9441 = vmatpush.bf16.msra.mxu0 %v9378
  %9442 = vmatpush.bf16.msra.mxu0 %v9374
  %9443 = vmatpush.bf16.msra.mxu0 %v9370
  %9444 = vmatpush.bf16.msra.mxu0 %v9366
  %9445 = vmatpush.bf16.msra.mxu0 %v9362
  %9446 = vmatmul.bf16.gmra.mxu0 %v9264
  %v9447 = vpop.f32.mrf.mxu0
  %v9448 = vadd.f32 %v9430, %v9447
  %v9449 = vpop.f32.mrf.mxu0
  %9450 = vdwg.mxu0
  %9451 = vmatpush.bf16.msra.mxu0 %v9391
  %9452 = vmatpush.bf16.msra.mxu0 %v9387
  %9453 = vmatpush.bf16.msra.mxu0 %v9383
  %9454 = vmatpush.bf16.msra.mxu0 %v9379
  %9455 = vmatpush.bf16.msra.mxu0 %v9375
  %9456 = vmatpush.bf16.msra.mxu0 %v9371
  %9457 = vmatpush.bf16.msra.mxu0 %v9367
  %9458 = vmatpush.bf16.msra.mxu0 %v9363
  %9459 = vmatmul.bf16.gmra.mxu0 %v9264
  %v9460 = vpop.f32.mrf.mxu0
  %v9461 = vadd.f32 %v9431, %v9460
  %v9462 = vpop.f32.mrf.mxu0
  %9463 = vdwg.mxu0
  %9464 = vmatpush.bf16.msra.mxu0 %v9392
  %9465 = vmatpush.bf16.msra.mxu0 %v9388
  %9466 = vmatpush.bf16.msra.mxu0 %v9384
  %9467 = vmatpush.bf16.msra.mxu0 %v9380
  %9468 = vmatpush.bf16.msra.mxu0 %v9376
  %9469 = vmatpush.bf16.msra.mxu0 %v9372
  %9470 = vmatpush.bf16.msra.mxu0 %v9368
  %9471 = vmatpush.bf16.msra.mxu0 %v9364
  %9472 = vmatmul.bf16.gmra.mxu0 %v9264
  %v9473 = vpop.f32.mrf.mxu0
  %v9474 = vadd.f32 %v9432, %v9473
  %v9475 = vpop.f32.mrf.mxu0
  %9476 = vdwg.mxu0
  %9477 = vmatpush.bf16.msra.mxu0 %v9393
  %9478 = vmatpush.bf16.msra.mxu0 %v9389
  %9479 = vmatpush.bf16.msra.mxu0 %v9385
  %9480 = vmatpush.bf16.msra.mxu0 %v9381
  %9481 = vmatpush.bf16.msra.mxu0 %v9377
  %9482 = vmatpush.bf16.msra.mxu0 %v9373
  %9483 = vmatpush.bf16.msra.mxu0 %v9369
  %9484 = vmatpush.bf16.msra.mxu0 %v9365
  %9485 = vmatmul.bf16.gmra.mxu0 %v9264
  %v9486 = vpop.f32.mrf.mxu0
  %v9487 = vadd.f32 %v9433, %v9486
  %v9488 = vpop.f32.mrf.mxu0
  %9489 = vdwg.mxu0
  %v9494 = vrot.slane %v9448, 6
  %v9495 = vrot.slane %v9461, 6
  %v9496 = vrot.slane %v9474, 6
  %v9497 = vrot.slane %v9487, 6
  %v9502 = vsel %vm1239, %v9185, %v9494
  %v9503 = vsel %vm1239, %v9198, %v9495
  %v9504 = vsel %vm1239, %v9211, %v9496
  %v9505 = vsel %vm1239, %v9224, %v9497
  %v9506 = vxor.u32 %v9502, 2147483648
  %v9507 = vmul.f32 %v9506, 1.442695
  %v9508 = vpow.pop %v9507
  %v9509 = vadd.f32 %v9508, 1.0
  %v9510 = vrcp.pop %v9509
  %v9511 = vmul.f32 %v9509, %v9510
  %v9512 = vsub.f32 1.0, %v9511
  %v9513 = vmul.f32 %v9510, %v9512
  %v9514 = vadd.f32 %v9510, %v9513
  %vm9515 = vweird.f32 %v9509
  %vm9516 = vweird.f32 %v9510
  %vm9517 = vmor %vm9515, %vm9516
  %v9518 = vsel %vm9517, %v9510, %v9514
  %v9519 = vand.u32 2147483647, %v9509
  %vm9520 = vcmp.eq.f32.partialorder %v9519, 8.507059e+37
  %v9521 = vand.u32 %v9509, 2147483648
  %v9522 = vor.u32 1.1754944e-38, %v9521
  %v9523 = vsel %vm9520, %v9522, %v9518
  %v9524 = vmul.f32 1.0, %v9523
  %v9525 = vxor.u32 %v9503, 2147483648
  %v9526 = vmul.f32 %v9525, 1.442695
  %v9527 = vpow.pop %v9526
  %v9528 = vadd.f32 %v9527, 1.0
  %v9529 = vrcp.pop %v9528
  %v9530 = vmul.f32 %v9528, %v9529
  %v9531 = vsub.f32 1.0, %v9530
  %v9532 = vmul.f32 %v9529, %v9531
  %v9533 = vadd.f32 %v9529, %v9532
  %vm9534 = vweird.f32 %v9528
  %vm9535 = vweird.f32 %v9529
  %vm9536 = vmor %vm9534, %vm9535
  %v9537 = vsel %vm9536, %v9529, %v9533
  %v9538 = vand.u32 2147483647, %v9528
  %vm9539 = vcmp.eq.f32.partialorder %v9538, 8.507059e+37
  %v9540 = vand.u32 %v9528, 2147483648
  %v9541 = vor.u32 1.1754944e-38, %v9540
  %v9542 = vsel %vm9539, %v9541, %v9537
  %v9543 = vmul.f32 1.0, %v9542
  %v9544 = vtanh.pop %v9504
  %v9545 = vxor.u32 %v9505, 2147483648
  %v9546 = vmul.f32 %v9545, 1.442695
  %v9547 = vpow.pop %v9546
  %v9548 = vadd.f32 %v9547, 1.0
  %v9549 = vrcp.pop %v9548
  %v9550 = vmul.f32 %v9548, %v9549
  %v9551 = vsub.f32 1.0, %v9550
  %v9552 = vmul.f32 %v9549, %v9551
  %v9553 = vadd.f32 %v9549, %v9552
  %vm9554 = vweird.f32 %v9548
  %vm9555 = vweird.f32 %v9549
  %vm9556 = vmor %vm9554, %vm9555
  %v9557 = vsel %vm9556, %v9549, %v9553
  %v9558 = vand.u32 2147483647, %v9548
  %vm9559 = vcmp.eq.f32.partialorder %v9558, 8.507059e+37
  %v9560 = vand.u32 %v9548, 2147483648
  %v9561 = vor.u32 1.1754944e-38, %v9560
  %v9562 = vsel %vm9559, %v9561, %v9557
  %v9563 = vmul.f32 1.0, %v9562
  %v9564 = vmul.f32 %v9543, %v8970
  %v9565 = vmul.f32 %v9524, %v9544
  %v9566 = vadd.f32 %v9564, %v9565
  %v9567 = vtanh.pop %v9566
  %v9568 = vmul.f32 %v9563, %v9567
  %9569 = vst [vmem:[#allocation3 + $0x10] sm:$0x3] %v9568
  %v9571 = vrot.slane %v9568, 4
  %9573 = vst [vmem:[#allocation3 + $0x8] sm:$0xc0] %v9571
  %v9574 = vpack.c.bf16 %v9568, %v9568
  %v9575 = vld [vmem:[#allocation6] sm:$0xff]
  %v9576 = vld [vmem:[#allocation6 + $0x8] sm:$0xff]
  %v9577 = vld [vmem:[#allocation6 + $0x10] sm:$0xff]
  %v9578 = vld [vmem:[#allocation6 + $0x18] sm:$0xff]
  %v9579 = vld [vmem:[#allocation6 + $0x20] sm:$0xff]
  %v9580 = vld [vmem:[#allocation6 + $0x28] sm:$0xff]
  %v9581 = vld [vmem:[#allocation6 + $0x30] sm:$0xff]
  %v9582 = vld [vmem:[#allocation6 + $0x38] sm:$0xff]
  %v9583 = vld [vmem:[#allocation6 + $0x40] sm:$0xff]
  %v9584 = vld [vmem:[#allocation6 + $0x48] sm:$0xff]
  %v9585 = vld [vmem:[#allocation6 + $0x50] sm:$0xff]
  %v9586 = vld [vmem:[#allocation6 + $0x58] sm:$0xff]
  %v9587 = vld [vmem:[#allocation6 + $0x60] sm:$0xff]
  %v9588 = vld [vmem:[#allocation6 + $0x68] sm:$0xff]
  %v9589 = vld [vmem:[#allocation6 + $0x70] sm:$0xff]
  %v9590 = vld [vmem:[#allocation6 + $0x78] sm:$0xff]
  %v9591 = vld [vmem:[#allocation6 + $0x80] sm:$0xff]
  %v9592 = vld [vmem:[#allocation6 + $0x88] sm:$0xff]
  %v9593 = vld [vmem:[#allocation6 + $0x90] sm:$0xff]
  %v9594 = vld [vmem:[#allocation6 + $0x98] sm:$0xff]
  %v9595 = vld [vmem:[#allocation6 + $0xa0] sm:$0xff]
  %v9596 = vld [vmem:[#allocation6 + $0xa8] sm:$0xff]
  %v9597 = vld [vmem:[#allocation6 + $0xb0] sm:$0xff]
  %v9598 = vld [vmem:[#allocation6 + $0xb8] sm:$0xff]
  %v9599 = vld [vmem:[#allocation6 + $0xc0] sm:$0xff]
  %v9600 = vld [vmem:[#allocation6 + $0xc8] sm:$0xff]
  %v9601 = vld [vmem:[#allocation6 + $0xd0] sm:$0xff]
  %v9602 = vld [vmem:[#allocation6 + $0xd8] sm:$0xff]
  %v9603 = vld [vmem:[#allocation6 + $0xe0] sm:$0xff]
  %v9604 = vld [vmem:[#allocation6 + $0xe8] sm:$0xff]
  %v9605 = vld [vmem:[#allocation6 + $0xf0] sm:$0xff]
  %v9606 = vld [vmem:[#allocation6 + $0xf8] sm:$0xff]
  %v9607 = vld [vmem:[#allocation4 + $0x40] sm:$0xc]
  %v9608 = vld [vmem:[#allocation4 + $0x48] sm:$0xc]
  %v9609 = vld [vmem:[#allocation4 + $0x50] sm:$0xc]
  %v9610 = vld [vmem:[#allocation4 + $0x58] sm:$0xc]
  %v9643 = vunpack.c.l.b16 %v9575
  %v9644 = vunpack.c.h.b16 %v9575
  %v9645 = vunpack.c.l.b16 %v9576
  %v9646 = vunpack.c.h.b16 %v9576
  %v9647 = vunpack.c.l.b16 %v9577
  %v9648 = vunpack.c.h.b16 %v9577
  %v9649 = vunpack.c.l.b16 %v9578
  %v9650 = vunpack.c.h.b16 %v9578
  %v9651 = vunpack.c.l.b16 %v9579
  %v9652 = vunpack.c.h.b16 %v9579
  %v9653 = vunpack.c.l.b16 %v9580
  %v9654 = vunpack.c.h.b16 %v9580
  %v9655 = vunpack.c.l.b16 %v9581
  %v9656 = vunpack.c.h.b16 %v9581
  %v9657 = vunpack.c.l.b16 %v9582
  %v9658 = vunpack.c.h.b16 %v9582
  %v9659 = vunpack.c.l.b16 %v9583
  %v9660 = vunpack.c.h.b16 %v9583
  %v9661 = vunpack.c.l.b16 %v9584
  %v9662 = vunpack.c.h.b16 %v9584
  %v9663 = vunpack.c.l.b16 %v9585
  %v9664 = vunpack.c.h.b16 %v9585
  %v9665 = vunpack.c.l.b16 %v9586
  %v9666 = vunpack.c.h.b16 %v9586
  %v9667 = vunpack.c.l.b16 %v9587
  %v9668 = vunpack.c.h.b16 %v9587
  %v9669 = vunpack.c.l.b16 %v9588
  %v9670 = vunpack.c.h.b16 %v9588
  %v9671 = vunpack.c.l.b16 %v9589
  %v9672 = vunpack.c.h.b16 %v9589
  %v9673 = vunpack.c.l.b16 %v9590
  %v9674 = vunpack.c.h.b16 %v9590
  %v9675 = vunpack.c.l.b16 %v9591
  %v9676 = vunpack.c.h.b16 %v9591
  %v9677 = vunpack.c.l.b16 %v9592
  %v9678 = vunpack.c.h.b16 %v9592
  %v9679 = vunpack.c.l.b16 %v9593
  %v9680 = vunpack.c.h.b16 %v9593
  %v9681 = vunpack.c.l.b16 %v9594
  %v9682 = vunpack.c.h.b16 %v9594
  %v9683 = vunpack.c.l.b16 %v9595
  %v9684 = vunpack.c.h.b16 %v9595
  %v9685 = vunpack.c.l.b16 %v9596
  %v9686 = vunpack.c.h.b16 %v9596
  %v9687 = vunpack.c.l.b16 %v9597
  %v9688 = vunpack.c.h.b16 %v9597
  %v9689 = vunpack.c.l.b16 %v9598
  %v9690 = vunpack.c.h.b16 %v9598
  %v9691 = vunpack.c.l.b16 %v9599
  %v9692 = vunpack.c.h.b16 %v9599
  %v9693 = vunpack.c.l.b16 %v9600
  %v9694 = vunpack.c.h.b16 %v9600
  %v9695 = vunpack.c.l.b16 %v9601
  %v9696 = vunpack.c.h.b16 %v9601
  %v9697 = vunpack.c.l.b16 %v9602
  %v9698 = vunpack.c.h.b16 %v9602
  %v9699 = vunpack.c.l.b16 %v9603
  %v9700 = vunpack.c.h.b16 %v9603
  %v9701 = vunpack.c.l.b16 %v9604
  %v9702 = vunpack.c.h.b16 %v9604
  %v9703 = vunpack.c.l.b16 %v9605
  %v9704 = vunpack.c.h.b16 %v9605
  %v9705 = vunpack.c.l.b16 %v9606
  %v9706 = vunpack.c.h.b16 %v9606
  %v9707 = vpack.c.b16 %v9647, %v9643
  %v9708 = vpack.c.b16 %v9648, %v9644
  %v9709 = vpack.c.b16 %v9649, %v9645
  %v9710 = vpack.c.b16 %v9650, %v9646
  %v9711 = vpack.c.b16 %v9655, %v9651
  %v9712 = vpack.c.b16 %v9656, %v9652
  %v9713 = vpack.c.b16 %v9657, %v9653
  %v9714 = vpack.c.b16 %v9658, %v9654
  %v9715 = vpack.c.b16 %v9663, %v9659
  %v9716 = vpack.c.b16 %v9664, %v9660
  %v9717 = vpack.c.b16 %v9665, %v9661
  %v9718 = vpack.c.b16 %v9666, %v9662
  %v9719 = vpack.c.b16 %v9671, %v9667
  %v9720 = vpack.c.b16 %v9672, %v9668
  %v9721 = vpack.c.b16 %v9673, %v9669
  %v9722 = vpack.c.b16 %v9674, %v9670
  %v9723 = vpack.c.b16 %v9679, %v9675
  %v9724 = vpack.c.b16 %v9680, %v9676
  %v9725 = vpack.c.b16 %v9681, %v9677
  %v9726 = vpack.c.b16 %v9682, %v9678
  %v9727 = vpack.c.b16 %v9687, %v9683
  %v9728 = vpack.c.b16 %v9688, %v9684
  %v9729 = vpack.c.b16 %v9689, %v9685
  %v9730 = vpack.c.b16 %v9690, %v9686
  %v9731 = vpack.c.b16 %v9695, %v9691
  %v9732 = vpack.c.b16 %v9696, %v9692
  %v9733 = vpack.c.b16 %v9697, %v9693
  %v9734 = vpack.c.b16 %v9698, %v9694
  %v9735 = vpack.c.b16 %v9703, %v9699
  %v9736 = vpack.c.b16 %v9704, %v9700
  %v9737 = vpack.c.b16 %v9705, %v9701
  %v9738 = vpack.c.b16 %v9706, %v9702
  %v9775 = vrot.slane %v9607, 2
  %v9776 = vrot.slane %v9608, 2
  %v9777 = vrot.slane %v9609, 2
  %v9778 = vrot.slane %v9610, 2
  %9783 = vmatpush.bf16.msra.mxu0 %v9735
  %9784 = vmatpush.bf16.msra.mxu0 %v9731
  %9785 = vmatpush.bf16.msra.mxu0 %v9727
  %9786 = vmatpush.bf16.msra.mxu0 %v9723
  %9787 = vmatpush.bf16.msra.mxu0 %v9719
  %9788 = vmatpush.bf16.msra.mxu0 %v9715
  %9789 = vmatpush.bf16.msra.mxu0 %v9711
  %9790 = vmatpush.bf16.msra.mxu0 %v9707
  %9791 = vmatmul.bf16.gmra.mxu0 %v9574
  %v9792 = vpop.f32.mrf.mxu0
  %v9793 = vadd.f32 %v9775, %v9792
  %v9794 = vpop.f32.mrf.mxu0
  %9795 = vdwg.mxu0
  %9796 = vmatpush.bf16.msra.mxu0 %v9736
  %9797 = vmatpush.bf16.msra.mxu0 %v9732
  %9798 = vmatpush.bf16.msra.mxu0 %v9728
  %9799 = vmatpush.bf16.msra.mxu0 %v9724
  %9800 = vmatpush.bf16.msra.mxu0 %v9720
  %9801 = vmatpush.bf16.msra.mxu0 %v9716
  %9802 = vmatpush.bf16.msra.mxu0 %v9712
  %9803 = vmatpush.bf16.msra.mxu0 %v9708
  %9804 = vmatmul.bf16.gmra.mxu0 %v9574
  %v9805 = vpop.f32.mrf.mxu0
  %v9806 = vadd.f32 %v9776, %v9805
  %v9807 = vpop.f32.mrf.mxu0
  %9808 = vdwg.mxu0
  %9809 = vmatpush.bf16.msra.mxu0 %v9737
  %9810 = vmatpush.bf16.msra.mxu0 %v9733
  %9811 = vmatpush.bf16.msra.mxu0 %v9729
  %9812 = vmatpush.bf16.msra.mxu0 %v9725
  %9813 = vmatpush.bf16.msra.mxu0 %v9721
  %9814 = vmatpush.bf16.msra.mxu0 %v9717
  %9815 = vmatpush.bf16.msra.mxu0 %v9713
  %9816 = vmatpush.bf16.msra.mxu0 %v9709
  %9817 = vmatmul.bf16.gmra.mxu0 %v9574
  %v9818 = vpop.f32.mrf.mxu0
  %v9819 = vadd.f32 %v9777, %v9818
  %v9820 = vpop.f32.mrf.mxu0
  %9821 = vdwg.mxu0
  %9822 = vmatpush.bf16.msra.mxu0 %v9738
  %9823 = vmatpush.bf16.msra.mxu0 %v9734
  %9824 = vmatpush.bf16.msra.mxu0 %v9730
  %9825 = vmatpush.bf16.msra.mxu0 %v9726
  %9826 = vmatpush.bf16.msra.mxu0 %v9722
  %9827 = vmatpush.bf16.msra.mxu0 %v9718
  %9828 = vmatpush.bf16.msra.mxu0 %v9714
  %9829 = vmatpush.bf16.msra.mxu0 %v9710
  %9830 = vmatmul.bf16.gmra.mxu0 %v9574
  %v9831 = vpop.f32.mrf.mxu0
  %v9832 = vadd.f32 %v9778, %v9831
  %v9833 = vpop.f32.mrf.mxu0
  %9834 = vdwg.mxu0
  %v9835 = vld [vmem:[#allocation7] sm:$0xff]
  %v9836 = vld [vmem:[#allocation7 + $0x8] sm:$0xff]
  %v9837 = vld [vmem:[#allocation7 + $0x10] sm:$0xff]
  %v9838 = vld [vmem:[#allocation7 + $0x18] sm:$0xff]
  %v9839 = vld [vmem:[#allocation7 + $0x20] sm:$0xff]
  %v9840 = vld [vmem:[#allocation7 + $0x28] sm:$0xff]
  %v9841 = vld [vmem:[#allocation7 + $0x30] sm:$0xff]
  %v9842 = vld [vmem:[#allocation7 + $0x38] sm:$0xff]
  %v9843 = vld [vmem:[#allocation7 + $0x40] sm:$0xff]
  %v9844 = vld [vmem:[#allocation7 + $0x48] sm:$0xff]
  %v9845 = vld [vmem:[#allocation7 + $0x50] sm:$0xff]
  %v9846 = vld [vmem:[#allocation7 + $0x58] sm:$0xff]
  %v9847 = vld [vmem:[#allocation7 + $0x60] sm:$0xff]
  %v9848 = vld [vmem:[#allocation7 + $0x68] sm:$0xff]
  %v9849 = vld [vmem:[#allocation7 + $0x70] sm:$0xff]
  %v9850 = vld [vmem:[#allocation7 + $0x78] sm:$0xff]
  %v9851 = vld [vmem:[#allocation7 + $0x80] sm:$0xff]
  %v9852 = vld [vmem:[#allocation7 + $0x88] sm:$0xff]
  %v9853 = vld [vmem:[#allocation7 + $0x90] sm:$0xff]
  %v9854 = vld [vmem:[#allocation7 + $0x98] sm:$0xff]
  %v9855 = vld [vmem:[#allocation7 + $0xa0] sm:$0xff]
  %v9856 = vld [vmem:[#allocation7 + $0xa8] sm:$0xff]
  %v9857 = vld [vmem:[#allocation7 + $0xb0] sm:$0xff]
  %v9858 = vld [vmem:[#allocation7 + $0xb8] sm:$0xff]
  %v9859 = vld [vmem:[#allocation7 + $0xc0] sm:$0xff]
  %v9860 = vld [vmem:[#allocation7 + $0xc8] sm:$0xff]
  %v9861 = vld [vmem:[#allocation7 + $0xd0] sm:$0xff]
  %v9862 = vld [vmem:[#allocation7 + $0xd8] sm:$0xff]
  %v9863 = vld [vmem:[#allocation7 + $0xe0] sm:$0xff]
  %v9864 = vld [vmem:[#allocation7 + $0xe8] sm:$0xff]
  %v9865 = vld [vmem:[#allocation7 + $0xf0] sm:$0xff]
  %v9866 = vld [vmem:[#allocation7 + $0xf8] sm:$0xff]
  %v9867 = vld [vmem:[#allocation4 + $0x20] sm:$0x30]
  %v9868 = vld [vmem:[#allocation4 + $0x28] sm:$0x30]
  %v9869 = vld [vmem:[#allocation4 + $0x30] sm:$0x30]
  %v9870 = vld [vmem:[#allocation4 + $0x38] sm:$0x30]
  %v9872 = vrot.slane %v9574, 1
  %v9906 = vunpack.c.l.b16 %v9835
  %v9907 = vunpack.c.h.b16 %v9835
  %v9908 = vunpack.c.l.b16 %v9836
  %v9909 = vunpack.c.h.b16 %v9836
  %v9910 = vunpack.c.l.b16 %v9837
  %v9911 = vunpack.c.h.b16 %v9837
  %v9912 = vunpack.c.l.b16 %v9838
  %v9913 = vunpack.c.h.b16 %v9838
  %v9914 = vunpack.c.l.b16 %v9839
  %v9915 = vunpack.c.h.b16 %v9839
  %v9916 = vunpack.c.l.b16 %v9840
  %v9917 = vunpack.c.h.b16 %v9840
  %v9918 = vunpack.c.l.b16 %v9841
  %v9919 = vunpack.c.h.b16 %v9841
  %v9920 = vunpack.c.l.b16 %v9842
  %v9921 = vunpack.c.h.b16 %v9842
  %v9922 = vunpack.c.l.b16 %v9843
  %v9923 = vunpack.c.h.b16 %v9843
  %v9924 = vunpack.c.l.b16 %v9844
  %v9925 = vunpack.c.h.b16 %v9844
  %v9926 = vunpack.c.l.b16 %v9845
  %v9927 = vunpack.c.h.b16 %v9845
  %v9928 = vunpack.c.l.b16 %v9846
  %v9929 = vunpack.c.h.b16 %v9846
  %v9930 = vunpack.c.l.b16 %v9847
  %v9931 = vunpack.c.h.b16 %v9847
  %v9932 = vunpack.c.l.b16 %v9848
  %v9933 = vunpack.c.h.b16 %v9848
  %v9934 = vunpack.c.l.b16 %v9849
  %v9935 = vunpack.c.h.b16 %v9849
  %v9936 = vunpack.c.l.b16 %v9850
  %v9937 = vunpack.c.h.b16 %v9850
  %v9938 = vunpack.c.l.b16 %v9851
  %v9939 = vunpack.c.h.b16 %v9851
  %v9940 = vunpack.c.l.b16 %v9852
  %v9941 = vunpack.c.h.b16 %v9852
  %v9942 = vunpack.c.l.b16 %v9853
  %v9943 = vunpack.c.h.b16 %v9853
  %v9944 = vunpack.c.l.b16 %v9854
  %v9945 = vunpack.c.h.b16 %v9854
  %v9946 = vunpack.c.l.b16 %v9855
  %v9947 = vunpack.c.h.b16 %v9855
  %v9948 = vunpack.c.l.b16 %v9856
  %v9949 = vunpack.c.h.b16 %v9856
  %v9950 = vunpack.c.l.b16 %v9857
  %v9951 = vunpack.c.h.b16 %v9857
  %v9952 = vunpack.c.l.b16 %v9858
  %v9953 = vunpack.c.h.b16 %v9858
  %v9954 = vunpack.c.l.b16 %v9859
  %v9955 = vunpack.c.h.b16 %v9859
  %v9956 = vunpack.c.l.b16 %v9860
  %v9957 = vunpack.c.h.b16 %v9860
  %v9958 = vunpack.c.l.b16 %v9861
  %v9959 = vunpack.c.h.b16 %v9861
  %v9960 = vunpack.c.l.b16 %v9862
  %v9961 = vunpack.c.h.b16 %v9862
  %v9962 = vunpack.c.l.b16 %v9863
  %v9963 = vunpack.c.h.b16 %v9863
  %v9964 = vunpack.c.l.b16 %v9864
  %v9965 = vunpack.c.h.b16 %v9864
  %v9966 = vunpack.c.l.b16 %v9865
  %v9967 = vunpack.c.h.b16 %v9865
  %v9968 = vunpack.c.l.b16 %v9866
  %v9969 = vunpack.c.h.b16 %v9866
  %v9970 = vpack.c.b16 %v9910, %v9906
  %v9971 = vpack.c.b16 %v9911, %v9907
  %v9972 = vpack.c.b16 %v9912, %v9908
  %v9973 = vpack.c.b16 %v9913, %v9909
  %v9974 = vpack.c.b16 %v9918, %v9914
  %v9975 = vpack.c.b16 %v9919, %v9915
  %v9976 = vpack.c.b16 %v9920, %v9916
  %v9977 = vpack.c.b16 %v9921, %v9917
  %v9978 = vpack.c.b16 %v9926, %v9922
  %v9979 = vpack.c.b16 %v9927, %v9923
  %v9980 = vpack.c.b16 %v9928, %v9924
  %v9981 = vpack.c.b16 %v9929, %v9925
  %v9982 = vpack.c.b16 %v9934, %v9930
  %v9983 = vpack.c.b16 %v9935, %v9931
  %v9984 = vpack.c.b16 %v9936, %v9932
  %v9985 = vpack.c.b16 %v9937, %v9933
  %v9986 = vpack.c.b16 %v9942, %v9938
  %v9987 = vpack.c.b16 %v9943, %v9939
  %v9988 = vpack.c.b16 %v9944, %v9940
  %v9989 = vpack.c.b16 %v9945, %v9941
  %v9990 = vpack.c.b16 %v9950, %v9946
  %v9991 = vpack.c.b16 %v9951, %v9947
  %v9992 = vpack.c.b16 %v9952, %v9948
  %v9993 = vpack.c.b16 %v9953, %v9949
  %v9994 = vpack.c.b16 %v9958, %v9954
  %v9995 = vpack.c.b16 %v9959, %v9955
  %v9996 = vpack.c.b16 %v9960, %v9956
  %v9997 = vpack.c.b16 %v9961, %v9957
  %v9998 = vpack.c.b16 %v9966, %v9962
  %v9999 = vpack.c.b16 %v9967, %v9963
  %v10000 = vpack.c.b16 %v9968, %v9964
  %v10001 = vpack.c.b16 %v9969, %v9965
  %v10038 = vrot.slane %v9867, 4
  %v10039 = vrot.slane %v9868, 4
  %v10040 = vrot.slane %v9869, 4
  %v10041 = vrot.slane %v9870, 4
  %10046 = vmatpush.bf16.msra.mxu0 %v9998
  %10047 = vmatpush.bf16.msra.mxu0 %v9994
  %10048 = vmatpush.bf16.msra.mxu0 %v9990
  %10049 = vmatpush.bf16.msra.mxu0 %v9986
  %10050 = vmatpush.bf16.msra.mxu0 %v9982
  %10051 = vmatpush.bf16.msra.mxu0 %v9978
  %10052 = vmatpush.bf16.msra.mxu0 %v9974
  %10053 = vmatpush.bf16.msra.mxu0 %v9970
  %10054 = vmatmul.bf16.gmra.mxu0 %v9872
  %v10055 = vpop.f32.mrf.mxu0
  %v10056 = vadd.f32 %v10038, %v10055
  %v10057 = vpop.f32.mrf.mxu0
  %10058 = vdwg.mxu0
  %10059 = vmatpush.bf16.msra.mxu0 %v9999
  %10060 = vmatpush.bf16.msra.mxu0 %v9995
  %10061 = vmatpush.bf16.msra.mxu0 %v9991
  %10062 = vmatpush.bf16.msra.mxu0 %v9987
  %10063 = vmatpush.bf16.msra.mxu0 %v9983
  %10064 = vmatpush.bf16.msra.mxu0 %v9979
  %10065 = vmatpush.bf16.msra.mxu0 %v9975
  %10066 = vmatpush.bf16.msra.mxu0 %v9971
  %10067 = vmatmul.bf16.gmra.mxu0 %v9872
  %v10068 = vpop.f32.mrf.mxu0
  %v10069 = vadd.f32 %v10039, %v10068
  %v10070 = vpop.f32.mrf.mxu0
  %10071 = vdwg.mxu0
  %10072 = vmatpush.bf16.msra.mxu0 %v10000
  %10073 = vmatpush.bf16.msra.mxu0 %v9996
  %10074 = vmatpush.bf16.msra.mxu0 %v9992
  %10075 = vmatpush.bf16.msra.mxu0 %v9988
  %10076 = vmatpush.bf16.msra.mxu0 %v9984
  %10077 = vmatpush.bf16.msra.mxu0 %v9980
  %10078 = vmatpush.bf16.msra.mxu0 %v9976
  %10079 = vmatpush.bf16.msra.mxu0 %v9972
  %10080 = vmatmul.bf16.gmra.mxu0 %v9872
  %v10081 = vpop.f32.mrf.mxu0
  %v10082 = vadd.f32 %v10040, %v10081
  %v10083 = vpop.f32.mrf.mxu0
  %10084 = vdwg.mxu0
  %10085 = vmatpush.bf16.msra.mxu0 %v10001
  %10086 = vmatpush.bf16.msra.mxu0 %v9997
  %10087 = vmatpush.bf16.msra.mxu0 %v9993
  %10088 = vmatpush.bf16.msra.mxu0 %v9989
  %10089 = vmatpush.bf16.msra.mxu0 %v9985
  %10090 = vmatpush.bf16.msra.mxu0 %v9981
  %10091 = vmatpush.bf16.msra.mxu0 %v9977
  %10092 = vmatpush.bf16.msra.mxu0 %v9973
  %10093 = vmatmul.bf16.gmra.mxu0 %v9872
  %v10094 = vpop.f32.mrf.mxu0
  %v10095 = vadd.f32 %v10041, %v10094
  %v10096 = vpop.f32.mrf.mxu0
  %10097 = vdwg.mxu0
  %v10102 = vrot.slane %v10056, 6
  %v10103 = vrot.slane %v10069, 6
  %v10104 = vrot.slane %v10082, 6
  %v10105 = vrot.slane %v10095, 6
  %v10110 = vsel %vm1239, %v9793, %v10102
  %v10111 = vsel %vm1239, %v9806, %v10103
  %v10112 = vsel %vm1239, %v9819, %v10104
  %v10113 = vsel %vm1239, %v9832, %v10105
  %v10114 = vxor.u32 %v10110, 2147483648
  %v10115 = vmul.f32 %v10114, 1.442695
  %v10116 = vpow.pop %v10115
  %v10117 = vadd.f32 %v10116, 1.0
  %v10118 = vrcp.pop %v10117
  %v10119 = vmul.f32 %v10117, %v10118
  %v10120 = vsub.f32 1.0, %v10119
  %v10121 = vmul.f32 %v10118, %v10120
  %v10122 = vadd.f32 %v10118, %v10121
  %vm10123 = vweird.f32 %v10117
  %vm10124 = vweird.f32 %v10118
  %vm10125 = vmor %vm10123, %vm10124
  %v10126 = vsel %vm10125, %v10118, %v10122
  %v10127 = vand.u32 2147483647, %v10117
  %vm10128 = vcmp.eq.f32.partialorder %v10127, 8.507059e+37
  %v10129 = vand.u32 %v10117, 2147483648
  %v10130 = vor.u32 1.1754944e-38, %v10129
  %v10131 = vsel %vm10128, %v10130, %v10126
  %v10132 = vmul.f32 1.0, %v10131
  %v10133 = vxor.u32 %v10111, 2147483648
  %v10134 = vmul.f32 %v10133, 1.442695
  %v10135 = vpow.pop %v10134
  %v10136 = vadd.f32 %v10135, 1.0
  %v10137 = vrcp.pop %v10136
  %v10138 = vmul.f32 %v10136, %v10137
  %v10139 = vsub.f32 1.0, %v10138
  %v10140 = vmul.f32 %v10137, %v10139
  %v10141 = vadd.f32 %v10137, %v10140
  %vm10142 = vweird.f32 %v10136
  %vm10143 = vweird.f32 %v10137
  %vm10144 = vmor %vm10142, %vm10143
  %v10145 = vsel %vm10144, %v10137, %v10141
  %v10146 = vand.u32 2147483647, %v10136
  %vm10147 = vcmp.eq.f32.partialorder %v10146, 8.507059e+37
  %v10148 = vand.u32 %v10136, 2147483648
  %v10149 = vor.u32 1.1754944e-38, %v10148
  %v10150 = vsel %vm10147, %v10149, %v10145
  %v10151 = vmul.f32 1.0, %v10150
  %v10152 = vtanh.pop %v10112
  %v10153 = vxor.u32 %v10113, 2147483648
  %v10154 = vmul.f32 %v10153, 1.442695
  %v10155 = vpow.pop %v10154
  %v10156 = vadd.f32 %v10155, 1.0
  %v10157 = vrcp.pop %v10156
  %v10158 = vmul.f32 %v10156, %v10157
  %v10159 = vsub.f32 1.0, %v10158
  %v10160 = vmul.f32 %v10157, %v10159
  %v10161 = vadd.f32 %v10157, %v10160
  %vm10162 = vweird.f32 %v10156
  %vm10163 = vweird.f32 %v10157
  %vm10164 = vmor %vm10162, %vm10163
  %v10165 = vsel %vm10164, %v10157, %v10161
  %v10166 = vand.u32 2147483647, %v10156
  %vm10167 = vcmp.eq.f32.partialorder %v10166, 8.507059e+37
  %v10168 = vand.u32 %v10156, 2147483648
  %v10169 = vor.u32 1.1754944e-38, %v10168
  %v10170 = vsel %vm10167, %v10169, %v10165
  %v10171 = vmul.f32 1.0, %v10170
  %v10172 = vmul.f32 %v10151, %v9566
  %v10173 = vmul.f32 %v10132, %v10152
  %v10174 = vadd.f32 %v10172, %v10173
  %v10175 = vtanh.pop %v10174
  %v10176 = vmul.f32 %v10171, %v10175
  %v10178 = vrot.slane %v10176, 6
  %10180 = vst [vmem:[#allocation3 + $0x10] sm:$0xc] %v10178
  %10181 = vst [vmem:[#allocation3 + $0x8] sm:$0x30] %v10178
  %v10182 = vpack.c.bf16 %v10176, %v10176
  %v10183 = vld [vmem:[#allocation6] sm:$0xff]
  %v10184 = vld [vmem:[#allocation6 + $0x8] sm:$0xff]
  %v10185 = vld [vmem:[#allocation6 + $0x10] sm:$0xff]
  %v10186 = vld [vmem:[#allocation6 + $0x18] sm:$0xff]
  %v10187 = vld [vmem:[#allocation6 + $0x20] sm:$0xff]
  %v10188 = vld [vmem:[#allocation6 + $0x28] sm:$0xff]
  %v10189 = vld [vmem:[#allocation6 + $0x30] sm:$0xff]
  %v10190 = vld [vmem:[#allocation6 + $0x38] sm:$0xff]
  %v10191 = vld [vmem:[#allocation6 + $0x40] sm:$0xff]
  %v10192 = vld [vmem:[#allocation6 + $0x48] sm:$0xff]
  %v10193 = vld [vmem:[#allocation6 + $0x50] sm:$0xff]
  %v10194 = vld [vmem:[#allocation6 + $0x58] sm:$0xff]
  %v10195 = vld [vmem:[#allocation6 + $0x60] sm:$0xff]
  %v10196 = vld [vmem:[#allocation6 + $0x68] sm:$0xff]
  %v10197 = vld [vmem:[#allocation6 + $0x70] sm:$0xff]
  %v10198 = vld [vmem:[#allocation6 + $0x78] sm:$0xff]
  %v10199 = vld [vmem:[#allocation6 + $0x80] sm:$0xff]
  %v10200 = vld [vmem:[#allocation6 + $0x88] sm:$0xff]
  %v10201 = vld [vmem:[#allocation6 + $0x90] sm:$0xff]
  %v10202 = vld [vmem:[#allocation6 + $0x98] sm:$0xff]
  %v10203 = vld [vmem:[#allocation6 + $0xa0] sm:$0xff]
  %v10204 = vld [vmem:[#allocation6 + $0xa8] sm:$0xff]
  %v10205 = vld [vmem:[#allocation6 + $0xb0] sm:$0xff]
  %v10206 = vld [vmem:[#allocation6 + $0xb8] sm:$0xff]
  %v10207 = vld [vmem:[#allocation6 + $0xc0] sm:$0xff]
  %v10208 = vld [vmem:[#allocation6 + $0xc8] sm:$0xff]
  %v10209 = vld [vmem:[#allocation6 + $0xd0] sm:$0xff]
  %v10210 = vld [vmem:[#allocation6 + $0xd8] sm:$0xff]
  %v10211 = vld [vmem:[#allocation6 + $0xe0] sm:$0xff]
  %v10212 = vld [vmem:[#allocation6 + $0xe8] sm:$0xff]
  %v10213 = vld [vmem:[#allocation6 + $0xf0] sm:$0xff]
  %v10214 = vld [vmem:[#allocation6 + $0xf8] sm:$0xff]
  %v10215 = vld [vmem:[#allocation4 + $0x40] sm:$0x30]
  %v10216 = vld [vmem:[#allocation4 + $0x48] sm:$0x30]
  %v10217 = vld [vmem:[#allocation4 + $0x50] sm:$0x30]
  %v10218 = vld [vmem:[#allocation4 + $0x58] sm:$0x30]
  %v10251 = vunpack.c.l.b16 %v10183
  %v10252 = vunpack.c.h.b16 %v10183
  %v10253 = vunpack.c.l.b16 %v10184
  %v10254 = vunpack.c.h.b16 %v10184
  %v10255 = vunpack.c.l.b16 %v10185
  %v10256 = vunpack.c.h.b16 %v10185
  %v10257 = vunpack.c.l.b16 %v10186
  %v10258 = vunpack.c.h.b16 %v10186
  %v10259 = vunpack.c.l.b16 %v10187
  %v10260 = vunpack.c.h.b16 %v10187
  %v10261 = vunpack.c.l.b16 %v10188
  %v10262 = vunpack.c.h.b16 %v10188
  %v10263 = vunpack.c.l.b16 %v10189
  %v10264 = vunpack.c.h.b16 %v10189
  %v10265 = vunpack.c.l.b16 %v10190
  %v10266 = vunpack.c.h.b16 %v10190
  %v10267 = vunpack.c.l.b16 %v10191
  %v10268 = vunpack.c.h.b16 %v10191
  %v10269 = vunpack.c.l.b16 %v10192
  %v10270 = vunpack.c.h.b16 %v10192
  %v10271 = vunpack.c.l.b16 %v10193
  %v10272 = vunpack.c.h.b16 %v10193
  %v10273 = vunpack.c.l.b16 %v10194
  %v10274 = vunpack.c.h.b16 %v10194
  %v10275 = vunpack.c.l.b16 %v10195
  %v10276 = vunpack.c.h.b16 %v10195
  %v10277 = vunpack.c.l.b16 %v10196
  %v10278 = vunpack.c.h.b16 %v10196
  %v10279 = vunpack.c.l.b16 %v10197
  %v10280 = vunpack.c.h.b16 %v10197
  %v10281 = vunpack.c.l.b16 %v10198
  %v10282 = vunpack.c.h.b16 %v10198
  %v10283 = vunpack.c.l.b16 %v10199
  %v10284 = vunpack.c.h.b16 %v10199
  %v10285 = vunpack.c.l.b16 %v10200
  %v10286 = vunpack.c.h.b16 %v10200
  %v10287 = vunpack.c.l.b16 %v10201
  %v10288 = vunpack.c.h.b16 %v10201
  %v10289 = vunpack.c.l.b16 %v10202
  %v10290 = vunpack.c.h.b16 %v10202
  %v10291 = vunpack.c.l.b16 %v10203
  %v10292 = vunpack.c.h.b16 %v10203
  %v10293 = vunpack.c.l.b16 %v10204
  %v10294 = vunpack.c.h.b16 %v10204
  %v10295 = vunpack.c.l.b16 %v10205
  %v10296 = vunpack.c.h.b16 %v10205
  %v10297 = vunpack.c.l.b16 %v10206
  %v10298 = vunpack.c.h.b16 %v10206
  %v10299 = vunpack.c.l.b16 %v10207
  %v10300 = vunpack.c.h.b16 %v10207
  %v10301 = vunpack.c.l.b16 %v10208
  %v10302 = vunpack.c.h.b16 %v10208
  %v10303 = vunpack.c.l.b16 %v10209
  %v10304 = vunpack.c.h.b16 %v10209
  %v10305 = vunpack.c.l.b16 %v10210
  %v10306 = vunpack.c.h.b16 %v10210
  %v10307 = vunpack.c.l.b16 %v10211
  %v10308 = vunpack.c.h.b16 %v10211
  %v10309 = vunpack.c.l.b16 %v10212
  %v10310 = vunpack.c.h.b16 %v10212
  %v10311 = vunpack.c.l.b16 %v10213
  %v10312 = vunpack.c.h.b16 %v10213
  %v10313 = vunpack.c.l.b16 %v10214
  %v10314 = vunpack.c.h.b16 %v10214
  %v10315 = vpack.c.b16 %v10255, %v10251
  %v10316 = vpack.c.b16 %v10256, %v10252
  %v10317 = vpack.c.b16 %v10257, %v10253
  %v10318 = vpack.c.b16 %v10258, %v10254
  %v10319 = vpack.c.b16 %v10263, %v10259
  %v10320 = vpack.c.b16 %v10264, %v10260
  %v10321 = vpack.c.b16 %v10265, %v10261
  %v10322 = vpack.c.b16 %v10266, %v10262
  %v10323 = vpack.c.b16 %v10271, %v10267
  %v10324 = vpack.c.b16 %v10272, %v10268
  %v10325 = vpack.c.b16 %v10273, %v10269
  %v10326 = vpack.c.b16 %v10274, %v10270
  %v10327 = vpack.c.b16 %v10279, %v10275
  %v10328 = vpack.c.b16 %v10280, %v10276
  %v10329 = vpack.c.b16 %v10281, %v10277
  %v10330 = vpack.c.b16 %v10282, %v10278
  %v10331 = vpack.c.b16 %v10287, %v10283
  %v10332 = vpack.c.b16 %v10288, %v10284
  %v10333 = vpack.c.b16 %v10289, %v10285
  %v10334 = vpack.c.b16 %v10290, %v10286
  %v10335 = vpack.c.b16 %v10295, %v10291
  %v10336 = vpack.c.b16 %v10296, %v10292
  %v10337 = vpack.c.b16 %v10297, %v10293
  %v10338 = vpack.c.b16 %v10298, %v10294
  %v10339 = vpack.c.b16 %v10303, %v10299
  %v10340 = vpack.c.b16 %v10304, %v10300
  %v10341 = vpack.c.b16 %v10305, %v10301
  %v10342 = vpack.c.b16 %v10306, %v10302
  %v10343 = vpack.c.b16 %v10311, %v10307
  %v10344 = vpack.c.b16 %v10312, %v10308
  %v10345 = vpack.c.b16 %v10313, %v10309
  %v10346 = vpack.c.b16 %v10314, %v10310
  %v10383 = vrot.slane %v10215, 4
  %v10384 = vrot.slane %v10216, 4
  %v10385 = vrot.slane %v10217, 4
  %v10386 = vrot.slane %v10218, 4
  %10391 = vmatpush.bf16.msra.mxu0 %v10343
  %10392 = vmatpush.bf16.msra.mxu0 %v10339
  %10393 = vmatpush.bf16.msra.mxu0 %v10335
  %10394 = vmatpush.bf16.msra.mxu0 %v10331
  %10395 = vmatpush.bf16.msra.mxu0 %v10327
  %10396 = vmatpush.bf16.msra.mxu0 %v10323
  %10397 = vmatpush.bf16.msra.mxu0 %v10319
  %10398 = vmatpush.bf16.msra.mxu0 %v10315
  %10399 = vmatmul.bf16.gmra.mxu0 %v10182
  %v10400 = vpop.f32.mrf.mxu0
  %v10401 = vadd.f32 %v10383, %v10400
  %v10402 = vpop.f32.mrf.mxu0
  %10403 = vdwg.mxu0
  %10404 = vmatpush.bf16.msra.mxu0 %v10344
  %10405 = vmatpush.bf16.msra.mxu0 %v10340
  %10406 = vmatpush.bf16.msra.mxu0 %v10336
  %10407 = vmatpush.bf16.msra.mxu0 %v10332
  %10408 = vmatpush.bf16.msra.mxu0 %v10328
  %10409 = vmatpush.bf16.msra.mxu0 %v10324
  %10410 = vmatpush.bf16.msra.mxu0 %v10320
  %10411 = vmatpush.bf16.msra.mxu0 %v10316
  %10412 = vmatmul.bf16.gmra.mxu0 %v10182
  %v10413 = vpop.f32.mrf.mxu0
  %v10414 = vadd.f32 %v10384, %v10413
  %v10415 = vpop.f32.mrf.mxu0
  %10416 = vdwg.mxu0
  %10417 = vmatpush.bf16.msra.mxu0 %v10345
  %10418 = vmatpush.bf16.msra.mxu0 %v10341
  %10419 = vmatpush.bf16.msra.mxu0 %v10337
  %10420 = vmatpush.bf16.msra.mxu0 %v10333
  %10421 = vmatpush.bf16.msra.mxu0 %v10329
  %10422 = vmatpush.bf16.msra.mxu0 %v10325
  %10423 = vmatpush.bf16.msra.mxu0 %v10321
  %10424 = vmatpush.bf16.msra.mxu0 %v10317
  %10425 = vmatmul.bf16.gmra.mxu0 %v10182
  %v10426 = vpop.f32.mrf.mxu0
  %v10427 = vadd.f32 %v10385, %v10426
  %v10428 = vpop.f32.mrf.mxu0
  %10429 = vdwg.mxu0
  %10430 = vmatpush.bf16.msra.mxu0 %v10346
  %10431 = vmatpush.bf16.msra.mxu0 %v10342
  %10432 = vmatpush.bf16.msra.mxu0 %v10338
  %10433 = vmatpush.bf16.msra.mxu0 %v10334
  %10434 = vmatpush.bf16.msra.mxu0 %v10330
  %10435 = vmatpush.bf16.msra.mxu0 %v10326
  %10436 = vmatpush.bf16.msra.mxu0 %v10322
  %10437 = vmatpush.bf16.msra.mxu0 %v10318
  %10438 = vmatmul.bf16.gmra.mxu0 %v10182
  %v10439 = vpop.f32.mrf.mxu0
  %v10440 = vadd.f32 %v10386, %v10439
  %v10441 = vpop.f32.mrf.mxu0
  %10442 = vdwg.mxu0
  %v10443 = vld [vmem:[#allocation7] sm:$0xff]
  %v10444 = vld [vmem:[#allocation7 + $0x8] sm:$0xff]
  %v10445 = vld [vmem:[#allocation7 + $0x10] sm:$0xff]
  %v10446 = vld [vmem:[#allocation7 + $0x18] sm:$0xff]
  %v10447 = vld [vmem:[#allocation7 + $0x20] sm:$0xff]
  %v10448 = vld [vmem:[#allocation7 + $0x28] sm:$0xff]
  %v10449 = vld [vmem:[#allocation7 + $0x30] sm:$0xff]
  %v10450 = vld [vmem:[#allocation7 + $0x38] sm:$0xff]
  %v10451 = vld [vmem:[#allocation7 + $0x40] sm:$0xff]
  %v10452 = vld [vmem:[#allocation7 + $0x48] sm:$0xff]
  %v10453 = vld [vmem:[#allocation7 + $0x50] sm:$0xff]
  %v10454 = vld [vmem:[#allocation7 + $0x58] sm:$0xff]
  %v10455 = vld [vmem:[#allocation7 + $0x60] sm:$0xff]
  %v10456 = vld [vmem:[#allocation7 + $0x68] sm:$0xff]
  %v10457 = vld [vmem:[#allocation7 + $0x70] sm:$0xff]
  %v10458 = vld [vmem:[#allocation7 + $0x78] sm:$0xff]
  %v10459 = vld [vmem:[#allocation7 + $0x80] sm:$0xff]
  %v10460 = vld [vmem:[#allocation7 + $0x88] sm:$0xff]
  %v10461 = vld [vmem:[#allocation7 + $0x90] sm:$0xff]
  %v10462 = vld [vmem:[#allocation7 + $0x98] sm:$0xff]
  %v10463 = vld [vmem:[#allocation7 + $0xa0] sm:$0xff]
  %v10464 = vld [vmem:[#allocation7 + $0xa8] sm:$0xff]
  %v10465 = vld [vmem:[#allocation7 + $0xb0] sm:$0xff]
  %v10466 = vld [vmem:[#allocation7 + $0xb8] sm:$0xff]
  %v10467 = vld [vmem:[#allocation7 + $0xc0] sm:$0xff]
  %v10468 = vld [vmem:[#allocation7 + $0xc8] sm:$0xff]
  %v10469 = vld [vmem:[#allocation7 + $0xd0] sm:$0xff]
  %v10470 = vld [vmem:[#allocation7 + $0xd8] sm:$0xff]
  %v10471 = vld [vmem:[#allocation7 + $0xe0] sm:$0xff]
  %v10472 = vld [vmem:[#allocation7 + $0xe8] sm:$0xff]
  %v10473 = vld [vmem:[#allocation7 + $0xf0] sm:$0xff]
  %v10474 = vld [vmem:[#allocation7 + $0xf8] sm:$0xff]
  %v10475 = vld [vmem:[#allocation4 + $0x20] sm:$0xc]
  %v10476 = vld [vmem:[#allocation4 + $0x28] sm:$0xc]
  %v10477 = vld [vmem:[#allocation4 + $0x30] sm:$0xc]
  %v10478 = vld [vmem:[#allocation4 + $0x38] sm:$0xc]
  %v10480 = vrot.slane %v10182, 1
  %v10514 = vunpack.c.l.b16 %v10443
  %v10515 = vunpack.c.h.b16 %v10443
  %v10516 = vunpack.c.l.b16 %v10444
  %v10517 = vunpack.c.h.b16 %v10444
  %v10518 = vunpack.c.l.b16 %v10445
  %v10519 = vunpack.c.h.b16 %v10445
  %v10520 = vunpack.c.l.b16 %v10446
  %v10521 = vunpack.c.h.b16 %v10446
  %v10522 = vunpack.c.l.b16 %v10447
  %v10523 = vunpack.c.h.b16 %v10447
  %v10524 = vunpack.c.l.b16 %v10448
  %v10525 = vunpack.c.h.b16 %v10448
  %v10526 = vunpack.c.l.b16 %v10449
  %v10527 = vunpack.c.h.b16 %v10449
  %v10528 = vunpack.c.l.b16 %v10450
  %v10529 = vunpack.c.h.b16 %v10450
  %v10530 = vunpack.c.l.b16 %v10451
  %v10531 = vunpack.c.h.b16 %v10451
  %v10532 = vunpack.c.l.b16 %v10452
  %v10533 = vunpack.c.h.b16 %v10452
  %v10534 = vunpack.c.l.b16 %v10453
  %v10535 = vunpack.c.h.b16 %v10453
  %v10536 = vunpack.c.l.b16 %v10454
  %v10537 = vunpack.c.h.b16 %v10454
  %v10538 = vunpack.c.l.b16 %v10455
  %v10539 = vunpack.c.h.b16 %v10455
  %v10540 = vunpack.c.l.b16 %v10456
  %v10541 = vunpack.c.h.b16 %v10456
  %v10542 = vunpack.c.l.b16 %v10457
  %v10543 = vunpack.c.h.b16 %v10457
  %v10544 = vunpack.c.l.b16 %v10458
  %v10545 = vunpack.c.h.b16 %v10458
  %v10546 = vunpack.c.l.b16 %v10459
  %v10547 = vunpack.c.h.b16 %v10459
  %v10548 = vunpack.c.l.b16 %v10460
  %v10549 = vunpack.c.h.b16 %v10460
  %v10550 = vunpack.c.l.b16 %v10461
  %v10551 = vunpack.c.h.b16 %v10461
  %v10552 = vunpack.c.l.b16 %v10462
  %v10553 = vunpack.c.h.b16 %v10462
  %v10554 = vunpack.c.l.b16 %v10463
  %v10555 = vunpack.c.h.b16 %v10463
  %v10556 = vunpack.c.l.b16 %v10464
  %v10557 = vunpack.c.h.b16 %v10464
  %v10558 = vunpack.c.l.b16 %v10465
  %v10559 = vunpack.c.h.b16 %v10465
  %v10560 = vunpack.c.l.b16 %v10466
  %v10561 = vunpack.c.h.b16 %v10466
  %v10562 = vunpack.c.l.b16 %v10467
  %v10563 = vunpack.c.h.b16 %v10467
  %v10564 = vunpack.c.l.b16 %v10468
  %v10565 = vunpack.c.h.b16 %v10468
  %v10566 = vunpack.c.l.b16 %v10469
  %v10567 = vunpack.c.h.b16 %v10469
  %v10568 = vunpack.c.l.b16 %v10470
  %v10569 = vunpack.c.h.b16 %v10470
  %v10570 = vunpack.c.l.b16 %v10471
  %v10571 = vunpack.c.h.b16 %v10471
  %v10572 = vunpack.c.l.b16 %v10472
  %v10573 = vunpack.c.h.b16 %v10472
  %v10574 = vunpack.c.l.b16 %v10473
  %v10575 = vunpack.c.h.b16 %v10473
  %v10576 = vunpack.c.l.b16 %v10474
  %v10577 = vunpack.c.h.b16 %v10474
  %v10578 = vpack.c.b16 %v10518, %v10514
  %v10579 = vpack.c.b16 %v10519, %v10515
  %v10580 = vpack.c.b16 %v10520, %v10516
  %v10581 = vpack.c.b16 %v10521, %v10517
  %v10582 = vpack.c.b16 %v10526, %v10522
  %v10583 = vpack.c.b16 %v10527, %v10523
  %v10584 = vpack.c.b16 %v10528, %v10524
  %v10585 = vpack.c.b16 %v10529, %v10525
  %v10586 = vpack.c.b16 %v10534, %v10530
  %v10587 = vpack.c.b16 %v10535, %v10531
  %v10588 = vpack.c.b16 %v10536, %v10532
  %v10589 = vpack.c.b16 %v10537, %v10533
  %v10590 = vpack.c.b16 %v10542, %v10538
  %v10591 = vpack.c.b16 %v10543, %v10539
  %v10592 = vpack.c.b16 %v10544, %v10540
  %v10593 = vpack.c.b16 %v10545, %v10541
  %v10594 = vpack.c.b16 %v10550, %v10546
  %v10595 = vpack.c.b16 %v10551, %v10547
  %v10596 = vpack.c.b16 %v10552, %v10548
  %v10597 = vpack.c.b16 %v10553, %v10549
  %v10598 = vpack.c.b16 %v10558, %v10554
  %v10599 = vpack.c.b16 %v10559, %v10555
  %v10600 = vpack.c.b16 %v10560, %v10556
  %v10601 = vpack.c.b16 %v10561, %v10557
  %v10602 = vpack.c.b16 %v10566, %v10562
  %v10603 = vpack.c.b16 %v10567, %v10563
  %v10604 = vpack.c.b16 %v10568, %v10564
  %v10605 = vpack.c.b16 %v10569, %v10565
  %v10606 = vpack.c.b16 %v10574, %v10570
  %v10607 = vpack.c.b16 %v10575, %v10571
  %v10608 = vpack.c.b16 %v10576, %v10572
  %v10609 = vpack.c.b16 %v10577, %v10573
  %v10646 = vrot.slane %v10475, 2
  %v10647 = vrot.slane %v10476, 2
  %v10648 = vrot.slane %v10477, 2
  %v10649 = vrot.slane %v10478, 2
  %10654 = vmatpush.bf16.msra.mxu0 %v10606
  %10655 = vmatpush.bf16.msra.mxu0 %v10602
  %10656 = vmatpush.bf16.msra.mxu0 %v10598
  %10657 = vmatpush.bf16.msra.mxu0 %v10594
  %10658 = vmatpush.bf16.msra.mxu0 %v10590
  %10659 = vmatpush.bf16.msra.mxu0 %v10586
  %10660 = vmatpush.bf16.msra.mxu0 %v10582
  %10661 = vmatpush.bf16.msra.mxu0 %v10578
  %10662 = vmatmul.bf16.gmra.mxu0 %v10480
  %v10663 = vpop.f32.mrf.mxu0
  %v10664 = vadd.f32 %v10646, %v10663
  %v10665 = vpop.f32.mrf.mxu0
  %10666 = vdwg.mxu0
  %10667 = vmatpush.bf16.msra.mxu0 %v10607
  %10668 = vmatpush.bf16.msra.mxu0 %v10603
  %10669 = vmatpush.bf16.msra.mxu0 %v10599
  %10670 = vmatpush.bf16.msra.mxu0 %v10595
  %10671 = vmatpush.bf16.msra.mxu0 %v10591
  %10672 = vmatpush.bf16.msra.mxu0 %v10587
  %10673 = vmatpush.bf16.msra.mxu0 %v10583
  %10674 = vmatpush.bf16.msra.mxu0 %v10579
  %10675 = vmatmul.bf16.gmra.mxu0 %v10480
  %v10676 = vpop.f32.mrf.mxu0
  %v10677 = vadd.f32 %v10647, %v10676
  %v10678 = vpop.f32.mrf.mxu0
  %10679 = vdwg.mxu0
  %10680 = vmatpush.bf16.msra.mxu0 %v10608
  %10681 = vmatpush.bf16.msra.mxu0 %v10604
  %10682 = vmatpush.bf16.msra.mxu0 %v10600
  %10683 = vmatpush.bf16.msra.mxu0 %v10596
  %10684 = vmatpush.bf16.msra.mxu0 %v10592
  %10685 = vmatpush.bf16.msra.mxu0 %v10588
  %10686 = vmatpush.bf16.msra.mxu0 %v10584
  %10687 = vmatpush.bf16.msra.mxu0 %v10580
  %10688 = vmatmul.bf16.gmra.mxu0 %v10480
  %v10689 = vpop.f32.mrf.mxu0
  %v10690 = vadd.f32 %v10648, %v10689
  %v10691 = vpop.f32.mrf.mxu0
  %10692 = vdwg.mxu0
  %10693 = vmatpush.bf16.msra.mxu0 %v10609
  %10694 = vmatpush.bf16.msra.mxu0 %v10605
  %10695 = vmatpush.bf16.msra.mxu0 %v10601
  %10696 = vmatpush.bf16.msra.mxu0 %v10597
  %10697 = vmatpush.bf16.msra.mxu0 %v10593
  %10698 = vmatpush.bf16.msra.mxu0 %v10589
  %10699 = vmatpush.bf16.msra.mxu0 %v10585
  %10700 = vmatpush.bf16.msra.mxu0 %v10581
  %10701 = vmatmul.bf16.gmra.mxu0 %v10480
  %v10702 = vpop.f32.mrf.mxu0
  %v10703 = vadd.f32 %v10649, %v10702
  %v10704 = vpop.f32.mrf.mxu0
  %10705 = vdwg.mxu0
  %v10710 = vrot.slane %v10664, 6
  %v10711 = vrot.slane %v10677, 6
  %v10712 = vrot.slane %v10690, 6
  %v10713 = vrot.slane %v10703, 6
  %v10718 = vsel %vm1239, %v10401, %v10710
  %v10719 = vsel %vm1239, %v10414, %v10711
  %v10720 = vsel %vm1239, %v10427, %v10712
  %v10721 = vsel %vm1239, %v10440, %v10713
  %v10722 = vxor.u32 %v10718, 2147483648
  %v10723 = vmul.f32 %v10722, 1.442695
  %v10724 = vpow.pop %v10723
  %v10725 = vadd.f32 %v10724, 1.0
  %v10726 = vrcp.pop %v10725
  %v10727 = vmul.f32 %v10725, %v10726
  %v10728 = vsub.f32 1.0, %v10727
  %v10729 = vmul.f32 %v10726, %v10728
  %v10730 = vadd.f32 %v10726, %v10729
  %vm10731 = vweird.f32 %v10725
  %vm10732 = vweird.f32 %v10726
  %vm10733 = vmor %vm10731, %vm10732
  %v10734 = vsel %vm10733, %v10726, %v10730
  %v10735 = vand.u32 2147483647, %v10725
  %vm10736 = vcmp.eq.f32.partialorder %v10735, 8.507059e+37
  %v10737 = vand.u32 %v10725, 2147483648
  %v10738 = vor.u32 1.1754944e-38, %v10737
  %v10739 = vsel %vm10736, %v10738, %v10734
  %v10740 = vmul.f32 1.0, %v10739
  %v10741 = vxor.u32 %v10719, 2147483648
  %v10742 = vmul.f32 %v10741, 1.442695
  %v10743 = vpow.pop %v10742
  %v10744 = vadd.f32 %v10743, 1.0
  %v10745 = vrcp.pop %v10744
  %v10746 = vmul.f32 %v10744, %v10745
  %v10747 = vsub.f32 1.0, %v10746
  %v10748 = vmul.f32 %v10745, %v10747
  %v10749 = vadd.f32 %v10745, %v10748
  %vm10750 = vweird.f32 %v10744
  %vm10751 = vweird.f32 %v10745
  %vm10752 = vmor %vm10750, %vm10751
  %v10753 = vsel %vm10752, %v10745, %v10749
  %v10754 = vand.u32 2147483647, %v10744
  %vm10755 = vcmp.eq.f32.partialorder %v10754, 8.507059e+37
  %v10756 = vand.u32 %v10744, 2147483648
  %v10757 = vor.u32 1.1754944e-38, %v10756
  %v10758 = vsel %vm10755, %v10757, %v10753
  %v10759 = vmul.f32 1.0, %v10758
  %v10760 = vtanh.pop %v10720
  %v10761 = vxor.u32 %v10721, 2147483648
  %v10762 = vmul.f32 %v10761, 1.442695
  %v10763 = vpow.pop %v10762
  %v10764 = vadd.f32 %v10763, 1.0
  %v10765 = vrcp.pop %v10764
  %v10766 = vmul.f32 %v10764, %v10765
  %v10767 = vsub.f32 1.0, %v10766
  %v10768 = vmul.f32 %v10765, %v10767
  %v10769 = vadd.f32 %v10765, %v10768
  %vm10770 = vweird.f32 %v10764
  %vm10771 = vweird.f32 %v10765
  %vm10772 = vmor %vm10770, %vm10771
  %v10773 = vsel %vm10772, %v10765, %v10769
  %v10774 = vand.u32 2147483647, %v10764
  %vm10775 = vcmp.eq.f32.partialorder %v10774, 8.507059e+37
  %v10776 = vand.u32 %v10764, 2147483648
  %v10777 = vor.u32 1.1754944e-38, %v10776
  %v10778 = vsel %vm10775, %v10777, %v10773
  %v10779 = vmul.f32 1.0, %v10778
  %v10780 = vmul.f32 %v10759, %v10174
  %v10781 = vmul.f32 %v10740, %v10760
  %v10782 = vadd.f32 %v10780, %v10781
  %v10783 = vtanh.pop %v10782
  %v10784 = vmul.f32 %v10779, %v10783
  %v10786 = vrot.slane %v10784, 4
  %10788 = vst [vmem:[#allocation3 + $0x10] sm:$0x30] %v10786
  %10789 = vst [vmem:[#allocation3 + $0x8] sm:$0xc] %v10784
  %v10790 = vpack.c.bf16 %v10784, %v10784
  %v10791 = vld [vmem:[#allocation6] sm:$0xff]
  %v10792 = vld [vmem:[#allocation6 + $0x8] sm:$0xff]
  %v10793 = vld [vmem:[#allocation6 + $0x10] sm:$0xff]
  %v10794 = vld [vmem:[#allocation6 + $0x18] sm:$0xff]
  %v10795 = vld [vmem:[#allocation6 + $0x20] sm:$0xff]
  %v10796 = vld [vmem:[#allocation6 + $0x28] sm:$0xff]
  %v10797 = vld [vmem:[#allocation6 + $0x30] sm:$0xff]
  %v10798 = vld [vmem:[#allocation6 + $0x38] sm:$0xff]
  %v10799 = vld [vmem:[#allocation6 + $0x40] sm:$0xff]
  %v10800 = vld [vmem:[#allocation6 + $0x48] sm:$0xff]
  %v10801 = vld [vmem:[#allocation6 + $0x50] sm:$0xff]
  %v10802 = vld [vmem:[#allocation6 + $0x58] sm:$0xff]
  %v10803 = vld [vmem:[#allocation6 + $0x60] sm:$0xff]
  %v10804 = vld [vmem:[#allocation6 + $0x68] sm:$0xff]
  %v10805 = vld [vmem:[#allocation6 + $0x70] sm:$0xff]
  %v10806 = vld [vmem:[#allocation6 + $0x78] sm:$0xff]
  %v10807 = vld [vmem:[#allocation6 + $0x80] sm:$0xff]
  %v10808 = vld [vmem:[#allocation6 + $0x88] sm:$0xff]
  %v10809 = vld [vmem:[#allocation6 + $0x90] sm:$0xff]
  %v10810 = vld [vmem:[#allocation6 + $0x98] sm:$0xff]
  %v10811 = vld [vmem:[#allocation6 + $0xa0] sm:$0xff]
  %v10812 = vld [vmem:[#allocation6 + $0xa8] sm:$0xff]
  %v10813 = vld [vmem:[#allocation6 + $0xb0] sm:$0xff]
  %v10814 = vld [vmem:[#allocation6 + $0xb8] sm:$0xff]
  %v10815 = vld [vmem:[#allocation6 + $0xc0] sm:$0xff]
  %v10816 = vld [vmem:[#allocation6 + $0xc8] sm:$0xff]
  %v10817 = vld [vmem:[#allocation6 + $0xd0] sm:$0xff]
  %v10818 = vld [vmem:[#allocation6 + $0xd8] sm:$0xff]
  %v10819 = vld [vmem:[#allocation6 + $0xe0] sm:$0xff]
  %v10820 = vld [vmem:[#allocation6 + $0xe8] sm:$0xff]
  %v10821 = vld [vmem:[#allocation6 + $0xf0] sm:$0xff]
  %v10822 = vld [vmem:[#allocation6 + $0xf8] sm:$0xff]
  %v10823 = vld [vmem:[#allocation4 + $0x40] sm:$0xc0]
  %v10824 = vld [vmem:[#allocation4 + $0x48] sm:$0xc0]
  %v10825 = vld [vmem:[#allocation4 + $0x50] sm:$0xc0]
  %v10826 = vld [vmem:[#allocation4 + $0x58] sm:$0xc0]
  %v10859 = vunpack.c.l.b16 %v10791
  %v10860 = vunpack.c.h.b16 %v10791
  %v10861 = vunpack.c.l.b16 %v10792
  %v10862 = vunpack.c.h.b16 %v10792
  %v10863 = vunpack.c.l.b16 %v10793
  %v10864 = vunpack.c.h.b16 %v10793
  %v10865 = vunpack.c.l.b16 %v10794
  %v10866 = vunpack.c.h.b16 %v10794
  %v10867 = vunpack.c.l.b16 %v10795
  %v10868 = vunpack.c.h.b16 %v10795
  %v10869 = vunpack.c.l.b16 %v10796
  %v10870 = vunpack.c.h.b16 %v10796
  %v10871 = vunpack.c.l.b16 %v10797
  %v10872 = vunpack.c.h.b16 %v10797
  %v10873 = vunpack.c.l.b16 %v10798
  %v10874 = vunpack.c.h.b16 %v10798
  %v10875 = vunpack.c.l.b16 %v10799
  %v10876 = vunpack.c.h.b16 %v10799
  %v10877 = vunpack.c.l.b16 %v10800
  %v10878 = vunpack.c.h.b16 %v10800
  %v10879 = vunpack.c.l.b16 %v10801
  %v10880 = vunpack.c.h.b16 %v10801
  %v10881 = vunpack.c.l.b16 %v10802
  %v10882 = vunpack.c.h.b16 %v10802
  %v10883 = vunpack.c.l.b16 %v10803
  %v10884 = vunpack.c.h.b16 %v10803
  %v10885 = vunpack.c.l.b16 %v10804
  %v10886 = vunpack.c.h.b16 %v10804
  %v10887 = vunpack.c.l.b16 %v10805
  %v10888 = vunpack.c.h.b16 %v10805
  %v10889 = vunpack.c.l.b16 %v10806
  %v10890 = vunpack.c.h.b16 %v10806
  %v10891 = vunpack.c.l.b16 %v10807
  %v10892 = vunpack.c.h.b16 %v10807
  %v10893 = vunpack.c.l.b16 %v10808
  %v10894 = vunpack.c.h.b16 %v10808
  %v10895 = vunpack.c.l.b16 %v10809
  %v10896 = vunpack.c.h.b16 %v10809
  %v10897 = vunpack.c.l.b16 %v10810
  %v10898 = vunpack.c.h.b16 %v10810
  %v10899 = vunpack.c.l.b16 %v10811
  %v10900 = vunpack.c.h.b16 %v10811
  %v10901 = vunpack.c.l.b16 %v10812
  %v10902 = vunpack.c.h.b16 %v10812
  %v10903 = vunpack.c.l.b16 %v10813
  %v10904 = vunpack.c.h.b16 %v10813
  %v10905 = vunpack.c.l.b16 %v10814
  %v10906 = vunpack.c.h.b16 %v10814
  %v10907 = vunpack.c.l.b16 %v10815
  %v10908 = vunpack.c.h.b16 %v10815
  %v10909 = vunpack.c.l.b16 %v10816
  %v10910 = vunpack.c.h.b16 %v10816
  %v10911 = vunpack.c.l.b16 %v10817
  %v10912 = vunpack.c.h.b16 %v10817
  %v10913 = vunpack.c.l.b16 %v10818
  %v10914 = vunpack.c.h.b16 %v10818
  %v10915 = vunpack.c.l.b16 %v10819
  %v10916 = vunpack.c.h.b16 %v10819
  %v10917 = vunpack.c.l.b16 %v10820
  %v10918 = vunpack.c.h.b16 %v10820
  %v10919 = vunpack.c.l.b16 %v10821
  %v10920 = vunpack.c.h.b16 %v10821
  %v10921 = vunpack.c.l.b16 %v10822
  %v10922 = vunpack.c.h.b16 %v10822
  %v10923 = vpack.c.b16 %v10863, %v10859
  %v10924 = vpack.c.b16 %v10864, %v10860
  %v10925 = vpack.c.b16 %v10865, %v10861
  %v10926 = vpack.c.b16 %v10866, %v10862
  %v10927 = vpack.c.b16 %v10871, %v10867
  %v10928 = vpack.c.b16 %v10872, %v10868
  %v10929 = vpack.c.b16 %v10873, %v10869
  %v10930 = vpack.c.b16 %v10874, %v10870
  %v10931 = vpack.c.b16 %v10879, %v10875
  %v10932 = vpack.c.b16 %v10880, %v10876
  %v10933 = vpack.c.b16 %v10881, %v10877
  %v10934 = vpack.c.b16 %v10882, %v10878
  %v10935 = vpack.c.b16 %v10887, %v10883
  %v10936 = vpack.c.b16 %v10888, %v10884
  %v10937 = vpack.c.b16 %v10889, %v10885
  %v10938 = vpack.c.b16 %v10890, %v10886
  %v10939 = vpack.c.b16 %v10895, %v10891
  %v10940 = vpack.c.b16 %v10896, %v10892
  %v10941 = vpack.c.b16 %v10897, %v10893
  %v10942 = vpack.c.b16 %v10898, %v10894
  %v10943 = vpack.c.b16 %v10903, %v10899
  %v10944 = vpack.c.b16 %v10904, %v10900
  %v10945 = vpack.c.b16 %v10905, %v10901
  %v10946 = vpack.c.b16 %v10906, %v10902
  %v10947 = vpack.c.b16 %v10911, %v10907
  %v10948 = vpack.c.b16 %v10912, %v10908
  %v10949 = vpack.c.b16 %v10913, %v10909
  %v10950 = vpack.c.b16 %v10914, %v10910
  %v10951 = vpack.c.b16 %v10919, %v10915
  %v10952 = vpack.c.b16 %v10920, %v10916
  %v10953 = vpack.c.b16 %v10921, %v10917
  %v10954 = vpack.c.b16 %v10922, %v10918
  %v10991 = vrot.slane %v10823, 6
  %v10992 = vrot.slane %v10824, 6
  %v10993 = vrot.slane %v10825, 6
  %v10994 = vrot.slane %v10826, 6
  %10999 = vmatpush.bf16.msra.mxu0 %v10951
  %11000 = vmatpush.bf16.msra.mxu0 %v10947
  %11001 = vmatpush.bf16.msra.mxu0 %v10943
  %11002 = vmatpush.bf16.msra.mxu0 %v10939
  %11003 = vmatpush.bf16.msra.mxu0 %v10935
  %11004 = vmatpush.bf16.msra.mxu0 %v10931
  %11005 = vmatpush.bf16.msra.mxu0 %v10927
  %11006 = vmatpush.bf16.msra.mxu0 %v10923
  %11007 = vmatmul.bf16.gmra.mxu0 %v10790
  %v11008 = vpop.f32.mrf.mxu0
  %v11009 = vadd.f32 %v10991, %v11008
  %v11010 = vpop.f32.mrf.mxu0
  %11011 = vdwg.mxu0
  %11012 = vmatpush.bf16.msra.mxu0 %v10952
  %11013 = vmatpush.bf16.msra.mxu0 %v10948
  %11014 = vmatpush.bf16.msra.mxu0 %v10944
  %11015 = vmatpush.bf16.msra.mxu0 %v10940
  %11016 = vmatpush.bf16.msra.mxu0 %v10936
  %11017 = vmatpush.bf16.msra.mxu0 %v10932
  %11018 = vmatpush.bf16.msra.mxu0 %v10928
  %11019 = vmatpush.bf16.msra.mxu0 %v10924
  %11020 = vmatmul.bf16.gmra.mxu0 %v10790
  %v11021 = vpop.f32.mrf.mxu0
  %v11022 = vadd.f32 %v10992, %v11021
  %v11023 = vpop.f32.mrf.mxu0
  %11024 = vdwg.mxu0
  %11025 = vmatpush.bf16.msra.mxu0 %v10953
  %11026 = vmatpush.bf16.msra.mxu0 %v10949
  %11027 = vmatpush.bf16.msra.mxu0 %v10945
  %11028 = vmatpush.bf16.msra.mxu0 %v10941
  %11029 = vmatpush.bf16.msra.mxu0 %v10937
  %11030 = vmatpush.bf16.msra.mxu0 %v10933
  %11031 = vmatpush.bf16.msra.mxu0 %v10929
  %11032 = vmatpush.bf16.msra.mxu0 %v10925
  %11033 = vmatmul.bf16.gmra.mxu0 %v10790
  %v11034 = vpop.f32.mrf.mxu0
  %v11035 = vadd.f32 %v10993, %v11034
  %v11036 = vpop.f32.mrf.mxu0
  %11037 = vdwg.mxu0
  %11038 = vmatpush.bf16.msra.mxu0 %v10954
  %11039 = vmatpush.bf16.msra.mxu0 %v10950
  %11040 = vmatpush.bf16.msra.mxu0 %v10946
  %11041 = vmatpush.bf16.msra.mxu0 %v10942
  %11042 = vmatpush.bf16.msra.mxu0 %v10938
  %11043 = vmatpush.bf16.msra.mxu0 %v10934
  %11044 = vmatpush.bf16.msra.mxu0 %v10930
  %11045 = vmatpush.bf16.msra.mxu0 %v10926
  %11046 = vmatmul.bf16.gmra.mxu0 %v10790
  %v11047 = vpop.f32.mrf.mxu0
  %v11048 = vadd.f32 %v10994, %v11047
  %v11049 = vpop.f32.mrf.mxu0
  %11050 = vdwg.mxu0
  %v11051 = vld [vmem:[#allocation7] sm:$0xff]
  %v11052 = vld [vmem:[#allocation7 + $0x8] sm:$0xff]
  %v11053 = vld [vmem:[#allocation7 + $0x10] sm:$0xff]
  %v11054 = vld [vmem:[#allocation7 + $0x18] sm:$0xff]
  %v11055 = vld [vmem:[#allocation7 + $0x20] sm:$0xff]
  %v11056 = vld [vmem:[#allocation7 + $0x28] sm:$0xff]
  %v11057 = vld [vmem:[#allocation7 + $0x30] sm:$0xff]
  %v11058 = vld [vmem:[#allocation7 + $0x38] sm:$0xff]
  %v11059 = vld [vmem:[#allocation7 + $0x40] sm:$0xff]
  %v11060 = vld [vmem:[#allocation7 + $0x48] sm:$0xff]
  %v11061 = vld [vmem:[#allocation7 + $0x50] sm:$0xff]
  %v11062 = vld [vmem:[#allocation7 + $0x58] sm:$0xff]
  %v11063 = vld [vmem:[#allocation7 + $0x60] sm:$0xff]
  %v11064 = vld [vmem:[#allocation7 + $0x68] sm:$0xff]
  %v11065 = vld [vmem:[#allocation7 + $0x70] sm:$0xff]
  %v11066 = vld [vmem:[#allocation7 + $0x78] sm:$0xff]
  %v11067 = vld [vmem:[#allocation7 + $0x80] sm:$0xff]
  %v11068 = vld [vmem:[#allocation7 + $0x88] sm:$0xff]
  %v11069 = vld [vmem:[#allocation7 + $0x90] sm:$0xff]
  %v11070 = vld [vmem:[#allocation7 + $0x98] sm:$0xff]
  %v11071 = vld [vmem:[#allocation7 + $0xa0] sm:$0xff]
  %v11072 = vld [vmem:[#allocation7 + $0xa8] sm:$0xff]
  %v11073 = vld [vmem:[#allocation7 + $0xb0] sm:$0xff]
  %v11074 = vld [vmem:[#allocation7 + $0xb8] sm:$0xff]
  %v11075 = vld [vmem:[#allocation7 + $0xc0] sm:$0xff]
  %v11076 = vld [vmem:[#allocation7 + $0xc8] sm:$0xff]
  %v11077 = vld [vmem:[#allocation7 + $0xd0] sm:$0xff]
  %v11078 = vld [vmem:[#allocation7 + $0xd8] sm:$0xff]
  %v11079 = vld [vmem:[#allocation7 + $0xe0] sm:$0xff]
  %v11080 = vld [vmem:[#allocation7 + $0xe8] sm:$0xff]
  %v11081 = vld [vmem:[#allocation7 + $0xf0] sm:$0xff]
  %v11082 = vld [vmem:[#allocation7 + $0xf8] sm:$0xff]
  %v11083 = vld [vmem:[#allocation4 + $0x20] sm:$0x3]
  %v11084 = vld [vmem:[#allocation4 + $0x28] sm:$0x3]
  %v11085 = vld [vmem:[#allocation4 + $0x30] sm:$0x3]
  %v11086 = vld [vmem:[#allocation4 + $0x38] sm:$0x3]
  %v11088 = vrot.slane %v10790, 1
  %v11122 = vunpack.c.l.b16 %v11051
  %v11123 = vunpack.c.h.b16 %v11051
  %v11124 = vunpack.c.l.b16 %v11052
  %v11125 = vunpack.c.h.b16 %v11052
  %v11126 = vunpack.c.l.b16 %v11053
  %v11127 = vunpack.c.h.b16 %v11053
  %v11128 = vunpack.c.l.b16 %v11054
  %v11129 = vunpack.c.h.b16 %v11054
  %v11130 = vunpack.c.l.b16 %v11055
  %v11131 = vunpack.c.h.b16 %v11055
  %v11132 = vunpack.c.l.b16 %v11056
  %v11133 = vunpack.c.h.b16 %v11056
  %v11134 = vunpack.c.l.b16 %v11057
  %v11135 = vunpack.c.h.b16 %v11057
  %v11136 = vunpack.c.l.b16 %v11058
  %v11137 = vunpack.c.h.b16 %v11058
  %v11138 = vunpack.c.l.b16 %v11059
  %v11139 = vunpack.c.h.b16 %v11059
  %v11140 = vunpack.c.l.b16 %v11060
  %v11141 = vunpack.c.h.b16 %v11060
  %v11142 = vunpack.c.l.b16 %v11061
  %v11143 = vunpack.c.h.b16 %v11061
  %v11144 = vunpack.c.l.b16 %v11062
  %v11145 = vunpack.c.h.b16 %v11062
  %v11146 = vunpack.c.l.b16 %v11063
  %v11147 = vunpack.c.h.b16 %v11063
  %v11148 = vunpack.c.l.b16 %v11064
  %v11149 = vunpack.c.h.b16 %v11064
  %v11150 = vunpack.c.l.b16 %v11065
  %v11151 = vunpack.c.h.b16 %v11065
  %v11152 = vunpack.c.l.b16 %v11066
  %v11153 = vunpack.c.h.b16 %v11066
  %v11154 = vunpack.c.l.b16 %v11067
  %v11155 = vunpack.c.h.b16 %v11067
  %v11156 = vunpack.c.l.b16 %v11068
  %v11157 = vunpack.c.h.b16 %v11068
  %v11158 = vunpack.c.l.b16 %v11069
  %v11159 = vunpack.c.h.b16 %v11069
  %v11160 = vunpack.c.l.b16 %v11070
  %v11161 = vunpack.c.h.b16 %v11070
  %v11162 = vunpack.c.l.b16 %v11071
  %v11163 = vunpack.c.h.b16 %v11071
  %v11164 = vunpack.c.l.b16 %v11072
  %v11165 = vunpack.c.h.b16 %v11072
  %v11166 = vunpack.c.l.b16 %v11073
  %v11167 = vunpack.c.h.b16 %v11073
  %v11168 = vunpack.c.l.b16 %v11074
  %v11169 = vunpack.c.h.b16 %v11074
  %v11170 = vunpack.c.l.b16 %v11075
  %v11171 = vunpack.c.h.b16 %v11075
  %v11172 = vunpack.c.l.b16 %v11076
  %v11173 = vunpack.c.h.b16 %v11076
  %v11174 = vunpack.c.l.b16 %v11077
  %v11175 = vunpack.c.h.b16 %v11077
  %v11176 = vunpack.c.l.b16 %v11078
  %v11177 = vunpack.c.h.b16 %v11078
  %v11178 = vunpack.c.l.b16 %v11079
  %v11179 = vunpack.c.h.b16 %v11079
  %v11180 = vunpack.c.l.b16 %v11080
  %v11181 = vunpack.c.h.b16 %v11080
  %v11182 = vunpack.c.l.b16 %v11081
  %v11183 = vunpack.c.h.b16 %v11081
  %v11184 = vunpack.c.l.b16 %v11082
  %v11185 = vunpack.c.h.b16 %v11082
  %v11186 = vpack.c.b16 %v11126, %v11122
  %v11187 = vpack.c.b16 %v11127, %v11123
  %v11188 = vpack.c.b16 %v11128, %v11124
  %v11189 = vpack.c.b16 %v11129, %v11125
  %v11190 = vpack.c.b16 %v11134, %v11130
  %v11191 = vpack.c.b16 %v11135, %v11131
  %v11192 = vpack.c.b16 %v11136, %v11132
  %v11193 = vpack.c.b16 %v11137, %v11133
  %v11194 = vpack.c.b16 %v11142, %v11138
  %v11195 = vpack.c.b16 %v11143, %v11139
  %v11196 = vpack.c.b16 %v11144, %v11140
  %v11197 = vpack.c.b16 %v11145, %v11141
  %v11198 = vpack.c.b16 %v11150, %v11146
  %v11199 = vpack.c.b16 %v11151, %v11147
  %v11200 = vpack.c.b16 %v11152, %v11148
  %v11201 = vpack.c.b16 %v11153, %v11149
  %v11202 = vpack.c.b16 %v11158, %v11154
  %v11203 = vpack.c.b16 %v11159, %v11155
  %v11204 = vpack.c.b16 %v11160, %v11156
  %v11205 = vpack.c.b16 %v11161, %v11157
  %v11206 = vpack.c.b16 %v11166, %v11162
  %v11207 = vpack.c.b16 %v11167, %v11163
  %v11208 = vpack.c.b16 %v11168, %v11164
  %v11209 = vpack.c.b16 %v11169, %v11165
  %v11210 = vpack.c.b16 %v11174, %v11170
  %v11211 = vpack.c.b16 %v11175, %v11171
  %v11212 = vpack.c.b16 %v11176, %v11172
  %v11213 = vpack.c.b16 %v11177, %v11173
  %v11214 = vpack.c.b16 %v11182, %v11178
  %v11215 = vpack.c.b16 %v11183, %v11179
  %v11216 = vpack.c.b16 %v11184, %v11180
  %v11217 = vpack.c.b16 %v11185, %v11181
  %11250 = vmatpush.bf16.msra.mxu0 %v11214
  %11251 = vmatpush.bf16.msra.mxu0 %v11210
  %11252 = vmatpush.bf16.msra.mxu0 %v11206
  %11253 = vmatpush.bf16.msra.mxu0 %v11202
  %11254 = vmatpush.bf16.msra.mxu0 %v11198
  %11255 = vmatpush.bf16.msra.mxu0 %v11194
  %11256 = vmatpush.bf16.msra.mxu0 %v11190
  %11257 = vmatpush.bf16.msra.mxu0 %v11186
  %11258 = vmatmul.bf16.gmra.mxu0 %v11088
  %v11259 = vpop.f32.mrf.mxu0
  %v11260 = vadd.f32 %v11083, %v11259
  %v11261 = vpop.f32.mrf.mxu0
  %11262 = vdwg.mxu0
  %11263 = vmatpush.bf16.msra.mxu0 %v11215
  %11264 = vmatpush.bf16.msra.mxu0 %v11211
  %11265 = vmatpush.bf16.msra.mxu0 %v11207
  %11266 = vmatpush.bf16.msra.mxu0 %v11203
  %11267 = vmatpush.bf16.msra.mxu0 %v11199
  %11268 = vmatpush.bf16.msra.mxu0 %v11195
  %11269 = vmatpush.bf16.msra.mxu0 %v11191
  %11270 = vmatpush.bf16.msra.mxu0 %v11187
  %11271 = vmatmul.bf16.gmra.mxu0 %v11088
  %v11272 = vpop.f32.mrf.mxu0
  %v11273 = vadd.f32 %v11084, %v11272
  %v11274 = vpop.f32.mrf.mxu0
  %11275 = vdwg.mxu0
  %11276 = vmatpush.bf16.msra.mxu0 %v11216
  %11277 = vmatpush.bf16.msra.mxu0 %v11212
  %11278 = vmatpush.bf16.msra.mxu0 %v11208
  %11279 = vmatpush.bf16.msra.mxu0 %v11204
  %11280 = vmatpush.bf16.msra.mxu0 %v11200
  %11281 = vmatpush.bf16.msra.mxu0 %v11196
  %11282 = vmatpush.bf16.msra.mxu0 %v11192
  %11283 = vmatpush.bf16.msra.mxu0 %v11188
  %11284 = vmatmul.bf16.gmra.mxu0 %v11088
  %v11285 = vpop.f32.mrf.mxu0
  %v11286 = vadd.f32 %v11085, %v11285
  %v11287 = vpop.f32.mrf.mxu0
  %11288 = vdwg.mxu0
  %11289 = vmatpush.bf16.msra.mxu0 %v11217
  %11290 = vmatpush.bf16.msra.mxu0 %v11213
  %11291 = vmatpush.bf16.msra.mxu0 %v11209
  %11292 = vmatpush.bf16.msra.mxu0 %v11205
  %11293 = vmatpush.bf16.msra.mxu0 %v11201
  %11294 = vmatpush.bf16.msra.mxu0 %v11197
  %11295 = vmatpush.bf16.msra.mxu0 %v11193
  %11296 = vmatpush.bf16.msra.mxu0 %v11189
  %11297 = vmatmul.bf16.gmra.mxu0 %v11088
  %v11298 = vpop.f32.mrf.mxu0
  %v11299 = vadd.f32 %v11086, %v11298
  %v11300 = vpop.f32.mrf.mxu0
  %11301 = vdwg.mxu0
  %v11306 = vrot.slane %v11260, 6
  %v11307 = vrot.slane %v11273, 6
  %v11308 = vrot.slane %v11286, 6
  %v11309 = vrot.slane %v11299, 6
  %v11314 = vsel %vm1239, %v11009, %v11306
  %v11315 = vsel %vm1239, %v11022, %v11307
  %v11316 = vsel %vm1239, %v11035, %v11308
  %v11317 = vsel %vm1239, %v11048, %v11309
  %v11318 = vxor.u32 %v11314, 2147483648
  %v11319 = vmul.f32 %v11318, 1.442695
  %v11320 = vpow.pop %v11319
  %v11321 = vadd.f32 %v11320, 1.0
  %v11322 = vrcp.pop %v11321
  %v11323 = vmul.f32 %v11321, %v11322
  %v11324 = vsub.f32 1.0, %v11323
  %v11325 = vmul.f32 %v11322, %v11324
  %v11326 = vadd.f32 %v11322, %v11325
  %vm11327 = vweird.f32 %v11321
  %vm11328 = vweird.f32 %v11322
  %vm11329 = vmor %vm11327, %vm11328
  %v11330 = vsel %vm11329, %v11322, %v11326
  %v11331 = vand.u32 2147483647, %v11321
  %vm11332 = vcmp.eq.f32.partialorder %v11331, 8.507059e+37
  %v11333 = vand.u32 %v11321, 2147483648
  %v11334 = vor.u32 1.1754944e-38, %v11333
  %v11335 = vsel %vm11332, %v11334, %v11330
  %v11336 = vmul.f32 1.0, %v11335
  %v11337 = vxor.u32 %v11315, 2147483648
  %v11338 = vmul.f32 %v11337, 1.442695
  %v11339 = vpow.pop %v11338
  %v11340 = vadd.f32 %v11339, 1.0
  %v11341 = vrcp.pop %v11340
  %v11342 = vmul.f32 %v11340, %v11341
  %v11343 = vsub.f32 1.0, %v11342
  %v11344 = vmul.f32 %v11341, %v11343
  %v11345 = vadd.f32 %v11341, %v11344
  %vm11346 = vweird.f32 %v11340
  %vm11347 = vweird.f32 %v11341
  %vm11348 = vmor %vm11346, %vm11347
  %v11349 = vsel %vm11348, %v11341, %v11345
  %v11350 = vand.u32 2147483647, %v11340
  %vm11351 = vcmp.eq.f32.partialorder %v11350, 8.507059e+37
  %v11352 = vand.u32 %v11340, 2147483648
  %v11353 = vor.u32 1.1754944e-38, %v11352
  %v11354 = vsel %vm11351, %v11353, %v11349
  %v11355 = vmul.f32 1.0, %v11354
  %v11356 = vtanh.pop %v11316
  %v11357 = vxor.u32 %v11317, 2147483648
  %v11358 = vmul.f32 %v11357, 1.442695
  %v11359 = vpow.pop %v11358
  %v11360 = vadd.f32 %v11359, 1.0
  %v11361 = vrcp.pop %v11360
  %v11362 = vmul.f32 %v11360, %v11361
  %v11363 = vsub.f32 1.0, %v11362
  %v11364 = vmul.f32 %v11361, %v11363
  %v11365 = vadd.f32 %v11361, %v11364
  %vm11366 = vweird.f32 %v11360
  %vm11367 = vweird.f32 %v11361
  %vm11368 = vmor %vm11366, %vm11367
  %v11369 = vsel %vm11368, %v11361, %v11365
  %v11370 = vand.u32 2147483647, %v11360
  %vm11371 = vcmp.eq.f32.partialorder %v11370, 8.507059e+37
  %v11372 = vand.u32 %v11360, 2147483648
  %v11373 = vor.u32 1.1754944e-38, %v11372
  %v11374 = vsel %vm11371, %v11373, %v11369
  %v11375 = vmul.f32 1.0, %v11374
  %v11376 = vmul.f32 %v11355, %v10782
  %v11377 = vmul.f32 %v11336, %v11356
  %v11378 = vadd.f32 %v11376, %v11377
  %v11379 = vtanh.pop %v11378
  %v11380 = vmul.f32 %v11375, %v11379
  %v11382 = vrot.slane %v11380, 2
  %11384 = vst [vmem:[#allocation3 + $0x10] sm:$0xc0] %v11382
  %11385 = vst [vmem:[#allocation3 + $0x8] sm:$0x3] %v11382
  %s11386 = smul.u32 %s5532, 1
  %s11387 = sshll.u32 %s11386, 4
  %11388 = dma.done %s465, %s11387
  %v11389 = vld [vmem:[#allocation3] sm:$0xff]
  %v11390 = vld [vmem:[#allocation3 + $0x8] sm:$0xff]
  %v11391 = vld [vmem:[#allocation3 + $0x10] sm:$0xff]
  %v11392 = vld [vmem:[#allocation3 + $0x18] sm:$0xff]
  %v11393 = vpack.c.bf16 %v11391, %v11389
  %v11394 = vpack.c.bf16 %v11392, %v11390
  %v11395 = vld [vmem:[#allocation8] sm:$0xf]
  %v11396 = vld [vmem:[#allocation8 + $0x4] sm:$0xf]
  %v11397 = vld [vmem:[#allocation8 + $0x8] sm:$0xf]
  %v11398 = vld [vmem:[#allocation8 + $0xc] sm:$0xf]
  %v11399 = vld [vmem:[#allocation8 + $0x10] sm:$0xf]
  %v11400 = vld [vmem:[#allocation8 + $0x14] sm:$0xf]
  %v11401 = vld [vmem:[#allocation8 + $0x18] sm:$0xf]
  %v11402 = vld [vmem:[#allocation8 + $0x1c] sm:$0xf]
  %v11403 = vld [vmem:[#allocation8 + $0x20] sm:$0xf]
  %v11404 = vld [vmem:[#allocation8 + $0x24] sm:$0xf]
  %v11405 = vld [vmem:[#allocation8 + $0x28] sm:$0xf]
  %v11406 = vld [vmem:[#allocation8 + $0x2c] sm:$0xf]
  %v11407 = vld [vmem:[#allocation8 + $0x30] sm:$0xf]
  %v11408 = vld [vmem:[#allocation8 + $0x34] sm:$0xf]
  %v11409 = vld [vmem:[#allocation8 + $0x38] sm:$0xf]
  %v11410 = vld [vmem:[#allocation8 + $0x3c] sm:$0xf]
  %v11411 = vld [vmem:[#allocation8 + $0x40] sm:$0xf]
  %v11412 = vld [vmem:[#allocation8 + $0x44] sm:$0xf]
  %v11413 = vld [vmem:[#allocation8 + $0x48] sm:$0xf]
  %v11414 = vld [vmem:[#allocation8 + $0x4c] sm:$0xf]
  %v11415 = vld [vmem:[#allocation8 + $0x50] sm:$0xf]
  %v11416 = vld [vmem:[#allocation8 + $0x54] sm:$0xf]
  %v11417 = vld [vmem:[#allocation8 + $0x58] sm:$0xf]
  %v11418 = vld [vmem:[#allocation8 + $0x5c] sm:$0xf]
  %v11419 = vld [vmem:[#allocation8 + $0x60] sm:$0xf]
  %v11420 = vld [vmem:[#allocation8 + $0x64] sm:$0xf]
  %v11421 = vld [vmem:[#allocation8 + $0x68] sm:$0xf]
  %v11422 = vld [vmem:[#allocation8 + $0x6c] sm:$0xf]
  %v11423 = vld [vmem:[#allocation8 + $0x70] sm:$0xf]
  %v11424 = vld [vmem:[#allocation8 + $0x74] sm:$0xf]
  %v11425 = vld [vmem:[#allocation8 + $0x78] sm:$0xf]
  %v11426 = vld [vmem:[#allocation8 + $0x7c] sm:$0xf]
  %v11427 = vld [vmem:[%s10] sm:$0x1]
  %v11429 = vperm.slane %v11427, 0
  %v11463 = vunpack.c.l.b16 %v11395
  %v11464 = vunpack.c.l.b16 %v11396
  %v11465 = vunpack.c.l.b16 %v11397
  %v11466 = vunpack.c.l.b16 %v11398
  %v11467 = vunpack.c.l.b16 %v11399
  %v11468 = vunpack.c.l.b16 %v11400
  %v11469 = vunpack.c.l.b16 %v11401
  %v11470 = vunpack.c.l.b16 %v11402
  %v11471 = vunpack.c.l.b16 %v11403
  %v11472 = vunpack.c.l.b16 %v11404
  %v11473 = vunpack.c.l.b16 %v11405
  %v11474 = vunpack.c.l.b16 %v11406
  %v11475 = vunpack.c.l.b16 %v11407
  %v11476 = vunpack.c.l.b16 %v11408
  %v11477 = vunpack.c.l.b16 %v11409
  %v11478 = vunpack.c.l.b16 %v11410
  %v11479 = vunpack.c.l.b16 %v11411
  %v11480 = vunpack.c.l.b16 %v11412
  %v11481 = vunpack.c.l.b16 %v11413
  %v11482 = vunpack.c.l.b16 %v11414
  %v11483 = vunpack.c.l.b16 %v11415
  %v11484 = vunpack.c.l.b16 %v11416
  %v11485 = vunpack.c.l.b16 %v11417
  %v11486 = vunpack.c.l.b16 %v11418
  %v11487 = vunpack.c.l.b16 %v11419
  %v11488 = vunpack.c.l.b16 %v11420
  %v11489 = vunpack.c.l.b16 %v11421
  %v11490 = vunpack.c.l.b16 %v11422
  %v11491 = vunpack.c.l.b16 %v11423
  %v11492 = vunpack.c.l.b16 %v11424
  %v11493 = vunpack.c.l.b16 %v11425
  %v11494 = vunpack.c.l.b16 %v11426
  %v11495 = vpack.c.b16 %v11464, %v11463
  %v11496 = vpack.c.b16 %v11466, %v11465
  %v11497 = vpack.c.b16 %v11468, %v11467
  %v11498 = vpack.c.b16 %v11470, %v11469
  %v11499 = vpack.c.b16 %v11472, %v11471
  %v11500 = vpack.c.b16 %v11474, %v11473
  %v11501 = vpack.c.b16 %v11476, %v11475
  %v11502 = vpack.c.b16 %v11478, %v11477
  %v11503 = vpack.c.b16 %v11480, %v11479
  %v11504 = vpack.c.b16 %v11482, %v11481
  %v11505 = vpack.c.b16 %v11484, %v11483
  %v11506 = vpack.c.b16 %v11486, %v11485
  %v11507 = vpack.c.b16 %v11488, %v11487
  %v11508 = vpack.c.b16 %v11490, %v11489
  %v11509 = vpack.c.b16 %v11492, %v11491
  %v11510 = vpack.c.b16 %v11494, %v11493
  %11527 = vmatpush.bf16.msra.mxu0 %v11502
  %11528 = vmatpush.bf16.msra.mxu0 %v11501
  %11529 = vmatpush.bf16.msra.mxu0 %v11500
  %11530 = vmatpush.bf16.msra.mxu0 %v11499
  %11531 = vmatpush.bf16.msra.mxu0 %v11498
  %11532 = vmatpush.bf16.msra.mxu0 %v11497
  %11533 = vmatpush.bf16.msra.mxu0 %v11496
  %11534 = vmatpush.bf16.msra.mxu0 %v11495
  %11535 = vmatmul.bf16.gmra.mxu0 %v11393
  %v11536 = vpop.f32.mrf.mxu0
  %v11537 = vadd.f32 %v11429, %v11536
  %v11538 = vpop.f32.mrf.mxu0
  %v11539 = vadd.f32 %v11429, %v11538
  %11540 = vdwg.mxu0
  %11541 = vmatpush.bf16.msra.mxu0 %v11510
  %11542 = vmatpush.bf16.msra.mxu0 %v11509
  %11543 = vmatpush.bf16.msra.mxu0 %v11508
  %11544 = vmatpush.bf16.msra.mxu0 %v11507
  %11545 = vmatpush.bf16.msra.mxu0 %v11506
  %11546 = vmatpush.bf16.msra.mxu0 %v11505
  %11547 = vmatpush.bf16.msra.mxu0 %v11504
  %11548 = vmatpush.bf16.msra.mxu0 %v11503
  %11549 = vmatmul.bf16.gmra.mxu0 %v11394
  %v11550 = vpop.f32.mrf.mxu0
  %v11551 = vadd.f32 %v11537, %v11550
  %v11552 = vpop.f32.mrf.mxu0
  %v11553 = vadd.f32 %v11539, %v11552
  %11554 = vdwg.mxu0
  %11555 = vst [vmem:[%s11] sm:$0xff] %v11551
  %11556 = vst [vmem:[%s11 + $0x8] sm:$0xff] %v11553
  // Predicated region
  $region106: #{lstm_model_forward.1} parent=0 // pred_check
    _
  $region107: #{lstm_model_forward.1} parent=0 // pred_check_branch
    %11558 = sbr.rel (0) target = $region109
  $region108: #{lstm_model_forward.1} parent=0 // pred_region
    _
  $region109: #{lstm_model_forward.1} parent=0 // pred_fallthru
    _
  // Predicated region
  $region110: #{lstm_model_forward.1} parent=0 // pred_check
    _
  $region111: #{lstm_model_forward.1} parent=0 // pred_check_branch
    %11560 = sbr.rel (0) target = $region113
  $region112: #{lstm_model_forward.1} parent=0 // pred_region
    _
  $region113: #{lstm_model_forward.1} parent=0 // pred_fallthru
    _
  %11561 = vsyncmov [#allocation9]
  %s11562 = vpop.sfrf %11561
  %p11563 = scmp.eq.s32.totalorder %s11562, 0
  %p11564 = pneg %p11563
  %11566 = shalt.err (%p11564)
  %s11567 = scalar_lea.sflag [#allocation9], 1
  %11568 = vsyncmov %s11567
  %s11569 = vpop.sfrf %11568
  %p11570 = scmp.eq.s32.totalorder %s11569, 0
  %p11571 = pneg %p11570
  %11573 = shalt.err (%p11571)
  %s11574 = scalar_lea.sflag [#allocation9], 2
  %11575 = vsyncmov %s11574
  %s11576 = vpop.sfrf %11575
  %p11577 = scmp.eq.s32.totalorder %s11576, 0
  %p11578 = pneg %p11577
  %11580 = shalt.err (%p11578)
  %s11581 = scalar_lea.sflag [#allocation9], 3
  %11582 = vsyncmov %s11581
  %s11583 = vpop.sfrf %11582
  %p11584 = scmp.eq.s32.totalorder %s11583, 0
  %p11585 = pneg %p11584
  %11587 = shalt.err (%p11585)

</llo_original>
